<compile_context>
chip_gen: v5e
topology: v5e:2x2
jax: 0.10.0
libtpu: 0.0.40
codegen_flags: <defaults>
</compile_context>

<pallas_src>
import functools

import jax
import jax.numpy as jnp
from jax.experimental import pallas as pl
from jax.experimental.pallas import tpu as pltpu


# ------------------- setup-time helpers (plain JAX, outside the kernel) -------------------
def _conv1x3(cols, w, b):
    """Conv2d(Cin, Cout, kernel=(1,3), stride=1, pad=(0,1)) along the patch-width axis.

    cols: python list of (N, Cin) width slices; w: (3, Cin, Cout); b: (1, Cout).
    """
    n, cin = cols[0].shape
    zero = jnp.zeros((n, cin), jnp.float32)
    padded = [zero] + list(cols) + [zero]
    out = []
    for i in range(len(cols)):
        acc = b  # (1, Cout) bias, broadcasts to (N, Cout)
        for k in range(3):
            if cin == 1:
                acc = acc + padded[i + k] * w[k]          # (N,1)*(1,Cout)
            else:
                acc = acc + jnp.dot(padded[i + k], w[k])
        out.append(acc)
    return out


def _avgpool1x2(cols, pad):
    """AvgPool2d(kernel=(1,2), stride=(1,2), pad=(0, 1 if pad else 0)),
    count_include_pad=True (PyTorch default)."""
    n, c = cols[0].shape
    if pad:
        zero = jnp.zeros((n, c), jnp.float32)
        cols = [zero] + list(cols) + [zero]
    n_out = (len(cols) - 2) // 2 + 1
    return [(cols[2 * i] + cols[2 * i + 1]) * 0.5 for i in range(n_out)]


def _fold_patch_conv(params, patch_len):
    """Fold the (linear) conv/avg-pool chain into one (patch_len, 16) matrix + (1,16) bias
    by pushing the zero vector and the identity basis through the reference chain."""
    basis = jnp.concatenate(
        [jnp.zeros((1, patch_len), jnp.float32), jnp.eye(patch_len, dtype=jnp.float32)], 0)
    cols = [basis[:, i:i + 1] for i in range(patch_len)]
    cols = _conv1x3(cols, params["cw1"], params["cb1"]); cols = _avgpool1x2(cols, pad=False)
    cols = _conv1x3(cols, params["cw2"], params["cb2"]); cols = _avgpool1x2(cols, pad=True)
    cols = _conv1x3(cols, params["cw3"], params["cb3"]); cols = _avgpool1x2(cols, pad=True)
    cols = _conv1x3(cols, params["cw4"], params["cb4"]); cols = _avgpool1x2(cols, pad=False)
    assert len(cols) == 1, "conv chain expects patch_len == 10"
    feat = cols[0]                              # (patch_len+1, 16)
    bias = feat[0:1]                            # response to all-zero input
    w = feat[1:] - bias                         # (patch_len, 16)
    return w, bias


# ----------------------------------- in-kernel helpers ------------------------------------
def _layernorm(x, gamma, beta, eps=1e-5):
    mu = jnp.mean(x, axis=-1, keepdims=True)
    var = jnp.mean(jnp.square(x - mu), axis=-1, keepdims=True)
    return (x - mu) * jax.lax.rsqrt(var + eps) * gamma + beta


# ---------------------------------------- kernel ------------------------------------------
def attention_kernel(intensity_ref, base_ref, w_in_ref, blk_col_ref, blk_row_ref,
                     w_qkv_ref, b_qkv_ref, w_o_ref, b_o_ref, ln_ref,
                     w1_ref, b1_ref, w2_ref, b2_ref,
                     out_ref, *, n_layers, seq_len):
    bf16, f32 = jnp.bfloat16, jnp.float32

    xi = intensity_ref[...]                                     # (Bt*H, W) f32
    bh, _ = xi.shape
    d = base_ref.shape[-1]
    bt = bh // seq_len

    # intensity_patch_val = intensity.max(dim=-1);  att_mask = patch_val < 1e-5
    patch_val = jnp.max(xi, axis=-1, keepdims=True)             # (Bt*H, 1)
    key_neg = jnp.where(patch_val < 1e-5, -1e9, 0.0)            # additive key-padding bias
    # block-diagonal (per-sequence) + key-padding bias, key-major (K, Q), built in-kernel
    # from two tiny sequence-id vectors (no (Bt*H)^2 DMA input).
    same_seq = jnp.broadcast_to(blk_col_ref[...], (bh, bh)) == blk_row_ref[...]
    mask_bias = jnp.where(same_seq, key_neg, -1e30)             # (Bt*H_k, Bt*H_q)

    # folded PatchConvModule + [patch_feature | embed | patch_val] concat in one shot:
    # lanes 0..15 = conv features, 16..d-2 = embed (in base), lane d-1 = patch_val.
    x = jnp.dot(xi.astype(bf16), w_in_ref[...],
                preferred_element_type=f32) + base_ref[...]     # (Bt*H, d)
    lane = jax.lax.broadcasted_iota(jnp.int32, (1, d), 1)
    x = jnp.where(lane == d - 1, patch_val, x)

    # -------- transformer encoder (post-LN, 1 head, no dropout at inference) --------
    for l in range(n_layers):
        lnl = ln_ref[l]                                          # (4, d) f32
        xb = x.astype(bf16)
        qkv = jnp.dot(xb, w_qkv_ref[l], preferred_element_type=f32) + b_qkv_ref[l]
        q = qkv[:, :d]
        k = qkv[:, d:2 * d]
        v = qkv[:, 2 * d:]
        # 1/sqrt(d) softmax scale is pre-folded into w_q / b_q at setup time.
        # Scores kept key-major (K, Q) so the (Bt*H,1) key bias broadcasts on lanes and
        # the softmax reductions run on the cheap sublane axis.
        # TODO(synk): inspect the Mosaic dump for a large vxpose of `p` before the p.v
        # contraction; if present, flip to query-major scores (q @ k.T) instead.
        sT = jax.lax.dot_general(k.astype(bf16), q.astype(bf16),
                                 (((1,), (1,)), ((), ())),
                                 preferred_element_type=f32)
        sT = sT + mask_bias
        m = jnp.max(sT, axis=0, keepdims=True)
        e = jnp.exp(sT - m)
        p = e * pl.reciprocal(jnp.sum(e, axis=0, keepdims=True), approx=True)
        attn = jax.lax.dot_general(p.astype(bf16), v.astype(bf16),
                                   (((0,), (0,)), ((), ())),
                                   preferred_element_type=f32)   # (Bt*H, d)
        attn = jnp.dot(attn.astype(bf16), w_o_ref[l],
                       preferred_element_type=f32) + b_o_ref[l]
        x = _layernorm(x + attn, lnl[0:1], lnl[1:2])
        ff = jnp.maximum(
            jnp.dot(x.astype(bf16), w1_ref[l], preferred_element_type=f32) + b1_ref[l], 0.0)
        ff = jnp.dot(ff.astype(bf16), w2_ref[l], preferred_element_type=f32) + b2_ref[l]
        x = _layernorm(x + ff, lnl[2:3], lnl[3:4])

    # -------- x.max(dim=1).values over the sequence axis, per sequence --------
    out_ref[...] = jnp.max(x.reshape(bt, seq_len, d), axis=1)    # (Bt, d)


# ------------------------------------ parameter setup -------------------------------------
def init_params(key, *, to_seq_len, embed_len, n_layers, d_ff):
    d_model = 16 + 1 + embed_len
    keys = iter(jax.random.split(key, 64))

    def nrm(shape, scale=0.1):
        return (scale * jax.random.normal(next(keys), shape)).astype(jnp.float32)

    p = {"embed": nrm((to_seq_len, embed_len))}
    for i, (cin, cout) in enumerate([(1, 2), (2, 4), (4, 8), (8, 16)], 1):
        w = nrm((cout, cin, 1, 3))                                  # torch Conv2d layout
        p[f"cw{i}"] = jnp.transpose(w[:, :, 0, :], (2, 1, 0))       # (3, cin, cout)
        p[f"cb{i}"] = nrm((1, cout))
    L, d = n_layers, d_model
    for name in ("wq", "wk", "wv", "wo"):
        p[name] = nrm((L, d, d))
    for name in ("bq", "bk", "bv", "bo", "b2"):
        p[name] = nrm((L, 1, d))
    p["ln1g"] = jnp.ones((L, d), jnp.float32)
    p["ln1b"] = jnp.zeros((L, d), jnp.float32)
    p["ln2g"] = jnp.ones((L, d), jnp.float32)
    p["ln2b"] = jnp.zeros((L, d), jnp.float32)
    p["w1"] = nrm((L, d, d_ff))
    p["b1"] = nrm((L, 1, d_ff))
    p["w2"] = nrm((L, d_ff, d))
    return p, d_model


# ---------------------------------------- wrapper -----------------------------------------
def attention_module(raw_intensity, angle, params, *, patch_len, to_seq_len,
                     n_layers, d_model, batch_tile=32):
    # batch_tile=32 (M=256 rows/step) for v6e/v7x; use batch_tile=16 on v5e (128-wide MXU).
    f32, bf16 = jnp.float32, jnp.bfloat16
    B = raw_intensity.shape[0]
    assert angle.shape[0] == B   # angle only contributes its batch size (as in the reference)
    H, W, d = to_seq_len, patch_len, d_model

    bt = batch_tile
    n_tiles = pl.cdiv(B, bt)
    Bp = n_tiles * bt

    intensity = raw_intensity.reshape(B, H, W).astype(f32)
    if Bp != B:   # pad batch to a multiple of the tile; padded rows are fully key-masked
        intensity = jnp.concatenate([intensity, jnp.zeros((Bp - B, H, W), f32)], axis=0)
    intensity_flat = intensity.reshape(Bp * H, W)

    # fold the linear conv/avg-pool chain into a single (W,16) affine map
    w_patch, b_patch = _fold_patch_conv(params, W)
    conv_c = w_patch.shape[-1]
    embed_len = d - conv_c - 1
    w_in = jnp.zeros((W, d), f32).at[:, :conv_c].set(w_patch).astype(bf16)
    base_row = jnp.zeros((H, d), f32)
    base_row = base_row.at[:, :conv_c].set(jnp.broadcast_to(b_patch, (H, conv_c)))
    base_row = base_row.at[:, conv_c:conv_c + embed_len].set(params["embed"])
    base = jnp.tile(base_row, (bt, 1))                                  # (Bt*H, d)

    # tiny sequence-id vectors (replace the old (bt*H)^2 block-diagonal mask input)
    blk = (jnp.arange(bt * H, dtype=jnp.int32) // H).astype(jnp.int32)
    blk_col = blk.reshape(bt * H, 1)
    blk_row = blk.reshape(1, bt * H)

    # packed encoder weights: bf16 MXU operands, f32 biases / LayerNorm params.
    # The 1/sqrt(d) softmax scale is folded into the query projection.
    scale = 1.0 / (float(d) ** 0.5)
    w_qkv = jnp.concatenate(
        [params["wq"] * scale, params["wk"], params["wv"]], -1).astype(bf16)
    b_qkv = jnp.concatenate([params["bq"] * scale, params["bk"], params["bv"]], -1)
    w_o, b_o = params["wo"].astype(bf16), params["bo"]
    ln = jnp.stack([params["ln1g"], params["ln1b"], params["ln2g"], params["ln2b"]], axis=1)
    w1, b1 = params["w1"].astype(bf16), params["b1"]
    w2, b2 = params["w2"].astype(bf16), params["b2"]

    weight_args = [base, w_in, blk_col, blk_row, w_qkv, b_qkv, w_o, b_o, ln, w1, b1, w2, b2]

    def rep_spec(shape):
        nd = len(shape)
        return pl.BlockSpec(shape, lambda i, _nd=nd: (0,) * _nd)

    in_specs = [pl.BlockSpec((bt * H, W), lambda i: (i, 0))]
    in_specs += [rep_spec(a.shape) for a in weight_args]

    kernel = functools.partial(attention_kernel, n_layers=n_layers, seq_len=H)
    out = pl.pallas_call(
        kernel,
        out_shape=jax.ShapeDtypeStruct((Bp, d), f32),
        grid_spec=pltpu.PrefetchScalarGridSpec(
            num_scalar_prefetch=0,
            grid=(n_tiles,),
            in_specs=in_specs,
            out_specs=pl.BlockSpec((bt, d), lambda i: (i, 0)),
        ),
        compiler_params=pltpu.CompilerParams(dimension_semantics=("parallel",)),
    )(intensity_flat, *weight_args)
    return out[:B]


# ------------------------------------------ main ------------------------------------------
if __name__ == "__main__":
    # small shapes consistent with the module: patch_len=10 (fixed by the conv chain),
    # seq_len=80 -> to_seq_len=8, embed_len=15 -> d_model=32, n_layers=2, d_ff=64.
    patch_len = 10
    to_seq_len = 8
    embed_len = 15
    n_layers = 2
    d_ff = 64
    B = 64                     # two grid tiles at batch_tile=32 -> both v7x TCs get work

    key = jax.random.PRNGKey(0)
    kp, kx, ka = jax.random.split(key, 3)
    params, d_model = init_params(kp, to_seq_len=to_seq_len, embed_len=embed_len,
                                  n_layers=n_layers, d_ff=d_ff)

    raw_intensity = jax.random.uniform(kx, (B, to_seq_len * patch_len), dtype=jnp.float32)
    angle = jax.random.normal(ka, (B, 4), dtype=jnp.float32)   # only batch size is used

    out = attention_module(raw_intensity, angle, params,
                           patch_len=patch_len, to_seq_len=to_seq_len,
                           n_layers=n_layers, d_model=d_model, batch_tile=32)
    out = jax.block_until_ready(out)
    assert out.shape == (B, d_model)
    assert bool(jnp.all(jnp.isfinite(out)))
    print("KERNEL_OK")
</pallas_src>

<mosaic_0001>
module attributes {stable_mosaic.version = 11 : i64} {
  func.func @attention_kernel(%arg0: i32, %arg1: memref<256x10xf32, #tpu.memory_space<vmem>>, %arg2: memref<256x32xf32, #tpu.memory_space<vmem>>, %arg3: memref<10x32xbf16, #tpu.memory_space<vmem>>, %arg4: memref<256x1xi32, #tpu.memory_space<vmem>>, %arg5: memref<1x256xi32, #tpu.memory_space<vmem>>, %arg6: memref<2x32x96xbf16, #tpu.memory_space<vmem>>, %arg7: memref<2x1x96xf32, #tpu.memory_space<vmem>>, %arg8: memref<2x32x32xbf16, #tpu.memory_space<vmem>>, %arg9: memref<2x1x32xf32, #tpu.memory_space<vmem>>, %arg10: memref<2x4x32xf32, #tpu.memory_space<vmem>>, %arg11: memref<2x32x64xbf16, #tpu.memory_space<vmem>>, %arg12: memref<2x1x64xf32, #tpu.memory_space<vmem>>, %arg13: memref<2x64x32xbf16, #tpu.memory_space<vmem>>, %arg14: memref<2x1x32xf32, #tpu.memory_space<vmem>>, %arg15: memref<32x32xf32, #tpu.memory_space<vmem>>) attributes {dimension_semantics = [#tpu.dimension_semantics<parallel>], iteration_bounds = array<i64: 2>, scalar_prefetch = 0 : i64, scratch_operands = 0 : i64, tpu.core_type = #tpu.core_type<tc>, window_params = [{transform_indices = @transform_0, window_bounds = array<i64: 256, 10>}, {pipeline_mode = #tpu.pipeline_mode<synchronous>, transform_indices = @transform_1, window_bounds = array<i64: 256, 32>}, {pipeline_mode = #tpu.pipeline_mode<synchronous>, transform_indices = @transform_2, window_bounds = array<i64: 10, 32>}, {pipeline_mode = #tpu.pipeline_mode<synchronous>, transform_indices = @transform_3, window_bounds = array<i64: 256, 1>}, {pipeline_mode = #tpu.pipeline_mode<synchronous>, transform_indices = @transform_4, window_bounds = array<i64: 1, 256>}, {pipeline_mode = #tpu.pipeline_mode<synchronous>, transform_indices = @transform_5, window_bounds = array<i64: 2, 32, 96>}, {pipeline_mode = #tpu.pipeline_mode<synchronous>, transform_indices = @transform_6, window_bounds = array<i64: 2, 1, 96>}, {pipeline_mode = #tpu.pipeline_mode<synchronous>, transform_indices = @transform_7, window_bounds = array<i64: 2, 32, 32>}, {pipeline_mode = #tpu.pipeline_mode<synchronous>, transform_indices = @transform_8, window_bounds = array<i64: 2, 1, 32>}, {pipeline_mode = #tpu.pipeline_mode<synchronous>, transform_indices = @transform_9, window_bounds = array<i64: 2, 4, 32>}, {pipeline_mode = #tpu.pipeline_mode<synchronous>, transform_indices = @transform_10, window_bounds = array<i64: 2, 32, 64>}, {pipeline_mode = #tpu.pipeline_mode<synchronous>, transform_indices = @transform_11, window_bounds = array<i64: 2, 1, 64>}, {pipeline_mode = #tpu.pipeline_mode<synchronous>, transform_indices = @transform_12, window_bounds = array<i64: 2, 64, 32>}, {pipeline_mode = #tpu.pipeline_mode<synchronous>, transform_indices = @transform_13, window_bounds = array<i64: 2, 1, 32>}, {transform_indices = @transform_14, window_bounds = array<i64: 32, 32>}]} {
    %c0 = arith.constant 0 : index
    %c0_0 = arith.constant 0 : index
    %0 = vector.load %arg1[%c0, %c0_0] : memref<256x10xf32, #tpu.memory_space<vmem>>, vector<256x10xf32>
    %cst = arith.constant dense<0xFF800000> : vector<256xf32>
    %1 = vector.multi_reduction <maximumf>, %0, %cst [1] : vector<256x10xf32> to vector<256xf32>
    %2 = vector.shape_cast %1 : vector<256xf32> to vector<256x1xf32>
    %cst_1 = arith.constant 9.99999974E-6 : f32
    %3 = vector.broadcast %cst_1 : f32 to vector<256x1xf32>
    %4 = arith.cmpf olt, %2, %3 : vector<256x1xf32>
    %cst_2 = arith.constant -1.000000e+09 : f32
    %cst_3 = arith.constant 0.000000e+00 : f32
    %5 = vector.broadcast %cst_2 : f32 to vector<256x1xf32>
    %6 = vector.broadcast %cst_3 : f32 to vector<256x1xf32>
    %7 = arith.select %4, %5, %6 : vector<256x1xi1>, vector<256x1xf32>
    %c0_4 = arith.constant 0 : index
    %c0_5 = arith.constant 0 : index
    %8 = vector.load %arg4[%c0_4, %c0_5] : memref<256x1xi32, #tpu.memory_space<vmem>>, vector<256x1xi32>
    %9 = vector.shape_cast %8 : vector<256x1xi32> to vector<256x1xi32>
    %10 = vector.broadcast %9 : vector<256x1xi32> to vector<256x256xi32>
    %c0_6 = arith.constant 0 : index
    %c0_7 = arith.constant 0 : index
    %11 = vector.load %arg5[%c0_6, %c0_7] : memref<1x256xi32, #tpu.memory_space<vmem>>, vector<1x256xi32>
    %12 = vector.broadcast %11 : vector<1x256xi32> to vector<256x256xi32>
    %13 = arith.cmpi eq, %10, %12 : vector<256x256xi32>
    %cst_8 = arith.constant -1.000000e+30 : f32
    %14 = vector.shape_cast %7 : vector<256x1xf32> to vector<256x1xf32>
    %15 = vector.broadcast %14 : vector<256x1xf32> to vector<256x256xf32>
    %16 = vector.broadcast %cst_8 : f32 to vector<256x256xf32>
    %17 = arith.select %13, %15, %16 : vector<256x256xi1>, vector<256x256xf32>
    %18 = arith.truncf %0 : vector<256x10xf32> to vector<256x10xbf16>
    %c0_9 = arith.constant 0 : index
    %c0_10 = arith.constant 0 : index
    %19 = vector.load %arg3[%c0_9, %c0_10] : memref<10x32xbf16, #tpu.memory_space<vmem>>, vector<10x32xbf16>
    %cst_11 = arith.constant dense<0.000000e+00> : vector<256x32xf32>
    %20 = tpu.matmul %18, %19, %cst_11 {dimension_numbers = #tpu.dot_dimension_numbers<[1], [0], [0], [1], [0, 0, 1, 1], [], []>} : vector<256x10xbf16>, vector<10x32xbf16>, vector<256x32xf32> -> vector<256x32xf32>
    %c0_12 = arith.constant 0 : index
    %c0_13 = arith.constant 0 : index
    %21 = vector.load %arg2[%c0_12, %c0_13] : memref<256x32xf32, #tpu.memory_space<vmem>>, vector<256x32xf32>
    %22 = arith.addf %20, %21 : vector<256x32xf32>
    %23 = tpu.iota {dimensions = array<i32: 1>} : vector<1x32xi32>
    %c31_i32 = arith.constant 31 : i32
    %24 = vector.broadcast %c31_i32 : i32 to vector<1x32xi32>
    %25 = arith.cmpi eq, %23, %24 : vector<1x32xi32>
    %26 = vector.shape_cast %25 : vector<1x32xi1> to vector<1x32xi1>
    %27 = vector.broadcast %26 : vector<1x32xi1> to vector<256x32xi1>
    %28 = vector.shape_cast %2 : vector<256x1xf32> to vector<256x1xf32>
    %29 = vector.broadcast %28 : vector<256x1xf32> to vector<256x32xf32>
    %30 = arith.select %27, %29, %22 : vector<256x32xi1>, vector<256x32xf32>
    %c0_14 = arith.constant 0 : index
    %c0_15 = arith.constant 0 : index
    %c0_16 = arith.constant 0 : index
    %31 = vector.load %arg10[%c0_14, %c0_15, %c0_16] : memref<2x4x32xf32, #tpu.memory_space<vmem>>, vector<1x4x32xf32>
    %32 = vector.shape_cast %31 : vector<1x4x32xf32> to vector<4x32xf32>
    %33 = arith.truncf %30 : vector<256x32xf32> to vector<256x32xbf16>
    %c0_17 = arith.constant 0 : index
    %c0_18 = arith.constant 0 : index
    %c0_19 = arith.constant 0 : index
    %34 = vector.load %arg6[%c0_17, %c0_18, %c0_19] : memref<2x32x96xbf16, #tpu.memory_space<vmem>>, vector<1x32x96xbf16>
    %35 = vector.shape_cast %34 : vector<1x32x96xbf16> to vector<32x96xbf16>
    %cst_20 = arith.constant dense<0.000000e+00> : vector<256x96xf32>
    %36 = tpu.matmul %33, %35, %cst_20 {dimension_numbers = #tpu.dot_dimension_numbers<[1], [0], [0], [1], [0, 0, 1, 1], [], []>} : vector<256x32xbf16>, vector<32x96xbf16>, vector<256x96xf32> -> vector<256x96xf32>
    %c0_21 = arith.constant 0 : index
    %c0_22 = arith.constant 0 : index
    %c0_23 = arith.constant 0 : index
    %37 = vector.load %arg7[%c0_21, %c0_22, %c0_23] : memref<2x1x96xf32, #tpu.memory_space<vmem>>, vector<1x1x96xf32>
    %38 = vector.shape_cast %37 : vector<1x1x96xf32> to vector<1x96xf32>
    %39 = vector.broadcast %38 : vector<1x96xf32> to vector<256x96xf32>
    %40 = arith.addf %36, %39 : vector<256x96xf32>
    %41 = vector.extract_strided_slice %40 {offsets = [0, 0], sizes = [256, 32], strides = [1, 1]} : vector<256x96xf32> to vector<256x32xf32>
    %42 = vector.extract_strided_slice %40 {offsets = [0, 32], sizes = [256, 32], strides = [1, 1]} : vector<256x96xf32> to vector<256x32xf32>
    %43 = vector.extract_strided_slice %40 {offsets = [0, 64], sizes = [256, 32], strides = [1, 1]} : vector<256x96xf32> to vector<256x32xf32>
    %44 = arith.truncf %42 : vector<256x32xf32> to vector<256x32xbf16>
    %45 = arith.truncf %41 : vector<256x32xf32> to vector<256x32xbf16>
    %cst_24 = arith.constant dense<0.000000e+00> : vector<256x256xf32>
    %46 = tpu.matmul %44, %45, %cst_24 {dimension_numbers = #tpu.dot_dimension_numbers<[1], [1], [0], [0], [0, 0, 1, 0], [], []>} : vector<256x32xbf16>, vector<256x32xbf16>, vector<256x256xf32> -> vector<256x256xf32>
    %47 = arith.addf %46, %17 : vector<256x256xf32>
    %cst_25 = arith.constant dense<0xFF800000> : vector<256xf32>
    %48 = vector.multi_reduction <maximumf>, %47, %cst_25 [0] : vector<256x256xf32> to vector<256xf32>
    %49 = vector.shape_cast %48 : vector<256xf32> to vector<1x256xf32>
    %50 = vector.broadcast %49 : vector<1x256xf32> to vector<256x256xf32>
    %51 = arith.subf %47, %50 : vector<256x256xf32>
    %52 = math.exp %51 : vector<256x256xf32>
    %cst_26 = arith.constant dense<0.000000e+00> : vector<256xf32>
    %53 = vector.multi_reduction <add>, %52, %cst_26 [0] : vector<256x256xf32> to vector<256xf32>
    %54 = vector.shape_cast %53 : vector<256xf32> to vector<1x256xf32>
    %55 = tpu.reciprocal %54 {approx = true} : vector<1x256xf32> -> vector<1x256xf32>
    %56 = vector.broadcast %55 : vector<1x256xf32> to vector<256x256xf32>
    %57 = arith.mulf %52, %56 : vector<256x256xf32>
    %58 = arith.truncf %57 : vector<256x256xf32> to vector<256x256xbf16>
    %59 = arith.truncf %43 : vector<256x32xf32> to vector<256x32xbf16>
    %cst_27 = arith.constant dense<0.000000e+00> : vector<256x32xf32>
    %60 = tpu.matmul %58, %59, %cst_27 {dimension_numbers = #tpu.dot_dimension_numbers<[0], [0], [1], [1], [0, 1, 1, 1], [], []>} : vector<256x256xbf16>, vector<256x32xbf16>, vector<256x32xf32> -> vector<256x32xf32>
    %61 = arith.truncf %60 : vector<256x32xf32> to vector<256x32xbf16>
    %c0_28 = arith.constant 0 : index
    %c0_29 = arith.constant 0 : index
    %c0_30 = arith.constant 0 : index
    %62 = vector.load %arg8[%c0_28, %c0_29, %c0_30] : memref<2x32x32xbf16, #tpu.memory_space<vmem>>, vector<1x32x32xbf16>
    %63 = vector.shape_cast %62 : vector<1x32x32xbf16> to vector<32x32xbf16>
    %cst_31 = arith.constant dense<0.000000e+00> : vector<256x32xf32>
    %64 = tpu.matmul %61, %63, %cst_31 {dimension_numbers = #tpu.dot_dimension_numbers<[1], [0], [0], [1], [0, 0, 1, 1], [], []>} : vector<256x32xbf16>, vector<32x32xbf16>, vector<256x32xf32> -> vector<256x32xf32>
    %c0_32 = arith.constant 0 : index
    %c0_33 = arith.constant 0 : index
    %c0_34 = arith.constant 0 : index
    %65 = vector.load %arg9[%c0_32, %c0_33, %c0_34] : memref<2x1x32xf32, #tpu.memory_space<vmem>>, vector<1x1x32xf32>
    %66 = vector.shape_cast %65 : vector<1x1x32xf32> to vector<1x32xf32>
    %67 = vector.broadcast %66 : vector<1x32xf32> to vector<256x32xf32>
    %68 = arith.addf %64, %67 : vector<256x32xf32>
    %69 = arith.addf %30, %68 : vector<256x32xf32>
    %70 = vector.extract_strided_slice %32 {offsets = [0, 0], sizes = [1, 32], strides = [1, 1]} : vector<4x32xf32> to vector<1x32xf32>
    %71 = vector.extract_strided_slice %32 {offsets = [1, 0], sizes = [1, 32], strides = [1, 1]} : vector<4x32xf32> to vector<1x32xf32>
    %cst_35 = arith.constant dense<0.000000e+00> : vector<256xf32>
    %72 = vector.multi_reduction <add>, %69, %cst_35 [1] : vector<256x32xf32> to vector<256xf32>
    %73 = vector.shape_cast %72 : vector<256xf32> to vector<256x1xf32>
    %cst_36 = arith.constant 3.200000e+01 : f32
    %74 = vector.broadcast %cst_36 : f32 to vector<256x1xf32>
    %75 = arith.divf %73, %74 : vector<256x1xf32>
    %76 = vector.broadcast %75 : vector<256x1xf32> to vector<256x32xf32>
    %77 = arith.subf %69, %76 : vector<256x32xf32>
    %78 = arith.mulf %77, %77 : vector<256x32xf32>
    %cst_37 = arith.constant dense<0.000000e+00> : vector<256xf32>
    %79 = vector.multi_reduction <add>, %78, %cst_37 [1] : vector<256x32xf32> to vector<256xf32>
    %80 = vector.shape_cast %79 : vector<256xf32> to vector<256x1xf32>
    %cst_38 = arith.constant 3.200000e+01 : f32
    %81 = vector.broadcast %cst_38 : f32 to vector<256x1xf32>
    %82 = arith.divf %80, %81 : vector<256x1xf32>
    %83 = vector.broadcast %75 : vector<256x1xf32> to vector<256x32xf32>
    %84 = arith.subf %69, %83 : vector<256x32xf32>
    %cst_39 = arith.constant 9.99999974E-6 : f32
    %85 = vector.broadcast %cst_39 : f32 to vector<256x1xf32>
    %86 = arith.addf %82, %85 : vector<256x1xf32>
    %87 = math.rsqrt %86 : vector<256x1xf32>
    %88 = vector.broadcast %87 : vector<256x1xf32> to vector<256x32xf32>
    %89 = arith.mulf %84, %88 : vector<256x32xf32>
    %90 = vector.broadcast %70 : vector<1x32xf32> to vector<256x32xf32>
    %91 = arith.mulf %89, %90 : vector<256x32xf32>
    %92 = vector.broadcast %71 : vector<1x32xf32> to vector<256x32xf32>
    %93 = arith.addf %91, %92 : vector<256x32xf32>
    %94 = arith.truncf %93 : vector<256x32xf32> to vector<256x32xbf16>
    %c0_40 = arith.constant 0 : index
    %c0_41 = arith.constant 0 : index
    %c0_42 = arith.constant 0 : index
    %95 = vector.load %arg11[%c0_40, %c0_41, %c0_42] : memref<2x32x64xbf16, #tpu.memory_space<vmem>>, vector<1x32x64xbf16>
    %96 = vector.shape_cast %95 : vector<1x32x64xbf16> to vector<32x64xbf16>
    %cst_43 = arith.constant dense<0.000000e+00> : vector<256x64xf32>
    %97 = tpu.matmul %94, %96, %cst_43 {dimension_numbers = #tpu.dot_dimension_numbers<[1], [0], [0], [1], [0, 0, 1, 1], [], []>} : vector<256x32xbf16>, vector<32x64xbf16>, vector<256x64xf32> -> vector<256x64xf32>
    %c0_44 = arith.constant 0 : index
    %c0_45 = arith.constant 0 : index
    %c0_46 = arith.constant 0 : index
    %98 = vector.load %arg12[%c0_44, %c0_45, %c0_46] : memref<2x1x64xf32, #tpu.memory_space<vmem>>, vector<1x1x64xf32>
    %99 = vector.shape_cast %98 : vector<1x1x64xf32> to vector<1x64xf32>
    %100 = vector.broadcast %99 : vector<1x64xf32> to vector<256x64xf32>
    %101 = arith.addf %97, %100 : vector<256x64xf32>
    %cst_47 = arith.constant 0.000000e+00 : f32
    %102 = vector.broadcast %cst_47 : f32 to vector<256x64xf32>
    %103 = arith.maximumf %101, %102 : vector<256x64xf32>
    %104 = arith.truncf %103 : vector<256x64xf32> to vector<256x64xbf16>
    %c0_48 = arith.constant 0 : index
    %c0_49 = arith.constant 0 : index
    %c0_50 = arith.constant 0 : index
    %105 = vector.load %arg13[%c0_48, %c0_49, %c0_50] : memref<2x64x32xbf16, #tpu.memory_space<vmem>>, vector<1x64x32xbf16>
    %106 = vector.shape_cast %105 : vector<1x64x32xbf16> to vector<64x32xbf16>
    %cst_51 = arith.constant dense<0.000000e+00> : vector<256x32xf32>
    %107 = tpu.matmul %104, %106, %cst_51 {dimension_numbers = #tpu.dot_dimension_numbers<[1], [0], [0], [1], [0, 0, 1, 1], [], []>} : vector<256x64xbf16>, vector<64x32xbf16>, vector<256x32xf32> -> vector<256x32xf32>
    %c0_52 = arith.constant 0 : index
    %c0_53 = arith.constant 0 : index
    %c0_54 = arith.constant 0 : index
    %108 = vector.load %arg14[%c0_52, %c0_53, %c0_54] : memref<2x1x32xf32, #tpu.memory_space<vmem>>, vector<1x1x32xf32>
    %109 = vector.shape_cast %108 : vector<1x1x32xf32> to vector<1x32xf32>
    %110 = vector.broadcast %109 : vector<1x32xf32> to vector<256x32xf32>
    %111 = arith.addf %107, %110 : vector<256x32xf32>
    %112 = arith.addf %93, %111 : vector<256x32xf32>
    %113 = vector.extract_strided_slice %32 {offsets = [2, 0], sizes = [1, 32], strides = [1, 1]} : vector<4x32xf32> to vector<1x32xf32>
    %114 = vector.extract_strided_slice %32 {offsets = [3, 0], sizes = [1, 32], strides = [1, 1]} : vector<4x32xf32> to vector<1x32xf32>
    %cst_55 = arith.constant dense<0.000000e+00> : vector<256xf32>
    %115 = vector.multi_reduction <add>, %112, %cst_55 [1] : vector<256x32xf32> to vector<256xf32>
    %116 = vector.shape_cast %115 : vector<256xf32> to vector<256x1xf32>
    %cst_56 = arith.constant 3.200000e+01 : f32
    %117 = vector.broadcast %cst_56 : f32 to vector<256x1xf32>
    %118 = arith.divf %116, %117 : vector<256x1xf32>
    %119 = vector.broadcast %118 : vector<256x1xf32> to vector<256x32xf32>
    %120 = arith.subf %112, %119 : vector<256x32xf32>
    %121 = arith.mulf %120, %120 : vector<256x32xf32>
    %cst_57 = arith.constant dense<0.000000e+00> : vector<256xf32>
    %122 = vector.multi_reduction <add>, %121, %cst_57 [1] : vector<256x32xf32> to vector<256xf32>
    %123 = vector.shape_cast %122 : vector<256xf32> to vector<256x1xf32>
    %cst_58 = arith.constant 3.200000e+01 : f32
    %124 = vector.broadcast %cst_58 : f32 to vector<256x1xf32>
    %125 = arith.divf %123, %124 : vector<256x1xf32>
    %126 = vector.broadcast %118 : vector<256x1xf32> to vector<256x32xf32>
    %127 = arith.subf %112, %126 : vector<256x32xf32>
    %cst_59 = arith.constant 9.99999974E-6 : f32
    %128 = vector.broadcast %cst_59 : f32 to vector<256x1xf32>
    %129 = arith.addf %125, %128 : vector<256x1xf32>
    %130 = math.rsqrt %129 : vector<256x1xf32>
    %131 = vector.broadcast %130 : vector<256x1xf32> to vector<256x32xf32>
    %132 = arith.mulf %127, %131 : vector<256x32xf32>
    %133 = vector.broadcast %113 : vector<1x32xf32> to vector<256x32xf32>
    %134 = arith.mulf %132, %133 : vector<256x32xf32>
    %135 = vector.broadcast %114 : vector<1x32xf32> to vector<256x32xf32>
    %136 = arith.addf %134, %135 : vector<256x32xf32>
    %c1 = arith.constant 1 : index
    %c0_60 = arith.constant 0 : index
    %c0_61 = arith.constant 0 : index
    %137 = vector.load %arg10[%c1, %c0_60, %c0_61] : memref<2x4x32xf32, #tpu.memory_space<vmem>>, vector<1x4x32xf32>
    %138 = vector.shape_cast %137 : vector<1x4x32xf32> to vector<4x32xf32>
    %139 = arith.truncf %136 : vector<256x32xf32> to vector<256x32xbf16>
    %c1_62 = arith.constant 1 : index
    %c0_63 = arith.constant 0 : index
    %c0_64 = arith.constant 0 : index
    %140 = vector.load %arg6[%c1_62, %c0_63, %c0_64] : memref<2x32x96xbf16, #tpu.memory_space<vmem>>, vector<1x32x96xbf16>
    %141 = vector.shape_cast %140 : vector<1x32x96xbf16> to vector<32x96xbf16>
    %cst_65 = arith.constant dense<0.000000e+00> : vector<256x96xf32>
    %142 = tpu.matmul %139, %141, %cst_65 {dimension_numbers = #tpu.dot_dimension_numbers<[1], [0], [0], [1], [0, 0, 1, 1], [], []>} : vector<256x32xbf16>, vector<32x96xbf16>, vector<256x96xf32> -> vector<256x96xf32>
    %c1_66 = arith.constant 1 : index
    %c0_67 = arith.constant 0 : index
    %c0_68 = arith.constant 0 : index
    %143 = vector.load %arg7[%c1_66, %c0_67, %c0_68] : memref<2x1x96xf32, #tpu.memory_space<vmem>>, vector<1x1x96xf32>
    %144 = vector.shape_cast %143 : vector<1x1x96xf32> to vector<1x96xf32>
    %145 = vector.broadcast %144 : vector<1x96xf32> to vector<256x96xf32>
    %146 = arith.addf %142, %145 : vector<256x96xf32>
    %147 = vector.extract_strided_slice %146 {offsets = [0, 0], sizes = [256, 32], strides = [1, 1]} : vector<256x96xf32> to vector<256x32xf32>
    %148 = vector.extract_strided_slice %146 {offsets = [0, 32], sizes = [256, 32], strides = [1, 1]} : vector<256x96xf32> to vector<256x32xf32>
    %149 = vector.extract_strided_slice %146 {offsets = [0, 64], sizes = [256, 32], strides = [1, 1]} : vector<256x96xf32> to vector<256x32xf32>
    %150 = arith.truncf %148 : vector<256x32xf32> to vector<256x32xbf16>
    %151 = arith.truncf %147 : vector<256x32xf32> to vector<256x32xbf16>
    %cst_69 = arith.constant dense<0.000000e+00> : vector<256x256xf32>
    %152 = tpu.matmul %150, %151, %cst_69 {dimension_numbers = #tpu.dot_dimension_numbers<[1], [1], [0], [0], [0, 0, 1, 0], [], []>} : vector<256x32xbf16>, vector<256x32xbf16>, vector<256x256xf32> -> vector<256x256xf32>
    %153 = arith.addf %152, %17 : vector<256x256xf32>
    %cst_70 = arith.constant dense<0xFF800000> : vector<256xf32>
    %154 = vector.multi_reduction <maximumf>, %153, %cst_70 [0] : vector<256x256xf32> to vector<256xf32>
    %155 = vector.shape_cast %154 : vector<256xf32> to vector<1x256xf32>
    %156 = vector.broadcast %155 : vector<1x256xf32> to vector<256x256xf32>
    %157 = arith.subf %153, %156 : vector<256x256xf32>
    %158 = math.exp %157 : vector<256x256xf32>
    %cst_71 = arith.constant dense<0.000000e+00> : vector<256xf32>
    %159 = vector.multi_reduction <add>, %158, %cst_71 [0] : vector<256x256xf32> to vector<256xf32>
    %160 = vector.shape_cast %159 : vector<256xf32> to vector<1x256xf32>
    %161 = tpu.reciprocal %160 {approx = true} : vector<1x256xf32> -> vector<1x256xf32>
    %162 = vector.broadcast %161 : vector<1x256xf32> to vector<256x256xf32>
    %163 = arith.mulf %158, %162 : vector<256x256xf32>
    %164 = arith.truncf %163 : vector<256x256xf32> to vector<256x256xbf16>
    %165 = arith.truncf %149 : vector<256x32xf32> to vector<256x32xbf16>
    %cst_72 = arith.constant dense<0.000000e+00> : vector<256x32xf32>
    %166 = tpu.matmul %164, %165, %cst_72 {dimension_numbers = #tpu.dot_dimension_numbers<[0], [0], [1], [1], [0, 1, 1, 1], [], []>} : vector<256x256xbf16>, vector<256x32xbf16>, vector<256x32xf32> -> vector<256x32xf32>
    %167 = arith.truncf %166 : vector<256x32xf32> to vector<256x32xbf16>
    %c1_73 = arith.constant 1 : index
    %c0_74 = arith.constant 0 : index
    %c0_75 = arith.constant 0 : index
    %168 = vector.load %arg8[%c1_73, %c0_74, %c0_75] : memref<2x32x32xbf16, #tpu.memory_space<vmem>>, vector<1x32x32xbf16>
    %169 = vector.shape_cast %168 : vector<1x32x32xbf16> to vector<32x32xbf16>
    %cst_76 = arith.constant dense<0.000000e+00> : vector<256x32xf32>
    %170 = tpu.matmul %167, %169, %cst_76 {dimension_numbers = #tpu.dot_dimension_numbers<[1], [0], [0], [1], [0, 0, 1, 1], [], []>} : vector<256x32xbf16>, vector<32x32xbf16>, vector<256x32xf32> -> vector<256x32xf32>
    %c1_77 = arith.constant 1 : index
    %c0_78 = arith.constant 0 : index
    %c0_79 = arith.constant 0 : index
    %171 = vector.load %arg9[%c1_77, %c0_78, %c0_79] : memref<2x1x32xf32, #tpu.memory_space<vmem>>, vector<1x1x32xf32>
    %172 = vector.shape_cast %171 : vector<1x1x32xf32> to vector<1x32xf32>
    %173 = vector.broadcast %172 : vector<1x32xf32> to vector<256x32xf32>
    %174 = arith.addf %170, %173 : vector<256x32xf32>
    %175 = arith.addf %136, %174 : vector<256x32xf32>
    %176 = vector.extract_strided_slice %138 {offsets = [0, 0], sizes = [1, 32], strides = [1, 1]} : vector<4x32xf32> to vector<1x32xf32>
    %177 = vector.extract_strided_slice %138 {offsets = [1, 0], sizes = [1, 32], strides = [1, 1]} : vector<4x32xf32> to vector<1x32xf32>
    %cst_80 = arith.constant dense<0.000000e+00> : vector<256xf32>
    %178 = vector.multi_reduction <add>, %175, %cst_80 [1] : vector<256x32xf32> to vector<256xf32>
    %179 = vector.shape_cast %178 : vector<256xf32> to vector<256x1xf32>
    %cst_81 = arith.constant 3.200000e+01 : f32
    %180 = vector.broadcast %cst_81 : f32 to vector<256x1xf32>
    %181 = arith.divf %179, %180 : vector<256x1xf32>
    %182 = vector.broadcast %181 : vector<256x1xf32> to vector<256x32xf32>
    %183 = arith.subf %175, %182 : vector<256x32xf32>
    %184 = arith.mulf %183, %183 : vector<256x32xf32>
    %cst_82 = arith.constant dense<0.000000e+00> : vector<256xf32>
    %185 = vector.multi_reduction <add>, %184, %cst_82 [1] : vector<256x32xf32> to vector<256xf32>
    %186 = vector.shape_cast %185 : vector<256xf32> to vector<256x1xf32>
    %cst_83 = arith.constant 3.200000e+01 : f32
    %187 = vector.broadcast %cst_83 : f32 to vector<256x1xf32>
    %188 = arith.divf %186, %187 : vector<256x1xf32>
    %189 = vector.broadcast %181 : vector<256x1xf32> to vector<256x32xf32>
    %190 = arith.subf %175, %189 : vector<256x32xf32>
    %cst_84 = arith.constant 9.99999974E-6 : f32
    %191 = vector.broadcast %cst_84 : f32 to vector<256x1xf32>
    %192 = arith.addf %188, %191 : vector<256x1xf32>
    %193 = math.rsqrt %192 : vector<256x1xf32>
    %194 = vector.broadcast %193 : vector<256x1xf32> to vector<256x32xf32>
    %195 = arith.mulf %190, %194 : vector<256x32xf32>
    %196 = vector.broadcast %176 : vector<1x32xf32> to vector<256x32xf32>
    %197 = arith.mulf %195, %196 : vector<256x32xf32>
    %198 = vector.broadcast %177 : vector<1x32xf32> to vector<256x32xf32>
    %199 = arith.addf %197, %198 : vector<256x32xf32>
    %200 = arith.truncf %199 : vector<256x32xf32> to vector<256x32xbf16>
    %c1_85 = arith.constant 1 : index
    %c0_86 = arith.constant 0 : index
    %c0_87 = arith.constant 0 : index
    %201 = vector.load %arg11[%c1_85, %c0_86, %c0_87] : memref<2x32x64xbf16, #tpu.memory_space<vmem>>, vector<1x32x64xbf16>
    %202 = vector.shape_cast %201 : vector<1x32x64xbf16> to vector<32x64xbf16>
    %cst_88 = arith.constant dense<0.000000e+00> : vector<256x64xf32>
    %203 = tpu.matmul %200, %202, %cst_88 {dimension_numbers = #tpu.dot_dimension_numbers<[1], [0], [0], [1], [0, 0, 1, 1], [], []>} : vector<256x32xbf16>, vector<32x64xbf16>, vector<256x64xf32> -> vector<256x64xf32>
    %c1_89 = arith.constant 1 : index
    %c0_90 = arith.constant 0 : index
    %c0_91 = arith.constant 0 : index
    %204 = vector.load %arg12[%c1_89, %c0_90, %c0_91] : memref<2x1x64xf32, #tpu.memory_space<vmem>>, vector<1x1x64xf32>
    %205 = vector.shape_cast %204 : vector<1x1x64xf32> to vector<1x64xf32>
    %206 = vector.broadcast %205 : vector<1x64xf32> to vector<256x64xf32>
    %207 = arith.addf %203, %206 : vector<256x64xf32>
    %cst_92 = arith.constant 0.000000e+00 : f32
    %208 = vector.broadcast %cst_92 : f32 to vector<256x64xf32>
    %209 = arith.maximumf %207, %208 : vector<256x64xf32>
    %210 = arith.truncf %209 : vector<256x64xf32> to vector<256x64xbf16>
    %c1_93 = arith.constant 1 : index
    %c0_94 = arith.constant 0 : index
    %c0_95 = arith.constant 0 : index
    %211 = vector.load %arg13[%c1_93, %c0_94, %c0_95] : memref<2x64x32xbf16, #tpu.memory_space<vmem>>, vector<1x64x32xbf16>
    %212 = vector.shape_cast %211 : vector<1x64x32xbf16> to vector<64x32xbf16>
    %cst_96 = arith.constant dense<0.000000e+00> : vector<256x32xf32>
    %213 = tpu.matmul %210, %212, %cst_96 {dimension_numbers = #tpu.dot_dimension_numbers<[1], [0], [0], [1], [0, 0, 1, 1], [], []>} : vector<256x64xbf16>, vector<64x32xbf16>, vector<256x32xf32> -> vector<256x32xf32>
    %c1_97 = arith.constant 1 : index
    %c0_98 = arith.constant 0 : index
    %c0_99 = arith.constant 0 : index
    %214 = vector.load %arg14[%c1_97, %c0_98, %c0_99] : memref<2x1x32xf32, #tpu.memory_space<vmem>>, vector<1x1x32xf32>
    %215 = vector.shape_cast %214 : vector<1x1x32xf32> to vector<1x32xf32>
    %216 = vector.broadcast %215 : vector<1x32xf32> to vector<256x32xf32>
    %217 = arith.addf %213, %216 : vector<256x32xf32>
    %218 = arith.addf %199, %217 : vector<256x32xf32>
    %219 = vector.extract_strided_slice %138 {offsets = [2, 0], sizes = [1, 32], strides = [1, 1]} : vector<4x32xf32> to vector<1x32xf32>
    %220 = vector.extract_strided_slice %138 {offsets = [3, 0], sizes = [1, 32], strides = [1, 1]} : vector<4x32xf32> to vector<1x32xf32>
    %cst_100 = arith.constant dense<0.000000e+00> : vector<256xf32>
    %221 = vector.multi_reduction <add>, %218, %cst_100 [1] : vector<256x32xf32> to vector<256xf32>
    %222 = vector.shape_cast %221 : vector<256xf32> to vector<256x1xf32>
    %cst_101 = arith.constant 3.200000e+01 : f32
    %223 = vector.broadcast %cst_101 : f32 to vector<256x1xf32>
    %224 = arith.divf %222, %223 : vector<256x1xf32>
    %225 = vector.broadcast %224 : vector<256x1xf32> to vector<256x32xf32>
    %226 = arith.subf %218, %225 : vector<256x32xf32>
    %227 = arith.mulf %226, %226 : vector<256x32xf32>
    %cst_102 = arith.constant dense<0.000000e+00> : vector<256xf32>
    %228 = vector.multi_reduction <add>, %227, %cst_102 [1] : vector<256x32xf32> to vector<256xf32>
    %229 = vector.shape_cast %228 : vector<256xf32> to vector<256x1xf32>
    %cst_103 = arith.constant 3.200000e+01 : f32
    %230 = vector.broadcast %cst_103 : f32 to vector<256x1xf32>
    %231 = arith.divf %229, %230 : vector<256x1xf32>
    %232 = vector.broadcast %224 : vector<256x1xf32> to vector<256x32xf32>
    %233 = arith.subf %218, %232 : vector<256x32xf32>
    %cst_104 = arith.constant 9.99999974E-6 : f32
    %234 = vector.broadcast %cst_104 : f32 to vector<256x1xf32>
    %235 = arith.addf %231, %234 : vector<256x1xf32>
    %236 = math.rsqrt %235 : vector<256x1xf32>
    %237 = vector.broadcast %236 : vector<256x1xf32> to vector<256x32xf32>
    %238 = arith.mulf %233, %237 : vector<256x32xf32>
    %239 = vector.broadcast %219 : vector<1x32xf32> to vector<256x32xf32>
    %240 = arith.mulf %238, %239 : vector<256x32xf32>
    %241 = vector.broadcast %220 : vector<1x32xf32> to vector<256x32xf32>
    %242 = arith.addf %240, %241 : vector<256x32xf32>
    %243 = vector.shape_cast %242 : vector<256x32xf32> to vector<32x8x32xf32>
    %cst_105 = arith.constant dense<0xFF800000> : vector<32x32xf32>
    %244 = vector.multi_reduction <maximumf>, %243, %cst_105 [1] : vector<32x8x32xf32> to vector<32x32xf32>
    %c0_106 = arith.constant 0 : index
    %c0_107 = arith.constant 0 : index
    %245 = vector.load %arg15[%c0_106, %c0_107] : memref<32x32xf32, #tpu.memory_space<vmem>>, vector<32x32xf32>
    tpu.vector_store %arg15[%c0_106, %c0_107], %244 {strides = array<i32>} : memref<32x32xf32, #tpu.memory_space<vmem>>, vector<32x32xf32>,
    return
  }
  func.func @transform_0(%arg0: i32) -> (i32, i32) {
    %c0_i32 = arith.constant 0 : i32
    %c0_i32_0 = arith.constant 0 : i32
    return %arg0, %c0_i32 : i32, i32
  }
  func.func @transform_1(%arg0: i32) -> (i32, i32) {
    %c0_i32 = arith.constant 0 : i32
    %c0_i32_0 = arith.constant 0 : i32
    %c0_i32_1 = arith.constant 0 : i32
    return %c0_i32, %c0_i32_0 : i32, i32
  }
  func.func @transform_2(%arg0: i32) -> (i32, i32) {
    %c0_i32 = arith.constant 0 : i32
    %c0_i32_0 = arith.constant 0 : i32
    %c0_i32_1 = arith.constant 0 : i32
    return %c0_i32, %c0_i32_0 : i32, i32
  }
  func.func @transform_3(%arg0: i32) -> (i32, i32) {
    %c0_i32 = arith.constant 0 : i32
    %c0_i32_0 = arith.constant 0 : i32
    %c0_i32_1 = arith.constant 0 : i32
    return %c0_i32, %c0_i32_0 : i32, i32
  }
  func.func @transform_4(%arg0: i32) -> (i32, i32) {
    %c0_i32 = arith.constant 0 : i32
    %c0_i32_0 = arith.constant 0 : i32
    %c0_i32_1 = arith.constant 0 : i32
    return %c0_i32, %c0_i32_0 : i32, i32
  }
  func.func @transform_5(%arg0: i32) -> (i32, i32, i32) {
    %c0_i32 = arith.constant 0 : i32
    %c0_i32_0 = arith.constant 0 : i32
    %c0_i32_1 = arith.constant 0 : i32
    %c0_i32_2 = arith.constant 0 : i32
    return %c0_i32, %c0_i32_0, %c0_i32_1 : i32, i32, i32
  }
  func.func @transform_6(%arg0: i32) -> (i32, i32, i32) {
    %c0_i32 = arith.constant 0 : i32
    %c0_i32_0 = arith.constant 0 : i32
    %c0_i32_1 = arith.constant 0 : i32
    %c0_i32_2 = arith.constant 0 : i32
    return %c0_i32, %c0_i32_0, %c0_i32_1 : i32, i32, i32
  }
  func.func @transform_7(%arg0: i32) -> (i32, i32, i32) {
    %c0_i32 = arith.constant 0 : i32
    %c0_i32_0 = arith.constant 0 : i32
    %c0_i32_1 = arith.constant 0 : i32
    %c0_i32_2 = arith.constant 0 : i32
    return %c0_i32, %c0_i32_0, %c0_i32_1 : i32, i32, i32
  }
  func.func @transform_8(%arg0: i32) -> (i32, i32, i32) {
    %c0_i32 = arith.constant 0 : i32
    %c0_i32_0 = arith.constant 0 : i32
    %c0_i32_1 = arith.constant 0 : i32
    %c0_i32_2 = arith.constant 0 : i32
    return %c0_i32, %c0_i32_0, %c0_i32_1 : i32, i32, i32
  }
  func.func @transform_9(%arg0: i32) -> (i32, i32, i32) {
    %c0_i32 = arith.constant 0 : i32
    %c0_i32_0 = arith.constant 0 : i32
    %c0_i32_1 = arith.constant 0 : i32
    %c0_i32_2 = arith.constant 0 : i32
    return %c0_i32, %c0_i32_0, %c0_i32_1 : i32, i32, i32
  }
  func.func @transform_10(%arg0: i32) -> (i32, i32, i32) {
    %c0_i32 = arith.constant 0 : i32
    %c0_i32_0 = arith.constant 0 : i32
    %c0_i32_1 = arith.constant 0 : i32
    %c0_i32_2 = arith.constant 0 : i32
    return %c0_i32, %c0_i32_0, %c0_i32_1 : i32, i32, i32
  }
  func.func @transform_11(%arg0: i32) -> (i32, i32, i32) {
    %c0_i32 = arith.constant 0 : i32
    %c0_i32_0 = arith.constant 0 : i32
    %c0_i32_1 = arith.constant 0 : i32
    %c0_i32_2 = arith.constant 0 : i32
    return %c0_i32, %c0_i32_0, %c0_i32_1 : i32, i32, i32
  }
  func.func @transform_12(%arg0: i32) -> (i32, i32, i32) {
    %c0_i32 = arith.constant 0 : i32
    %c0_i32_0 = arith.constant 0 : i32
    %c0_i32_1 = arith.constant 0 : i32
    %c0_i32_2 = arith.constant 0 : i32
    return %c0_i32, %c0_i32_0, %c0_i32_1 : i32, i32, i32
  }
  func.func @transform_13(%arg0: i32) -> (i32, i32, i32) {
    %c0_i32 = arith.constant 0 : i32
    %c0_i32_0 = arith.constant 0 : i32
    %c0_i32_1 = arith.constant 0 : i32
    %c0_i32_2 = arith.constant 0 : i32
    return %c0_i32, %c0_i32_0, %c0_i32_1 : i32, i32, i32
  }
  func.func @transform_14(%arg0: i32) -> (i32, i32) {
    %c0_i32 = arith.constant 0 : i32
    %c0_i32_0 = arith.constant 0 : i32
    return %arg0, %c0_i32 : i32, i32
  }
}

</mosaic_0001>

<llo_original>
// kernel: tpu_custom_call.1
$region0: #{tpu_custom_call.1}
  #allocation0 [shape = 'u32[]', space=smem, size = 0x4, offset = 0x4, fixed_abs, tag = 'smem constant byte address 0x4 - core index']
  #allocation1 [shape = 'u32[72,128]{1,0:T(1,128)}', space=vmem, size = 0x9000, scoped, tag = 'internal scratch']
  %s0 = inlined_call_operand.vmem [shape: f32[512,10], index: 0, kind: input, shape index: {}]
  %s1 = inlined_call_operand.vmem [shape: f32[256,32], index: 1, kind: input, shape index: {}]
  %s2 = inlined_call_operand.vmem [shape: bf16[10,32], index: 2, kind: input, shape index: {}]
  %s3 = inlined_call_operand.vmem [shape: s32[256,1], index: 3, kind: input, shape index: {}]
  %s4 = inlined_call_operand.vmem [shape: s32[1,256], index: 4, kind: input, shape index: {}]
  %s5 = inlined_call_operand.vmem [shape: bf16[2,32,96], index: 5, kind: input, shape index: {}]
  %s6 = inlined_call_operand.vmem [shape: f32[2,1,96], index: 6, kind: input, shape index: {}]
  %s7 = inlined_call_operand.vmem [shape: bf16[2,32,32], index: 7, kind: input, shape index: {}]
  %s8 = inlined_call_operand.vmem [shape: f32[2,1,32], index: 8, kind: input, shape index: {}]
  %s9 = inlined_call_operand.vmem [shape: f32[2,4,32], index: 9, kind: input, shape index: {}]
  %s10 = inlined_call_operand.vmem [shape: bf16[2,32,64], index: 10, kind: input, shape index: {}]
  %s11 = inlined_call_operand.vmem [shape: f32[2,1,64], index: 11, kind: input, shape index: {}]
  %s12 = inlined_call_operand.vmem [shape: bf16[2,64,32], index: 12, kind: input, shape index: {}]
  %s13 = inlined_call_operand.vmem [shape: f32[2,1,32], index: 13, kind: input, shape index: {}]
  %s14 = inlined_call_operand.vmem [shape: f32[64,32], index: 14, kind: output, shape index: {}]
  %s15 = sld [smem:[#allocation0]]
  $region89: #{tpu_custom_call.1} parent=0
    _
  %s17 = ssub.s32 1, %s15
  %s18 = scalar_select 0, %s17, %s15
  loop: start=0, step=1, limit=4
  $region2: #{tpu_custom_call.1} parent=0 // loop_pre_header
    _
  $region3: #{tpu_custom_call.1} parent=0 // loop_header
    %s20 = sphi 0, %s24
    %p21 = scmp.ge.s32.totalorder %s20, 4
    %s30 = sphi 0, %s32
    %s33 = sphi 0, %s30
    %s34 = sphi 0, %s33
    %s50 = sphi 0, %s34
    %s54 = sphi 0, %s54
    %s56 = sphi 0, %s54
    %s57 = sphi 0, %s56
    %s71 = sphi 0, %s57
    %s75 = sphi 0, %s75
    %s77 = sphi 0, %s75
    %s78 = sphi 0, %s77
    %s92 = sphi 0, %s78
    %s96 = sphi 0, %s96
    %s98 = sphi 0, %s96
    %s99 = sphi 0, %s98
    %s113 = sphi 0, %s99
    %s117 = sphi 0, %s117
    %s119 = sphi 0, %s117
    %s120 = sphi 0, %s119
    %s134 = sphi 0, %s120
    %s138 = sphi 0, %s138
    %s140 = sphi 0, %s138
    %s141 = sphi 0, %s140
    %s155 = sphi 0, %s141
    %s159 = sphi 0, %s159
    %s161 = sphi 0, %s159
    %s162 = sphi 0, %s161
    %s176 = sphi 0, %s162
    %s180 = sphi 0, %s180
    %s182 = sphi 0, %s180
    %s183 = sphi 0, %s182
    %s197 = sphi 0, %s183
    %s201 = sphi 0, %s201
    %s203 = sphi 0, %s201
    %s204 = sphi 0, %s203
    %s218 = sphi 0, %s204
    %s222 = sphi 0, %s222
    %s224 = sphi 0, %s222
    %s225 = sphi 0, %s224
    %s239 = sphi 0, %s225
    %s243 = sphi 0, %s243
    %s245 = sphi 0, %s243
    %s246 = sphi 0, %s245
    %s260 = sphi 0, %s246
    %s264 = sphi 0, %s264
    %s266 = sphi 0, %s264
    %s267 = sphi 0, %s266
    %s281 = sphi 0, %s267
    %s285 = sphi 0, %s285
    %s287 = sphi 0, %s285
    %s288 = sphi 0, %s287
    %s302 = sphi 0, %s288
    %s306 = sphi 0, %s306
    %s308 = sphi 0, %s306
    %s309 = sphi 0, %s308
    %s323 = sphi 0, %s309
    %s329 = sphi 0, %s331
    %s332 = sphi 0, %s329
    %s333 = sphi 0, %s332
    %s349 = sphi 0, %s333
  $region4: #{tpu_custom_call.1} parent=0 // loop_header_branch
    %23 = sbr.rel (%p21) target = $region8
  $region5: #{tpu_custom_call.1} parent=0 // loop_body
    %s25 = ssub.s32 %s20, 1
    %s26 = ssub.s32 %s20, 2
    %s27 = sadd.s32 %s20, 1
    %s28 = ssub.s32 %s20, %s27
    %p29 = scmp.eq.s32.totalorder %s28, 0
    %s31 = sadd.s32 %s30, 1
    %s32 = scalar_select %p29, %s30, %s31
    %p35 = pneg %p29
    %p36 = scmp.eq.s32.totalorder %s20, 1
    %p37 = por %p35, %p36
    %p38 = scmp.ne.s32.totalorder %s30, %s33
    %p39 = scmp.eq.s32.totalorder %s20, 0
    %p40 = por %p38, %p39
    %p41 = scmp.ne.s32.totalorder %s30, %s33
    %p42 = scmp.eq.s32.totalorder %s25, 1
    %p43 = por %p41, %p42
    %p44 = scmp.ne.s32.totalorder %s33, %s34
    %p45 = scmp.eq.s32.totalorder %s25, 0
    %p46 = por %p44, %p45
    %p47 = scmp.ne.s32.totalorder %s33, %s34
    %p48 = scmp.eq.s32.totalorder %s26, 1
    %p49 = por %p47, %p48
    %p51 = scmp.ne.s32.totalorder %s34, %s50
    %p52 = scmp.eq.s32.totalorder %s26, 0
    %p53 = por %p51, %p52
    %s55 = sadd.s32 %s54, 1
    %p58 = scmp.eq.s32.totalorder %s20, 1
    %p59 = scmp.ne.s32.totalorder %s54, %s56
    %p60 = scmp.eq.s32.totalorder %s20, 0
    %p61 = por %p59, %p60
    %p62 = scmp.ne.s32.totalorder %s54, %s56
    %p63 = scmp.eq.s32.totalorder %s25, 1
    %p64 = por %p62, %p63
    %p65 = scmp.ne.s32.totalorder %s56, %s57
    %p66 = scmp.eq.s32.totalorder %s25, 0
    %p67 = por %p65, %p66
    %p68 = scmp.ne.s32.totalorder %s56, %s57
    %p69 = scmp.eq.s32.totalorder %s26, 1
    %p70 = por %p68, %p69
    %p72 = scmp.ne.s32.totalorder %s57, %s71
    %p73 = scmp.eq.s32.totalorder %s26, 0
    %p74 = por %p72, %p73
    %s76 = sadd.s32 %s75, 1
    %p79 = scmp.eq.s32.totalorder %s20, 1
    %p80 = scmp.ne.s32.totalorder %s75, %s77
    %p81 = scmp.eq.s32.totalorder %s20, 0
    %p82 = por %p80, %p81
    %p83 = scmp.ne.s32.totalorder %s75, %s77
    %p84 = scmp.eq.s32.totalorder %s25, 1
    %p85 = por %p83, %p84
    %p86 = scmp.ne.s32.totalorder %s77, %s78
    %p87 = scmp.eq.s32.totalorder %s25, 0
    %p88 = por %p86, %p87
    %p89 = scmp.ne.s32.totalorder %s77, %s78
    %p90 = scmp.eq.s32.totalorder %s26, 1
    %p91 = por %p89, %p90
    %p93 = scmp.ne.s32.totalorder %s78, %s92
    %p94 = scmp.eq.s32.totalorder %s26, 0
    %p95 = por %p93, %p94
    %s97 = sadd.s32 %s96, 1
    %p100 = scmp.eq.s32.totalorder %s20, 1
    %p101 = scmp.ne.s32.totalorder %s96, %s98
    %p102 = scmp.eq.s32.totalorder %s20, 0
    %p103 = por %p101, %p102
    %p104 = scmp.ne.s32.totalorder %s96, %s98
    %p105 = scmp.eq.s32.totalorder %s25, 1
    %p106 = por %p104, %p105
    %p107 = scmp.ne.s32.totalorder %s98, %s99
    %p108 = scmp.eq.s32.totalorder %s25, 0
    %p109 = por %p107, %p108
    %p110 = scmp.ne.s32.totalorder %s98, %s99
    %p111 = scmp.eq.s32.totalorder %s26, 1
    %p112 = por %p110, %p111
    %p114 = scmp.ne.s32.totalorder %s99, %s113
    %p115 = scmp.eq.s32.totalorder %s26, 0
    %p116 = por %p114, %p115
    %s118 = sadd.s32 %s117, 1
    %p121 = scmp.eq.s32.totalorder %s20, 1
    %p122 = scmp.ne.s32.totalorder %s117, %s119
    %p123 = scmp.eq.s32.totalorder %s20, 0
    %p124 = por %p122, %p123
    %p125 = scmp.ne.s32.totalorder %s117, %s119
    %p126 = scmp.eq.s32.totalorder %s25, 1
    %p127 = por %p125, %p126
    %p128 = scmp.ne.s32.totalorder %s119, %s120
    %p129 = scmp.eq.s32.totalorder %s25, 0
    %p130 = por %p128, %p129
    %p131 = scmp.ne.s32.totalorder %s119, %s120
    %p132 = scmp.eq.s32.totalorder %s26, 1
    %p133 = por %p131, %p132
    %p135 = scmp.ne.s32.totalorder %s120, %s134
    %p136 = scmp.eq.s32.totalorder %s26, 0
    %p137 = por %p135, %p136
    %s139 = sadd.s32 %s138, 1
    %p142 = scmp.eq.s32.totalorder %s20, 1
    %p143 = scmp.ne.s32.totalorder %s138, %s140
    %p144 = scmp.eq.s32.totalorder %s20, 0
    %p145 = por %p143, %p144
    %p146 = scmp.ne.s32.totalorder %s138, %s140
    %p147 = scmp.eq.s32.totalorder %s25, 1
    %p148 = por %p146, %p147
    %p149 = scmp.ne.s32.totalorder %s140, %s141
    %p150 = scmp.eq.s32.totalorder %s25, 0
    %p151 = por %p149, %p150
    %p152 = scmp.ne.s32.totalorder %s140, %s141
    %p153 = scmp.eq.s32.totalorder %s26, 1
    %p154 = por %p152, %p153
    %p156 = scmp.ne.s32.totalorder %s141, %s155
    %p157 = scmp.eq.s32.totalorder %s26, 0
    %p158 = por %p156, %p157
    %s160 = sadd.s32 %s159, 1
    %p163 = scmp.eq.s32.totalorder %s20, 1
    %p164 = scmp.ne.s32.totalorder %s159, %s161
    %p165 = scmp.eq.s32.totalorder %s20, 0
    %p166 = por %p164, %p165
    %p167 = scmp.ne.s32.totalorder %s159, %s161
    %p168 = scmp.eq.s32.totalorder %s25, 1
    %p169 = por %p167, %p168
    %p170 = scmp.ne.s32.totalorder %s161, %s162
    %p171 = scmp.eq.s32.totalorder %s25, 0
    %p172 = por %p170, %p171
    %p173 = scmp.ne.s32.totalorder %s161, %s162
    %p174 = scmp.eq.s32.totalorder %s26, 1
    %p175 = por %p173, %p174
    %p177 = scmp.ne.s32.totalorder %s162, %s176
    %p178 = scmp.eq.s32.totalorder %s26, 0
    %p179 = por %p177, %p178
    %s181 = sadd.s32 %s180, 1
    %p184 = scmp.eq.s32.totalorder %s20, 1
    %p185 = scmp.ne.s32.totalorder %s180, %s182
    %p186 = scmp.eq.s32.totalorder %s20, 0
    %p187 = por %p185, %p186
    %p188 = scmp.ne.s32.totalorder %s180, %s182
    %p189 = scmp.eq.s32.totalorder %s25, 1
    %p190 = por %p188, %p189
    %p191 = scmp.ne.s32.totalorder %s182, %s183
    %p192 = scmp.eq.s32.totalorder %s25, 0
    %p193 = por %p191, %p192
    %p194 = scmp.ne.s32.totalorder %s182, %s183
    %p195 = scmp.eq.s32.totalorder %s26, 1
    %p196 = por %p194, %p195
    %p198 = scmp.ne.s32.totalorder %s183, %s197
    %p199 = scmp.eq.s32.totalorder %s26, 0
    %p200 = por %p198, %p199
    %s202 = sadd.s32 %s201, 1
    %p205 = scmp.eq.s32.totalorder %s20, 1
    %p206 = scmp.ne.s32.totalorder %s201, %s203
    %p207 = scmp.eq.s32.totalorder %s20, 0
    %p208 = por %p206, %p207
    %p209 = scmp.ne.s32.totalorder %s201, %s203
    %p210 = scmp.eq.s32.totalorder %s25, 1
    %p211 = por %p209, %p210
    %p212 = scmp.ne.s32.totalorder %s203, %s204
    %p213 = scmp.eq.s32.totalorder %s25, 0
    %p214 = por %p212, %p213
    %p215 = scmp.ne.s32.totalorder %s203, %s204
    %p216 = scmp.eq.s32.totalorder %s26, 1
    %p217 = por %p215, %p216
    %p219 = scmp.ne.s32.totalorder %s204, %s218
    %p220 = scmp.eq.s32.totalorder %s26, 0
    %p221 = por %p219, %p220
    %s223 = sadd.s32 %s222, 1
    %p226 = scmp.eq.s32.totalorder %s20, 1
    %p227 = scmp.ne.s32.totalorder %s222, %s224
    %p228 = scmp.eq.s32.totalorder %s20, 0
    %p229 = por %p227, %p228
    %p230 = scmp.ne.s32.totalorder %s222, %s224
    %p231 = scmp.eq.s32.totalorder %s25, 1
    %p232 = por %p230, %p231
    %p233 = scmp.ne.s32.totalorder %s224, %s225
    %p234 = scmp.eq.s32.totalorder %s25, 0
    %p235 = por %p233, %p234
    %p236 = scmp.ne.s32.totalorder %s224, %s225
    %p237 = scmp.eq.s32.totalorder %s26, 1
    %p238 = por %p236, %p237
    %p240 = scmp.ne.s32.totalorder %s225, %s239
    %p241 = scmp.eq.s32.totalorder %s26, 0
    %p242 = por %p240, %p241
    %s244 = sadd.s32 %s243, 1
    %p247 = scmp.eq.s32.totalorder %s20, 1
    %p248 = scmp.ne.s32.totalorder %s243, %s245
    %p249 = scmp.eq.s32.totalorder %s20, 0
    %p250 = por %p248, %p249
    %p251 = scmp.ne.s32.totalorder %s243, %s245
    %p252 = scmp.eq.s32.totalorder %s25, 1
    %p253 = por %p251, %p252
    %p254 = scmp.ne.s32.totalorder %s245, %s246
    %p255 = scmp.eq.s32.totalorder %s25, 0
    %p256 = por %p254, %p255
    %p257 = scmp.ne.s32.totalorder %s245, %s246
    %p258 = scmp.eq.s32.totalorder %s26, 1
    %p259 = por %p257, %p258
    %p261 = scmp.ne.s32.totalorder %s246, %s260
    %p262 = scmp.eq.s32.totalorder %s26, 0
    %p263 = por %p261, %p262
    %s265 = sadd.s32 %s264, 1
    %p268 = scmp.eq.s32.totalorder %s20, 1
    %p269 = scmp.ne.s32.totalorder %s264, %s266
    %p270 = scmp.eq.s32.totalorder %s20, 0
    %p271 = por %p269, %p270
    %p272 = scmp.ne.s32.totalorder %s264, %s266
    %p273 = scmp.eq.s32.totalorder %s25, 1
    %p274 = por %p272, %p273
    %p275 = scmp.ne.s32.totalorder %s266, %s267
    %p276 = scmp.eq.s32.totalorder %s25, 0
    %p277 = por %p275, %p276
    %p278 = scmp.ne.s32.totalorder %s266, %s267
    %p279 = scmp.eq.s32.totalorder %s26, 1
    %p280 = por %p278, %p279
    %p282 = scmp.ne.s32.totalorder %s267, %s281
    %p283 = scmp.eq.s32.totalorder %s26, 0
    %p284 = por %p282, %p283
    %s286 = sadd.s32 %s285, 1
    %p289 = scmp.eq.s32.totalorder %s20, 1
    %p290 = scmp.ne.s32.totalorder %s285, %s287
    %p291 = scmp.eq.s32.totalorder %s20, 0
    %p292 = por %p290, %p291
    %p293 = scmp.ne.s32.totalorder %s285, %s287
    %p294 = scmp.eq.s32.totalorder %s25, 1
    %p295 = por %p293, %p294
    %p296 = scmp.ne.s32.totalorder %s287, %s288
    %p297 = scmp.eq.s32.totalorder %s25, 0
    %p298 = por %p296, %p297
    %p299 = scmp.ne.s32.totalorder %s287, %s288
    %p300 = scmp.eq.s32.totalorder %s26, 1
    %p301 = por %p299, %p300
    %p303 = scmp.ne.s32.totalorder %s288, %s302
    %p304 = scmp.eq.s32.totalorder %s26, 0
    %p305 = por %p303, %p304
    %s307 = sadd.s32 %s306, 1
    %p310 = scmp.eq.s32.totalorder %s20, 1
    %p311 = scmp.ne.s32.totalorder %s306, %s308
    %p312 = scmp.eq.s32.totalorder %s20, 0
    %p313 = por %p311, %p312
    %p314 = scmp.ne.s32.totalorder %s306, %s308
    %p315 = scmp.eq.s32.totalorder %s25, 1
    %p316 = por %p314, %p315
    %p317 = scmp.ne.s32.totalorder %s308, %s309
    %p318 = scmp.eq.s32.totalorder %s25, 0
    %p319 = por %p317, %p318
    %p320 = scmp.ne.s32.totalorder %s308, %s309
    %p321 = scmp.eq.s32.totalorder %s26, 1
    %p322 = por %p320, %p321
    %p324 = scmp.ne.s32.totalorder %s309, %s323
    %p325 = scmp.eq.s32.totalorder %s26, 0
    %p326 = por %p324, %p325
    %s327 = ssub.s32 %s20, %s27
    %p328 = scmp.eq.s32.totalorder %s327, 0
    %s330 = sadd.s32 %s329, 1
    %s331 = scalar_select %p328, %s329, %s330
    %p334 = pneg %p328
    %p335 = scmp.eq.s32.totalorder %s20, 1
    %p336 = por %p334, %p335
    %p337 = scmp.ne.s32.totalorder %s329, %s332
    %p338 = scmp.eq.s32.totalorder %s20, 0
    %p339 = por %p337, %p338
    %p340 = scmp.ne.s32.totalorder %s329, %s332
    %p341 = scmp.eq.s32.totalorder %s25, 1
    %p342 = por %p340, %p341
    %p343 = scmp.ne.s32.totalorder %s332, %s333
    %p344 = scmp.eq.s32.totalorder %s25, 0
    %p345 = por %p343, %p344
    %p346 = scmp.ne.s32.totalorder %s332, %s333
    %p347 = scmp.eq.s32.totalorder %s26, 1
    %p348 = por %p346, %p347
    %p350 = scmp.ne.s32.totalorder %s333, %s349
    %p351 = scmp.eq.s32.totalorder %s26, 0
    %p352 = por %p350, %p351
    %p353 = scmp.le.s32.totalorder 1, %s20
    %p354 = scmp.lt.s32.totalorder %s20, 3
    %p355 = pnand %p353, %p354
    %p356 = pneg %p355
    // Predicated region
    $region9: #{tpu_custom_call.1} parent=5 // pred_check
      _
    $region10: #{tpu_custom_call.1} parent=5 // pred_check_branch
      %358 = sbr.rel (%p355) target = $region12
    $region11: #{tpu_custom_call.1} parent=5 // pred_region
      %s359 = ssub.s32 %s20, 1
      // Predicated region
      $region13: #{tpu_custom_call.1} parent=11 // pred_check
        %p360 = pneg %p67
      $region14: #{tpu_custom_call.1} parent=11 // pred_check_branch
        %362 = sbr.rel (%p360) target = $region16
      $region15: #{tpu_custom_call.1} parent=11 // pred_region
        _
      $region16: #{tpu_custom_call.1} parent=11 // pred_fallthru
        _
      // Predicated region
      $region17: #{tpu_custom_call.1} parent=11 // pred_check
        %p363 = pneg %p88
      $region18: #{tpu_custom_call.1} parent=11 // pred_check_branch
        %365 = sbr.rel (%p363) target = $region20
      $region19: #{tpu_custom_call.1} parent=11 // pred_region
        _
      $region20: #{tpu_custom_call.1} parent=11 // pred_fallthru
        _
      // Predicated region
      $region21: #{tpu_custom_call.1} parent=11 // pred_check
        %p366 = pneg %p109
      $region22: #{tpu_custom_call.1} parent=11 // pred_check_branch
        %368 = sbr.rel (%p366) target = $region24
      $region23: #{tpu_custom_call.1} parent=11 // pred_region
        _
      $region24: #{tpu_custom_call.1} parent=11 // pred_fallthru
        _
      // Predicated region
      $region25: #{tpu_custom_call.1} parent=11 // pred_check
        %p369 = pneg %p130
      $region26: #{tpu_custom_call.1} parent=11 // pred_check_branch
        %371 = sbr.rel (%p369) target = $region28
      $region27: #{tpu_custom_call.1} parent=11 // pred_region
        _
      $region28: #{tpu_custom_call.1} parent=11 // pred_fallthru
        _
      // Predicated region
      $region29: #{tpu_custom_call.1} parent=11 // pred_check
        %p372 = pneg %p151
      $region30: #{tpu_custom_call.1} parent=11 // pred_check_branch
        %374 = sbr.rel (%p372) target = $region32
      $region31: #{tpu_custom_call.1} parent=11 // pred_region
        _
      $region32: #{tpu_custom_call.1} parent=11 // pred_fallthru
        _
      // Predicated region
      $region33: #{tpu_custom_call.1} parent=11 // pred_check
        %p375 = pneg %p172
      $region34: #{tpu_custom_call.1} parent=11 // pred_check_branch
        %377 = sbr.rel (%p375) target = $region36
      $region35: #{tpu_custom_call.1} parent=11 // pred_region
        _
      $region36: #{tpu_custom_call.1} parent=11 // pred_fallthru
        _
      // Predicated region
      $region37: #{tpu_custom_call.1} parent=11 // pred_check
        %p378 = pneg %p193
      $region38: #{tpu_custom_call.1} parent=11 // pred_check_branch
        %380 = sbr.rel (%p378) target = $region40
      $region39: #{tpu_custom_call.1} parent=11 // pred_region
        _
      $region40: #{tpu_custom_call.1} parent=11 // pred_fallthru
        _
      // Predicated region
      $region41: #{tpu_custom_call.1} parent=11 // pred_check
        %p381 = pneg %p214
      $region42: #{tpu_custom_call.1} parent=11 // pred_check_branch
        %383 = sbr.rel (%p381) target = $region44
      $region43: #{tpu_custom_call.1} parent=11 // pred_region
        _
      $region44: #{tpu_custom_call.1} parent=11 // pred_fallthru
        _
      // Predicated region
      $region45: #{tpu_custom_call.1} parent=11 // pred_check
        %p384 = pneg %p235
      $region46: #{tpu_custom_call.1} parent=11 // pred_check_branch
        %386 = sbr.rel (%p384) target = $region48
      $region47: #{tpu_custom_call.1} parent=11 // pred_region
        _
      $region48: #{tpu_custom_call.1} parent=11 // pred_fallthru
        _
      // Predicated region
      $region49: #{tpu_custom_call.1} parent=11 // pred_check
        %p387 = pneg %p256
      $region50: #{tpu_custom_call.1} parent=11 // pred_check_branch
        %389 = sbr.rel (%p387) target = $region52
      $region51: #{tpu_custom_call.1} parent=11 // pred_region
        _
      $region52: #{tpu_custom_call.1} parent=11 // pred_fallthru
        _
      // Predicated region
      $region53: #{tpu_custom_call.1} parent=11 // pred_check
        %p390 = pneg %p277
      $region54: #{tpu_custom_call.1} parent=11 // pred_check_branch
        %392 = sbr.rel (%p390) target = $region56
      $region55: #{tpu_custom_call.1} parent=11 // pred_region
        _
      $region56: #{tpu_custom_call.1} parent=11 // pred_fallthru
        _
      // Predicated region
      $region57: #{tpu_custom_call.1} parent=11 // pred_check
        %p393 = pneg %p298
      $region58: #{tpu_custom_call.1} parent=11 // pred_check_branch
        %395 = sbr.rel (%p393) target = $region60
      $region59: #{tpu_custom_call.1} parent=11 // pred_region
        _
      $region60: #{tpu_custom_call.1} parent=11 // pred_fallthru
        _
      // Predicated region
      $region61: #{tpu_custom_call.1} parent=11 // pred_check
        %p396 = pneg %p319
      $region62: #{tpu_custom_call.1} parent=11 // pred_check_branch
        %398 = sbr.rel (%p396) target = $region64
      $region63: #{tpu_custom_call.1} parent=11 // pred_region
        _
      $region64: #{tpu_custom_call.1} parent=11 // pred_fallthru
        _
    $region12: #{tpu_custom_call.1} parent=5 // pred_fallthru
      _
    %p399 = scmp.lt.s32.totalorder %s20, 2
    // Predicated region
    $region65: #{tpu_custom_call.1} parent=5 // pred_check
      %p400 = pneg %p399
    $region66: #{tpu_custom_call.1} parent=5 // pred_check_branch
      %402 = sbr.rel (%p400) target = $region68
    $region67: #{tpu_custom_call.1} parent=5 // pred_region
      // Predicated region
      $region69: #{tpu_custom_call.1} parent=67 // pred_check
        %p403 = pneg %p40
      $region70: #{tpu_custom_call.1} parent=67 // pred_check_branch
        %405 = sbr.rel (%p403) target = $region72
      $region71: #{tpu_custom_call.1} parent=67 // pred_region
        %s406 = smul.u32 32, %s20
        %p407 = scmp.lt.s32.totalorder %s406, 63
        %s408 = scalar_select %p407, %s406, 63
        %s409 = smul.addr %s408, 8
        %s410 = scalar_lea.vmem %s0, %s409
        %s411 = smul.u32 32, %s20
      $region72: #{tpu_custom_call.1} parent=67 // pred_fallthru
        _
    $region68: #{tpu_custom_call.1} parent=5 // pred_fallthru
      _
    %p412 = scmp.le.s32.totalorder 1, %s20
    %p413 = scmp.lt.s32.totalorder %s20, 3
    %p414 = pnand %p412, %p413
    %p415 = pneg %p414
    // Predicated region
    $region73: #{tpu_custom_call.1} parent=5 // pred_check
      _
    $region74: #{tpu_custom_call.1} parent=5 // pred_check_branch
      %417 = sbr.rel (%p414) target = $region76
    $region75: #{tpu_custom_call.1} parent=5 // pred_region
      %s418 = ssub.s32 %s20, 1
      %s419 = smul.u32 32, %s25
      %p420 = scmp.lt.s32.totalorder %s419, 63
      %s421 = scalar_select %p420, %s419, 63
      %s422 = smul.addr %s421, 8
      %s423 = scalar_lea.vmem %s0, %s422
      %p424 = pneg %p46
      %p425 = pneg %p43
      %p426 = pneg %p67
      %p427 = pneg %p64
      %p428 = pneg %p88
      %p429 = pneg %p85
      %p430 = pneg %p109
      %p431 = pneg %p106
      %p432 = pneg %p130
      %p433 = pneg %p127
      %p434 = pneg %p151
      %p435 = pneg %p148
      %p436 = pneg %p172
      %p437 = pneg %p169
      %p438 = pneg %p193
      %p439 = pneg %p190
      %p440 = pneg %p214
      %p441 = pneg %p211
      %p442 = pneg %p235
      %p443 = pneg %p232
      %p444 = pneg %p256
      %p445 = pneg %p253
      %p446 = pneg %p277
      %p447 = pneg %p274
      %p448 = pneg %p298
      %p449 = pneg %p295
      %p450 = pneg %p319
      %p451 = pneg %p316
      %p452 = pneg %p345
      %p453 = pneg %p342
      %s454 = smul.u32 4, %s25
      %p455 = scmp.lt.s32.totalorder %s454, 7
      %s456 = scalar_select %p455, %s454, 7
      %s457 = smul.addr %s456, 8
      %s458 = scalar_lea.vmem %s14, %s457
      %s459 = smul.u32 32, %s25
      %p460 = scmp.lt.s32.totalorder %s459, 63
      %s461 = scalar_select %p460, %s459, 63
      %s462 = smul.addr %s461, 8
      %s463 = scalar_lea.vmem %s0, %s462
      %s464 = smul.u32 32, %s25
      %s465 = smul.u32 4, %s25
      %p466 = scmp.lt.s32.totalorder %s465, 7
      %s467 = scalar_select %p466, %s465, 7
      %s468 = smul.addr %s467, 8
      %s469 = scalar_lea.vmem %s14, %s468
      %s470 = smul.u32 4, %s25
      %v472 = vld [vmem:[%s463] sm:$0xff]
      %v473 = vld [vmem:[%s463 + $0x8] sm:$0xff]
      %v474 = vld [vmem:[%s463 + $0x10] sm:$0xff]
      %v475 = vld [vmem:[%s463 + $0x18] sm:$0xff]
      %v476 = vld [vmem:[%s463 + $0x20] sm:$0xff]
      %v477 = vld [vmem:[%s463 + $0x28] sm:$0xff]
      %v478 = vld [vmem:[%s463 + $0x30] sm:$0xff]
      %v479 = vld [vmem:[%s463 + $0x38] sm:$0xff]
      %v480 = vld [vmem:[%s463 + $0x40] sm:$0xff]
      %v481 = vld [vmem:[%s463 + $0x48] sm:$0xff]
      %v482 = vld [vmem:[%s463 + $0x50] sm:$0xff]
      %v483 = vld [vmem:[%s463 + $0x58] sm:$0xff]
      %v484 = vld [vmem:[%s463 + $0x60] sm:$0xff]
      %v485 = vld [vmem:[%s463 + $0x68] sm:$0xff]
      %v486 = vld [vmem:[%s463 + $0x70] sm:$0xff]
      %v487 = vld [vmem:[%s463 + $0x78] sm:$0xff]
      %v488 = vld [vmem:[%s463 + $0x80] sm:$0xff]
      %v489 = vld [vmem:[%s463 + $0x88] sm:$0xff]
      %v490 = vld [vmem:[%s463 + $0x90] sm:$0xff]
      %v491 = vld [vmem:[%s463 + $0x98] sm:$0xff]
      %v492 = vld [vmem:[%s463 + $0xa0] sm:$0xff]
      %v493 = vld [vmem:[%s463 + $0xa8] sm:$0xff]
      %v494 = vld [vmem:[%s463 + $0xb0] sm:$0xff]
      %v495 = vld [vmem:[%s463 + $0xb8] sm:$0xff]
      %v496 = vld [vmem:[%s463 + $0xc0] sm:$0xff]
      %v497 = vld [vmem:[%s463 + $0xc8] sm:$0xff]
      %v498 = vld [vmem:[%s463 + $0xd0] sm:$0xff]
      %v499 = vld [vmem:[%s463 + $0xd8] sm:$0xff]
      %v500 = vld [vmem:[%s463 + $0xe0] sm:$0xff]
      %v501 = vld [vmem:[%s463 + $0xe8] sm:$0xff]
      %v502 = vld [vmem:[%s463 + $0xf0] sm:$0xff]
      %v503 = vld [vmem:[%s463 + $0xf8] sm:$0xff]
      %vm504 = vcmask 80896
      %v505 = vsel %vm504, %v472, -inf
      %506 = vmax.xlane.f32.xlu0 %v505
      %v507 = vpop.xlane.xlu0 %506
      %v508 = vsel %vm504, %v473, -inf
      %509 = vmax.xlane.f32.xlu0 %v508
      %v510 = vpop.xlane.xlu0 %509
      %v511 = vsel %vm504, %v474, -inf
      %512 = vmax.xlane.f32.xlu0 %v511
      %v513 = vpop.xlane.xlu0 %512
      %v514 = vsel %vm504, %v475, -inf
      %515 = vmax.xlane.f32.xlu0 %v514
      %v516 = vpop.xlane.xlu0 %515
      %v517 = vsel %vm504, %v476, -inf
      %518 = vmax.xlane.f32.xlu0 %v517
      %v519 = vpop.xlane.xlu0 %518
      %v520 = vsel %vm504, %v477, -inf
      %521 = vmax.xlane.f32.xlu0 %v520
      %v522 = vpop.xlane.xlu0 %521
      %v523 = vsel %vm504, %v478, -inf
      %524 = vmax.xlane.f32.xlu0 %v523
      %v525 = vpop.xlane.xlu0 %524
      %v526 = vsel %vm504, %v479, -inf
      %527 = vmax.xlane.f32.xlu0 %v526
      %v528 = vpop.xlane.xlu0 %527
      %v529 = vsel %vm504, %v480, -inf
      %530 = vmax.xlane.f32.xlu0 %v529
      %v531 = vpop.xlane.xlu0 %530
      %v532 = vsel %vm504, %v481, -inf
      %533 = vmax.xlane.f32.xlu0 %v532
      %v534 = vpop.xlane.xlu0 %533
      %v535 = vsel %vm504, %v482, -inf
      %536 = vmax.xlane.f32.xlu0 %v535
      %v537 = vpop.xlane.xlu0 %536
      %v538 = vsel %vm504, %v483, -inf
      %539 = vmax.xlane.f32.xlu0 %v538
      %v540 = vpop.xlane.xlu0 %539
      %v541 = vsel %vm504, %v484, -inf
      %542 = vmax.xlane.f32.xlu0 %v541
      %v543 = vpop.xlane.xlu0 %542
      %v544 = vsel %vm504, %v485, -inf
      %545 = vmax.xlane.f32.xlu0 %v544
      %v546 = vpop.xlane.xlu0 %545
      %v547 = vsel %vm504, %v486, -inf
      %548 = vmax.xlane.f32.xlu0 %v547
      %v549 = vpop.xlane.xlu0 %548
      %v550 = vsel %vm504, %v487, -inf
      %551 = vmax.xlane.f32.xlu0 %v550
      %v552 = vpop.xlane.xlu0 %551
      %v553 = vsel %vm504, %v488, -inf
      %554 = vmax.xlane.f32.xlu0 %v553
      %v555 = vpop.xlane.xlu0 %554
      %v556 = vsel %vm504, %v489, -inf
      %557 = vmax.xlane.f32.xlu0 %v556
      %v558 = vpop.xlane.xlu0 %557
      %v559 = vsel %vm504, %v490, -inf
      %560 = vmax.xlane.f32.xlu0 %v559
      %v561 = vpop.xlane.xlu0 %560
      %v562 = vsel %vm504, %v491, -inf
      %563 = vmax.xlane.f32.xlu0 %v562
      %v564 = vpop.xlane.xlu0 %563
      %v565 = vsel %vm504, %v492, -inf
      %566 = vmax.xlane.f32.xlu0 %v565
      %v567 = vpop.xlane.xlu0 %566
      %v568 = vsel %vm504, %v493, -inf
      %569 = vmax.xlane.f32.xlu0 %v568
      %v570 = vpop.xlane.xlu0 %569
      %v571 = vsel %vm504, %v494, -inf
      %572 = vmax.xlane.f32.xlu0 %v571
      %v573 = vpop.xlane.xlu0 %572
      %v574 = vsel %vm504, %v495, -inf
      %575 = vmax.xlane.f32.xlu0 %v574
      %v576 = vpop.xlane.xlu0 %575
      %v577 = vsel %vm504, %v496, -inf
      %578 = vmax.xlane.f32.xlu0 %v577
      %v579 = vpop.xlane.xlu0 %578
      %v580 = vsel %vm504, %v497, -inf
      %581 = vmax.xlane.f32.xlu0 %v580
      %v582 = vpop.xlane.xlu0 %581
      %v583 = vsel %vm504, %v498, -inf
      %584 = vmax.xlane.f32.xlu0 %v583
      %v585 = vpop.xlane.xlu0 %584
      %v586 = vsel %vm504, %v499, -inf
      %587 = vmax.xlane.f32.xlu0 %v586
      %v588 = vpop.xlane.xlu0 %587
      %v589 = vsel %vm504, %v500, -inf
      %590 = vmax.xlane.f32.xlu0 %v589
      %v591 = vpop.xlane.xlu0 %590
      %v592 = vsel %vm504, %v501, -inf
      %593 = vmax.xlane.f32.xlu0 %v592
      %v594 = vpop.xlane.xlu0 %593
      %v595 = vsel %vm504, %v502, -inf
      %596 = vmax.xlane.f32.xlu0 %v595
      %v597 = vpop.xlane.xlu0 %596
      %v598 = vsel %vm504, %v503, -inf
      %599 = vmax.xlane.f32.xlu0 %v598
      %v600 = vpop.xlane.xlu0 %599
      %vm601 = vcmp.lt.f32.partialorder %v507, 1e-05
      %vm602 = vcmp.lt.f32.partialorder %v510, 1e-05
      %vm603 = vcmp.lt.f32.partialorder %v513, 1e-05
      %vm604 = vcmp.lt.f32.partialorder %v516, 1e-05
      %vm605 = vcmp.lt.f32.partialorder %v519, 1e-05
      %vm606 = vcmp.lt.f32.partialorder %v522, 1e-05
      %vm607 = vcmp.lt.f32.partialorder %v525, 1e-05
      %vm608 = vcmp.lt.f32.partialorder %v528, 1e-05
      %vm609 = vcmp.lt.f32.partialorder %v531, 1e-05
      %vm610 = vcmp.lt.f32.partialorder %v534, 1e-05
      %vm611 = vcmp.lt.f32.partialorder %v537, 1e-05
      %vm612 = vcmp.lt.f32.partialorder %v540, 1e-05
      %vm613 = vcmp.lt.f32.partialorder %v543, 1e-05
      %vm614 = vcmp.lt.f32.partialorder %v546, 1e-05
      %vm615 = vcmp.lt.f32.partialorder %v549, 1e-05
      %vm616 = vcmp.lt.f32.partialorder %v552, 1e-05
      %vm617 = vcmp.lt.f32.partialorder %v555, 1e-05
      %vm618 = vcmp.lt.f32.partialorder %v558, 1e-05
      %vm619 = vcmp.lt.f32.partialorder %v561, 1e-05
      %vm620 = vcmp.lt.f32.partialorder %v564, 1e-05
      %vm621 = vcmp.lt.f32.partialorder %v567, 1e-05
      %vm622 = vcmp.lt.f32.partialorder %v570, 1e-05
      %vm623 = vcmp.lt.f32.partialorder %v573, 1e-05
      %vm624 = vcmp.lt.f32.partialorder %v576, 1e-05
      %vm625 = vcmp.lt.f32.partialorder %v579, 1e-05
      %vm626 = vcmp.lt.f32.partialorder %v582, 1e-05
      %vm627 = vcmp.lt.f32.partialorder %v585, 1e-05
      %vm628 = vcmp.lt.f32.partialorder %v588, 1e-05
      %vm629 = vcmp.lt.f32.partialorder %v591, 1e-05
      %vm630 = vcmp.lt.f32.partialorder %v594, 1e-05
      %vm631 = vcmp.lt.f32.partialorder %v597, 1e-05
      %vm632 = vcmp.lt.f32.partialorder %v600, 1e-05
      %v633 = vsel %vm601, -1e+09, 0.0
      %v634 = vsel %vm602, -1e+09, 0.0
      %v635 = vsel %vm603, -1e+09, 0.0
      %v636 = vsel %vm604, -1e+09, 0.0
      %v637 = vsel %vm605, -1e+09, 0.0
      %v638 = vsel %vm606, -1e+09, 0.0
      %v639 = vsel %vm607, -1e+09, 0.0
      %v640 = vsel %vm608, -1e+09, 0.0
      %v641 = vsel %vm609, -1e+09, 0.0
      %v642 = vsel %vm610, -1e+09, 0.0
      %v643 = vsel %vm611, -1e+09, 0.0
      %v644 = vsel %vm612, -1e+09, 0.0
      %v645 = vsel %vm613, -1e+09, 0.0
      %v646 = vsel %vm614, -1e+09, 0.0
      %v647 = vsel %vm615, -1e+09, 0.0
      %v648 = vsel %vm616, -1e+09, 0.0
      %v649 = vsel %vm617, -1e+09, 0.0
      %v650 = vsel %vm618, -1e+09, 0.0
      %v651 = vsel %vm619, -1e+09, 0.0
      %v652 = vsel %vm620, -1e+09, 0.0
      %v653 = vsel %vm621, -1e+09, 0.0
      %v654 = vsel %vm622, -1e+09, 0.0
      %v655 = vsel %vm623, -1e+09, 0.0
      %v656 = vsel %vm624, -1e+09, 0.0
      %v657 = vsel %vm625, -1e+09, 0.0
      %v658 = vsel %vm626, -1e+09, 0.0
      %v659 = vsel %vm627, -1e+09, 0.0
      %v660 = vsel %vm628, -1e+09, 0.0
      %v661 = vsel %vm629, -1e+09, 0.0
      %v662 = vsel %vm630, -1e+09, 0.0
      %v663 = vsel %vm631, -1e+09, 0.0
      %v664 = vsel %vm632, -1e+09, 0.0
      %v665 = vld [vmem:[%s3] sm:$0xff]
      %v666 = vld [vmem:[%s3 + $0x8] sm:$0xff]
      %v667 = vld [vmem:[%s3 + $0x10] sm:$0xff]
      %v668 = vld [vmem:[%s3 + $0x18] sm:$0xff]
      %v669 = vld [vmem:[%s3 + $0x20] sm:$0xff]
      %v670 = vld [vmem:[%s3 + $0x28] sm:$0xff]
      %v671 = vld [vmem:[%s3 + $0x30] sm:$0xff]
      %v672 = vld [vmem:[%s3 + $0x38] sm:$0xff]
      %v673 = vld [vmem:[%s3 + $0x40] sm:$0xff]
      %v674 = vld [vmem:[%s3 + $0x48] sm:$0xff]
      %v675 = vld [vmem:[%s3 + $0x50] sm:$0xff]
      %v676 = vld [vmem:[%s3 + $0x58] sm:$0xff]
      %v677 = vld [vmem:[%s3 + $0x60] sm:$0xff]
      %v678 = vld [vmem:[%s3 + $0x68] sm:$0xff]
      %v679 = vld [vmem:[%s3 + $0x70] sm:$0xff]
      %v680 = vld [vmem:[%s3 + $0x78] sm:$0xff]
      %v681 = vld [vmem:[%s3 + $0x80] sm:$0xff]
      %v682 = vld [vmem:[%s3 + $0x88] sm:$0xff]
      %v683 = vld [vmem:[%s3 + $0x90] sm:$0xff]
      %v684 = vld [vmem:[%s3 + $0x98] sm:$0xff]
      %v685 = vld [vmem:[%s3 + $0xa0] sm:$0xff]
      %v686 = vld [vmem:[%s3 + $0xa8] sm:$0xff]
      %v687 = vld [vmem:[%s3 + $0xb0] sm:$0xff]
      %v688 = vld [vmem:[%s3 + $0xb8] sm:$0xff]
      %v689 = vld [vmem:[%s3 + $0xc0] sm:$0xff]
      %v690 = vld [vmem:[%s3 + $0xc8] sm:$0xff]
      %v691 = vld [vmem:[%s3 + $0xd0] sm:$0xff]
      %v692 = vld [vmem:[%s3 + $0xd8] sm:$0xff]
      %v693 = vld [vmem:[%s3 + $0xe0] sm:$0xff]
      %v694 = vld [vmem:[%s3 + $0xe8] sm:$0xff]
      %v695 = vld [vmem:[%s3 + $0xf0] sm:$0xff]
      %v696 = vld [vmem:[%s3 + $0xf8] sm:$0xff]
      %697 = vset.pattern.permute.xlu0 0
      %698 = vperm.xlu0 %697, %v665
      %v699 = vpop.permute.xlu0 %698
      %700 = vset.pattern.permute.xlu0 0
      %701 = vperm.xlu0 %700, %v666
      %v702 = vpop.permute.xlu0 %701
      %703 = vset.pattern.permute.xlu0 0
      %704 = vperm.xlu0 %703, %v667
      %v705 = vpop.permute.xlu0 %704
      %706 = vset.pattern.permute.xlu0 0
      %707 = vperm.xlu0 %706, %v668
      %v708 = vpop.permute.xlu0 %707
      %709 = vset.pattern.permute.xlu0 0
      %710 = vperm.xlu0 %709, %v669
      %v711 = vpop.permute.xlu0 %710
      %712 = vset.pattern.permute.xlu0 0
      %713 = vperm.xlu0 %712, %v670
      %v714 = vpop.permute.xlu0 %713
      %715 = vset.pattern.permute.xlu0 0
      %716 = vperm.xlu0 %715, %v671
      %v717 = vpop.permute.xlu0 %716
      %718 = vset.pattern.permute.xlu0 0
      %719 = vperm.xlu0 %718, %v672
      %v720 = vpop.permute.xlu0 %719
      %721 = vset.pattern.permute.xlu0 0
      %722 = vperm.xlu0 %721, %v673
      %v723 = vpop.permute.xlu0 %722
      %724 = vset.pattern.permute.xlu0 0
      %725 = vperm.xlu0 %724, %v674
      %v726 = vpop.permute.xlu0 %725
      %727 = vset.pattern.permute.xlu0 0
      %728 = vperm.xlu0 %727, %v675
      %v729 = vpop.permute.xlu0 %728
      %730 = vset.pattern.permute.xlu0 0
      %731 = vperm.xlu0 %730, %v676
      %v732 = vpop.permute.xlu0 %731
      %733 = vset.pattern.permute.xlu0 0
      %734 = vperm.xlu0 %733, %v677
      %v735 = vpop.permute.xlu0 %734
      %736 = vset.pattern.permute.xlu0 0
      %737 = vperm.xlu0 %736, %v678
      %v738 = vpop.permute.xlu0 %737
      %739 = vset.pattern.permute.xlu0 0
      %740 = vperm.xlu0 %739, %v679
      %v741 = vpop.permute.xlu0 %740
      %742 = vset.pattern.permute.xlu0 0
      %743 = vperm.xlu0 %742, %v680
      %v744 = vpop.permute.xlu0 %743
      %745 = vset.pattern.permute.xlu0 0
      %746 = vperm.xlu0 %745, %v681
      %v747 = vpop.permute.xlu0 %746
      %748 = vset.pattern.permute.xlu0 0
      %749 = vperm.xlu0 %748, %v682
      %v750 = vpop.permute.xlu0 %749
      %751 = vset.pattern.permute.xlu0 0
      %752 = vperm.xlu0 %751, %v683
      %v753 = vpop.permute.xlu0 %752
      %754 = vset.pattern.permute.xlu0 0
      %755 = vperm.xlu0 %754, %v684
      %v756 = vpop.permute.xlu0 %755
      %757 = vset.pattern.permute.xlu0 0
      %758 = vperm.xlu0 %757, %v685
      %v759 = vpop.permute.xlu0 %758
      %760 = vset.pattern.permute.xlu0 0
      %761 = vperm.xlu0 %760, %v686
      %v762 = vpop.permute.xlu0 %761
      %763 = vset.pattern.permute.xlu0 0
      %764 = vperm.xlu0 %763, %v687
      %v765 = vpop.permute.xlu0 %764
      %766 = vset.pattern.permute.xlu0 0
      %767 = vperm.xlu0 %766, %v688
      %v768 = vpop.permute.xlu0 %767
      %769 = vset.pattern.permute.xlu0 0
      %770 = vperm.xlu0 %769, %v689
      %v771 = vpop.permute.xlu0 %770
      %772 = vset.pattern.permute.xlu0 0
      %773 = vperm.xlu0 %772, %v690
      %v774 = vpop.permute.xlu0 %773
      %775 = vset.pattern.permute.xlu0 0
      %776 = vperm.xlu0 %775, %v691
      %v777 = vpop.permute.xlu0 %776
      %778 = vset.pattern.permute.xlu0 0
      %779 = vperm.xlu0 %778, %v692
      %v780 = vpop.permute.xlu0 %779
      %781 = vset.pattern.permute.xlu0 0
      %782 = vperm.xlu0 %781, %v693
      %v783 = vpop.permute.xlu0 %782
      %784 = vset.pattern.permute.xlu0 0
      %785 = vperm.xlu0 %784, %v694
      %v786 = vpop.permute.xlu0 %785
      %787 = vset.pattern.permute.xlu0 0
      %788 = vperm.xlu0 %787, %v695
      %v789 = vpop.permute.xlu0 %788
      %790 = vset.pattern.permute.xlu0 0
      %791 = vperm.xlu0 %790, %v696
      %v792 = vpop.permute.xlu0 %791
      %v793 = vld [vmem:[%s4] sm:$0x3]
      %v794 = vperm.slane %v793, 0
      %v795 = vperm.slane %v793, 1
      %vm796 = vcmp.eq.s32.totalorder %v699, %v794
      %vm797 = vcmp.eq.s32.totalorder %v699, %v795
      %vm798 = vcmp.eq.s32.totalorder %v702, %v794
      %vm799 = vcmp.eq.s32.totalorder %v702, %v795
      %vm800 = vcmp.eq.s32.totalorder %v705, %v794
      %vm801 = vcmp.eq.s32.totalorder %v705, %v795
      %vm802 = vcmp.eq.s32.totalorder %v708, %v794
      %vm803 = vcmp.eq.s32.totalorder %v708, %v795
      %vm804 = vcmp.eq.s32.totalorder %v711, %v794
      %vm805 = vcmp.eq.s32.totalorder %v711, %v795
      %vm806 = vcmp.eq.s32.totalorder %v714, %v794
      %vm807 = vcmp.eq.s32.totalorder %v714, %v795
      %vm808 = vcmp.eq.s32.totalorder %v717, %v794
      %vm809 = vcmp.eq.s32.totalorder %v717, %v795
      %vm810 = vcmp.eq.s32.totalorder %v720, %v794
      %vm811 = vcmp.eq.s32.totalorder %v720, %v795
      %vm812 = vcmp.eq.s32.totalorder %v723, %v794
      %vm813 = vcmp.eq.s32.totalorder %v723, %v795
      %vm814 = vcmp.eq.s32.totalorder %v726, %v794
      %vm815 = vcmp.eq.s32.totalorder %v726, %v795
      %vm816 = vcmp.eq.s32.totalorder %v729, %v794
      %vm817 = vcmp.eq.s32.totalorder %v729, %v795
      %vm818 = vcmp.eq.s32.totalorder %v732, %v794
      %vm819 = vcmp.eq.s32.totalorder %v732, %v795
      %vm820 = vcmp.eq.s32.totalorder %v735, %v794
      %vm821 = vcmp.eq.s32.totalorder %v735, %v795
      %vm822 = vcmp.eq.s32.totalorder %v738, %v794
      %vm823 = vcmp.eq.s32.totalorder %v738, %v795
      %vm824 = vcmp.eq.s32.totalorder %v741, %v794
      %vm825 = vcmp.eq.s32.totalorder %v741, %v795
      %vm826 = vcmp.eq.s32.totalorder %v744, %v794
      %vm827 = vcmp.eq.s32.totalorder %v744, %v795
      %vm828 = vcmp.eq.s32.totalorder %v747, %v794
      %vm829 = vcmp.eq.s32.totalorder %v747, %v795
      %vm830 = vcmp.eq.s32.totalorder %v750, %v794
      %vm831 = vcmp.eq.s32.totalorder %v750, %v795
      %vm832 = vcmp.eq.s32.totalorder %v753, %v794
      %vm833 = vcmp.eq.s32.totalorder %v753, %v795
      %vm834 = vcmp.eq.s32.totalorder %v756, %v794
      %vm835 = vcmp.eq.s32.totalorder %v756, %v795
      %vm836 = vcmp.eq.s32.totalorder %v759, %v794
      %vm837 = vcmp.eq.s32.totalorder %v759, %v795
      %vm838 = vcmp.eq.s32.totalorder %v762, %v794
      %vm839 = vcmp.eq.s32.totalorder %v762, %v795
      %vm840 = vcmp.eq.s32.totalorder %v765, %v794
      %vm841 = vcmp.eq.s32.totalorder %v765, %v795
      %vm842 = vcmp.eq.s32.totalorder %v768, %v794
      %vm843 = vcmp.eq.s32.totalorder %v768, %v795
      %vm844 = vcmp.eq.s32.totalorder %v771, %v794
      %vm845 = vcmp.eq.s32.totalorder %v771, %v795
      %vm846 = vcmp.eq.s32.totalorder %v774, %v794
      %vm847 = vcmp.eq.s32.totalorder %v774, %v795
      %vm848 = vcmp.eq.s32.totalorder %v777, %v794
      %vm849 = vcmp.eq.s32.totalorder %v777, %v795
      %vm850 = vcmp.eq.s32.totalorder %v780, %v794
      %vm851 = vcmp.eq.s32.totalorder %v780, %v795
      %vm852 = vcmp.eq.s32.totalorder %v783, %v794
      %vm853 = vcmp.eq.s32.totalorder %v783, %v795
      %vm854 = vcmp.eq.s32.totalorder %v786, %v794
      %vm855 = vcmp.eq.s32.totalorder %v786, %v795
      %vm856 = vcmp.eq.s32.totalorder %v789, %v794
      %vm857 = vcmp.eq.s32.totalorder %v789, %v795
      %vm858 = vcmp.eq.s32.totalorder %v792, %v794
      %vm859 = vcmp.eq.s32.totalorder %v792, %v795
      %v860 = vsel %vm796, %v633, -1e+30
      %v861 = vsel %vm797, %v633, -1e+30
      %v862 = vsel %vm798, %v634, -1e+30
      %v863 = vsel %vm799, %v634, -1e+30
      %v864 = vsel %vm800, %v635, -1e+30
      %v865 = vsel %vm801, %v635, -1e+30
      %v866 = vsel %vm802, %v636, -1e+30
      %v867 = vsel %vm803, %v636, -1e+30
      %v868 = vsel %vm804, %v637, -1e+30
      %v869 = vsel %vm805, %v637, -1e+30
      %v870 = vsel %vm806, %v638, -1e+30
      %v871 = vsel %vm807, %v638, -1e+30
      %v872 = vsel %vm808, %v639, -1e+30
      %v873 = vsel %vm809, %v639, -1e+30
      %v874 = vsel %vm810, %v640, -1e+30
      %v875 = vsel %vm811, %v640, -1e+30
      %v876 = vsel %vm812, %v641, -1e+30
      %v877 = vsel %vm813, %v641, -1e+30
      %v878 = vsel %vm814, %v642, -1e+30
      %v879 = vsel %vm815, %v642, -1e+30
      %v880 = vsel %vm816, %v643, -1e+30
      %v881 = vsel %vm817, %v643, -1e+30
      %v882 = vsel %vm818, %v644, -1e+30
      %v883 = vsel %vm819, %v644, -1e+30
      %v884 = vsel %vm820, %v645, -1e+30
      %v885 = vsel %vm821, %v645, -1e+30
      %v886 = vsel %vm822, %v646, -1e+30
      %v887 = vsel %vm823, %v646, -1e+30
      %v888 = vsel %vm824, %v647, -1e+30
      %v889 = vsel %vm825, %v647, -1e+30
      %v890 = vsel %vm826, %v648, -1e+30
      %v891 = vsel %vm827, %v648, -1e+30
      %v892 = vsel %vm828, %v649, -1e+30
      %v893 = vsel %vm829, %v649, -1e+30
      %v894 = vsel %vm830, %v650, -1e+30
      %v895 = vsel %vm831, %v650, -1e+30
      %v896 = vsel %vm832, %v651, -1e+30
      %v897 = vsel %vm833, %v651, -1e+30
      %v898 = vsel %vm834, %v652, -1e+30
      %v899 = vsel %vm835, %v652, -1e+30
      %v900 = vsel %vm836, %v653, -1e+30
      %v901 = vsel %vm837, %v653, -1e+30
      %v902 = vsel %vm838, %v654, -1e+30
      %v903 = vsel %vm839, %v654, -1e+30
      %v904 = vsel %vm840, %v655, -1e+30
      %v905 = vsel %vm841, %v655, -1e+30
      %v906 = vsel %vm842, %v656, -1e+30
      %v907 = vsel %vm843, %v656, -1e+30
      %v908 = vsel %vm844, %v657, -1e+30
      %v909 = vsel %vm845, %v657, -1e+30
      %v910 = vsel %vm846, %v658, -1e+30
      %v911 = vsel %vm847, %v658, -1e+30
      %v912 = vsel %vm848, %v659, -1e+30
      %v913 = vsel %vm849, %v659, -1e+30
      %v914 = vsel %vm850, %v660, -1e+30
      %v915 = vsel %vm851, %v660, -1e+30
      %v916 = vsel %vm852, %v661, -1e+30
      %v917 = vsel %vm853, %v661, -1e+30
      %v918 = vsel %vm854, %v662, -1e+30
      %v919 = vsel %vm855, %v662, -1e+30
      %v920 = vsel %vm856, %v663, -1e+30
      %v921 = vsel %vm857, %v663, -1e+30
      %v922 = vsel %vm858, %v664, -1e+30
      %v923 = vsel %vm859, %v664, -1e+30
      %v924 = vpack.c.bf16 %v473, %v472
      %v925 = vpack.c.bf16 %v475, %v474
      %v926 = vpack.c.bf16 %v477, %v476
      %v927 = vpack.c.bf16 %v479, %v478
      %v928 = vpack.c.bf16 %v481, %v480
      %v929 = vpack.c.bf16 %v483, %v482
      %v930 = vpack.c.bf16 %v485, %v484
      %v931 = vpack.c.bf16 %v487, %v486
      %v932 = vpack.c.bf16 %v489, %v488
      %v933 = vpack.c.bf16 %v491, %v490
      %v934 = vpack.c.bf16 %v493, %v492
      %v935 = vpack.c.bf16 %v495, %v494
      %v936 = vpack.c.bf16 %v497, %v496
      %v937 = vpack.c.bf16 %v499, %v498
      %v938 = vpack.c.bf16 %v501, %v500
      %v939 = vpack.c.bf16 %v503, %v502
      %v940 = vld [vmem:[%s2] sm:$0xf]
      %v941 = vld [vmem:[%s2 + $0x4] sm:$0x1]
      %v942 = vld [vmem:[%s1] sm:$0xff]
      %v943 = vld [vmem:[%s1 + $0x8] sm:$0xff]
      %v944 = vld [vmem:[%s1 + $0x10] sm:$0xff]
      %v945 = vld [vmem:[%s1 + $0x18] sm:$0xff]
      %v946 = vld [vmem:[%s1 + $0x20] sm:$0xff]
      %v947 = vld [vmem:[%s1 + $0x28] sm:$0xff]
      %v948 = vld [vmem:[%s1 + $0x30] sm:$0xff]
      %v949 = vld [vmem:[%s1 + $0x38] sm:$0xff]
      %v950 = vld [vmem:[%s1 + $0x40] sm:$0xff]
      %v951 = vld [vmem:[%s1 + $0x48] sm:$0xff]
      %v952 = vld [vmem:[%s1 + $0x50] sm:$0xff]
      %v953 = vld [vmem:[%s1 + $0x58] sm:$0xff]
      %v954 = vld [vmem:[%s1 + $0x60] sm:$0xff]
      %v955 = vld [vmem:[%s1 + $0x68] sm:$0xff]
      %v956 = vld [vmem:[%s1 + $0x70] sm:$0xff]
      %v957 = vld [vmem:[%s1 + $0x78] sm:$0xff]
      %v958 = vld [vmem:[%s1 + $0x80] sm:$0xff]
      %v959 = vld [vmem:[%s1 + $0x88] sm:$0xff]
      %v960 = vld [vmem:[%s1 + $0x90] sm:$0xff]
      %v961 = vld [vmem:[%s1 + $0x98] sm:$0xff]
      %v962 = vld [vmem:[%s1 + $0xa0] sm:$0xff]
      %v963 = vld [vmem:[%s1 + $0xa8] sm:$0xff]
      %v964 = vld [vmem:[%s1 + $0xb0] sm:$0xff]
      %v965 = vld [vmem:[%s1 + $0xb8] sm:$0xff]
      %v966 = vld [vmem:[%s1 + $0xc0] sm:$0xff]
      %v967 = vld [vmem:[%s1 + $0xc8] sm:$0xff]
      %v968 = vld [vmem:[%s1 + $0xd0] sm:$0xff]
      %v969 = vld [vmem:[%s1 + $0xd8] sm:$0xff]
      %v970 = vld [vmem:[%s1 + $0xe0] sm:$0xff]
      %v971 = vld [vmem:[%s1 + $0xe8] sm:$0xff]
      %v972 = vld [vmem:[%s1 + $0xf0] sm:$0xff]
      %v973 = vld [vmem:[%s1 + $0xf8] sm:$0xff]
      %v976 = vunpack.c.l.b16 %v940
      %v977 = vunpack.c.l.b16 %v941
      %v978 = vpack.c.b16 %v977, %v976
      %v980 = vsel %vm504, %v924, 0
      %v983 = vsel %vm504, %v925, 0
      %v986 = vsel %vm504, %v926, 0
      %v989 = vsel %vm504, %v927, 0
      %v992 = vsel %vm504, %v928, 0
      %v995 = vsel %vm504, %v929, 0
      %v998 = vsel %vm504, %v930, 0
      %v1001 = vsel %vm504, %v931, 0
      %v1004 = vsel %vm504, %v932, 0
      %v1007 = vsel %vm504, %v933, 0
      %v1010 = vsel %vm504, %v934, 0
      %v1013 = vsel %vm504, %v935, 0
      %v1016 = vsel %vm504, %v936, 0
      %v1019 = vsel %vm504, %v937, 0
      %v1022 = vsel %vm504, %v938, 0
      %v1025 = vsel %vm504, %v939, 0
      %vm1027 = vcmask 1044480
      %v1029 = vsel %vm1027, %v978, 0
      %1031 = vmatpush.bf16.msra.mxu0 0
      %1032 = vmatpush.bf16.msra.mxu0 0
      %1033 = vmatpush.bf16.msra.mxu0 0
      %1034 = vmatpush.bf16.msra.mxu0 0
      %1035 = vmatpush.bf16.msra.mxu0 0
      %1036 = vmatpush.bf16.msra.mxu0 0
      %1037 = vmatpush.bf16.msra.mxu0 0
      %1038 = vmatpush.bf16.msra.mxu0 %v1029
      %1039 = vmatmul.bf16.gmra.mxu0 %v980
      %v1040 = vpop.f32.mrf.mxu0
      %v1041 = vadd.f32 %v942, %v1040
      %v1042 = vpop.f32.mrf.mxu0
      %v1043 = vadd.f32 %v943, %v1042
      %1044 = vmatmul.bf16.gmra.mxu0 %v983
      %v1045 = vpop.f32.mrf.mxu0
      %v1046 = vadd.f32 %v944, %v1045
      %v1047 = vpop.f32.mrf.mxu0
      %v1048 = vadd.f32 %v945, %v1047
      %1049 = vmatmul.bf16.gmra.mxu0 %v986
      %v1050 = vpop.f32.mrf.mxu0
      %v1051 = vadd.f32 %v946, %v1050
      %v1052 = vpop.f32.mrf.mxu0
      %v1053 = vadd.f32 %v947, %v1052
      %1054 = vmatmul.bf16.gmra.mxu0 %v989
      %v1055 = vpop.f32.mrf.mxu0
      %v1056 = vadd.f32 %v948, %v1055
      %v1057 = vpop.f32.mrf.mxu0
      %v1058 = vadd.f32 %v949, %v1057
      %1059 = vmatmul.bf16.gmra.mxu0 %v992
      %v1060 = vpop.f32.mrf.mxu0
      %v1061 = vadd.f32 %v950, %v1060
      %v1062 = vpop.f32.mrf.mxu0
      %v1063 = vadd.f32 %v951, %v1062
      %1064 = vmatmul.bf16.gmra.mxu0 %v995
      %v1065 = vpop.f32.mrf.mxu0
      %v1066 = vadd.f32 %v952, %v1065
      %v1067 = vpop.f32.mrf.mxu0
      %v1068 = vadd.f32 %v953, %v1067
      %1069 = vmatmul.bf16.gmra.mxu0 %v998
      %v1070 = vpop.f32.mrf.mxu0
      %v1071 = vadd.f32 %v954, %v1070
      %v1072 = vpop.f32.mrf.mxu0
      %v1073 = vadd.f32 %v955, %v1072
      %1074 = vmatmul.bf16.gmra.mxu0 %v1001
      %v1075 = vpop.f32.mrf.mxu0
      %v1076 = vadd.f32 %v956, %v1075
      %v1077 = vpop.f32.mrf.mxu0
      %v1078 = vadd.f32 %v957, %v1077
      %1079 = vmatmul.bf16.gmra.mxu0 %v1004
      %v1080 = vpop.f32.mrf.mxu0
      %v1081 = vadd.f32 %v958, %v1080
      %v1082 = vpop.f32.mrf.mxu0
      %v1083 = vadd.f32 %v959, %v1082
      %1084 = vmatmul.bf16.gmra.mxu0 %v1007
      %v1085 = vpop.f32.mrf.mxu0
      %v1086 = vadd.f32 %v960, %v1085
      %v1087 = vpop.f32.mrf.mxu0
      %v1088 = vadd.f32 %v961, %v1087
      %1089 = vmatmul.bf16.gmra.mxu0 %v1010
      %v1090 = vpop.f32.mrf.mxu0
      %v1091 = vadd.f32 %v962, %v1090
      %v1092 = vpop.f32.mrf.mxu0
      %v1093 = vadd.f32 %v963, %v1092
      %1094 = vmatmul.bf16.gmra.mxu0 %v1013
      %v1095 = vpop.f32.mrf.mxu0
      %v1096 = vadd.f32 %v964, %v1095
      %v1097 = vpop.f32.mrf.mxu0
      %v1098 = vadd.f32 %v965, %v1097
      %1099 = vmatmul.bf16.gmra.mxu0 %v1016
      %v1100 = vpop.f32.mrf.mxu0
      %v1101 = vadd.f32 %v966, %v1100
      %v1102 = vpop.f32.mrf.mxu0
      %v1103 = vadd.f32 %v967, %v1102
      %1104 = vmatmul.bf16.gmra.mxu0 %v1019
      %v1105 = vpop.f32.mrf.mxu0
      %v1106 = vadd.f32 %v968, %v1105
      %v1107 = vpop.f32.mrf.mxu0
      %v1108 = vadd.f32 %v969, %v1107
      %1109 = vmatmul.bf16.gmra.mxu0 %v1022
      %v1110 = vpop.f32.mrf.mxu0
      %v1111 = vadd.f32 %v970, %v1110
      %v1112 = vpop.f32.mrf.mxu0
      %v1113 = vadd.f32 %v971, %v1112
      %1114 = vmatmul.bf16.gmra.mxu0 %v1025
      %v1115 = vpop.f32.mrf.mxu0
      %v1116 = vadd.f32 %v972, %v1115
      %v1117 = vpop.f32.mrf.mxu0
      %v1118 = vadd.f32 %v973, %v1117
      %1119 = vdwg.mxu0
      %v1120 = vlaneseq
      %v1121 = vand.u32 %v1120, 127
      %vm1122 = vcmp.eq.s32.totalorder %v1121, 31
      %v1123 = vsel %vm1122, 1, 0
      %vm1124 = vcmp.eq.s32.totalorder %v1123, 1
      %v1125 = vsel %vm1124, %v507, %v1041
      %v1126 = vsel %vm1124, %v510, %v1043
      %v1127 = vsel %vm1124, %v513, %v1046
      %v1128 = vsel %vm1124, %v516, %v1048
      %v1129 = vsel %vm1124, %v519, %v1051
      %v1130 = vsel %vm1124, %v522, %v1053
      %v1131 = vsel %vm1124, %v525, %v1056
      %v1132 = vsel %vm1124, %v528, %v1058
      %v1133 = vsel %vm1124, %v531, %v1061
      %v1134 = vsel %vm1124, %v534, %v1063
      %v1135 = vsel %vm1124, %v537, %v1066
      %v1136 = vsel %vm1124, %v540, %v1068
      %v1137 = vsel %vm1124, %v543, %v1071
      %v1138 = vsel %vm1124, %v546, %v1073
      %v1139 = vsel %vm1124, %v549, %v1076
      %v1140 = vsel %vm1124, %v552, %v1078
      %v1141 = vsel %vm1124, %v555, %v1081
      %v1142 = vsel %vm1124, %v558, %v1083
      %v1143 = vsel %vm1124, %v561, %v1086
      %v1144 = vsel %vm1124, %v564, %v1088
      %v1145 = vsel %vm1124, %v567, %v1091
      %v1146 = vsel %vm1124, %v570, %v1093
      %v1147 = vsel %vm1124, %v573, %v1096
      %v1148 = vsel %vm1124, %v576, %v1098
      %v1149 = vsel %vm1124, %v579, %v1101
      %v1150 = vsel %vm1124, %v582, %v1103
      %v1151 = vsel %vm1124, %v585, %v1106
      %v1152 = vsel %vm1124, %v588, %v1108
      %v1153 = vsel %vm1124, %v591, %v1111
      %v1154 = vsel %vm1124, %v594, %v1113
      %v1155 = vsel %vm1124, %v597, %v1116
      %v1156 = vsel %vm1124, %v600, %v1118
      %v1157 = vld [vmem:[%s9] sm:$0xf]
      %v1158 = vpack.c.bf16 %v1126, %v1125
      %v1159 = vpack.c.bf16 %v1128, %v1127
      %v1160 = vpack.c.bf16 %v1130, %v1129
      %v1161 = vpack.c.bf16 %v1132, %v1131
      %v1162 = vpack.c.bf16 %v1134, %v1133
      %v1163 = vpack.c.bf16 %v1136, %v1135
      %v1164 = vpack.c.bf16 %v1138, %v1137
      %v1165 = vpack.c.bf16 %v1140, %v1139
      %v1166 = vpack.c.bf16 %v1142, %v1141
      %v1167 = vpack.c.bf16 %v1144, %v1143
      %v1168 = vpack.c.bf16 %v1146, %v1145
      %v1169 = vpack.c.bf16 %v1148, %v1147
      %v1170 = vpack.c.bf16 %v1150, %v1149
      %v1171 = vpack.c.bf16 %v1152, %v1151
      %v1172 = vpack.c.bf16 %v1154, %v1153
      %v1173 = vpack.c.bf16 %v1156, %v1155
      %v1174 = vld [vmem:[%s5] sm:$0xf]
      %v1175 = vld [vmem:[%s5 + $0x4] sm:$0xf]
      %v1176 = vld [vmem:[%s5 + $0x8] sm:$0xf]
      %v1177 = vld [vmem:[%s5 + $0xc] sm:$0xf]
      %v1178 = vld [vmem:[%s6] sm:$0x1]
      %v1180 = vperm.slane %v1178, 0
      %v1186 = vunpack.c.l.b16 %v1174
      %v1187 = vunpack.c.l.b16 %v1175
      %v1188 = vunpack.c.l.b16 %v1176
      %v1189 = vunpack.c.l.b16 %v1177
      %v1190 = vpack.c.b16 %v1187, %v1186
      %v1191 = vpack.c.b16 %v1189, %v1188
      %vm1194 = vcmask 261120
      %v1196 = vsel %vm1194, %v1158, 0
      %v1199 = vsel %vm1194, %v1159, 0
      %v1202 = vsel %vm1194, %v1160, 0
      %v1205 = vsel %vm1194, %v1161, 0
      %v1208 = vsel %vm1194, %v1162, 0
      %v1211 = vsel %vm1194, %v1163, 0
      %v1214 = vsel %vm1194, %v1164, 0
      %v1217 = vsel %vm1194, %v1165, 0
      %v1220 = vsel %vm1194, %v1166, 0
      %v1223 = vsel %vm1194, %v1167, 0
      %v1226 = vsel %vm1194, %v1168, 0
      %v1229 = vsel %vm1194, %v1169, 0
      %v1232 = vsel %vm1194, %v1170, 0
      %v1235 = vsel %vm1194, %v1171, 0
      %v1238 = vsel %vm1194, %v1172, 0
      %v1241 = vsel %vm1194, %v1173, 0
      %1243 = vmatpush.bf16.msra.mxu0 0
      %1244 = vmatpush.bf16.msra.mxu0 0
      %1245 = vmatpush.bf16.msra.mxu0 0
      %1246 = vmatpush.bf16.msra.mxu0 0
      %1247 = vmatpush.bf16.msra.mxu0 0
      %1248 = vmatpush.bf16.msra.mxu0 0
      %1249 = vmatpush.bf16.msra.mxu0 %v1191
      %1250 = vmatpush.bf16.msra.mxu0 %v1190
      %1251 = vmatmul.bf16.gmra.mxu0 %v1196
      %v1252 = vpop.f32.mrf.mxu0
      %v1253 = vadd.f32 %v1180, %v1252
      %v1254 = vpop.f32.mrf.mxu0
      %v1255 = vadd.f32 %v1180, %v1254
      %1256 = vmatmul.bf16.gmra.mxu0 %v1199
      %v1257 = vpop.f32.mrf.mxu0
      %v1258 = vadd.f32 %v1180, %v1257
      %v1259 = vpop.f32.mrf.mxu0
      %v1260 = vadd.f32 %v1180, %v1259
      %1261 = vmatmul.bf16.gmra.mxu0 %v1202
      %v1262 = vpop.f32.mrf.mxu0
      %v1263 = vadd.f32 %v1180, %v1262
      %v1264 = vpop.f32.mrf.mxu0
      %v1265 = vadd.f32 %v1180, %v1264
      %1266 = vmatmul.bf16.gmra.mxu0 %v1205
      %v1267 = vpop.f32.mrf.mxu0
      %v1268 = vadd.f32 %v1180, %v1267
      %v1269 = vpop.f32.mrf.mxu0
      %v1270 = vadd.f32 %v1180, %v1269
      %1271 = vmatmul.bf16.gmra.mxu0 %v1208
      %v1272 = vpop.f32.mrf.mxu0
      %v1273 = vadd.f32 %v1180, %v1272
      %v1274 = vpop.f32.mrf.mxu0
      %v1275 = vadd.f32 %v1180, %v1274
      %1276 = vmatmul.bf16.gmra.mxu0 %v1211
      %v1277 = vpop.f32.mrf.mxu0
      %v1278 = vadd.f32 %v1180, %v1277
      %v1279 = vpop.f32.mrf.mxu0
      %v1280 = vadd.f32 %v1180, %v1279
      %1281 = vmatmul.bf16.gmra.mxu0 %v1214
      %v1282 = vpop.f32.mrf.mxu0
      %v1283 = vadd.f32 %v1180, %v1282
      %v1284 = vpop.f32.mrf.mxu0
      %v1285 = vadd.f32 %v1180, %v1284
      %1286 = vmatmul.bf16.gmra.mxu0 %v1217
      %v1287 = vpop.f32.mrf.mxu0
      %v1288 = vadd.f32 %v1180, %v1287
      %v1289 = vpop.f32.mrf.mxu0
      %v1290 = vadd.f32 %v1180, %v1289
      %1291 = vmatmul.bf16.gmra.mxu0 %v1220
      %v1292 = vpop.f32.mrf.mxu0
      %v1293 = vadd.f32 %v1180, %v1292
      %v1294 = vpop.f32.mrf.mxu0
      %v1295 = vadd.f32 %v1180, %v1294
      %1296 = vmatmul.bf16.gmra.mxu0 %v1223
      %v1297 = vpop.f32.mrf.mxu0
      %v1298 = vadd.f32 %v1180, %v1297
      %v1299 = vpop.f32.mrf.mxu0
      %v1300 = vadd.f32 %v1180, %v1299
      %1301 = vmatmul.bf16.gmra.mxu0 %v1226
      %v1302 = vpop.f32.mrf.mxu0
      %v1303 = vadd.f32 %v1180, %v1302
      %v1304 = vpop.f32.mrf.mxu0
      %v1305 = vadd.f32 %v1180, %v1304
      %1306 = vmatmul.bf16.gmra.mxu0 %v1229
      %v1307 = vpop.f32.mrf.mxu0
      %v1308 = vadd.f32 %v1180, %v1307
      %v1309 = vpop.f32.mrf.mxu0
      %v1310 = vadd.f32 %v1180, %v1309
      %1311 = vmatmul.bf16.gmra.mxu0 %v1232
      %v1312 = vpop.f32.mrf.mxu0
      %v1313 = vadd.f32 %v1180, %v1312
      %v1314 = vpop.f32.mrf.mxu0
      %v1315 = vadd.f32 %v1180, %v1314
      %1316 = vmatmul.bf16.gmra.mxu0 %v1235
      %v1317 = vpop.f32.mrf.mxu0
      %v1318 = vadd.f32 %v1180, %v1317
      %v1319 = vpop.f32.mrf.mxu0
      %v1320 = vadd.f32 %v1180, %v1319
      %1321 = vmatmul.bf16.gmra.mxu0 %v1238
      %v1322 = vpop.f32.mrf.mxu0
      %v1323 = vadd.f32 %v1180, %v1322
      %v1324 = vpop.f32.mrf.mxu0
      %v1325 = vadd.f32 %v1180, %v1324
      %1326 = vmatmul.bf16.gmra.mxu0 %v1241
      %v1327 = vpop.f32.mrf.mxu0
      %v1328 = vadd.f32 %v1180, %v1327
      %v1329 = vpop.f32.mrf.mxu0
      %v1330 = vadd.f32 %v1180, %v1329
      %1331 = vdwg.mxu0
      %v1332 = vpack.c.bf16 %v1255, %v1253
      %v1333 = vpack.c.bf16 %v1260, %v1258
      %v1334 = vpack.c.bf16 %v1265, %v1263
      %v1335 = vpack.c.bf16 %v1270, %v1268
      %v1336 = vpack.c.bf16 %v1275, %v1273
      %v1337 = vpack.c.bf16 %v1280, %v1278
      %v1338 = vpack.c.bf16 %v1285, %v1283
      %v1339 = vpack.c.bf16 %v1290, %v1288
      %v1340 = vpack.c.bf16 %v1295, %v1293
      %v1341 = vpack.c.bf16 %v1300, %v1298
      %v1342 = vpack.c.bf16 %v1305, %v1303
      %v1343 = vpack.c.bf16 %v1310, %v1308
      %v1344 = vpack.c.bf16 %v1315, %v1313
      %v1345 = vpack.c.bf16 %v1320, %v1318
      %v1346 = vpack.c.bf16 %v1325, %v1323
      %v1347 = vpack.c.bf16 %v1330, %v1328
      %1364 = vrot.lane.b32.xlu0 %v1332, 96
      %v1365 = vpop.permute.xlu0 %1364
      %1366 = vrot.lane.b32.xlu0 %v1333, 96
      %v1367 = vpop.permute.xlu0 %1366
      %1368 = vrot.lane.b32.xlu0 %v1334, 96
      %v1369 = vpop.permute.xlu0 %1368
      %1370 = vrot.lane.b32.xlu0 %v1335, 96
      %v1371 = vpop.permute.xlu0 %1370
      %1372 = vrot.lane.b32.xlu0 %v1336, 96
      %v1373 = vpop.permute.xlu0 %1372
      %1374 = vrot.lane.b32.xlu0 %v1337, 96
      %v1375 = vpop.permute.xlu0 %1374
      %1376 = vrot.lane.b32.xlu0 %v1338, 96
      %v1377 = vpop.permute.xlu0 %1376
      %1378 = vrot.lane.b32.xlu0 %v1339, 96
      %v1379 = vpop.permute.xlu0 %1378
      %1380 = vrot.lane.b32.xlu0 %v1340, 96
      %v1381 = vpop.permute.xlu0 %1380
      %1382 = vrot.lane.b32.xlu0 %v1341, 96
      %v1383 = vpop.permute.xlu0 %1382
      %1384 = vrot.lane.b32.xlu0 %v1342, 96
      %v1385 = vpop.permute.xlu0 %1384
      %1386 = vrot.lane.b32.xlu0 %v1343, 96
      %v1387 = vpop.permute.xlu0 %1386
      %1388 = vrot.lane.b32.xlu0 %v1344, 96
      %v1389 = vpop.permute.xlu0 %1388
      %1390 = vrot.lane.b32.xlu0 %v1345, 96
      %v1391 = vpop.permute.xlu0 %1390
      %1392 = vrot.lane.b32.xlu0 %v1346, 96
      %v1393 = vpop.permute.xlu0 %1392
      %1394 = vrot.lane.b32.xlu0 %v1347, 96
      %v1395 = vpop.permute.xlu0 %1394
      %v1397 = vsel %vm1194, %v1365, 0
      %v1400 = vsel %vm1194, %v1367, 0
      %v1403 = vsel %vm1194, %v1369, 0
      %v1406 = vsel %vm1194, %v1371, 0
      %v1409 = vsel %vm1194, %v1373, 0
      %v1412 = vsel %vm1194, %v1375, 0
      %v1415 = vsel %vm1194, %v1377, 0
      %v1418 = vsel %vm1194, %v1379, 0
      %v1421 = vsel %vm1194, %v1381, 0
      %v1424 = vsel %vm1194, %v1383, 0
      %v1427 = vsel %vm1194, %v1385, 0
      %v1430 = vsel %vm1194, %v1387, 0
      %v1433 = vsel %vm1194, %v1389, 0
      %v1436 = vsel %vm1194, %v1391, 0
      %v1439 = vsel %vm1194, %v1393, 0
      %v1442 = vsel %vm1194, %v1395, 0
      %v1445 = vsel %vm1194, %v1332, 0
      %v1448 = vsel %vm1194, %v1333, 0
      %v1451 = vsel %vm1194, %v1334, 0
      %v1454 = vsel %vm1194, %v1335, 0
      %v1457 = vsel %vm1194, %v1336, 0
      %v1460 = vsel %vm1194, %v1337, 0
      %v1463 = vsel %vm1194, %v1338, 0
      %v1466 = vsel %vm1194, %v1339, 0
      %v1469 = vsel %vm1194, %v1340, 0
      %v1472 = vsel %vm1194, %v1341, 0
      %v1475 = vsel %vm1194, %v1342, 0
      %v1478 = vsel %vm1194, %v1343, 0
      %v1481 = vsel %vm1194, %v1344, 0
      %v1484 = vsel %vm1194, %v1345, 0
      %v1487 = vsel %vm1194, %v1346, 0
      %v1490 = vsel %vm1194, %v1347, 0
      %1492 = vmatpush.bf16.xpose.msra.mxu0 %v1466
      %1493 = vmatpush.bf16.xpose.msra.mxu0 %v1463
      %1494 = vmatpush.bf16.xpose.msra.mxu0 %v1460
      %1495 = vmatpush.bf16.xpose.msra.mxu0 %v1457
      %1496 = vmatpush.bf16.xpose.msra.mxu0 %v1454
      %1497 = vmatpush.bf16.xpose.msra.mxu0 %v1451
      %1498 = vmatpush.bf16.xpose.msra.mxu0 %v1448
      %1499 = vmatpush.bf16.xpose.msra.mxu0 %v1445
      %1500 = vmatmul.bf16.gmra.mxu0 %v1397
      %v1501 = vpop.f32.mrf.mxu0
      %v1502 = vadd.f32 %v860, %v1501
      %v1503 = vpop.f32.mrf.mxu0
      %v1504 = vadd.f32 %v862, %v1503
      %1505 = vmatmul.bf16.gmra.mxu0 %v1400
      %v1506 = vpop.f32.mrf.mxu0
      %v1507 = vadd.f32 %v864, %v1506
      %v1508 = vpop.f32.mrf.mxu0
      %v1509 = vadd.f32 %v866, %v1508
      %1510 = vmatmul.bf16.gmra.mxu0 %v1403
      %v1511 = vpop.f32.mrf.mxu0
      %v1512 = vadd.f32 %v868, %v1511
      %v1513 = vpop.f32.mrf.mxu0
      %v1514 = vadd.f32 %v870, %v1513
      %1515 = vmatmul.bf16.gmra.mxu0 %v1406
      %v1516 = vpop.f32.mrf.mxu0
      %v1517 = vadd.f32 %v872, %v1516
      %v1518 = vpop.f32.mrf.mxu0
      %v1519 = vadd.f32 %v874, %v1518
      %1520 = vmatmul.bf16.gmra.mxu0 %v1409
      %v1521 = vpop.f32.mrf.mxu0
      %v1522 = vadd.f32 %v876, %v1521
      %v1523 = vpop.f32.mrf.mxu0
      %v1524 = vadd.f32 %v878, %v1523
      %1525 = vmatmul.bf16.gmra.mxu0 %v1412
      %v1526 = vpop.f32.mrf.mxu0
      %v1527 = vadd.f32 %v880, %v1526
      %v1528 = vpop.f32.mrf.mxu0
      %v1529 = vadd.f32 %v882, %v1528
      %1530 = vmatmul.bf16.gmra.mxu0 %v1415
      %v1531 = vpop.f32.mrf.mxu0
      %v1532 = vadd.f32 %v884, %v1531
      %v1533 = vpop.f32.mrf.mxu0
      %v1534 = vadd.f32 %v886, %v1533
      %1535 = vmatmul.bf16.gmra.mxu0 %v1418
      %v1536 = vpop.f32.mrf.mxu0
      %v1537 = vadd.f32 %v888, %v1536
      %v1538 = vpop.f32.mrf.mxu0
      %v1539 = vadd.f32 %v890, %v1538
      %1540 = vmatmul.bf16.gmra.mxu0 %v1421
      %v1541 = vpop.f32.mrf.mxu0
      %v1542 = vadd.f32 %v892, %v1541
      %v1543 = vpop.f32.mrf.mxu0
      %v1544 = vadd.f32 %v894, %v1543
      %1545 = vmatmul.bf16.gmra.mxu0 %v1424
      %v1546 = vpop.f32.mrf.mxu0
      %v1547 = vadd.f32 %v896, %v1546
      %v1548 = vpop.f32.mrf.mxu0
      %v1549 = vadd.f32 %v898, %v1548
      %1550 = vmatmul.bf16.gmra.mxu0 %v1427
      %v1551 = vpop.f32.mrf.mxu0
      %v1552 = vadd.f32 %v900, %v1551
      %v1553 = vpop.f32.mrf.mxu0
      %v1554 = vadd.f32 %v902, %v1553
      %1555 = vmatmul.bf16.gmra.mxu0 %v1430
      %v1556 = vpop.f32.mrf.mxu0
      %v1557 = vadd.f32 %v904, %v1556
      %v1558 = vpop.f32.mrf.mxu0
      %v1559 = vadd.f32 %v906, %v1558
      %1560 = vmatmul.bf16.gmra.mxu0 %v1433
      %v1561 = vpop.f32.mrf.mxu0
      %v1562 = vadd.f32 %v908, %v1561
      %v1563 = vpop.f32.mrf.mxu0
      %v1564 = vadd.f32 %v910, %v1563
      %1565 = vmatmul.bf16.gmra.mxu0 %v1436
      %v1566 = vpop.f32.mrf.mxu0
      %v1567 = vadd.f32 %v912, %v1566
      %v1568 = vpop.f32.mrf.mxu0
      %v1569 = vadd.f32 %v914, %v1568
      %1570 = vmatmul.bf16.gmra.mxu0 %v1439
      %v1571 = vpop.f32.mrf.mxu0
      %v1572 = vadd.f32 %v916, %v1571
      %v1573 = vpop.f32.mrf.mxu0
      %v1574 = vadd.f32 %v918, %v1573
      %1575 = vmatmul.bf16.gmra.mxu0 %v1442
      %v1576 = vpop.f32.mrf.mxu0
      %v1577 = vadd.f32 %v920, %v1576
      %v1578 = vpop.f32.mrf.mxu0
      %v1579 = vadd.f32 %v922, %v1578
      %1580 = vdwg.mxu0
      %1581 = vmatpush.bf16.xpose.msra.mxu0 %v1490
      %1582 = vmatpush.bf16.xpose.msra.mxu0 %v1487
      %1583 = vmatpush.bf16.xpose.msra.mxu0 %v1484
      %1584 = vmatpush.bf16.xpose.msra.mxu0 %v1481
      %1585 = vmatpush.bf16.xpose.msra.mxu0 %v1478
      %1586 = vmatpush.bf16.xpose.msra.mxu0 %v1475
      %1587 = vmatpush.bf16.xpose.msra.mxu0 %v1472
      %1588 = vmatpush.bf16.xpose.msra.mxu0 %v1469
      %1589 = vmatmul.bf16.gmra.mxu0 %v1397
      %v1590 = vpop.f32.mrf.mxu0
      %v1591 = vadd.f32 %v861, %v1590
      %v1592 = vpop.f32.mrf.mxu0
      %v1593 = vadd.f32 %v863, %v1592
      %1594 = vmatmul.bf16.gmra.mxu0 %v1400
      %v1595 = vpop.f32.mrf.mxu0
      %v1596 = vadd.f32 %v865, %v1595
      %v1597 = vpop.f32.mrf.mxu0
      %v1598 = vadd.f32 %v867, %v1597
      %1599 = vmatmul.bf16.gmra.mxu0 %v1403
      %v1600 = vpop.f32.mrf.mxu0
      %v1601 = vadd.f32 %v869, %v1600
      %v1602 = vpop.f32.mrf.mxu0
      %v1603 = vadd.f32 %v871, %v1602
      %1604 = vmatmul.bf16.gmra.mxu0 %v1406
      %v1605 = vpop.f32.mrf.mxu0
      %v1606 = vadd.f32 %v873, %v1605
      %v1607 = vpop.f32.mrf.mxu0
      %v1608 = vadd.f32 %v875, %v1607
      %1609 = vmatmul.bf16.gmra.mxu0 %v1409
      %v1610 = vpop.f32.mrf.mxu0
      %v1611 = vadd.f32 %v877, %v1610
      %v1612 = vpop.f32.mrf.mxu0
      %v1613 = vadd.f32 %v879, %v1612
      %1614 = vmatmul.bf16.gmra.mxu0 %v1412
      %v1615 = vpop.f32.mrf.mxu0
      %v1616 = vadd.f32 %v881, %v1615
      %v1617 = vpop.f32.mrf.mxu0
      %v1618 = vadd.f32 %v883, %v1617
      %1619 = vmatmul.bf16.gmra.mxu0 %v1415
      %v1620 = vpop.f32.mrf.mxu0
      %v1621 = vadd.f32 %v885, %v1620
      %v1622 = vpop.f32.mrf.mxu0
      %v1623 = vadd.f32 %v887, %v1622
      %1624 = vmatmul.bf16.gmra.mxu0 %v1418
      %v1625 = vpop.f32.mrf.mxu0
      %v1626 = vadd.f32 %v889, %v1625
      %v1627 = vpop.f32.mrf.mxu0
      %v1628 = vadd.f32 %v891, %v1627
      %1629 = vmatmul.bf16.gmra.mxu0 %v1421
      %v1630 = vpop.f32.mrf.mxu0
      %v1631 = vadd.f32 %v893, %v1630
      %v1632 = vpop.f32.mrf.mxu0
      %v1633 = vadd.f32 %v895, %v1632
      %1634 = vmatmul.bf16.gmra.mxu0 %v1424
      %v1635 = vpop.f32.mrf.mxu0
      %v1636 = vadd.f32 %v897, %v1635
      %v1637 = vpop.f32.mrf.mxu0
      %v1638 = vadd.f32 %v899, %v1637
      %1639 = vmatmul.bf16.gmra.mxu0 %v1427
      %v1640 = vpop.f32.mrf.mxu0
      %v1641 = vadd.f32 %v901, %v1640
      %v1642 = vpop.f32.mrf.mxu0
      %v1643 = vadd.f32 %v903, %v1642
      %1644 = vmatmul.bf16.gmra.mxu0 %v1430
      %v1645 = vpop.f32.mrf.mxu0
      %v1646 = vadd.f32 %v905, %v1645
      %v1647 = vpop.f32.mrf.mxu0
      %v1648 = vadd.f32 %v907, %v1647
      %1649 = vmatmul.bf16.gmra.mxu0 %v1433
      %v1650 = vpop.f32.mrf.mxu0
      %v1651 = vadd.f32 %v909, %v1650
      %v1652 = vpop.f32.mrf.mxu0
      %v1653 = vadd.f32 %v911, %v1652
      %1654 = vmatmul.bf16.gmra.mxu0 %v1436
      %v1655 = vpop.f32.mrf.mxu0
      %v1656 = vadd.f32 %v913, %v1655
      %v1657 = vpop.f32.mrf.mxu0
      %v1658 = vadd.f32 %v915, %v1657
      %1659 = vmatmul.bf16.gmra.mxu0 %v1439
      %v1660 = vpop.f32.mrf.mxu0
      %v1661 = vadd.f32 %v917, %v1660
      %v1662 = vpop.f32.mrf.mxu0
      %v1663 = vadd.f32 %v919, %v1662
      %1664 = vmatmul.bf16.gmra.mxu0 %v1442
      %v1665 = vpop.f32.mrf.mxu0
      %v1666 = vadd.f32 %v921, %v1665
      %v1667 = vpop.f32.mrf.mxu0
      %v1668 = vadd.f32 %v923, %v1667
      %1669 = vdwg.mxu0
      %v1670 = vmax.f32 %v1502, %v1507
      %v1671 = vmax.f32 %v1504, %v1509
      %v1672 = vmax.f32 %v1670, %v1512
      %v1673 = vmax.f32 %v1671, %v1514
      %v1674 = vmax.f32 %v1672, %v1517
      %v1675 = vmax.f32 %v1673, %v1519
      %v1676 = vmax.f32 %v1674, %v1522
      %v1677 = vmax.f32 %v1675, %v1524
      %v1678 = vmax.f32 %v1676, %v1527
      %v1679 = vmax.f32 %v1677, %v1529
      %v1680 = vmax.f32 %v1678, %v1532
      %v1681 = vmax.f32 %v1679, %v1534
      %v1682 = vmax.f32 %v1680, %v1537
      %v1683 = vmax.f32 %v1681, %v1539
      %v1684 = vmax.f32 %v1682, %v1542
      %v1685 = vmax.f32 %v1683, %v1544
      %v1686 = vmax.f32 %v1684, %v1547
      %v1687 = vmax.f32 %v1685, %v1549
      %v1688 = vmax.f32 %v1686, %v1552
      %v1689 = vmax.f32 %v1687, %v1554
      %v1690 = vmax.f32 %v1688, %v1557
      %v1691 = vmax.f32 %v1689, %v1559
      %v1692 = vmax.f32 %v1690, %v1562
      %v1693 = vmax.f32 %v1691, %v1564
      %v1694 = vmax.f32 %v1692, %v1567
      %v1695 = vmax.f32 %v1693, %v1569
      %v1696 = vmax.f32 %v1694, %v1572
      %v1697 = vmax.f32 %v1695, %v1574
      %v1698 = vmax.f32 %v1696, %v1577
      %v1699 = vmax.f32 %v1697, %v1579
      %v1700 = vmax.f32 %v1698, %v1699
      %v1701 = vrot.slane %v1700, 4
      %v1702 = vmax.f32 %v1700, %v1701
      %v1703 = vrot.slane %v1702, 2
      %v1704 = vmax.f32 %v1702, %v1703
      %v1705 = vrot.slane %v1704, 1
      %v1706 = vmax.f32 %v1704, %v1705
      %v1707 = vmax.f32 %v1591, %v1596
      %v1708 = vmax.f32 %v1593, %v1598
      %v1709 = vmax.f32 %v1707, %v1601
      %v1710 = vmax.f32 %v1708, %v1603
      %v1711 = vmax.f32 %v1709, %v1606
      %v1712 = vmax.f32 %v1710, %v1608
      %v1713 = vmax.f32 %v1711, %v1611
      %v1714 = vmax.f32 %v1712, %v1613
      %v1715 = vmax.f32 %v1713, %v1616
      %v1716 = vmax.f32 %v1714, %v1618
      %v1717 = vmax.f32 %v1715, %v1621
      %v1718 = vmax.f32 %v1716, %v1623
      %v1719 = vmax.f32 %v1717, %v1626
      %v1720 = vmax.f32 %v1718, %v1628
      %v1721 = vmax.f32 %v1719, %v1631
      %v1722 = vmax.f32 %v1720, %v1633
      %v1723 = vmax.f32 %v1721, %v1636
      %v1724 = vmax.f32 %v1722, %v1638
      %v1725 = vmax.f32 %v1723, %v1641
      %v1726 = vmax.f32 %v1724, %v1643
      %v1727 = vmax.f32 %v1725, %v1646
      %v1728 = vmax.f32 %v1726, %v1648
      %v1729 = vmax.f32 %v1727, %v1651
      %v1730 = vmax.f32 %v1728, %v1653
      %v1731 = vmax.f32 %v1729, %v1656
      %v1732 = vmax.f32 %v1730, %v1658
      %v1733 = vmax.f32 %v1731, %v1661
      %v1734 = vmax.f32 %v1732, %v1663
      %v1735 = vmax.f32 %v1733, %v1666
      %v1736 = vmax.f32 %v1734, %v1668
      %v1737 = vmax.f32 %v1735, %v1736
      %v1738 = vrot.slane %v1737, 4
      %v1739 = vmax.f32 %v1737, %v1738
      %v1740 = vrot.slane %v1739, 2
      %v1741 = vmax.f32 %v1739, %v1740
      %v1742 = vrot.slane %v1741, 1
      %v1743 = vmax.f32 %v1741, %v1742
      %v1744 = vsub.f32 %v1502, %v1706
      %v1745 = vsub.f32 %v1591, %v1743
      %v1746 = vsub.f32 %v1504, %v1706
      %v1747 = vsub.f32 %v1593, %v1743
      %v1748 = vsub.f32 %v1507, %v1706
      %v1749 = vsub.f32 %v1596, %v1743
      %v1750 = vsub.f32 %v1509, %v1706
      %v1751 = vsub.f32 %v1598, %v1743
      %v1752 = vsub.f32 %v1512, %v1706
      %v1753 = vsub.f32 %v1601, %v1743
      %v1754 = vsub.f32 %v1514, %v1706
      %v1755 = vsub.f32 %v1603, %v1743
      %v1756 = vsub.f32 %v1517, %v1706
      %v1757 = vsub.f32 %v1606, %v1743
      %v1758 = vsub.f32 %v1519, %v1706
      %v1759 = vsub.f32 %v1608, %v1743
      %v1760 = vsub.f32 %v1522, %v1706
      %v1761 = vsub.f32 %v1611, %v1743
      %v1762 = vsub.f32 %v1524, %v1706
      %v1763 = vsub.f32 %v1613, %v1743
      %v1764 = vsub.f32 %v1527, %v1706
      %v1765 = vsub.f32 %v1616, %v1743
      %v1766 = vsub.f32 %v1529, %v1706
      %v1767 = vsub.f32 %v1618, %v1743
      %v1768 = vsub.f32 %v1532, %v1706
      %v1769 = vsub.f32 %v1621, %v1743
      %v1770 = vsub.f32 %v1534, %v1706
      %v1771 = vsub.f32 %v1623, %v1743
      %v1772 = vsub.f32 %v1537, %v1706
      %v1773 = vsub.f32 %v1626, %v1743
      %v1774 = vsub.f32 %v1539, %v1706
      %v1775 = vsub.f32 %v1628, %v1743
      %v1776 = vsub.f32 %v1542, %v1706
      %v1777 = vsub.f32 %v1631, %v1743
      %v1778 = vsub.f32 %v1544, %v1706
      %v1779 = vsub.f32 %v1633, %v1743
      %v1780 = vsub.f32 %v1547, %v1706
      %v1781 = vsub.f32 %v1636, %v1743
      %v1782 = vsub.f32 %v1549, %v1706
      %v1783 = vsub.f32 %v1638, %v1743
      %v1784 = vsub.f32 %v1552, %v1706
      %v1785 = vsub.f32 %v1641, %v1743
      %v1786 = vsub.f32 %v1554, %v1706
      %v1787 = vsub.f32 %v1643, %v1743
      %v1788 = vsub.f32 %v1557, %v1706
      %v1789 = vsub.f32 %v1646, %v1743
      %v1790 = vsub.f32 %v1559, %v1706
      %v1791 = vsub.f32 %v1648, %v1743
      %v1792 = vsub.f32 %v1562, %v1706
      %v1793 = vsub.f32 %v1651, %v1743
      %v1794 = vsub.f32 %v1564, %v1706
      %v1795 = vsub.f32 %v1653, %v1743
      %v1796 = vsub.f32 %v1567, %v1706
      %v1797 = vsub.f32 %v1656, %v1743
      %v1798 = vsub.f32 %v1569, %v1706
      %v1799 = vsub.f32 %v1658, %v1743
      %v1800 = vsub.f32 %v1572, %v1706
      %v1801 = vsub.f32 %v1661, %v1743
      %v1802 = vsub.f32 %v1574, %v1706
      %v1803 = vsub.f32 %v1663, %v1743
      %v1804 = vsub.f32 %v1577, %v1706
      %v1805 = vsub.f32 %v1666, %v1743
      %v1806 = vsub.f32 %v1579, %v1706
      %v1807 = vsub.f32 %v1668, %v1743
      %v1808 = vmul.f32 %v1744, 1.442695
      %v1809 = vpow.pop %v1808
      %v1810 = vmul.f32 %v1745, 1.442695
      %v1811 = vpow.pop %v1810
      %v1812 = vmul.f32 %v1746, 1.442695
      %v1813 = vpow.pop %v1812
      %v1814 = vmul.f32 %v1747, 1.442695
      %v1815 = vpow.pop %v1814
      %v1816 = vmul.f32 %v1748, 1.442695
      %v1817 = vpow.pop %v1816
      %v1818 = vmul.f32 %v1749, 1.442695
      %v1819 = vpow.pop %v1818
      %v1820 = vmul.f32 %v1750, 1.442695
      %v1821 = vpow.pop %v1820
      %v1822 = vmul.f32 %v1751, 1.442695
      %v1823 = vpow.pop %v1822
      %v1824 = vmul.f32 %v1752, 1.442695
      %v1825 = vpow.pop %v1824
      %v1826 = vmul.f32 %v1753, 1.442695
      %v1827 = vpow.pop %v1826
      %v1828 = vmul.f32 %v1754, 1.442695
      %v1829 = vpow.pop %v1828
      %v1830 = vmul.f32 %v1755, 1.442695
      %v1831 = vpow.pop %v1830
      %v1832 = vmul.f32 %v1756, 1.442695
      %v1833 = vpow.pop %v1832
      %v1834 = vmul.f32 %v1757, 1.442695
      %v1835 = vpow.pop %v1834
      %v1836 = vmul.f32 %v1758, 1.442695
      %v1837 = vpow.pop %v1836
      %v1838 = vmul.f32 %v1759, 1.442695
      %v1839 = vpow.pop %v1838
      %v1840 = vmul.f32 %v1760, 1.442695
      %v1841 = vpow.pop %v1840
      %v1842 = vmul.f32 %v1761, 1.442695
      %v1843 = vpow.pop %v1842
      %v1844 = vmul.f32 %v1762, 1.442695
      %v1845 = vpow.pop %v1844
      %v1846 = vmul.f32 %v1763, 1.442695
      %v1847 = vpow.pop %v1846
      %v1848 = vmul.f32 %v1764, 1.442695
      %v1849 = vpow.pop %v1848
      %v1850 = vmul.f32 %v1765, 1.442695
      %v1851 = vpow.pop %v1850
      %v1852 = vmul.f32 %v1766, 1.442695
      %v1853 = vpow.pop %v1852
      %v1854 = vmul.f32 %v1767, 1.442695
      %v1855 = vpow.pop %v1854
      %v1856 = vmul.f32 %v1768, 1.442695
      %v1857 = vpow.pop %v1856
      %v1858 = vmul.f32 %v1769, 1.442695
      %v1859 = vpow.pop %v1858
      %v1860 = vmul.f32 %v1770, 1.442695
      %v1861 = vpow.pop %v1860
      %v1862 = vmul.f32 %v1771, 1.442695
      %v1863 = vpow.pop %v1862
      %v1864 = vmul.f32 %v1772, 1.442695
      %v1865 = vpow.pop %v1864
      %v1866 = vmul.f32 %v1773, 1.442695
      %v1867 = vpow.pop %v1866
      %v1868 = vmul.f32 %v1774, 1.442695
      %v1869 = vpow.pop %v1868
      %v1870 = vmul.f32 %v1775, 1.442695
      %v1871 = vpow.pop %v1870
      %v1872 = vmul.f32 %v1776, 1.442695
      %v1873 = vpow.pop %v1872
      %v1874 = vmul.f32 %v1777, 1.442695
      %v1875 = vpow.pop %v1874
      %v1876 = vmul.f32 %v1778, 1.442695
      %v1877 = vpow.pop %v1876
      %v1878 = vmul.f32 %v1779, 1.442695
      %v1879 = vpow.pop %v1878
      %v1880 = vmul.f32 %v1780, 1.442695
      %v1881 = vpow.pop %v1880
      %v1882 = vmul.f32 %v1781, 1.442695
      %v1883 = vpow.pop %v1882
      %v1884 = vmul.f32 %v1782, 1.442695
      %v1885 = vpow.pop %v1884
      %v1886 = vmul.f32 %v1783, 1.442695
      %v1887 = vpow.pop %v1886
      %v1888 = vmul.f32 %v1784, 1.442695
      %v1889 = vpow.pop %v1888
      %v1890 = vmul.f32 %v1785, 1.442695
      %v1891 = vpow.pop %v1890
      %v1892 = vmul.f32 %v1786, 1.442695
      %v1893 = vpow.pop %v1892
      %v1894 = vmul.f32 %v1787, 1.442695
      %v1895 = vpow.pop %v1894
      %v1896 = vmul.f32 %v1788, 1.442695
      %v1897 = vpow.pop %v1896
      %v1898 = vmul.f32 %v1789, 1.442695
      %v1899 = vpow.pop %v1898
      %v1900 = vmul.f32 %v1790, 1.442695
      %v1901 = vpow.pop %v1900
      %v1902 = vmul.f32 %v1791, 1.442695
      %v1903 = vpow.pop %v1902
      %v1904 = vmul.f32 %v1792, 1.442695
      %v1905 = vpow.pop %v1904
      %v1906 = vmul.f32 %v1793, 1.442695
      %v1907 = vpow.pop %v1906
      %v1908 = vmul.f32 %v1794, 1.442695
      %v1909 = vpow.pop %v1908
      %v1910 = vmul.f32 %v1795, 1.442695
      %v1911 = vpow.pop %v1910
      %v1912 = vmul.f32 %v1796, 1.442695
      %v1913 = vpow.pop %v1912
      %v1914 = vmul.f32 %v1797, 1.442695
      %v1915 = vpow.pop %v1914
      %v1916 = vmul.f32 %v1798, 1.442695
      %v1917 = vpow.pop %v1916
      %v1918 = vmul.f32 %v1799, 1.442695
      %v1919 = vpow.pop %v1918
      %v1920 = vmul.f32 %v1800, 1.442695
      %v1921 = vpow.pop %v1920
      %v1922 = vmul.f32 %v1801, 1.442695
      %v1923 = vpow.pop %v1922
      %v1924 = vmul.f32 %v1802, 1.442695
      %v1925 = vpow.pop %v1924
      %v1926 = vmul.f32 %v1803, 1.442695
      %v1927 = vpow.pop %v1926
      %v1928 = vmul.f32 %v1804, 1.442695
      %v1929 = vpow.pop %v1928
      %v1930 = vmul.f32 %v1805, 1.442695
      %v1931 = vpow.pop %v1930
      %v1932 = vmul.f32 %v1806, 1.442695
      %v1933 = vpow.pop %v1932
      %v1934 = vmul.f32 %v1807, 1.442695
      %v1935 = vpow.pop %v1934
      %v1936 = vadd.f32 %v1809, %v1813
      %v1937 = vadd.f32 %v1936, %v1817
      %v1938 = vadd.f32 %v1937, %v1821
      %v1939 = vadd.f32 %v1938, %v1825
      %v1940 = vadd.f32 %v1939, %v1829
      %v1941 = vadd.f32 %v1940, %v1833
      %v1942 = vadd.f32 %v1941, %v1837
      %v1943 = vadd.f32 %v1942, %v1841
      %v1944 = vadd.f32 %v1943, %v1845
      %v1945 = vadd.f32 %v1944, %v1849
      %v1946 = vadd.f32 %v1945, %v1853
      %v1947 = vadd.f32 %v1946, %v1857
      %v1948 = vadd.f32 %v1947, %v1861
      %v1949 = vadd.f32 %v1948, %v1865
      %v1950 = vadd.f32 %v1949, %v1869
      %v1951 = vadd.f32 %v1950, %v1873
      %v1952 = vadd.f32 %v1951, %v1877
      %v1953 = vadd.f32 %v1952, %v1881
      %v1954 = vadd.f32 %v1953, %v1885
      %v1955 = vadd.f32 %v1954, %v1889
      %v1956 = vadd.f32 %v1955, %v1893
      %v1957 = vadd.f32 %v1956, %v1897
      %v1958 = vadd.f32 %v1957, %v1901
      %v1959 = vadd.f32 %v1958, %v1905
      %v1960 = vadd.f32 %v1959, %v1909
      %v1961 = vadd.f32 %v1960, %v1913
      %v1962 = vadd.f32 %v1961, %v1917
      %v1963 = vadd.f32 %v1962, %v1921
      %v1964 = vadd.f32 %v1963, %v1925
      %v1965 = vadd.f32 %v1964, %v1929
      %v1966 = vadd.f32 %v1965, %v1933
      %v1967 = vrot.slane %v1966, 4
      %v1968 = vadd.f32 %v1966, %v1967
      %v1969 = vrot.slane %v1968, 2
      %v1970 = vadd.f32 %v1968, %v1969
      %v1971 = vrot.slane %v1970, 1
      %v1972 = vadd.f32 %v1970, %v1971
      %v1973 = vadd.f32 %v1811, %v1815
      %v1974 = vadd.f32 %v1973, %v1819
      %v1975 = vadd.f32 %v1974, %v1823
      %v1976 = vadd.f32 %v1975, %v1827
      %v1977 = vadd.f32 %v1976, %v1831
      %v1978 = vadd.f32 %v1977, %v1835
      %v1979 = vadd.f32 %v1978, %v1839
      %v1980 = vadd.f32 %v1979, %v1843
      %v1981 = vadd.f32 %v1980, %v1847
      %v1982 = vadd.f32 %v1981, %v1851
      %v1983 = vadd.f32 %v1982, %v1855
      %v1984 = vadd.f32 %v1983, %v1859
      %v1985 = vadd.f32 %v1984, %v1863
      %v1986 = vadd.f32 %v1985, %v1867
      %v1987 = vadd.f32 %v1986, %v1871
      %v1988 = vadd.f32 %v1987, %v1875
      %v1989 = vadd.f32 %v1988, %v1879
      %v1990 = vadd.f32 %v1989, %v1883
      %v1991 = vadd.f32 %v1990, %v1887
      %v1992 = vadd.f32 %v1991, %v1891
      %v1993 = vadd.f32 %v1992, %v1895
      %v1994 = vadd.f32 %v1993, %v1899
      %v1995 = vadd.f32 %v1994, %v1903
      %v1996 = vadd.f32 %v1995, %v1907
      %v1997 = vadd.f32 %v1996, %v1911
      %v1998 = vadd.f32 %v1997, %v1915
      %v1999 = vadd.f32 %v1998, %v1919
      %v2000 = vadd.f32 %v1999, %v1923
      %v2001 = vadd.f32 %v2000, %v1927
      %v2002 = vadd.f32 %v2001, %v1931
      %v2003 = vadd.f32 %v2002, %v1935
      %v2004 = vrot.slane %v2003, 4
      %v2005 = vadd.f32 %v2003, %v2004
      %v2006 = vrot.slane %v2005, 2
      %v2007 = vadd.f32 %v2005, %v2006
      %v2008 = vrot.slane %v2007, 1
      %v2009 = vadd.f32 %v2007, %v2008
      %v2010 = vrcp.pop %v1972
      %v2011 = vrcp.pop %v2009
      %v2012 = vmul.f32 %v1809, %v2010
      %v2013 = vmul.f32 %v1811, %v2011
      %v2014 = vmul.f32 %v1813, %v2010
      %v2015 = vmul.f32 %v1815, %v2011
      %v2016 = vmul.f32 %v1817, %v2010
      %v2017 = vmul.f32 %v1819, %v2011
      %v2018 = vmul.f32 %v1821, %v2010
      %v2019 = vmul.f32 %v1823, %v2011
      %v2020 = vmul.f32 %v1825, %v2010
      %v2021 = vmul.f32 %v1827, %v2011
      %v2022 = vmul.f32 %v1829, %v2010
      %v2023 = vmul.f32 %v1831, %v2011
      %v2024 = vmul.f32 %v1833, %v2010
      %v2025 = vmul.f32 %v1835, %v2011
      %v2026 = vmul.f32 %v1837, %v2010
      %v2027 = vmul.f32 %v1839, %v2011
      %v2028 = vmul.f32 %v1841, %v2010
      %v2029 = vmul.f32 %v1843, %v2011
      %v2030 = vmul.f32 %v1845, %v2010
      %v2031 = vmul.f32 %v1847, %v2011
      %v2032 = vmul.f32 %v1849, %v2010
      %v2033 = vmul.f32 %v1851, %v2011
      %v2034 = vmul.f32 %v1853, %v2010
      %v2035 = vmul.f32 %v1855, %v2011
      %v2036 = vmul.f32 %v1857, %v2010
      %v2037 = vmul.f32 %v1859, %v2011
      %v2038 = vmul.f32 %v1861, %v2010
      %v2039 = vmul.f32 %v1863, %v2011
      %v2040 = vmul.f32 %v1865, %v2010
      %v2041 = vmul.f32 %v1867, %v2011
      %v2042 = vmul.f32 %v1869, %v2010
      %v2043 = vmul.f32 %v1871, %v2011
      %v2044 = vmul.f32 %v1873, %v2010
      %v2045 = vmul.f32 %v1875, %v2011
      %v2046 = vmul.f32 %v1877, %v2010
      %v2047 = vmul.f32 %v1879, %v2011
      %v2048 = vmul.f32 %v1881, %v2010
      %v2049 = vmul.f32 %v1883, %v2011
      %v2050 = vmul.f32 %v1885, %v2010
      %v2051 = vmul.f32 %v1887, %v2011
      %v2052 = vmul.f32 %v1889, %v2010
      %v2053 = vmul.f32 %v1891, %v2011
      %v2054 = vmul.f32 %v1893, %v2010
      %v2055 = vmul.f32 %v1895, %v2011
      %v2056 = vmul.f32 %v1897, %v2010
      %v2057 = vmul.f32 %v1899, %v2011
      %v2058 = vmul.f32 %v1901, %v2010
      %v2059 = vmul.f32 %v1903, %v2011
      %v2060 = vmul.f32 %v1905, %v2010
      %v2061 = vmul.f32 %v1907, %v2011
      %v2062 = vmul.f32 %v1909, %v2010
      %v2063 = vmul.f32 %v1911, %v2011
      %v2064 = vmul.f32 %v1913, %v2010
      %v2065 = vmul.f32 %v1915, %v2011
      %v2066 = vmul.f32 %v1917, %v2010
      %v2067 = vmul.f32 %v1919, %v2011
      %v2068 = vmul.f32 %v1921, %v2010
      %v2069 = vmul.f32 %v1923, %v2011
      %v2070 = vmul.f32 %v1925, %v2010
      %v2071 = vmul.f32 %v1927, %v2011
      %v2072 = vmul.f32 %v1929, %v2010
      %v2073 = vmul.f32 %v1931, %v2011
      %v2074 = vmul.f32 %v1933, %v2010
      %v2075 = vmul.f32 %v1935, %v2011
      %v2076 = vpack.c.bf16 %v2014, %v2012
      %v2077 = vpack.c.bf16 %v2015, %v2013
      %v2078 = vpack.c.bf16 %v2018, %v2016
      %v2079 = vpack.c.bf16 %v2019, %v2017
      %v2080 = vpack.c.bf16 %v2022, %v2020
      %v2081 = vpack.c.bf16 %v2023, %v2021
      %v2082 = vpack.c.bf16 %v2026, %v2024
      %v2083 = vpack.c.bf16 %v2027, %v2025
      %v2084 = vpack.c.bf16 %v2030, %v2028
      %v2085 = vpack.c.bf16 %v2031, %v2029
      %v2086 = vpack.c.bf16 %v2034, %v2032
      %v2087 = vpack.c.bf16 %v2035, %v2033
      %v2088 = vpack.c.bf16 %v2038, %v2036
      %v2089 = vpack.c.bf16 %v2039, %v2037
      %v2090 = vpack.c.bf16 %v2042, %v2040
      %v2091 = vpack.c.bf16 %v2043, %v2041
      %v2092 = vpack.c.bf16 %v2046, %v2044
      %v2093 = vpack.c.bf16 %v2047, %v2045
      %v2094 = vpack.c.bf16 %v2050, %v2048
      %v2095 = vpack.c.bf16 %v2051, %v2049
      %v2096 = vpack.c.bf16 %v2054, %v2052
      %v2097 = vpack.c.bf16 %v2055, %v2053
      %v2098 = vpack.c.bf16 %v2058, %v2056
      %v2099 = vpack.c.bf16 %v2059, %v2057
      %v2100 = vpack.c.bf16 %v2062, %v2060
      %v2101 = vpack.c.bf16 %v2063, %v2061
      %v2102 = vpack.c.bf16 %v2066, %v2064
      %v2103 = vpack.c.bf16 %v2067, %v2065
      %v2104 = vpack.c.bf16 %v2070, %v2068
      %v2105 = vpack.c.bf16 %v2071, %v2069
      %v2106 = vpack.c.bf16 %v2074, %v2072
      %v2107 = vpack.c.bf16 %v2075, %v2073
      %2108 = vxpose.binary.xlu0.c.b16.start [1/16] %v2077, %v2076, 128
      %2109 = vxpose.binary.xlu0.c.b16.cont [2/16] %v2079, %v2078, 128
      %2110 = vxpose.binary.xlu0.c.b16.cont [3/16] %v2081, %v2080, 128
      %2111 = vxpose.binary.xlu0.c.b16.cont [4/16] %v2083, %v2082, 128
      %2112 = vxpose.binary.xlu0.c.b16.cont [5/16] %v2085, %v2084, 128
      %2113 = vxpose.binary.xlu0.c.b16.cont [6/16] %v2087, %v2086, 128
      %2114 = vxpose.binary.xlu0.c.b16.cont [7/16] %v2089, %v2088, 128
      %2115 = vxpose.binary.xlu0.c.b16.end [8/16] %v2091, %v2090, 128
      %v2116 = vpop.trf.xlu0
      %v2117 = vpop.trf.xlu0
      %v2118 = vpop.trf.xlu0
      %v2119 = vpop.trf.xlu0
      %v2120 = vpop.trf.xlu0
      %v2121 = vpop.trf.xlu0
      %v2122 = vpop.trf.xlu0
      %v2123 = vpop.trf.xlu0
      %v2124 = vpop.trf.xlu0
      %v2125 = vpop.trf.xlu0
      %v2126 = vpop.trf.xlu0
      %v2127 = vpop.trf.xlu0
      %v2128 = vpop.trf.xlu0
      %v2129 = vpop.trf.xlu0
      %v2130 = vpop.trf.xlu0
      %v2131 = vpop.trf.xlu0
      %2132 = vxpose.binary.xlu0.c.b16.start [1/16] %v2093, %v2092, 128
      %2133 = vxpose.binary.xlu0.c.b16.cont [2/16] %v2095, %v2094, 128
      %2134 = vxpose.binary.xlu0.c.b16.cont [3/16] %v2097, %v2096, 128
      %2135 = vxpose.binary.xlu0.c.b16.cont [4/16] %v2099, %v2098, 128
      %2136 = vxpose.binary.xlu0.c.b16.cont [5/16] %v2101, %v2100, 128
      %2137 = vxpose.binary.xlu0.c.b16.cont [6/16] %v2103, %v2102, 128
      %2138 = vxpose.binary.xlu0.c.b16.cont [7/16] %v2105, %v2104, 128
      %2139 = vxpose.binary.xlu0.c.b16.end [8/16] %v2107, %v2106, 128
      %v2140 = vpop.trf.xlu0
      %v2141 = vpop.trf.xlu0
      %v2142 = vpop.trf.xlu0
      %v2143 = vpop.trf.xlu0
      %v2144 = vpop.trf.xlu0
      %v2145 = vpop.trf.xlu0
      %v2146 = vpop.trf.xlu0
      %v2147 = vpop.trf.xlu0
      %v2148 = vpop.trf.xlu0
      %v2149 = vpop.trf.xlu0
      %v2150 = vpop.trf.xlu0
      %v2151 = vpop.trf.xlu0
      %v2152 = vpop.trf.xlu0
      %v2153 = vpop.trf.xlu0
      %v2154 = vpop.trf.xlu0
      %v2155 = vpop.trf.xlu0
      %2156 = vrot.lane.b32.xlu0 %v1332, 64
      %v2157 = vpop.permute.xlu0 %2156
      %2158 = vrot.lane.b32.xlu0 %v1333, 64
      %v2159 = vpop.permute.xlu0 %2158
      %2160 = vrot.lane.b32.xlu0 %v1334, 64
      %v2161 = vpop.permute.xlu0 %2160
      %2162 = vrot.lane.b32.xlu0 %v1335, 64
      %v2163 = vpop.permute.xlu0 %2162
      %2164 = vrot.lane.b32.xlu0 %v1336, 64
      %v2165 = vpop.permute.xlu0 %2164
      %2166 = vrot.lane.b32.xlu0 %v1337, 64
      %v2167 = vpop.permute.xlu0 %2166
      %2168 = vrot.lane.b32.xlu0 %v1338, 64
      %v2169 = vpop.permute.xlu0 %2168
      %2170 = vrot.lane.b32.xlu0 %v1339, 64
      %v2171 = vpop.permute.xlu0 %2170
      %2172 = vrot.lane.b32.xlu0 %v1340, 64
      %v2173 = vpop.permute.xlu0 %2172
      %2174 = vrot.lane.b32.xlu0 %v1341, 64
      %v2175 = vpop.permute.xlu0 %2174
      %2176 = vrot.lane.b32.xlu0 %v1342, 64
      %v2177 = vpop.permute.xlu0 %2176
      %2178 = vrot.lane.b32.xlu0 %v1343, 64
      %v2179 = vpop.permute.xlu0 %2178
      %2180 = vrot.lane.b32.xlu0 %v1344, 64
      %v2181 = vpop.permute.xlu0 %2180
      %2182 = vrot.lane.b32.xlu0 %v1345, 64
      %v2183 = vpop.permute.xlu0 %2182
      %2184 = vrot.lane.b32.xlu0 %v1346, 64
      %v2185 = vpop.permute.xlu0 %2184
      %2186 = vrot.lane.b32.xlu0 %v1347, 64
      %v2187 = vpop.permute.xlu0 %2186
      %2204 = vmatpush.bf16.msra.mxu0 %v2171
      %2205 = vmatpush.bf16.msra.mxu0 %v2169
      %2206 = vmatpush.bf16.msra.mxu0 %v2167
      %2207 = vmatpush.bf16.msra.mxu0 %v2165
      %2208 = vmatpush.bf16.msra.mxu0 %v2163
      %2209 = vmatpush.bf16.msra.mxu0 %v2161
      %2210 = vmatpush.bf16.msra.mxu0 %v2159
      %2211 = vmatpush.bf16.msra.mxu0 %v2157
      %2212 = vmatmul.bf16.gmra.mxu0 %v2116
      %v2213 = vpop.f32.mrf.mxu0
      %v2214 = vadd.f32 0.0, %v2213
      %v2215 = vpop.f32.mrf.mxu0
      %v2216 = vadd.f32 0.0, %v2215
      %2217 = vmatmul.bf16.gmra.mxu0 %v2118
      %v2218 = vpop.f32.mrf.mxu0
      %v2219 = vadd.f32 0.0, %v2218
      %v2220 = vpop.f32.mrf.mxu0
      %v2221 = vadd.f32 0.0, %v2220
      %2222 = vmatmul.bf16.gmra.mxu0 %v2120
      %v2223 = vpop.f32.mrf.mxu0
      %v2224 = vadd.f32 0.0, %v2223
      %v2225 = vpop.f32.mrf.mxu0
      %v2226 = vadd.f32 0.0, %v2225
      %2227 = vmatmul.bf16.gmra.mxu0 %v2122
      %v2228 = vpop.f32.mrf.mxu0
      %v2229 = vadd.f32 0.0, %v2228
      %v2230 = vpop.f32.mrf.mxu0
      %v2231 = vadd.f32 0.0, %v2230
      %2232 = vmatmul.bf16.gmra.mxu0 %v2124
      %v2233 = vpop.f32.mrf.mxu0
      %v2234 = vadd.f32 0.0, %v2233
      %v2235 = vpop.f32.mrf.mxu0
      %v2236 = vadd.f32 0.0, %v2235
      %2237 = vmatmul.bf16.gmra.mxu0 %v2126
      %v2238 = vpop.f32.mrf.mxu0
      %v2239 = vadd.f32 0.0, %v2238
      %v2240 = vpop.f32.mrf.mxu0
      %v2241 = vadd.f32 0.0, %v2240
      %2242 = vmatmul.bf16.gmra.mxu0 %v2128
      %v2243 = vpop.f32.mrf.mxu0
      %v2244 = vadd.f32 0.0, %v2243
      %v2245 = vpop.f32.mrf.mxu0
      %v2246 = vadd.f32 0.0, %v2245
      %2247 = vmatmul.bf16.gmra.mxu0 %v2130
      %v2248 = vpop.f32.mrf.mxu0
      %v2249 = vadd.f32 0.0, %v2248
      %v2250 = vpop.f32.mrf.mxu0
      %v2251 = vadd.f32 0.0, %v2250
      %2252 = vmatmul.bf16.gmra.mxu0 %v2117
      %v2253 = vpop.f32.mrf.mxu0
      %v2254 = vadd.f32 0.0, %v2253
      %v2255 = vpop.f32.mrf.mxu0
      %v2256 = vadd.f32 0.0, %v2255
      %2257 = vmatmul.bf16.gmra.mxu0 %v2119
      %v2258 = vpop.f32.mrf.mxu0
      %v2259 = vadd.f32 0.0, %v2258
      %v2260 = vpop.f32.mrf.mxu0
      %v2261 = vadd.f32 0.0, %v2260
      %2262 = vmatmul.bf16.gmra.mxu0 %v2121
      %v2263 = vpop.f32.mrf.mxu0
      %v2264 = vadd.f32 0.0, %v2263
      %v2265 = vpop.f32.mrf.mxu0
      %v2266 = vadd.f32 0.0, %v2265
      %2267 = vmatmul.bf16.gmra.mxu0 %v2123
      %v2268 = vpop.f32.mrf.mxu0
      %v2269 = vadd.f32 0.0, %v2268
      %v2270 = vpop.f32.mrf.mxu0
      %v2271 = vadd.f32 0.0, %v2270
      %2272 = vmatmul.bf16.gmra.mxu0 %v2125
      %v2273 = vpop.f32.mrf.mxu0
      %v2274 = vadd.f32 0.0, %v2273
      %v2275 = vpop.f32.mrf.mxu0
      %v2276 = vadd.f32 0.0, %v2275
      %2277 = vmatmul.bf16.gmra.mxu0 %v2127
      %v2278 = vpop.f32.mrf.mxu0
      %v2279 = vadd.f32 0.0, %v2278
      %v2280 = vpop.f32.mrf.mxu0
      %v2281 = vadd.f32 0.0, %v2280
      %2282 = vmatmul.bf16.gmra.mxu0 %v2129
      %v2283 = vpop.f32.mrf.mxu0
      %v2284 = vadd.f32 0.0, %v2283
      %v2285 = vpop.f32.mrf.mxu0
      %v2286 = vadd.f32 0.0, %v2285
      %2287 = vmatmul.bf16.gmra.mxu0 %v2131
      %v2288 = vpop.f32.mrf.mxu0
      %v2289 = vadd.f32 0.0, %v2288
      %v2290 = vpop.f32.mrf.mxu0
      %v2291 = vadd.f32 0.0, %v2290
      %2292 = vdwg.mxu0
      %2293 = vmatpush.bf16.msra.mxu0 %v2187
      %2294 = vmatpush.bf16.msra.mxu0 %v2185
      %2295 = vmatpush.bf16.msra.mxu0 %v2183
      %2296 = vmatpush.bf16.msra.mxu0 %v2181
      %2297 = vmatpush.bf16.msra.mxu0 %v2179
      %2298 = vmatpush.bf16.msra.mxu0 %v2177
      %2299 = vmatpush.bf16.msra.mxu0 %v2175
      %2300 = vmatpush.bf16.msra.mxu0 %v2173
      %2301 = vmatmul.bf16.gmra.mxu0 %v2140
      %v2302 = vpop.f32.mrf.mxu0
      %v2303 = vadd.f32 %v2214, %v2302
      %v2304 = vpop.f32.mrf.mxu0
      %v2305 = vadd.f32 %v2216, %v2304
      %2306 = vmatmul.bf16.gmra.mxu0 %v2142
      %v2307 = vpop.f32.mrf.mxu0
      %v2308 = vadd.f32 %v2219, %v2307
      %v2309 = vpop.f32.mrf.mxu0
      %v2310 = vadd.f32 %v2221, %v2309
      %2311 = vmatmul.bf16.gmra.mxu0 %v2144
      %v2312 = vpop.f32.mrf.mxu0
      %v2313 = vadd.f32 %v2224, %v2312
      %v2314 = vpop.f32.mrf.mxu0
      %v2315 = vadd.f32 %v2226, %v2314
      %2316 = vmatmul.bf16.gmra.mxu0 %v2146
      %v2317 = vpop.f32.mrf.mxu0
      %v2318 = vadd.f32 %v2229, %v2317
      %v2319 = vpop.f32.mrf.mxu0
      %v2320 = vadd.f32 %v2231, %v2319
      %2321 = vmatmul.bf16.gmra.mxu0 %v2148
      %v2322 = vpop.f32.mrf.mxu0
      %v2323 = vadd.f32 %v2234, %v2322
      %v2324 = vpop.f32.mrf.mxu0
      %v2325 = vadd.f32 %v2236, %v2324
      %2326 = vmatmul.bf16.gmra.mxu0 %v2150
      %v2327 = vpop.f32.mrf.mxu0
      %v2328 = vadd.f32 %v2239, %v2327
      %v2329 = vpop.f32.mrf.mxu0
      %v2330 = vadd.f32 %v2241, %v2329
      %2331 = vmatmul.bf16.gmra.mxu0 %v2152
      %v2332 = vpop.f32.mrf.mxu0
      %v2333 = vadd.f32 %v2244, %v2332
      %v2334 = vpop.f32.mrf.mxu0
      %v2335 = vadd.f32 %v2246, %v2334
      %2336 = vmatmul.bf16.gmra.mxu0 %v2154
      %v2337 = vpop.f32.mrf.mxu0
      %v2338 = vadd.f32 %v2249, %v2337
      %v2339 = vpop.f32.mrf.mxu0
      %v2340 = vadd.f32 %v2251, %v2339
      %2341 = vmatmul.bf16.gmra.mxu0 %v2141
      %v2342 = vpop.f32.mrf.mxu0
      %v2343 = vadd.f32 %v2254, %v2342
      %v2344 = vpop.f32.mrf.mxu0
      %v2345 = vadd.f32 %v2256, %v2344
      %2346 = vmatmul.bf16.gmra.mxu0 %v2143
      %v2347 = vpop.f32.mrf.mxu0
      %v2348 = vadd.f32 %v2259, %v2347
      %v2349 = vpop.f32.mrf.mxu0
      %v2350 = vadd.f32 %v2261, %v2349
      %2351 = vmatmul.bf16.gmra.mxu0 %v2145
      %v2352 = vpop.f32.mrf.mxu0
      %v2353 = vadd.f32 %v2264, %v2352
      %v2354 = vpop.f32.mrf.mxu0
      %v2355 = vadd.f32 %v2266, %v2354
      %2356 = vmatmul.bf16.gmra.mxu0 %v2147
      %v2357 = vpop.f32.mrf.mxu0
      %v2358 = vadd.f32 %v2269, %v2357
      %v2359 = vpop.f32.mrf.mxu0
      %v2360 = vadd.f32 %v2271, %v2359
      %2361 = vmatmul.bf16.gmra.mxu0 %v2149
      %v2362 = vpop.f32.mrf.mxu0
      %v2363 = vadd.f32 %v2274, %v2362
      %v2364 = vpop.f32.mrf.mxu0
      %v2365 = vadd.f32 %v2276, %v2364
      %2366 = vmatmul.bf16.gmra.mxu0 %v2151
      %v2367 = vpop.f32.mrf.mxu0
      %v2368 = vadd.f32 %v2279, %v2367
      %v2369 = vpop.f32.mrf.mxu0
      %v2370 = vadd.f32 %v2281, %v2369
      %2371 = vmatmul.bf16.gmra.mxu0 %v2153
      %v2372 = vpop.f32.mrf.mxu0
      %v2373 = vadd.f32 %v2284, %v2372
      %v2374 = vpop.f32.mrf.mxu0
      %v2375 = vadd.f32 %v2286, %v2374
      %2376 = vmatmul.bf16.gmra.mxu0 %v2155
      %v2377 = vpop.f32.mrf.mxu0
      %v2378 = vadd.f32 %v2289, %v2377
      %v2379 = vpop.f32.mrf.mxu0
      %v2380 = vadd.f32 %v2291, %v2379
      %2381 = vdwg.mxu0
      %v2382 = vpack.c.bf16 %v2305, %v2303
      %v2383 = vpack.c.bf16 %v2310, %v2308
      %v2384 = vpack.c.bf16 %v2315, %v2313
      %v2385 = vpack.c.bf16 %v2320, %v2318
      %v2386 = vpack.c.bf16 %v2325, %v2323
      %v2387 = vpack.c.bf16 %v2330, %v2328
      %v2388 = vpack.c.bf16 %v2335, %v2333
      %v2389 = vpack.c.bf16 %v2340, %v2338
      %v2390 = vpack.c.bf16 %v2345, %v2343
      %v2391 = vpack.c.bf16 %v2350, %v2348
      %v2392 = vpack.c.bf16 %v2355, %v2353
      %v2393 = vpack.c.bf16 %v2360, %v2358
      %v2394 = vpack.c.bf16 %v2365, %v2363
      %v2395 = vpack.c.bf16 %v2370, %v2368
      %v2396 = vpack.c.bf16 %v2375, %v2373
      %v2397 = vpack.c.bf16 %v2380, %v2378
      %v2398 = vld [vmem:[%s7] sm:$0xf]
      %v2399 = vld [vmem:[%s7 + $0x4] sm:$0xf]
      %v2400 = vld [vmem:[%s7 + $0x8] sm:$0xf]
      %v2401 = vld [vmem:[%s7 + $0xc] sm:$0xf]
      %v2402 = vld [vmem:[%s8] sm:$0x1]
      %v2404 = vperm.slane %v2402, 0
      %v2410 = vunpack.c.l.b16 %v2398
      %v2411 = vunpack.c.l.b16 %v2399
      %v2412 = vunpack.c.l.b16 %v2400
      %v2413 = vunpack.c.l.b16 %v2401
      %v2414 = vpack.c.b16 %v2411, %v2410
      %v2415 = vpack.c.b16 %v2413, %v2412
      %v2419 = vsel %vm1194, %v2382, 0
      %v2422 = vsel %vm1194, %v2383, 0
      %v2425 = vsel %vm1194, %v2384, 0
      %v2428 = vsel %vm1194, %v2385, 0
      %v2431 = vsel %vm1194, %v2386, 0
      %v2434 = vsel %vm1194, %v2387, 0
      %v2437 = vsel %vm1194, %v2388, 0
      %v2440 = vsel %vm1194, %v2389, 0
      %v2443 = vsel %vm1194, %v2390, 0
      %v2446 = vsel %vm1194, %v2391, 0
      %v2449 = vsel %vm1194, %v2392, 0
      %v2452 = vsel %vm1194, %v2393, 0
      %v2455 = vsel %vm1194, %v2394, 0
      %v2458 = vsel %vm1194, %v2395, 0
      %v2461 = vsel %vm1194, %v2396, 0
      %v2464 = vsel %vm1194, %v2397, 0
      %2466 = vmatpush.bf16.msra.mxu0 0
      %2467 = vmatpush.bf16.msra.mxu0 0
      %2468 = vmatpush.bf16.msra.mxu0 0
      %2469 = vmatpush.bf16.msra.mxu0 0
      %2470 = vmatpush.bf16.msra.mxu0 0
      %2471 = vmatpush.bf16.msra.mxu0 0
      %2472 = vmatpush.bf16.msra.mxu0 %v2415
      %2473 = vmatpush.bf16.msra.mxu0 %v2414
      %2474 = vmatmul.bf16.gmra.mxu0 %v2419
      %v2475 = vpop.f32.mrf.mxu0
      %v2476 = vadd.f32 %v2404, %v2475
      %v2477 = vpop.f32.mrf.mxu0
      %v2478 = vadd.f32 %v2404, %v2477
      %2479 = vmatmul.bf16.gmra.mxu0 %v2422
      %v2480 = vpop.f32.mrf.mxu0
      %v2481 = vadd.f32 %v2404, %v2480
      %v2482 = vpop.f32.mrf.mxu0
      %v2483 = vadd.f32 %v2404, %v2482
      %2484 = vmatmul.bf16.gmra.mxu0 %v2425
      %v2485 = vpop.f32.mrf.mxu0
      %v2486 = vadd.f32 %v2404, %v2485
      %v2487 = vpop.f32.mrf.mxu0
      %v2488 = vadd.f32 %v2404, %v2487
      %2489 = vmatmul.bf16.gmra.mxu0 %v2428
      %v2490 = vpop.f32.mrf.mxu0
      %v2491 = vadd.f32 %v2404, %v2490
      %v2492 = vpop.f32.mrf.mxu0
      %v2493 = vadd.f32 %v2404, %v2492
      %2494 = vmatmul.bf16.gmra.mxu0 %v2431
      %v2495 = vpop.f32.mrf.mxu0
      %v2496 = vadd.f32 %v2404, %v2495
      %v2497 = vpop.f32.mrf.mxu0
      %v2498 = vadd.f32 %v2404, %v2497
      %2499 = vmatmul.bf16.gmra.mxu0 %v2434
      %v2500 = vpop.f32.mrf.mxu0
      %v2501 = vadd.f32 %v2404, %v2500
      %v2502 = vpop.f32.mrf.mxu0
      %v2503 = vadd.f32 %v2404, %v2502
      %2504 = vmatmul.bf16.gmra.mxu0 %v2437
      %v2505 = vpop.f32.mrf.mxu0
      %v2506 = vadd.f32 %v2404, %v2505
      %v2507 = vpop.f32.mrf.mxu0
      %v2508 = vadd.f32 %v2404, %v2507
      %2509 = vmatmul.bf16.gmra.mxu0 %v2440
      %v2510 = vpop.f32.mrf.mxu0
      %v2511 = vadd.f32 %v2404, %v2510
      %v2512 = vpop.f32.mrf.mxu0
      %v2513 = vadd.f32 %v2404, %v2512
      %2514 = vmatmul.bf16.gmra.mxu0 %v2443
      %v2515 = vpop.f32.mrf.mxu0
      %v2516 = vadd.f32 %v2404, %v2515
      %v2517 = vpop.f32.mrf.mxu0
      %v2518 = vadd.f32 %v2404, %v2517
      %2519 = vmatmul.bf16.gmra.mxu0 %v2446
      %v2520 = vpop.f32.mrf.mxu0
      %v2521 = vadd.f32 %v2404, %v2520
      %v2522 = vpop.f32.mrf.mxu0
      %v2523 = vadd.f32 %v2404, %v2522
      %2524 = vmatmul.bf16.gmra.mxu0 %v2449
      %v2525 = vpop.f32.mrf.mxu0
      %v2526 = vadd.f32 %v2404, %v2525
      %v2527 = vpop.f32.mrf.mxu0
      %v2528 = vadd.f32 %v2404, %v2527
      %2529 = vmatmul.bf16.gmra.mxu0 %v2452
      %v2530 = vpop.f32.mrf.mxu0
      %v2531 = vadd.f32 %v2404, %v2530
      %v2532 = vpop.f32.mrf.mxu0
      %v2533 = vadd.f32 %v2404, %v2532
      %2534 = vmatmul.bf16.gmra.mxu0 %v2455
      %v2535 = vpop.f32.mrf.mxu0
      %v2536 = vadd.f32 %v2404, %v2535
      %v2537 = vpop.f32.mrf.mxu0
      %v2538 = vadd.f32 %v2404, %v2537
      %2539 = vmatmul.bf16.gmra.mxu0 %v2458
      %v2540 = vpop.f32.mrf.mxu0
      %v2541 = vadd.f32 %v2404, %v2540
      %v2542 = vpop.f32.mrf.mxu0
      %v2543 = vadd.f32 %v2404, %v2542
      %2544 = vmatmul.bf16.gmra.mxu0 %v2461
      %v2545 = vpop.f32.mrf.mxu0
      %v2546 = vadd.f32 %v2404, %v2545
      %v2547 = vpop.f32.mrf.mxu0
      %v2548 = vadd.f32 %v2404, %v2547
      %2549 = vmatmul.bf16.gmra.mxu0 %v2464
      %v2550 = vpop.f32.mrf.mxu0
      %v2551 = vadd.f32 %v2404, %v2550
      %v2552 = vpop.f32.mrf.mxu0
      %v2553 = vadd.f32 %v2404, %v2552
      %2554 = vdwg.mxu0
      %v2555 = vadd.f32 %v1125, %v2476
      %v2556 = vadd.f32 %v1126, %v2478
      %v2557 = vadd.f32 %v1127, %v2481
      %v2558 = vadd.f32 %v1128, %v2483
      %v2559 = vadd.f32 %v1129, %v2486
      %v2560 = vadd.f32 %v1130, %v2488
      %v2561 = vadd.f32 %v1131, %v2491
      %v2562 = vadd.f32 %v1132, %v2493
      %v2563 = vadd.f32 %v1133, %v2496
      %v2564 = vadd.f32 %v1134, %v2498
      %v2565 = vadd.f32 %v1135, %v2501
      %v2566 = vadd.f32 %v1136, %v2503
      %v2567 = vadd.f32 %v1137, %v2506
      %v2568 = vadd.f32 %v1138, %v2508
      %v2569 = vadd.f32 %v1139, %v2511
      %v2570 = vadd.f32 %v1140, %v2513
      %v2571 = vadd.f32 %v1141, %v2516
      %v2572 = vadd.f32 %v1142, %v2518
      %v2573 = vadd.f32 %v1143, %v2521
      %v2574 = vadd.f32 %v1144, %v2523
      %v2575 = vadd.f32 %v1145, %v2526
      %v2576 = vadd.f32 %v1146, %v2528
      %v2577 = vadd.f32 %v1147, %v2531
      %v2578 = vadd.f32 %v1148, %v2533
      %v2579 = vadd.f32 %v1149, %v2536
      %v2580 = vadd.f32 %v1150, %v2538
      %v2581 = vadd.f32 %v1151, %v2541
      %v2582 = vadd.f32 %v1152, %v2543
      %v2583 = vadd.f32 %v1153, %v2546
      %v2584 = vadd.f32 %v1154, %v2548
      %v2585 = vadd.f32 %v1155, %v2551
      %v2586 = vadd.f32 %v1156, %v2553
      %v2587 = vsel %vm1194, %v2555, 0.0
      %2588 = vadd.xlane.f32.xlu0 %v2587
      %v2589 = vpop.xlane.xlu0 %2588
      %v2590 = vsel %vm1194, %v2556, 0.0
      %2591 = vadd.xlane.f32.xlu0 %v2590
      %v2592 = vpop.xlane.xlu0 %2591
      %v2593 = vsel %vm1194, %v2557, 0.0
      %2594 = vadd.xlane.f32.xlu0 %v2593
      %v2595 = vpop.xlane.xlu0 %2594
      %v2596 = vsel %vm1194, %v2558, 0.0
      %2597 = vadd.xlane.f32.xlu0 %v2596
      %v2598 = vpop.xlane.xlu0 %2597
      %v2599 = vsel %vm1194, %v2559, 0.0
      %2600 = vadd.xlane.f32.xlu0 %v2599
      %v2601 = vpop.xlane.xlu0 %2600
      %v2602 = vsel %vm1194, %v2560, 0.0
      %2603 = vadd.xlane.f32.xlu0 %v2602
      %v2604 = vpop.xlane.xlu0 %2603
      %v2605 = vsel %vm1194, %v2561, 0.0
      %2606 = vadd.xlane.f32.xlu0 %v2605
      %v2607 = vpop.xlane.xlu0 %2606
      %v2608 = vsel %vm1194, %v2562, 0.0
      %2609 = vadd.xlane.f32.xlu0 %v2608
      %v2610 = vpop.xlane.xlu0 %2609
      %v2611 = vsel %vm1194, %v2563, 0.0
      %2612 = vadd.xlane.f32.xlu0 %v2611
      %v2613 = vpop.xlane.xlu0 %2612
      %v2614 = vsel %vm1194, %v2564, 0.0
      %2615 = vadd.xlane.f32.xlu0 %v2614
      %v2616 = vpop.xlane.xlu0 %2615
      %v2617 = vsel %vm1194, %v2565, 0.0
      %2618 = vadd.xlane.f32.xlu0 %v2617
      %v2619 = vpop.xlane.xlu0 %2618
      %v2620 = vsel %vm1194, %v2566, 0.0
      %2621 = vadd.xlane.f32.xlu0 %v2620
      %v2622 = vpop.xlane.xlu0 %2621
      %v2623 = vsel %vm1194, %v2567, 0.0
      %2624 = vadd.xlane.f32.xlu0 %v2623
      %v2625 = vpop.xlane.xlu0 %2624
      %v2626 = vsel %vm1194, %v2568, 0.0
      %2627 = vadd.xlane.f32.xlu0 %v2626
      %v2628 = vpop.xlane.xlu0 %2627
      %v2629 = vsel %vm1194, %v2569, 0.0
      %2630 = vadd.xlane.f32.xlu0 %v2629
      %v2631 = vpop.xlane.xlu0 %2630
      %v2632 = vsel %vm1194, %v2570, 0.0
      %2633 = vadd.xlane.f32.xlu0 %v2632
      %v2634 = vpop.xlane.xlu0 %2633
      %v2635 = vsel %vm1194, %v2571, 0.0
      %2636 = vadd.xlane.f32.xlu0 %v2635
      %v2637 = vpop.xlane.xlu0 %2636
      %v2638 = vsel %vm1194, %v2572, 0.0
      %2639 = vadd.xlane.f32.xlu0 %v2638
      %v2640 = vpop.xlane.xlu0 %2639
      %v2641 = vsel %vm1194, %v2573, 0.0
      %2642 = vadd.xlane.f32.xlu0 %v2641
      %v2643 = vpop.xlane.xlu0 %2642
      %v2644 = vsel %vm1194, %v2574, 0.0
      %2645 = vadd.xlane.f32.xlu0 %v2644
      %v2646 = vpop.xlane.xlu0 %2645
      %v2647 = vsel %vm1194, %v2575, 0.0
      %2648 = vadd.xlane.f32.xlu0 %v2647
      %v2649 = vpop.xlane.xlu0 %2648
      %v2650 = vsel %vm1194, %v2576, 0.0
      %2651 = vadd.xlane.f32.xlu0 %v2650
      %v2652 = vpop.xlane.xlu0 %2651
      %v2653 = vsel %vm1194, %v2577, 0.0
      %2654 = vadd.xlane.f32.xlu0 %v2653
      %v2655 = vpop.xlane.xlu0 %2654
      %v2656 = vsel %vm1194, %v2578, 0.0
      %2657 = vadd.xlane.f32.xlu0 %v2656
      %v2658 = vpop.xlane.xlu0 %2657
      %v2659 = vsel %vm1194, %v2579, 0.0
      %2660 = vadd.xlane.f32.xlu0 %v2659
      %v2661 = vpop.xlane.xlu0 %2660
      %v2662 = vsel %vm1194, %v2580, 0.0
      %2663 = vadd.xlane.f32.xlu0 %v2662
      %v2664 = vpop.xlane.xlu0 %2663
      %v2665 = vsel %vm1194, %v2581, 0.0
      %2666 = vadd.xlane.f32.xlu0 %v2665
      %v2667 = vpop.xlane.xlu0 %2666
      %v2668 = vsel %vm1194, %v2582, 0.0
      %2669 = vadd.xlane.f32.xlu0 %v2668
      %v2670 = vpop.xlane.xlu0 %2669
      %v2671 = vsel %vm1194, %v2583, 0.0
      %2672 = vadd.xlane.f32.xlu0 %v2671
      %v2673 = vpop.xlane.xlu0 %2672
      %v2674 = vsel %vm1194, %v2584, 0.0
      %2675 = vadd.xlane.f32.xlu0 %v2674
      %v2676 = vpop.xlane.xlu0 %2675
      %v2677 = vsel %vm1194, %v2585, 0.0
      %2678 = vadd.xlane.f32.xlu0 %v2677
      %v2679 = vpop.xlane.xlu0 %2678
      %v2680 = vsel %vm1194, %v2586, 0.0
      %2681 = vadd.xlane.f32.xlu0 %v2680
      %v2682 = vpop.xlane.xlu0 %2681
      %v2683 = vrcp.pop 32.0
      %v2684 = vmul.f32 32.0, %v2683
      %v2685 = vsub.f32 1.0, %v2684
      %v2686 = vmul.f32 %v2683, %v2685
      %v2687 = vadd.f32 %v2683, %v2686
      %vm2688 = vweird.f32 %v2683
      %v2689 = vsel %vm2688, %v2683, %v2687
      %v2690 = vmul.f32 %v2589, %v2689
      %v2691 = vmul.f32 %v2592, %v2689
      %v2692 = vmul.f32 %v2595, %v2689
      %v2693 = vmul.f32 %v2598, %v2689
      %v2694 = vmul.f32 %v2601, %v2689
      %v2695 = vmul.f32 %v2604, %v2689
      %v2696 = vmul.f32 %v2607, %v2689
      %v2697 = vmul.f32 %v2610, %v2689
      %v2698 = vmul.f32 %v2613, %v2689
      %v2699 = vmul.f32 %v2616, %v2689
      %v2700 = vmul.f32 %v2619, %v2689
      %v2701 = vmul.f32 %v2622, %v2689
      %v2702 = vmul.f32 %v2625, %v2689
      %v2703 = vmul.f32 %v2628, %v2689
      %v2704 = vmul.f32 %v2631, %v2689
      %v2705 = vmul.f32 %v2634, %v2689
      %v2706 = vmul.f32 %v2637, %v2689
      %v2707 = vmul.f32 %v2640, %v2689
      %v2708 = vmul.f32 %v2643, %v2689
      %v2709 = vmul.f32 %v2646, %v2689
      %v2710 = vmul.f32 %v2649, %v2689
      %v2711 = vmul.f32 %v2652, %v2689
      %v2712 = vmul.f32 %v2655, %v2689
      %v2713 = vmul.f32 %v2658, %v2689
      %v2714 = vmul.f32 %v2661, %v2689
      %v2715 = vmul.f32 %v2664, %v2689
      %v2716 = vmul.f32 %v2667, %v2689
      %v2717 = vmul.f32 %v2670, %v2689
      %v2718 = vmul.f32 %v2673, %v2689
      %v2719 = vmul.f32 %v2676, %v2689
      %v2720 = vmul.f32 %v2679, %v2689
      %v2721 = vmul.f32 %v2682, %v2689
      %v2722 = vsub.f32 %v2555, %v2690
      %v2723 = vsub.f32 %v2556, %v2691
      %v2724 = vsub.f32 %v2557, %v2692
      %v2725 = vsub.f32 %v2558, %v2693
      %v2726 = vsub.f32 %v2559, %v2694
      %v2727 = vsub.f32 %v2560, %v2695
      %v2728 = vsub.f32 %v2561, %v2696
      %v2729 = vsub.f32 %v2562, %v2697
      %v2730 = vsub.f32 %v2563, %v2698
      %v2731 = vsub.f32 %v2564, %v2699
      %v2732 = vsub.f32 %v2565, %v2700
      %v2733 = vsub.f32 %v2566, %v2701
      %v2734 = vsub.f32 %v2567, %v2702
      %v2735 = vsub.f32 %v2568, %v2703
      %v2736 = vsub.f32 %v2569, %v2704
      %v2737 = vsub.f32 %v2570, %v2705
      %v2738 = vsub.f32 %v2571, %v2706
      %v2739 = vsub.f32 %v2572, %v2707
      %v2740 = vsub.f32 %v2573, %v2708
      %v2741 = vsub.f32 %v2574, %v2709
      %v2742 = vsub.f32 %v2575, %v2710
      %v2743 = vsub.f32 %v2576, %v2711
      %v2744 = vsub.f32 %v2577, %v2712
      %v2745 = vsub.f32 %v2578, %v2713
      %v2746 = vsub.f32 %v2579, %v2714
      %v2747 = vsub.f32 %v2580, %v2715
      %v2748 = vsub.f32 %v2581, %v2716
      %v2749 = vsub.f32 %v2582, %v2717
      %v2750 = vsub.f32 %v2583, %v2718
      %v2751 = vsub.f32 %v2584, %v2719
      %v2752 = vsub.f32 %v2585, %v2720
      %v2753 = vsub.f32 %v2586, %v2721
      %v2754 = vmul.f32 %v2722, %v2722
      %v2755 = vmul.f32 %v2723, %v2723
      %v2756 = vmul.f32 %v2724, %v2724
      %v2757 = vmul.f32 %v2725, %v2725
      %v2758 = vmul.f32 %v2726, %v2726
      %v2759 = vmul.f32 %v2727, %v2727
      %v2760 = vmul.f32 %v2728, %v2728
      %v2761 = vmul.f32 %v2729, %v2729
      %v2762 = vmul.f32 %v2730, %v2730
      %v2763 = vmul.f32 %v2731, %v2731
      %v2764 = vmul.f32 %v2732, %v2732
      %v2765 = vmul.f32 %v2733, %v2733
      %v2766 = vmul.f32 %v2734, %v2734
      %v2767 = vmul.f32 %v2735, %v2735
      %v2768 = vmul.f32 %v2736, %v2736
      %v2769 = vmul.f32 %v2737, %v2737
      %v2770 = vmul.f32 %v2738, %v2738
      %v2771 = vmul.f32 %v2739, %v2739
      %v2772 = vmul.f32 %v2740, %v2740
      %v2773 = vmul.f32 %v2741, %v2741
      %v2774 = vmul.f32 %v2742, %v2742
      %v2775 = vmul.f32 %v2743, %v2743
      %v2776 = vmul.f32 %v2744, %v2744
      %v2777 = vmul.f32 %v2745, %v2745
      %v2778 = vmul.f32 %v2746, %v2746
      %v2779 = vmul.f32 %v2747, %v2747
      %v2780 = vmul.f32 %v2748, %v2748
      %v2781 = vmul.f32 %v2749, %v2749
      %v2782 = vmul.f32 %v2750, %v2750
      %v2783 = vmul.f32 %v2751, %v2751
      %v2784 = vmul.f32 %v2752, %v2752
      %v2785 = vmul.f32 %v2753, %v2753
      %v2786 = vsel %vm1194, %v2754, 0.0
      %2787 = vadd.xlane.f32.xlu0 %v2786
      %v2788 = vpop.xlane.xlu0 %2787
      %v2789 = vsel %vm1194, %v2755, 0.0
      %2790 = vadd.xlane.f32.xlu0 %v2789
      %v2791 = vpop.xlane.xlu0 %2790
      %v2792 = vsel %vm1194, %v2756, 0.0
      %2793 = vadd.xlane.f32.xlu0 %v2792
      %v2794 = vpop.xlane.xlu0 %2793
      %v2795 = vsel %vm1194, %v2757, 0.0
      %2796 = vadd.xlane.f32.xlu0 %v2795
      %v2797 = vpop.xlane.xlu0 %2796
      %v2798 = vsel %vm1194, %v2758, 0.0
      %2799 = vadd.xlane.f32.xlu0 %v2798
      %v2800 = vpop.xlane.xlu0 %2799
      %v2801 = vsel %vm1194, %v2759, 0.0
      %2802 = vadd.xlane.f32.xlu0 %v2801
      %v2803 = vpop.xlane.xlu0 %2802
      %v2804 = vsel %vm1194, %v2760, 0.0
      %2805 = vadd.xlane.f32.xlu0 %v2804
      %v2806 = vpop.xlane.xlu0 %2805
      %v2807 = vsel %vm1194, %v2761, 0.0
      %2808 = vadd.xlane.f32.xlu0 %v2807
      %v2809 = vpop.xlane.xlu0 %2808
      %v2810 = vsel %vm1194, %v2762, 0.0
      %2811 = vadd.xlane.f32.xlu0 %v2810
      %v2812 = vpop.xlane.xlu0 %2811
      %v2813 = vsel %vm1194, %v2763, 0.0
      %2814 = vadd.xlane.f32.xlu0 %v2813
      %v2815 = vpop.xlane.xlu0 %2814
      %v2816 = vsel %vm1194, %v2764, 0.0
      %2817 = vadd.xlane.f32.xlu0 %v2816
      %v2818 = vpop.xlane.xlu0 %2817
      %v2819 = vsel %vm1194, %v2765, 0.0
      %2820 = vadd.xlane.f32.xlu0 %v2819
      %v2821 = vpop.xlane.xlu0 %2820
      %v2822 = vsel %vm1194, %v2766, 0.0
      %2823 = vadd.xlane.f32.xlu0 %v2822
      %v2824 = vpop.xlane.xlu0 %2823
      %v2825 = vsel %vm1194, %v2767, 0.0
      %2826 = vadd.xlane.f32.xlu0 %v2825
      %v2827 = vpop.xlane.xlu0 %2826
      %v2828 = vsel %vm1194, %v2768, 0.0
      %2829 = vadd.xlane.f32.xlu0 %v2828
      %v2830 = vpop.xlane.xlu0 %2829
      %v2831 = vsel %vm1194, %v2769, 0.0
      %2832 = vadd.xlane.f32.xlu0 %v2831
      %v2833 = vpop.xlane.xlu0 %2832
      %v2834 = vsel %vm1194, %v2770, 0.0
      %2835 = vadd.xlane.f32.xlu0 %v2834
      %v2836 = vpop.xlane.xlu0 %2835
      %v2837 = vsel %vm1194, %v2771, 0.0
      %2838 = vadd.xlane.f32.xlu0 %v2837
      %v2839 = vpop.xlane.xlu0 %2838
      %v2840 = vsel %vm1194, %v2772, 0.0
      %2841 = vadd.xlane.f32.xlu0 %v2840
      %v2842 = vpop.xlane.xlu0 %2841
      %v2843 = vsel %vm1194, %v2773, 0.0
      %2844 = vadd.xlane.f32.xlu0 %v2843
      %v2845 = vpop.xlane.xlu0 %2844
      %v2846 = vsel %vm1194, %v2774, 0.0
      %2847 = vadd.xlane.f32.xlu0 %v2846
      %v2848 = vpop.xlane.xlu0 %2847
      %v2849 = vsel %vm1194, %v2775, 0.0
      %2850 = vadd.xlane.f32.xlu0 %v2849
      %v2851 = vpop.xlane.xlu0 %2850
      %v2852 = vsel %vm1194, %v2776, 0.0
      %2853 = vadd.xlane.f32.xlu0 %v2852
      %v2854 = vpop.xlane.xlu0 %2853
      %v2855 = vsel %vm1194, %v2777, 0.0
      %2856 = vadd.xlane.f32.xlu0 %v2855
      %v2857 = vpop.xlane.xlu0 %2856
      %v2858 = vsel %vm1194, %v2778, 0.0
      %2859 = vadd.xlane.f32.xlu0 %v2858
      %v2860 = vpop.xlane.xlu0 %2859
      %v2861 = vsel %vm1194, %v2779, 0.0
      %2862 = vadd.xlane.f32.xlu0 %v2861
      %v2863 = vpop.xlane.xlu0 %2862
      %v2864 = vsel %vm1194, %v2780, 0.0
      %2865 = vadd.xlane.f32.xlu0 %v2864
      %v2866 = vpop.xlane.xlu0 %2865
      %v2867 = vsel %vm1194, %v2781, 0.0
      %2868 = vadd.xlane.f32.xlu0 %v2867
      %v2869 = vpop.xlane.xlu0 %2868
      %v2870 = vsel %vm1194, %v2782, 0.0
      %2871 = vadd.xlane.f32.xlu0 %v2870
      %v2872 = vpop.xlane.xlu0 %2871
      %v2873 = vsel %vm1194, %v2783, 0.0
      %2874 = vadd.xlane.f32.xlu0 %v2873
      %v2875 = vpop.xlane.xlu0 %2874
      %v2876 = vsel %vm1194, %v2784, 0.0
      %2877 = vadd.xlane.f32.xlu0 %v2876
      %v2878 = vpop.xlane.xlu0 %2877
      %v2879 = vsel %vm1194, %v2785, 0.0
      %2880 = vadd.xlane.f32.xlu0 %v2879
      %v2881 = vpop.xlane.xlu0 %2880
      %v2882 = vmul.f32 %v2788, %v2689
      %v2883 = vmul.f32 %v2791, %v2689
      %v2884 = vmul.f32 %v2794, %v2689
      %v2885 = vmul.f32 %v2797, %v2689
      %v2886 = vmul.f32 %v2800, %v2689
      %v2887 = vmul.f32 %v2803, %v2689
      %v2888 = vmul.f32 %v2806, %v2689
      %v2889 = vmul.f32 %v2809, %v2689
      %v2890 = vmul.f32 %v2812, %v2689
      %v2891 = vmul.f32 %v2815, %v2689
      %v2892 = vmul.f32 %v2818, %v2689
      %v2893 = vmul.f32 %v2821, %v2689
      %v2894 = vmul.f32 %v2824, %v2689
      %v2895 = vmul.f32 %v2827, %v2689
      %v2896 = vmul.f32 %v2830, %v2689
      %v2897 = vmul.f32 %v2833, %v2689
      %v2898 = vmul.f32 %v2836, %v2689
      %v2899 = vmul.f32 %v2839, %v2689
      %v2900 = vmul.f32 %v2842, %v2689
      %v2901 = vmul.f32 %v2845, %v2689
      %v2902 = vmul.f32 %v2848, %v2689
      %v2903 = vmul.f32 %v2851, %v2689
      %v2904 = vmul.f32 %v2854, %v2689
      %v2905 = vmul.f32 %v2857, %v2689
      %v2906 = vmul.f32 %v2860, %v2689
      %v2907 = vmul.f32 %v2863, %v2689
      %v2908 = vmul.f32 %v2866, %v2689
      %v2909 = vmul.f32 %v2869, %v2689
      %v2910 = vmul.f32 %v2872, %v2689
      %v2911 = vmul.f32 %v2875, %v2689
      %v2912 = vmul.f32 %v2878, %v2689
      %v2913 = vmul.f32 %v2881, %v2689
      %v2914 = vadd.f32 %v2882, 1e-05
      %v2915 = vadd.f32 %v2883, 1e-05
      %v2916 = vadd.f32 %v2884, 1e-05
      %v2917 = vadd.f32 %v2885, 1e-05
      %v2918 = vadd.f32 %v2886, 1e-05
      %v2919 = vadd.f32 %v2887, 1e-05
      %v2920 = vadd.f32 %v2888, 1e-05
      %v2921 = vadd.f32 %v2889, 1e-05
      %v2922 = vadd.f32 %v2890, 1e-05
      %v2923 = vadd.f32 %v2891, 1e-05
      %v2924 = vadd.f32 %v2892, 1e-05
      %v2925 = vadd.f32 %v2893, 1e-05
      %v2926 = vadd.f32 %v2894, 1e-05
      %v2927 = vadd.f32 %v2895, 1e-05
      %v2928 = vadd.f32 %v2896, 1e-05
      %v2929 = vadd.f32 %v2897, 1e-05
      %v2930 = vadd.f32 %v2898, 1e-05
      %v2931 = vadd.f32 %v2899, 1e-05
      %v2932 = vadd.f32 %v2900, 1e-05
      %v2933 = vadd.f32 %v2901, 1e-05
      %v2934 = vadd.f32 %v2902, 1e-05
      %v2935 = vadd.f32 %v2903, 1e-05
      %v2936 = vadd.f32 %v2904, 1e-05
      %v2937 = vadd.f32 %v2905, 1e-05
      %v2938 = vadd.f32 %v2906, 1e-05
      %v2939 = vadd.f32 %v2907, 1e-05
      %v2940 = vadd.f32 %v2908, 1e-05
      %v2941 = vadd.f32 %v2909, 1e-05
      %v2942 = vadd.f32 %v2910, 1e-05
      %v2943 = vadd.f32 %v2911, 1e-05
      %v2944 = vadd.f32 %v2912, 1e-05
      %v2945 = vadd.f32 %v2913, 1e-05
      %v2946 = vrsqrt.pop %v2914
      %v2947 = vmul.f32 %v2946, %v2914
      %v2948 = vmul.f32 %v2947, %v2946
      %v2949 = vmul.f32 0.5, %v2948
      %v2950 = vsub.f32 1.5, %v2949
      %v2951 = vmul.f32 %v2946, %v2950
      %vm2952 = vweird.f32 %v2914
      %vm2953 = vweird.f32 %v2946
      %vm2954 = vmor %vm2952, %vm2953
      %v2955 = vsel %vm2954, %v2946, %v2951
      %v2956 = vrsqrt.pop %v2915
      %v2957 = vmul.f32 %v2956, %v2915
      %v2958 = vmul.f32 %v2957, %v2956
      %v2959 = vmul.f32 0.5, %v2958
      %v2960 = vsub.f32 1.5, %v2959
      %v2961 = vmul.f32 %v2956, %v2960
      %vm2962 = vweird.f32 %v2915
      %vm2963 = vweird.f32 %v2956
      %vm2964 = vmor %vm2962, %vm2963
      %v2965 = vsel %vm2964, %v2956, %v2961
      %v2966 = vrsqrt.pop %v2916
      %v2967 = vmul.f32 %v2966, %v2916
      %v2968 = vmul.f32 %v2967, %v2966
      %v2969 = vmul.f32 0.5, %v2968
      %v2970 = vsub.f32 1.5, %v2969
      %v2971 = vmul.f32 %v2966, %v2970
      %vm2972 = vweird.f32 %v2916
      %vm2973 = vweird.f32 %v2966
      %vm2974 = vmor %vm2972, %vm2973
      %v2975 = vsel %vm2974, %v2966, %v2971
      %v2976 = vrsqrt.pop %v2917
      %v2977 = vmul.f32 %v2976, %v2917
      %v2978 = vmul.f32 %v2977, %v2976
      %v2979 = vmul.f32 0.5, %v2978
      %v2980 = vsub.f32 1.5, %v2979
      %v2981 = vmul.f32 %v2976, %v2980
      %vm2982 = vweird.f32 %v2917
      %vm2983 = vweird.f32 %v2976
      %vm2984 = vmor %vm2982, %vm2983
      %v2985 = vsel %vm2984, %v2976, %v2981
      %v2986 = vrsqrt.pop %v2918
      %v2987 = vmul.f32 %v2986, %v2918
      %v2988 = vmul.f32 %v2987, %v2986
      %v2989 = vmul.f32 0.5, %v2988
      %v2990 = vsub.f32 1.5, %v2989
      %v2991 = vmul.f32 %v2986, %v2990
      %vm2992 = vweird.f32 %v2918
      %vm2993 = vweird.f32 %v2986
      %vm2994 = vmor %vm2992, %vm2993
      %v2995 = vsel %vm2994, %v2986, %v2991
      %v2996 = vrsqrt.pop %v2919
      %v2997 = vmul.f32 %v2996, %v2919
      %v2998 = vmul.f32 %v2997, %v2996
      %v2999 = vmul.f32 0.5, %v2998
      %v3000 = vsub.f32 1.5, %v2999
      %v3001 = vmul.f32 %v2996, %v3000
      %vm3002 = vweird.f32 %v2919
      %vm3003 = vweird.f32 %v2996
      %vm3004 = vmor %vm3002, %vm3003
      %v3005 = vsel %vm3004, %v2996, %v3001
      %v3006 = vrsqrt.pop %v2920
      %v3007 = vmul.f32 %v3006, %v2920
      %v3008 = vmul.f32 %v3007, %v3006
      %v3009 = vmul.f32 0.5, %v3008
      %v3010 = vsub.f32 1.5, %v3009
      %v3011 = vmul.f32 %v3006, %v3010
      %vm3012 = vweird.f32 %v2920
      %vm3013 = vweird.f32 %v3006
      %vm3014 = vmor %vm3012, %vm3013
      %v3015 = vsel %vm3014, %v3006, %v3011
      %v3016 = vrsqrt.pop %v2921
      %v3017 = vmul.f32 %v3016, %v2921
      %v3018 = vmul.f32 %v3017, %v3016
      %v3019 = vmul.f32 0.5, %v3018
      %v3020 = vsub.f32 1.5, %v3019
      %v3021 = vmul.f32 %v3016, %v3020
      %vm3022 = vweird.f32 %v2921
      %vm3023 = vweird.f32 %v3016
      %vm3024 = vmor %vm3022, %vm3023
      %v3025 = vsel %vm3024, %v3016, %v3021
      %v3026 = vrsqrt.pop %v2922
      %v3027 = vmul.f32 %v3026, %v2922
      %v3028 = vmul.f32 %v3027, %v3026
      %v3029 = vmul.f32 0.5, %v3028
      %v3030 = vsub.f32 1.5, %v3029
      %v3031 = vmul.f32 %v3026, %v3030
      %vm3032 = vweird.f32 %v2922
      %vm3033 = vweird.f32 %v3026
      %vm3034 = vmor %vm3032, %vm3033
      %v3035 = vsel %vm3034, %v3026, %v3031
      %v3036 = vrsqrt.pop %v2923
      %v3037 = vmul.f32 %v3036, %v2923
      %v3038 = vmul.f32 %v3037, %v3036
      %v3039 = vmul.f32 0.5, %v3038
      %v3040 = vsub.f32 1.5, %v3039
      %v3041 = vmul.f32 %v3036, %v3040
      %vm3042 = vweird.f32 %v2923
      %vm3043 = vweird.f32 %v3036
      %vm3044 = vmor %vm3042, %vm3043
      %v3045 = vsel %vm3044, %v3036, %v3041
      %v3046 = vrsqrt.pop %v2924
      %v3047 = vmul.f32 %v3046, %v2924
      %v3048 = vmul.f32 %v3047, %v3046
      %v3049 = vmul.f32 0.5, %v3048
      %v3050 = vsub.f32 1.5, %v3049
      %v3051 = vmul.f32 %v3046, %v3050
      %vm3052 = vweird.f32 %v2924
      %vm3053 = vweird.f32 %v3046
      %vm3054 = vmor %vm3052, %vm3053
      %v3055 = vsel %vm3054, %v3046, %v3051
      %v3056 = vrsqrt.pop %v2925
      %v3057 = vmul.f32 %v3056, %v2925
      %v3058 = vmul.f32 %v3057, %v3056
      %v3059 = vmul.f32 0.5, %v3058
      %v3060 = vsub.f32 1.5, %v3059
      %v3061 = vmul.f32 %v3056, %v3060
      %vm3062 = vweird.f32 %v2925
      %vm3063 = vweird.f32 %v3056
      %vm3064 = vmor %vm3062, %vm3063
      %v3065 = vsel %vm3064, %v3056, %v3061
      %v3066 = vrsqrt.pop %v2926
      %v3067 = vmul.f32 %v3066, %v2926
      %v3068 = vmul.f32 %v3067, %v3066
      %v3069 = vmul.f32 0.5, %v3068
      %v3070 = vsub.f32 1.5, %v3069
      %v3071 = vmul.f32 %v3066, %v3070
      %vm3072 = vweird.f32 %v2926
      %vm3073 = vweird.f32 %v3066
      %vm3074 = vmor %vm3072, %vm3073
      %v3075 = vsel %vm3074, %v3066, %v3071
      %v3076 = vrsqrt.pop %v2927
      %v3077 = vmul.f32 %v3076, %v2927
      %v3078 = vmul.f32 %v3077, %v3076
      %v3079 = vmul.f32 0.5, %v3078
      %v3080 = vsub.f32 1.5, %v3079
      %v3081 = vmul.f32 %v3076, %v3080
      %vm3082 = vweird.f32 %v2927
      %vm3083 = vweird.f32 %v3076
      %vm3084 = vmor %vm3082, %vm3083
      %v3085 = vsel %vm3084, %v3076, %v3081
      %v3086 = vrsqrt.pop %v2928
      %v3087 = vmul.f32 %v3086, %v2928
      %v3088 = vmul.f32 %v3087, %v3086
      %v3089 = vmul.f32 0.5, %v3088
      %v3090 = vsub.f32 1.5, %v3089
      %v3091 = vmul.f32 %v3086, %v3090
      %vm3092 = vweird.f32 %v2928
      %vm3093 = vweird.f32 %v3086
      %vm3094 = vmor %vm3092, %vm3093
      %v3095 = vsel %vm3094, %v3086, %v3091
      %v3096 = vrsqrt.pop %v2929
      %v3097 = vmul.f32 %v3096, %v2929
      %v3098 = vmul.f32 %v3097, %v3096
      %v3099 = vmul.f32 0.5, %v3098
      %v3100 = vsub.f32 1.5, %v3099
      %v3101 = vmul.f32 %v3096, %v3100
      %vm3102 = vweird.f32 %v2929
      %vm3103 = vweird.f32 %v3096
      %vm3104 = vmor %vm3102, %vm3103
      %v3105 = vsel %vm3104, %v3096, %v3101
      %v3106 = vrsqrt.pop %v2930
      %v3107 = vmul.f32 %v3106, %v2930
      %v3108 = vmul.f32 %v3107, %v3106
      %v3109 = vmul.f32 0.5, %v3108
      %v3110 = vsub.f32 1.5, %v3109
      %v3111 = vmul.f32 %v3106, %v3110
      %vm3112 = vweird.f32 %v2930
      %vm3113 = vweird.f32 %v3106
      %vm3114 = vmor %vm3112, %vm3113
      %v3115 = vsel %vm3114, %v3106, %v3111
      %v3116 = vrsqrt.pop %v2931
      %v3117 = vmul.f32 %v3116, %v2931
      %v3118 = vmul.f32 %v3117, %v3116
      %v3119 = vmul.f32 0.5, %v3118
      %v3120 = vsub.f32 1.5, %v3119
      %v3121 = vmul.f32 %v3116, %v3120
      %vm3122 = vweird.f32 %v2931
      %vm3123 = vweird.f32 %v3116
      %vm3124 = vmor %vm3122, %vm3123
      %v3125 = vsel %vm3124, %v3116, %v3121
      %v3126 = vrsqrt.pop %v2932
      %v3127 = vmul.f32 %v3126, %v2932
      %v3128 = vmul.f32 %v3127, %v3126
      %v3129 = vmul.f32 0.5, %v3128
      %v3130 = vsub.f32 1.5, %v3129
      %v3131 = vmul.f32 %v3126, %v3130
      %vm3132 = vweird.f32 %v2932
      %vm3133 = vweird.f32 %v3126
      %vm3134 = vmor %vm3132, %vm3133
      %v3135 = vsel %vm3134, %v3126, %v3131
      %v3136 = vrsqrt.pop %v2933
      %v3137 = vmul.f32 %v3136, %v2933
      %v3138 = vmul.f32 %v3137, %v3136
      %v3139 = vmul.f32 0.5, %v3138
      %v3140 = vsub.f32 1.5, %v3139
      %v3141 = vmul.f32 %v3136, %v3140
      %vm3142 = vweird.f32 %v2933
      %vm3143 = vweird.f32 %v3136
      %vm3144 = vmor %vm3142, %vm3143
      %v3145 = vsel %vm3144, %v3136, %v3141
      %v3146 = vrsqrt.pop %v2934
      %v3147 = vmul.f32 %v3146, %v2934
      %v3148 = vmul.f32 %v3147, %v3146
      %v3149 = vmul.f32 0.5, %v3148
      %v3150 = vsub.f32 1.5, %v3149
      %v3151 = vmul.f32 %v3146, %v3150
      %vm3152 = vweird.f32 %v2934
      %vm3153 = vweird.f32 %v3146
      %vm3154 = vmor %vm3152, %vm3153
      %v3155 = vsel %vm3154, %v3146, %v3151
      %v3156 = vrsqrt.pop %v2935
      %v3157 = vmul.f32 %v3156, %v2935
      %v3158 = vmul.f32 %v3157, %v3156
      %v3159 = vmul.f32 0.5, %v3158
      %v3160 = vsub.f32 1.5, %v3159
      %v3161 = vmul.f32 %v3156, %v3160
      %vm3162 = vweird.f32 %v2935
      %vm3163 = vweird.f32 %v3156
      %vm3164 = vmor %vm3162, %vm3163
      %v3165 = vsel %vm3164, %v3156, %v3161
      %v3166 = vrsqrt.pop %v2936
      %v3167 = vmul.f32 %v3166, %v2936
      %v3168 = vmul.f32 %v3167, %v3166
      %v3169 = vmul.f32 0.5, %v3168
      %v3170 = vsub.f32 1.5, %v3169
      %v3171 = vmul.f32 %v3166, %v3170
      %vm3172 = vweird.f32 %v2936
      %vm3173 = vweird.f32 %v3166
      %vm3174 = vmor %vm3172, %vm3173
      %v3175 = vsel %vm3174, %v3166, %v3171
      %v3176 = vrsqrt.pop %v2937
      %v3177 = vmul.f32 %v3176, %v2937
      %v3178 = vmul.f32 %v3177, %v3176
      %v3179 = vmul.f32 0.5, %v3178
      %v3180 = vsub.f32 1.5, %v3179
      %v3181 = vmul.f32 %v3176, %v3180
      %vm3182 = vweird.f32 %v2937
      %vm3183 = vweird.f32 %v3176
      %vm3184 = vmor %vm3182, %vm3183
      %v3185 = vsel %vm3184, %v3176, %v3181
      %v3186 = vrsqrt.pop %v2938
      %v3187 = vmul.f32 %v3186, %v2938
      %v3188 = vmul.f32 %v3187, %v3186
      %v3189 = vmul.f32 0.5, %v3188
      %v3190 = vsub.f32 1.5, %v3189
      %v3191 = vmul.f32 %v3186, %v3190
      %vm3192 = vweird.f32 %v2938
      %vm3193 = vweird.f32 %v3186
      %vm3194 = vmor %vm3192, %vm3193
      %v3195 = vsel %vm3194, %v3186, %v3191
      %v3196 = vrsqrt.pop %v2939
      %v3197 = vmul.f32 %v3196, %v2939
      %v3198 = vmul.f32 %v3197, %v3196
      %v3199 = vmul.f32 0.5, %v3198
      %v3200 = vsub.f32 1.5, %v3199
      %v3201 = vmul.f32 %v3196, %v3200
      %vm3202 = vweird.f32 %v2939
      %vm3203 = vweird.f32 %v3196
      %vm3204 = vmor %vm3202, %vm3203
      %v3205 = vsel %vm3204, %v3196, %v3201
      %v3206 = vrsqrt.pop %v2940
      %v3207 = vmul.f32 %v3206, %v2940
      %v3208 = vmul.f32 %v3207, %v3206
      %v3209 = vmul.f32 0.5, %v3208
      %v3210 = vsub.f32 1.5, %v3209
      %v3211 = vmul.f32 %v3206, %v3210
      %vm3212 = vweird.f32 %v2940
      %vm3213 = vweird.f32 %v3206
      %vm3214 = vmor %vm3212, %vm3213
      %v3215 = vsel %vm3214, %v3206, %v3211
      %v3216 = vrsqrt.pop %v2941
      %v3217 = vmul.f32 %v3216, %v2941
      %v3218 = vmul.f32 %v3217, %v3216
      %v3219 = vmul.f32 0.5, %v3218
      %v3220 = vsub.f32 1.5, %v3219
      %v3221 = vmul.f32 %v3216, %v3220
      %vm3222 = vweird.f32 %v2941
      %vm3223 = vweird.f32 %v3216
      %vm3224 = vmor %vm3222, %vm3223
      %v3225 = vsel %vm3224, %v3216, %v3221
      %v3226 = vrsqrt.pop %v2942
      %v3227 = vmul.f32 %v3226, %v2942
      %v3228 = vmul.f32 %v3227, %v3226
      %v3229 = vmul.f32 0.5, %v3228
      %v3230 = vsub.f32 1.5, %v3229
      %v3231 = vmul.f32 %v3226, %v3230
      %vm3232 = vweird.f32 %v2942
      %vm3233 = vweird.f32 %v3226
      %vm3234 = vmor %vm3232, %vm3233
      %v3235 = vsel %vm3234, %v3226, %v3231
      %v3236 = vrsqrt.pop %v2943
      %v3237 = vmul.f32 %v3236, %v2943
      %v3238 = vmul.f32 %v3237, %v3236
      %v3239 = vmul.f32 0.5, %v3238
      %v3240 = vsub.f32 1.5, %v3239
      %v3241 = vmul.f32 %v3236, %v3240
      %vm3242 = vweird.f32 %v2943
      %vm3243 = vweird.f32 %v3236
      %vm3244 = vmor %vm3242, %vm3243
      %v3245 = vsel %vm3244, %v3236, %v3241
      %v3246 = vrsqrt.pop %v2944
      %v3247 = vmul.f32 %v3246, %v2944
      %v3248 = vmul.f32 %v3247, %v3246
      %v3249 = vmul.f32 0.5, %v3248
      %v3250 = vsub.f32 1.5, %v3249
      %v3251 = vmul.f32 %v3246, %v3250
      %vm3252 = vweird.f32 %v2944
      %vm3253 = vweird.f32 %v3246
      %vm3254 = vmor %vm3252, %vm3253
      %v3255 = vsel %vm3254, %v3246, %v3251
      %v3256 = vrsqrt.pop %v2945
      %v3257 = vmul.f32 %v3256, %v2945
      %v3258 = vmul.f32 %v3257, %v3256
      %v3259 = vmul.f32 0.5, %v3258
      %v3260 = vsub.f32 1.5, %v3259
      %v3261 = vmul.f32 %v3256, %v3260
      %vm3262 = vweird.f32 %v2945
      %vm3263 = vweird.f32 %v3256
      %vm3264 = vmor %vm3262, %vm3263
      %v3265 = vsel %vm3264, %v3256, %v3261
      %v3266 = vmul.f32 %v2722, %v2955
      %v3267 = vmul.f32 %v2723, %v2965
      %v3268 = vmul.f32 %v2724, %v2975
      %v3269 = vmul.f32 %v2725, %v2985
      %v3270 = vmul.f32 %v2726, %v2995
      %v3271 = vmul.f32 %v2727, %v3005
      %v3272 = vmul.f32 %v2728, %v3015
      %v3273 = vmul.f32 %v2729, %v3025
      %v3274 = vmul.f32 %v2730, %v3035
      %v3275 = vmul.f32 %v2731, %v3045
      %v3276 = vmul.f32 %v2732, %v3055
      %v3277 = vmul.f32 %v2733, %v3065
      %v3278 = vmul.f32 %v2734, %v3075
      %v3279 = vmul.f32 %v2735, %v3085
      %v3280 = vmul.f32 %v2736, %v3095
      %v3281 = vmul.f32 %v2737, %v3105
      %v3282 = vmul.f32 %v2738, %v3115
      %v3283 = vmul.f32 %v2739, %v3125
      %v3284 = vmul.f32 %v2740, %v3135
      %v3285 = vmul.f32 %v2741, %v3145
      %v3286 = vmul.f32 %v2742, %v3155
      %v3287 = vmul.f32 %v2743, %v3165
      %v3288 = vmul.f32 %v2744, %v3175
      %v3289 = vmul.f32 %v2745, %v3185
      %v3290 = vmul.f32 %v2746, %v3195
      %v3291 = vmul.f32 %v2747, %v3205
      %v3292 = vmul.f32 %v2748, %v3215
      %v3293 = vmul.f32 %v2749, %v3225
      %v3294 = vmul.f32 %v2750, %v3235
      %v3295 = vmul.f32 %v2751, %v3245
      %v3296 = vmul.f32 %v2752, %v3255
      %v3297 = vmul.f32 %v2753, %v3265
      %v3298 = vperm.slane %v1157, 0
      %v3299 = vmul.f32 %v3266, %v3298
      %v3300 = vmul.f32 %v3267, %v3298
      %v3301 = vmul.f32 %v3268, %v3298
      %v3302 = vmul.f32 %v3269, %v3298
      %v3303 = vmul.f32 %v3270, %v3298
      %v3304 = vmul.f32 %v3271, %v3298
      %v3305 = vmul.f32 %v3272, %v3298
      %v3306 = vmul.f32 %v3273, %v3298
      %v3307 = vmul.f32 %v3274, %v3298
      %v3308 = vmul.f32 %v3275, %v3298
      %v3309 = vmul.f32 %v3276, %v3298
      %v3310 = vmul.f32 %v3277, %v3298
      %v3311 = vmul.f32 %v3278, %v3298
      %v3312 = vmul.f32 %v3279, %v3298
      %v3313 = vmul.f32 %v3280, %v3298
      %v3314 = vmul.f32 %v3281, %v3298
      %v3315 = vmul.f32 %v3282, %v3298
      %v3316 = vmul.f32 %v3283, %v3298
      %v3317 = vmul.f32 %v3284, %v3298
      %v3318 = vmul.f32 %v3285, %v3298
      %v3319 = vmul.f32 %v3286, %v3298
      %v3320 = vmul.f32 %v3287, %v3298
      %v3321 = vmul.f32 %v3288, %v3298
      %v3322 = vmul.f32 %v3289, %v3298
      %v3323 = vmul.f32 %v3290, %v3298
      %v3324 = vmul.f32 %v3291, %v3298
      %v3325 = vmul.f32 %v3292, %v3298
      %v3326 = vmul.f32 %v3293, %v3298
      %v3327 = vmul.f32 %v3294, %v3298
      %v3328 = vmul.f32 %v3295, %v3298
      %v3329 = vmul.f32 %v3296, %v3298
      %v3330 = vmul.f32 %v3297, %v3298
      %v3331 = vperm.slane %v1157, 1
      %v3332 = vadd.f32 %v3299, %v3331
      %v3333 = vadd.f32 %v3300, %v3331
      %v3334 = vadd.f32 %v3301, %v3331
      %v3335 = vadd.f32 %v3302, %v3331
      %v3336 = vadd.f32 %v3303, %v3331
      %v3337 = vadd.f32 %v3304, %v3331
      %v3338 = vadd.f32 %v3305, %v3331
      %v3339 = vadd.f32 %v3306, %v3331
      %v3340 = vadd.f32 %v3307, %v3331
      %v3341 = vadd.f32 %v3308, %v3331
      %v3342 = vadd.f32 %v3309, %v3331
      %v3343 = vadd.f32 %v3310, %v3331
      %v3344 = vadd.f32 %v3311, %v3331
      %v3345 = vadd.f32 %v3312, %v3331
      %v3346 = vadd.f32 %v3313, %v3331
      %v3347 = vadd.f32 %v3314, %v3331
      %v3348 = vadd.f32 %v3315, %v3331
      %v3349 = vadd.f32 %v3316, %v3331
      %v3350 = vadd.f32 %v3317, %v3331
      %v3351 = vadd.f32 %v3318, %v3331
      %v3352 = vadd.f32 %v3319, %v3331
      %v3353 = vadd.f32 %v3320, %v3331
      %v3354 = vadd.f32 %v3321, %v3331
      %v3355 = vadd.f32 %v3322, %v3331
      %v3356 = vadd.f32 %v3323, %v3331
      %v3357 = vadd.f32 %v3324, %v3331
      %v3358 = vadd.f32 %v3325, %v3331
      %v3359 = vadd.f32 %v3326, %v3331
      %v3360 = vadd.f32 %v3327, %v3331
      %v3361 = vadd.f32 %v3328, %v3331
      %v3362 = vadd.f32 %v3329, %v3331
      %v3363 = vadd.f32 %v3330, %v3331
      %v3364 = vpack.c.bf16 %v3333, %v3332
      %v3365 = vpack.c.bf16 %v3335, %v3334
      %v3366 = vpack.c.bf16 %v3337, %v3336
      %v3367 = vpack.c.bf16 %v3339, %v3338
      %v3368 = vpack.c.bf16 %v3341, %v3340
      %v3369 = vpack.c.bf16 %v3343, %v3342
      %v3370 = vpack.c.bf16 %v3345, %v3344
      %v3371 = vpack.c.bf16 %v3347, %v3346
      %v3372 = vpack.c.bf16 %v3349, %v3348
      %v3373 = vpack.c.bf16 %v3351, %v3350
      %v3374 = vpack.c.bf16 %v3353, %v3352
      %v3375 = vpack.c.bf16 %v3355, %v3354
      %v3376 = vpack.c.bf16 %v3357, %v3356
      %v3377 = vpack.c.bf16 %v3359, %v3358
      %v3378 = vpack.c.bf16 %v3361, %v3360
      %v3379 = vpack.c.bf16 %v3363, %v3362
      %v3380 = vld [vmem:[%s10] sm:$0xf]
      %v3381 = vld [vmem:[%s10 + $0x4] sm:$0xf]
      %v3382 = vld [vmem:[%s10 + $0x8] sm:$0xf]
      %v3383 = vld [vmem:[%s10 + $0xc] sm:$0xf]
      %v3384 = vld [vmem:[%s11] sm:$0x1]
      %v3386 = vperm.slane %v3384, 0
      %v3392 = vunpack.c.l.b16 %v3380
      %v3393 = vunpack.c.l.b16 %v3381
      %v3394 = vunpack.c.l.b16 %v3382
      %v3395 = vunpack.c.l.b16 %v3383
      %v3396 = vpack.c.b16 %v3393, %v3392
      %v3397 = vpack.c.b16 %v3395, %v3394
      %v3401 = vsel %vm1194, %v3364, 0
      %v3404 = vsel %vm1194, %v3365, 0
      %v3407 = vsel %vm1194, %v3366, 0
      %v3410 = vsel %vm1194, %v3367, 0
      %v3413 = vsel %vm1194, %v3368, 0
      %v3416 = vsel %vm1194, %v3369, 0
      %v3419 = vsel %vm1194, %v3370, 0
      %v3422 = vsel %vm1194, %v3371, 0
      %v3425 = vsel %vm1194, %v3372, 0
      %v3428 = vsel %vm1194, %v3373, 0
      %v3431 = vsel %vm1194, %v3374, 0
      %v3434 = vsel %vm1194, %v3375, 0
      %v3437 = vsel %vm1194, %v3376, 0
      %v3440 = vsel %vm1194, %v3377, 0
      %v3443 = vsel %vm1194, %v3378, 0
      %v3446 = vsel %vm1194, %v3379, 0
      %3448 = vmatpush.bf16.msra.mxu0 0
      %3449 = vmatpush.bf16.msra.mxu0 0
      %3450 = vmatpush.bf16.msra.mxu0 0
      %3451 = vmatpush.bf16.msra.mxu0 0
      %3452 = vmatpush.bf16.msra.mxu0 0
      %3453 = vmatpush.bf16.msra.mxu0 0
      %3454 = vmatpush.bf16.msra.mxu0 %v3397
      %3455 = vmatpush.bf16.msra.mxu0 %v3396
      %3456 = vmatmul.bf16.gmra.mxu0 %v3401
      %v3457 = vpop.f32.mrf.mxu0
      %v3458 = vadd.f32 %v3386, %v3457
      %v3459 = vpop.f32.mrf.mxu0
      %v3460 = vadd.f32 %v3386, %v3459
      %3461 = vmatmul.bf16.gmra.mxu0 %v3404
      %v3462 = vpop.f32.mrf.mxu0
      %v3463 = vadd.f32 %v3386, %v3462
      %v3464 = vpop.f32.mrf.mxu0
      %v3465 = vadd.f32 %v3386, %v3464
      %3466 = vmatmul.bf16.gmra.mxu0 %v3407
      %v3467 = vpop.f32.mrf.mxu0
      %v3468 = vadd.f32 %v3386, %v3467
      %v3469 = vpop.f32.mrf.mxu0
      %v3470 = vadd.f32 %v3386, %v3469
      %3471 = vmatmul.bf16.gmra.mxu0 %v3410
      %v3472 = vpop.f32.mrf.mxu0
      %v3473 = vadd.f32 %v3386, %v3472
      %v3474 = vpop.f32.mrf.mxu0
      %v3475 = vadd.f32 %v3386, %v3474
      %3476 = vmatmul.bf16.gmra.mxu0 %v3413
      %v3477 = vpop.f32.mrf.mxu0
      %v3478 = vadd.f32 %v3386, %v3477
      %v3479 = vpop.f32.mrf.mxu0
      %v3480 = vadd.f32 %v3386, %v3479
      %3481 = vmatmul.bf16.gmra.mxu0 %v3416
      %v3482 = vpop.f32.mrf.mxu0
      %v3483 = vadd.f32 %v3386, %v3482
      %v3484 = vpop.f32.mrf.mxu0
      %v3485 = vadd.f32 %v3386, %v3484
      %3486 = vmatmul.bf16.gmra.mxu0 %v3419
      %v3487 = vpop.f32.mrf.mxu0
      %v3488 = vadd.f32 %v3386, %v3487
      %v3489 = vpop.f32.mrf.mxu0
      %v3490 = vadd.f32 %v3386, %v3489
      %3491 = vmatmul.bf16.gmra.mxu0 %v3422
      %v3492 = vpop.f32.mrf.mxu0
      %v3493 = vadd.f32 %v3386, %v3492
      %v3494 = vpop.f32.mrf.mxu0
      %v3495 = vadd.f32 %v3386, %v3494
      %3496 = vmatmul.bf16.gmra.mxu0 %v3425
      %v3497 = vpop.f32.mrf.mxu0
      %v3498 = vadd.f32 %v3386, %v3497
      %v3499 = vpop.f32.mrf.mxu0
      %v3500 = vadd.f32 %v3386, %v3499
      %3501 = vmatmul.bf16.gmra.mxu0 %v3428
      %v3502 = vpop.f32.mrf.mxu0
      %v3503 = vadd.f32 %v3386, %v3502
      %v3504 = vpop.f32.mrf.mxu0
      %v3505 = vadd.f32 %v3386, %v3504
      %3506 = vmatmul.bf16.gmra.mxu0 %v3431
      %v3507 = vpop.f32.mrf.mxu0
      %v3508 = vadd.f32 %v3386, %v3507
      %v3509 = vpop.f32.mrf.mxu0
      %v3510 = vadd.f32 %v3386, %v3509
      %3511 = vmatmul.bf16.gmra.mxu0 %v3434
      %v3512 = vpop.f32.mrf.mxu0
      %v3513 = vadd.f32 %v3386, %v3512
      %v3514 = vpop.f32.mrf.mxu0
      %v3515 = vadd.f32 %v3386, %v3514
      %3516 = vmatmul.bf16.gmra.mxu0 %v3437
      %v3517 = vpop.f32.mrf.mxu0
      %v3518 = vadd.f32 %v3386, %v3517
      %v3519 = vpop.f32.mrf.mxu0
      %v3520 = vadd.f32 %v3386, %v3519
      %3521 = vmatmul.bf16.gmra.mxu0 %v3440
      %v3522 = vpop.f32.mrf.mxu0
      %v3523 = vadd.f32 %v3386, %v3522
      %v3524 = vpop.f32.mrf.mxu0
      %v3525 = vadd.f32 %v3386, %v3524
      %3526 = vmatmul.bf16.gmra.mxu0 %v3443
      %v3527 = vpop.f32.mrf.mxu0
      %v3528 = vadd.f32 %v3386, %v3527
      %v3529 = vpop.f32.mrf.mxu0
      %v3530 = vadd.f32 %v3386, %v3529
      %3531 = vmatmul.bf16.gmra.mxu0 %v3446
      %v3532 = vpop.f32.mrf.mxu0
      %v3533 = vadd.f32 %v3386, %v3532
      %v3534 = vpop.f32.mrf.mxu0
      %v3535 = vadd.f32 %v3386, %v3534
      %3536 = vdwg.mxu0
      %v3537 = vmax.f32 %v3458, 0.0
      %v3538 = vmax.f32 %v3460, 0.0
      %v3539 = vmax.f32 %v3463, 0.0
      %v3540 = vmax.f32 %v3465, 0.0
      %v3541 = vmax.f32 %v3468, 0.0
      %v3542 = vmax.f32 %v3470, 0.0
      %v3543 = vmax.f32 %v3473, 0.0
      %v3544 = vmax.f32 %v3475, 0.0
      %v3545 = vmax.f32 %v3478, 0.0
      %v3546 = vmax.f32 %v3480, 0.0
      %v3547 = vmax.f32 %v3483, 0.0
      %v3548 = vmax.f32 %v3485, 0.0
      %v3549 = vmax.f32 %v3488, 0.0
      %v3550 = vmax.f32 %v3490, 0.0
      %v3551 = vmax.f32 %v3493, 0.0
      %v3552 = vmax.f32 %v3495, 0.0
      %v3553 = vmax.f32 %v3498, 0.0
      %v3554 = vmax.f32 %v3500, 0.0
      %v3555 = vmax.f32 %v3503, 0.0
      %v3556 = vmax.f32 %v3505, 0.0
      %v3557 = vmax.f32 %v3508, 0.0
      %v3558 = vmax.f32 %v3510, 0.0
      %v3559 = vmax.f32 %v3513, 0.0
      %v3560 = vmax.f32 %v3515, 0.0
      %v3561 = vmax.f32 %v3518, 0.0
      %v3562 = vmax.f32 %v3520, 0.0
      %v3563 = vmax.f32 %v3523, 0.0
      %v3564 = vmax.f32 %v3525, 0.0
      %v3565 = vmax.f32 %v3528, 0.0
      %v3566 = vmax.f32 %v3530, 0.0
      %v3567 = vmax.f32 %v3533, 0.0
      %v3568 = vmax.f32 %v3535, 0.0
      %v3569 = vpack.c.bf16 %v3538, %v3537
      %v3570 = vpack.c.bf16 %v3540, %v3539
      %v3571 = vpack.c.bf16 %v3542, %v3541
      %v3572 = vpack.c.bf16 %v3544, %v3543
      %v3573 = vpack.c.bf16 %v3546, %v3545
      %v3574 = vpack.c.bf16 %v3548, %v3547
      %v3575 = vpack.c.bf16 %v3550, %v3549
      %v3576 = vpack.c.bf16 %v3552, %v3551
      %v3577 = vpack.c.bf16 %v3554, %v3553
      %v3578 = vpack.c.bf16 %v3556, %v3555
      %v3579 = vpack.c.bf16 %v3558, %v3557
      %v3580 = vpack.c.bf16 %v3560, %v3559
      %v3581 = vpack.c.bf16 %v3562, %v3561
      %v3582 = vpack.c.bf16 %v3564, %v3563
      %v3583 = vpack.c.bf16 %v3566, %v3565
      %v3584 = vpack.c.bf16 %v3568, %v3567
      %v3585 = vld [vmem:[%s12] sm:$0xf]
      %v3586 = vld [vmem:[%s12 + $0x4] sm:$0xf]
      %v3587 = vld [vmem:[%s12 + $0x8] sm:$0xf]
      %v3588 = vld [vmem:[%s12 + $0xc] sm:$0xf]
      %v3589 = vld [vmem:[%s12 + $0x10] sm:$0xf]
      %v3590 = vld [vmem:[%s12 + $0x14] sm:$0xf]
      %v3591 = vld [vmem:[%s12 + $0x18] sm:$0xf]
      %v3592 = vld [vmem:[%s12 + $0x1c] sm:$0xf]
      %v3593 = vld [vmem:[%s13] sm:$0x1]
      %v3595 = vperm.slane %v3593, 0
      %v3605 = vunpack.c.l.b16 %v3585
      %v3606 = vunpack.c.l.b16 %v3586
      %v3607 = vunpack.c.l.b16 %v3587
      %v3608 = vunpack.c.l.b16 %v3588
      %v3609 = vunpack.c.l.b16 %v3589
      %v3610 = vunpack.c.l.b16 %v3590
      %v3611 = vunpack.c.l.b16 %v3591
      %v3612 = vunpack.c.l.b16 %v3592
      %v3613 = vpack.c.b16 %v3606, %v3605
      %v3614 = vpack.c.b16 %v3608, %v3607
      %v3615 = vpack.c.b16 %v3610, %v3609
      %v3616 = vpack.c.b16 %v3612, %v3611
      %vm3621 = vcmask 523264
      %v3623 = vsel %vm3621, %v3569, 0
      %v3626 = vsel %vm3621, %v3570, 0
      %v3629 = vsel %vm3621, %v3571, 0
      %v3632 = vsel %vm3621, %v3572, 0
      %v3635 = vsel %vm3621, %v3573, 0
      %v3638 = vsel %vm3621, %v3574, 0
      %v3641 = vsel %vm3621, %v3575, 0
      %v3644 = vsel %vm3621, %v3576, 0
      %v3647 = vsel %vm3621, %v3577, 0
      %v3650 = vsel %vm3621, %v3578, 0
      %v3653 = vsel %vm3621, %v3579, 0
      %v3656 = vsel %vm3621, %v3580, 0
      %v3659 = vsel %vm3621, %v3581, 0
      %v3662 = vsel %vm3621, %v3582, 0
      %v3665 = vsel %vm3621, %v3583, 0
      %v3668 = vsel %vm3621, %v3584, 0
      %3670 = vmatpush.bf16.msra.mxu0 0
      %3671 = vmatpush.bf16.msra.mxu0 0
      %3672 = vmatpush.bf16.msra.mxu0 0
      %3673 = vmatpush.bf16.msra.mxu0 0
      %3674 = vmatpush.bf16.msra.mxu0 %v3616
      %3675 = vmatpush.bf16.msra.mxu0 %v3615
      %3676 = vmatpush.bf16.msra.mxu0 %v3614
      %3677 = vmatpush.bf16.msra.mxu0 %v3613
      %3678 = vmatmul.bf16.gmra.mxu0 %v3623
      %v3679 = vpop.f32.mrf.mxu0
      %v3680 = vadd.f32 %v3595, %v3679
      %v3681 = vpop.f32.mrf.mxu0
      %v3682 = vadd.f32 %v3595, %v3681
      %3683 = vmatmul.bf16.gmra.mxu0 %v3626
      %v3684 = vpop.f32.mrf.mxu0
      %v3685 = vadd.f32 %v3595, %v3684
      %v3686 = vpop.f32.mrf.mxu0
      %v3687 = vadd.f32 %v3595, %v3686
      %3688 = vmatmul.bf16.gmra.mxu0 %v3629
      %v3689 = vpop.f32.mrf.mxu0
      %v3690 = vadd.f32 %v3595, %v3689
      %v3691 = vpop.f32.mrf.mxu0
      %v3692 = vadd.f32 %v3595, %v3691
      %3693 = vmatmul.bf16.gmra.mxu0 %v3632
      %v3694 = vpop.f32.mrf.mxu0
      %v3695 = vadd.f32 %v3595, %v3694
      %v3696 = vpop.f32.mrf.mxu0
      %v3697 = vadd.f32 %v3595, %v3696
      %3698 = vmatmul.bf16.gmra.mxu0 %v3635
      %v3699 = vpop.f32.mrf.mxu0
      %v3700 = vadd.f32 %v3595, %v3699
      %v3701 = vpop.f32.mrf.mxu0
      %v3702 = vadd.f32 %v3595, %v3701
      %3703 = vmatmul.bf16.gmra.mxu0 %v3638
      %v3704 = vpop.f32.mrf.mxu0
      %v3705 = vadd.f32 %v3595, %v3704
      %v3706 = vpop.f32.mrf.mxu0
      %v3707 = vadd.f32 %v3595, %v3706
      %3708 = vmatmul.bf16.gmra.mxu0 %v3641
      %v3709 = vpop.f32.mrf.mxu0
      %v3710 = vadd.f32 %v3595, %v3709
      %v3711 = vpop.f32.mrf.mxu0
      %v3712 = vadd.f32 %v3595, %v3711
      %3713 = vmatmul.bf16.gmra.mxu0 %v3644
      %v3714 = vpop.f32.mrf.mxu0
      %v3715 = vadd.f32 %v3595, %v3714
      %v3716 = vpop.f32.mrf.mxu0
      %v3717 = vadd.f32 %v3595, %v3716
      %3718 = vmatmul.bf16.gmra.mxu0 %v3647
      %v3719 = vpop.f32.mrf.mxu0
      %v3720 = vadd.f32 %v3595, %v3719
      %v3721 = vpop.f32.mrf.mxu0
      %v3722 = vadd.f32 %v3595, %v3721
      %3723 = vmatmul.bf16.gmra.mxu0 %v3650
      %v3724 = vpop.f32.mrf.mxu0
      %v3725 = vadd.f32 %v3595, %v3724
      %v3726 = vpop.f32.mrf.mxu0
      %v3727 = vadd.f32 %v3595, %v3726
      %3728 = vmatmul.bf16.gmra.mxu0 %v3653
      %v3729 = vpop.f32.mrf.mxu0
      %v3730 = vadd.f32 %v3595, %v3729
      %v3731 = vpop.f32.mrf.mxu0
      %v3732 = vadd.f32 %v3595, %v3731
      %3733 = vmatmul.bf16.gmra.mxu0 %v3656
      %v3734 = vpop.f32.mrf.mxu0
      %v3735 = vadd.f32 %v3595, %v3734
      %v3736 = vpop.f32.mrf.mxu0
      %v3737 = vadd.f32 %v3595, %v3736
      %3738 = vmatmul.bf16.gmra.mxu0 %v3659
      %v3739 = vpop.f32.mrf.mxu0
      %v3740 = vadd.f32 %v3595, %v3739
      %v3741 = vpop.f32.mrf.mxu0
      %v3742 = vadd.f32 %v3595, %v3741
      %3743 = vmatmul.bf16.gmra.mxu0 %v3662
      %v3744 = vpop.f32.mrf.mxu0
      %v3745 = vadd.f32 %v3595, %v3744
      %v3746 = vpop.f32.mrf.mxu0
      %v3747 = vadd.f32 %v3595, %v3746
      %3748 = vmatmul.bf16.gmra.mxu0 %v3665
      %v3749 = vpop.f32.mrf.mxu0
      %v3750 = vadd.f32 %v3595, %v3749
      %v3751 = vpop.f32.mrf.mxu0
      %v3752 = vadd.f32 %v3595, %v3751
      %3753 = vmatmul.bf16.gmra.mxu0 %v3668
      %v3754 = vpop.f32.mrf.mxu0
      %v3755 = vadd.f32 %v3595, %v3754
      %v3756 = vpop.f32.mrf.mxu0
      %v3757 = vadd.f32 %v3595, %v3756
      %3758 = vdwg.mxu0
      %v3759 = vadd.f32 %v3332, %v3680
      %v3760 = vadd.f32 %v3333, %v3682
      %v3761 = vadd.f32 %v3334, %v3685
      %v3762 = vadd.f32 %v3335, %v3687
      %v3763 = vadd.f32 %v3336, %v3690
      %v3764 = vadd.f32 %v3337, %v3692
      %v3765 = vadd.f32 %v3338, %v3695
      %v3766 = vadd.f32 %v3339, %v3697
      %v3767 = vadd.f32 %v3340, %v3700
      %v3768 = vadd.f32 %v3341, %v3702
      %v3769 = vadd.f32 %v3342, %v3705
      %v3770 = vadd.f32 %v3343, %v3707
      %v3771 = vadd.f32 %v3344, %v3710
      %v3772 = vadd.f32 %v3345, %v3712
      %v3773 = vadd.f32 %v3346, %v3715
      %v3774 = vadd.f32 %v3347, %v3717
      %v3775 = vadd.f32 %v3348, %v3720
      %v3776 = vadd.f32 %v3349, %v3722
      %v3777 = vadd.f32 %v3350, %v3725
      %v3778 = vadd.f32 %v3351, %v3727
      %v3779 = vadd.f32 %v3352, %v3730
      %v3780 = vadd.f32 %v3353, %v3732
      %v3781 = vadd.f32 %v3354, %v3735
      %v3782 = vadd.f32 %v3355, %v3737
      %v3783 = vadd.f32 %v3356, %v3740
      %v3784 = vadd.f32 %v3357, %v3742
      %v3785 = vadd.f32 %v3358, %v3745
      %v3786 = vadd.f32 %v3359, %v3747
      %v3787 = vadd.f32 %v3360, %v3750
      %v3788 = vadd.f32 %v3361, %v3752
      %v3789 = vadd.f32 %v3362, %v3755
      %v3790 = vadd.f32 %v3363, %v3757
      %v3791 = vsel %vm1194, %v3759, 0.0
      %3792 = vadd.xlane.f32.xlu0 %v3791
      %v3793 = vpop.xlane.xlu0 %3792
      %v3794 = vsel %vm1194, %v3760, 0.0
      %3795 = vadd.xlane.f32.xlu0 %v3794
      %v3796 = vpop.xlane.xlu0 %3795
      %v3797 = vsel %vm1194, %v3761, 0.0
      %3798 = vadd.xlane.f32.xlu0 %v3797
      %v3799 = vpop.xlane.xlu0 %3798
      %v3800 = vsel %vm1194, %v3762, 0.0
      %3801 = vadd.xlane.f32.xlu0 %v3800
      %v3802 = vpop.xlane.xlu0 %3801
      %v3803 = vsel %vm1194, %v3763, 0.0
      %3804 = vadd.xlane.f32.xlu0 %v3803
      %v3805 = vpop.xlane.xlu0 %3804
      %v3806 = vsel %vm1194, %v3764, 0.0
      %3807 = vadd.xlane.f32.xlu0 %v3806
      %v3808 = vpop.xlane.xlu0 %3807
      %v3809 = vsel %vm1194, %v3765, 0.0
      %3810 = vadd.xlane.f32.xlu0 %v3809
      %v3811 = vpop.xlane.xlu0 %3810
      %v3812 = vsel %vm1194, %v3766, 0.0
      %3813 = vadd.xlane.f32.xlu0 %v3812
      %v3814 = vpop.xlane.xlu0 %3813
      %v3815 = vsel %vm1194, %v3767, 0.0
      %3816 = vadd.xlane.f32.xlu0 %v3815
      %v3817 = vpop.xlane.xlu0 %3816
      %v3818 = vsel %vm1194, %v3768, 0.0
      %3819 = vadd.xlane.f32.xlu0 %v3818
      %v3820 = vpop.xlane.xlu0 %3819
      %v3821 = vsel %vm1194, %v3769, 0.0
      %3822 = vadd.xlane.f32.xlu0 %v3821
      %v3823 = vpop.xlane.xlu0 %3822
      %v3824 = vsel %vm1194, %v3770, 0.0
      %3825 = vadd.xlane.f32.xlu0 %v3824
      %v3826 = vpop.xlane.xlu0 %3825
      %v3827 = vsel %vm1194, %v3771, 0.0
      %3828 = vadd.xlane.f32.xlu0 %v3827
      %v3829 = vpop.xlane.xlu0 %3828
      %v3830 = vsel %vm1194, %v3772, 0.0
      %3831 = vadd.xlane.f32.xlu0 %v3830
      %v3832 = vpop.xlane.xlu0 %3831
      %v3833 = vsel %vm1194, %v3773, 0.0
      %3834 = vadd.xlane.f32.xlu0 %v3833
      %v3835 = vpop.xlane.xlu0 %3834
      %v3836 = vsel %vm1194, %v3774, 0.0
      %3837 = vadd.xlane.f32.xlu0 %v3836
      %v3838 = vpop.xlane.xlu0 %3837
      %v3839 = vsel %vm1194, %v3775, 0.0
      %3840 = vadd.xlane.f32.xlu0 %v3839
      %v3841 = vpop.xlane.xlu0 %3840
      %v3842 = vsel %vm1194, %v3776, 0.0
      %3843 = vadd.xlane.f32.xlu0 %v3842
      %v3844 = vpop.xlane.xlu0 %3843
      %v3845 = vsel %vm1194, %v3777, 0.0
      %3846 = vadd.xlane.f32.xlu0 %v3845
      %v3847 = vpop.xlane.xlu0 %3846
      %v3848 = vsel %vm1194, %v3778, 0.0
      %3849 = vadd.xlane.f32.xlu0 %v3848
      %v3850 = vpop.xlane.xlu0 %3849
      %v3851 = vsel %vm1194, %v3779, 0.0
      %3852 = vadd.xlane.f32.xlu0 %v3851
      %v3853 = vpop.xlane.xlu0 %3852
      %v3854 = vsel %vm1194, %v3780, 0.0
      %3855 = vadd.xlane.f32.xlu0 %v3854
      %v3856 = vpop.xlane.xlu0 %3855
      %v3857 = vsel %vm1194, %v3781, 0.0
      %3858 = vadd.xlane.f32.xlu0 %v3857
      %v3859 = vpop.xlane.xlu0 %3858
      %v3860 = vsel %vm1194, %v3782, 0.0
      %3861 = vadd.xlane.f32.xlu0 %v3860
      %v3862 = vpop.xlane.xlu0 %3861
      %v3863 = vsel %vm1194, %v3783, 0.0
      %3864 = vadd.xlane.f32.xlu0 %v3863
      %v3865 = vpop.xlane.xlu0 %3864
      %v3866 = vsel %vm1194, %v3784, 0.0
      %3867 = vadd.xlane.f32.xlu0 %v3866
      %v3868 = vpop.xlane.xlu0 %3867
      %v3869 = vsel %vm1194, %v3785, 0.0
      %3870 = vadd.xlane.f32.xlu0 %v3869
      %v3871 = vpop.xlane.xlu0 %3870
      %v3872 = vsel %vm1194, %v3786, 0.0
      %3873 = vadd.xlane.f32.xlu0 %v3872
      %v3874 = vpop.xlane.xlu0 %3873
      %v3875 = vsel %vm1194, %v3787, 0.0
      %3876 = vadd.xlane.f32.xlu0 %v3875
      %v3877 = vpop.xlane.xlu0 %3876
      %v3878 = vsel %vm1194, %v3788, 0.0
      %3879 = vadd.xlane.f32.xlu0 %v3878
      %v3880 = vpop.xlane.xlu0 %3879
      %v3881 = vsel %vm1194, %v3789, 0.0
      %3882 = vadd.xlane.f32.xlu0 %v3881
      %v3883 = vpop.xlane.xlu0 %3882
      %v3884 = vsel %vm1194, %v3790, 0.0
      %3885 = vadd.xlane.f32.xlu0 %v3884
      %v3886 = vpop.xlane.xlu0 %3885
      %v3887 = vmul.f32 %v3793, %v2689
      %v3888 = vmul.f32 %v3796, %v2689
      %v3889 = vmul.f32 %v3799, %v2689
      %v3890 = vmul.f32 %v3802, %v2689
      %v3891 = vmul.f32 %v3805, %v2689
      %v3892 = vmul.f32 %v3808, %v2689
      %v3893 = vmul.f32 %v3811, %v2689
      %v3894 = vmul.f32 %v3814, %v2689
      %v3895 = vmul.f32 %v3817, %v2689
      %v3896 = vmul.f32 %v3820, %v2689
      %v3897 = vmul.f32 %v3823, %v2689
      %v3898 = vmul.f32 %v3826, %v2689
      %v3899 = vmul.f32 %v3829, %v2689
      %v3900 = vmul.f32 %v3832, %v2689
      %v3901 = vmul.f32 %v3835, %v2689
      %v3902 = vmul.f32 %v3838, %v2689
      %v3903 = vmul.f32 %v3841, %v2689
      %v3904 = vmul.f32 %v3844, %v2689
      %v3905 = vmul.f32 %v3847, %v2689
      %v3906 = vmul.f32 %v3850, %v2689
      %v3907 = vmul.f32 %v3853, %v2689
      %v3908 = vmul.f32 %v3856, %v2689
      %v3909 = vmul.f32 %v3859, %v2689
      %v3910 = vmul.f32 %v3862, %v2689
      %v3911 = vmul.f32 %v3865, %v2689
      %v3912 = vmul.f32 %v3868, %v2689
      %v3913 = vmul.f32 %v3871, %v2689
      %v3914 = vmul.f32 %v3874, %v2689
      %v3915 = vmul.f32 %v3877, %v2689
      %v3916 = vmul.f32 %v3880, %v2689
      %v3917 = vmul.f32 %v3883, %v2689
      %v3918 = vmul.f32 %v3886, %v2689
      %v3919 = vsub.f32 %v3759, %v3887
      %v3920 = vsub.f32 %v3760, %v3888
      %v3921 = vsub.f32 %v3761, %v3889
      %v3922 = vsub.f32 %v3762, %v3890
      %v3923 = vsub.f32 %v3763, %v3891
      %v3924 = vsub.f32 %v3764, %v3892
      %v3925 = vsub.f32 %v3765, %v3893
      %v3926 = vsub.f32 %v3766, %v3894
      %v3927 = vsub.f32 %v3767, %v3895
      %v3928 = vsub.f32 %v3768, %v3896
      %v3929 = vsub.f32 %v3769, %v3897
      %v3930 = vsub.f32 %v3770, %v3898
      %v3931 = vsub.f32 %v3771, %v3899
      %v3932 = vsub.f32 %v3772, %v3900
      %v3933 = vsub.f32 %v3773, %v3901
      %v3934 = vsub.f32 %v3774, %v3902
      %v3935 = vsub.f32 %v3775, %v3903
      %v3936 = vsub.f32 %v3776, %v3904
      %v3937 = vsub.f32 %v3777, %v3905
      %v3938 = vsub.f32 %v3778, %v3906
      %v3939 = vsub.f32 %v3779, %v3907
      %v3940 = vsub.f32 %v3780, %v3908
      %v3941 = vsub.f32 %v3781, %v3909
      %v3942 = vsub.f32 %v3782, %v3910
      %v3943 = vsub.f32 %v3783, %v3911
      %v3944 = vsub.f32 %v3784, %v3912
      %v3945 = vsub.f32 %v3785, %v3913
      %v3946 = vsub.f32 %v3786, %v3914
      %v3947 = vsub.f32 %v3787, %v3915
      %v3948 = vsub.f32 %v3788, %v3916
      %v3949 = vsub.f32 %v3789, %v3917
      %v3950 = vsub.f32 %v3790, %v3918
      %v3951 = vmul.f32 %v3919, %v3919
      %v3952 = vmul.f32 %v3920, %v3920
      %v3953 = vmul.f32 %v3921, %v3921
      %v3954 = vmul.f32 %v3922, %v3922
      %v3955 = vmul.f32 %v3923, %v3923
      %v3956 = vmul.f32 %v3924, %v3924
      %v3957 = vmul.f32 %v3925, %v3925
      %v3958 = vmul.f32 %v3926, %v3926
      %v3959 = vmul.f32 %v3927, %v3927
      %v3960 = vmul.f32 %v3928, %v3928
      %v3961 = vmul.f32 %v3929, %v3929
      %v3962 = vmul.f32 %v3930, %v3930
      %v3963 = vmul.f32 %v3931, %v3931
      %v3964 = vmul.f32 %v3932, %v3932
      %v3965 = vmul.f32 %v3933, %v3933
      %v3966 = vmul.f32 %v3934, %v3934
      %v3967 = vmul.f32 %v3935, %v3935
      %v3968 = vmul.f32 %v3936, %v3936
      %v3969 = vmul.f32 %v3937, %v3937
      %v3970 = vmul.f32 %v3938, %v3938
      %v3971 = vmul.f32 %v3939, %v3939
      %v3972 = vmul.f32 %v3940, %v3940
      %v3973 = vmul.f32 %v3941, %v3941
      %v3974 = vmul.f32 %v3942, %v3942
      %v3975 = vmul.f32 %v3943, %v3943
      %v3976 = vmul.f32 %v3944, %v3944
      %v3977 = vmul.f32 %v3945, %v3945
      %v3978 = vmul.f32 %v3946, %v3946
      %v3979 = vmul.f32 %v3947, %v3947
      %v3980 = vmul.f32 %v3948, %v3948
      %v3981 = vmul.f32 %v3949, %v3949
      %v3982 = vmul.f32 %v3950, %v3950
      %v3983 = vsel %vm1194, %v3951, 0.0
      %3984 = vadd.xlane.f32.xlu0 %v3983
      %v3985 = vpop.xlane.xlu0 %3984
      %v3986 = vsel %vm1194, %v3952, 0.0
      %3987 = vadd.xlane.f32.xlu0 %v3986
      %v3988 = vpop.xlane.xlu0 %3987
      %v3989 = vsel %vm1194, %v3953, 0.0
      %3990 = vadd.xlane.f32.xlu0 %v3989
      %v3991 = vpop.xlane.xlu0 %3990
      %v3992 = vsel %vm1194, %v3954, 0.0
      %3993 = vadd.xlane.f32.xlu0 %v3992
      %v3994 = vpop.xlane.xlu0 %3993
      %v3995 = vsel %vm1194, %v3955, 0.0
      %3996 = vadd.xlane.f32.xlu0 %v3995
      %v3997 = vpop.xlane.xlu0 %3996
      %v3998 = vsel %vm1194, %v3956, 0.0
      %3999 = vadd.xlane.f32.xlu0 %v3998
      %v4000 = vpop.xlane.xlu0 %3999
      %v4001 = vsel %vm1194, %v3957, 0.0
      %4002 = vadd.xlane.f32.xlu0 %v4001
      %v4003 = vpop.xlane.xlu0 %4002
      %v4004 = vsel %vm1194, %v3958, 0.0
      %4005 = vadd.xlane.f32.xlu0 %v4004
      %v4006 = vpop.xlane.xlu0 %4005
      %v4007 = vsel %vm1194, %v3959, 0.0
      %4008 = vadd.xlane.f32.xlu0 %v4007
      %v4009 = vpop.xlane.xlu0 %4008
      %v4010 = vsel %vm1194, %v3960, 0.0
      %4011 = vadd.xlane.f32.xlu0 %v4010
      %v4012 = vpop.xlane.xlu0 %4011
      %v4013 = vsel %vm1194, %v3961, 0.0
      %4014 = vadd.xlane.f32.xlu0 %v4013
      %v4015 = vpop.xlane.xlu0 %4014
      %v4016 = vsel %vm1194, %v3962, 0.0
      %4017 = vadd.xlane.f32.xlu0 %v4016
      %v4018 = vpop.xlane.xlu0 %4017
      %v4019 = vsel %vm1194, %v3963, 0.0
      %4020 = vadd.xlane.f32.xlu0 %v4019
      %v4021 = vpop.xlane.xlu0 %4020
      %v4022 = vsel %vm1194, %v3964, 0.0
      %4023 = vadd.xlane.f32.xlu0 %v4022
      %v4024 = vpop.xlane.xlu0 %4023
      %v4025 = vsel %vm1194, %v3965, 0.0
      %4026 = vadd.xlane.f32.xlu0 %v4025
      %v4027 = vpop.xlane.xlu0 %4026
      %v4028 = vsel %vm1194, %v3966, 0.0
      %4029 = vadd.xlane.f32.xlu0 %v4028
      %v4030 = vpop.xlane.xlu0 %4029
      %v4031 = vsel %vm1194, %v3967, 0.0
      %4032 = vadd.xlane.f32.xlu0 %v4031
      %v4033 = vpop.xlane.xlu0 %4032
      %v4034 = vsel %vm1194, %v3968, 0.0
      %4035 = vadd.xlane.f32.xlu0 %v4034
      %v4036 = vpop.xlane.xlu0 %4035
      %v4037 = vsel %vm1194, %v3969, 0.0
      %4038 = vadd.xlane.f32.xlu0 %v4037
      %v4039 = vpop.xlane.xlu0 %4038
      %v4040 = vsel %vm1194, %v3970, 0.0
      %4041 = vadd.xlane.f32.xlu0 %v4040
      %v4042 = vpop.xlane.xlu0 %4041
      %v4043 = vsel %vm1194, %v3971, 0.0
      %4044 = vadd.xlane.f32.xlu0 %v4043
      %v4045 = vpop.xlane.xlu0 %4044
      %v4046 = vsel %vm1194, %v3972, 0.0
      %4047 = vadd.xlane.f32.xlu0 %v4046
      %v4048 = vpop.xlane.xlu0 %4047
      %v4049 = vsel %vm1194, %v3973, 0.0
      %4050 = vadd.xlane.f32.xlu0 %v4049
      %v4051 = vpop.xlane.xlu0 %4050
      %v4052 = vsel %vm1194, %v3974, 0.0
      %4053 = vadd.xlane.f32.xlu0 %v4052
      %v4054 = vpop.xlane.xlu0 %4053
      %v4055 = vsel %vm1194, %v3975, 0.0
      %4056 = vadd.xlane.f32.xlu0 %v4055
      %v4057 = vpop.xlane.xlu0 %4056
      %v4058 = vsel %vm1194, %v3976, 0.0
      %4059 = vadd.xlane.f32.xlu0 %v4058
      %v4060 = vpop.xlane.xlu0 %4059
      %v4061 = vsel %vm1194, %v3977, 0.0
      %4062 = vadd.xlane.f32.xlu0 %v4061
      %v4063 = vpop.xlane.xlu0 %4062
      %v4064 = vsel %vm1194, %v3978, 0.0
      %4065 = vadd.xlane.f32.xlu0 %v4064
      %v4066 = vpop.xlane.xlu0 %4065
      %v4067 = vsel %vm1194, %v3979, 0.0
      %4068 = vadd.xlane.f32.xlu0 %v4067
      %v4069 = vpop.xlane.xlu0 %4068
      %v4070 = vsel %vm1194, %v3980, 0.0
      %4071 = vadd.xlane.f32.xlu0 %v4070
      %v4072 = vpop.xlane.xlu0 %4071
      %v4073 = vsel %vm1194, %v3981, 0.0
      %4074 = vadd.xlane.f32.xlu0 %v4073
      %v4075 = vpop.xlane.xlu0 %4074
      %v4076 = vsel %vm1194, %v3982, 0.0
      %4077 = vadd.xlane.f32.xlu0 %v4076
      %v4078 = vpop.xlane.xlu0 %4077
      %v4079 = vmul.f32 %v3985, %v2689
      %v4080 = vmul.f32 %v3988, %v2689
      %v4081 = vmul.f32 %v3991, %v2689
      %v4082 = vmul.f32 %v3994, %v2689
      %v4083 = vmul.f32 %v3997, %v2689
      %v4084 = vmul.f32 %v4000, %v2689
      %v4085 = vmul.f32 %v4003, %v2689
      %v4086 = vmul.f32 %v4006, %v2689
      %v4087 = vmul.f32 %v4009, %v2689
      %v4088 = vmul.f32 %v4012, %v2689
      %v4089 = vmul.f32 %v4015, %v2689
      %v4090 = vmul.f32 %v4018, %v2689
      %v4091 = vmul.f32 %v4021, %v2689
      %v4092 = vmul.f32 %v4024, %v2689
      %v4093 = vmul.f32 %v4027, %v2689
      %v4094 = vmul.f32 %v4030, %v2689
      %v4095 = vmul.f32 %v4033, %v2689
      %v4096 = vmul.f32 %v4036, %v2689
      %v4097 = vmul.f32 %v4039, %v2689
      %v4098 = vmul.f32 %v4042, %v2689
      %v4099 = vmul.f32 %v4045, %v2689
      %v4100 = vmul.f32 %v4048, %v2689
      %v4101 = vmul.f32 %v4051, %v2689
      %v4102 = vmul.f32 %v4054, %v2689
      %v4103 = vmul.f32 %v4057, %v2689
      %v4104 = vmul.f32 %v4060, %v2689
      %v4105 = vmul.f32 %v4063, %v2689
      %v4106 = vmul.f32 %v4066, %v2689
      %v4107 = vmul.f32 %v4069, %v2689
      %v4108 = vmul.f32 %v4072, %v2689
      %v4109 = vmul.f32 %v4075, %v2689
      %v4110 = vmul.f32 %v4078, %v2689
      %v4111 = vadd.f32 %v4079, 1e-05
      %v4112 = vadd.f32 %v4080, 1e-05
      %v4113 = vadd.f32 %v4081, 1e-05
      %v4114 = vadd.f32 %v4082, 1e-05
      %v4115 = vadd.f32 %v4083, 1e-05
      %v4116 = vadd.f32 %v4084, 1e-05
      %v4117 = vadd.f32 %v4085, 1e-05
      %v4118 = vadd.f32 %v4086, 1e-05
      %v4119 = vadd.f32 %v4087, 1e-05
      %v4120 = vadd.f32 %v4088, 1e-05
      %v4121 = vadd.f32 %v4089, 1e-05
      %v4122 = vadd.f32 %v4090, 1e-05
      %v4123 = vadd.f32 %v4091, 1e-05
      %v4124 = vadd.f32 %v4092, 1e-05
      %v4125 = vadd.f32 %v4093, 1e-05
      %v4126 = vadd.f32 %v4094, 1e-05
      %v4127 = vadd.f32 %v4095, 1e-05
      %v4128 = vadd.f32 %v4096, 1e-05
      %v4129 = vadd.f32 %v4097, 1e-05
      %v4130 = vadd.f32 %v4098, 1e-05
      %v4131 = vadd.f32 %v4099, 1e-05
      %v4132 = vadd.f32 %v4100, 1e-05
      %v4133 = vadd.f32 %v4101, 1e-05
      %v4134 = vadd.f32 %v4102, 1e-05
      %v4135 = vadd.f32 %v4103, 1e-05
      %v4136 = vadd.f32 %v4104, 1e-05
      %v4137 = vadd.f32 %v4105, 1e-05
      %v4138 = vadd.f32 %v4106, 1e-05
      %v4139 = vadd.f32 %v4107, 1e-05
      %v4140 = vadd.f32 %v4108, 1e-05
      %v4141 = vadd.f32 %v4109, 1e-05
      %v4142 = vadd.f32 %v4110, 1e-05
      %v4143 = vrsqrt.pop %v4111
      %v4144 = vmul.f32 %v4143, %v4111
      %v4145 = vmul.f32 %v4144, %v4143
      %v4146 = vmul.f32 0.5, %v4145
      %v4147 = vsub.f32 1.5, %v4146
      %v4148 = vmul.f32 %v4143, %v4147
      %vm4149 = vweird.f32 %v4111
      %vm4150 = vweird.f32 %v4143
      %vm4151 = vmor %vm4149, %vm4150
      %v4152 = vsel %vm4151, %v4143, %v4148
      %v4153 = vrsqrt.pop %v4112
      %v4154 = vmul.f32 %v4153, %v4112
      %v4155 = vmul.f32 %v4154, %v4153
      %v4156 = vmul.f32 0.5, %v4155
      %v4157 = vsub.f32 1.5, %v4156
      %v4158 = vmul.f32 %v4153, %v4157
      %vm4159 = vweird.f32 %v4112
      %vm4160 = vweird.f32 %v4153
      %vm4161 = vmor %vm4159, %vm4160
      %v4162 = vsel %vm4161, %v4153, %v4158
      %v4163 = vrsqrt.pop %v4113
      %v4164 = vmul.f32 %v4163, %v4113
      %v4165 = vmul.f32 %v4164, %v4163
      %v4166 = vmul.f32 0.5, %v4165
      %v4167 = vsub.f32 1.5, %v4166
      %v4168 = vmul.f32 %v4163, %v4167
      %vm4169 = vweird.f32 %v4113
      %vm4170 = vweird.f32 %v4163
      %vm4171 = vmor %vm4169, %vm4170
      %v4172 = vsel %vm4171, %v4163, %v4168
      %v4173 = vrsqrt.pop %v4114
      %v4174 = vmul.f32 %v4173, %v4114
      %v4175 = vmul.f32 %v4174, %v4173
      %v4176 = vmul.f32 0.5, %v4175
      %v4177 = vsub.f32 1.5, %v4176
      %v4178 = vmul.f32 %v4173, %v4177
      %vm4179 = vweird.f32 %v4114
      %vm4180 = vweird.f32 %v4173
      %vm4181 = vmor %vm4179, %vm4180
      %v4182 = vsel %vm4181, %v4173, %v4178
      %v4183 = vrsqrt.pop %v4115
      %v4184 = vmul.f32 %v4183, %v4115
      %v4185 = vmul.f32 %v4184, %v4183
      %v4186 = vmul.f32 0.5, %v4185
      %v4187 = vsub.f32 1.5, %v4186
      %v4188 = vmul.f32 %v4183, %v4187
      %vm4189 = vweird.f32 %v4115
      %vm4190 = vweird.f32 %v4183
      %vm4191 = vmor %vm4189, %vm4190
      %v4192 = vsel %vm4191, %v4183, %v4188
      %v4193 = vrsqrt.pop %v4116
      %v4194 = vmul.f32 %v4193, %v4116
      %v4195 = vmul.f32 %v4194, %v4193
      %v4196 = vmul.f32 0.5, %v4195
      %v4197 = vsub.f32 1.5, %v4196
      %v4198 = vmul.f32 %v4193, %v4197
      %vm4199 = vweird.f32 %v4116
      %vm4200 = vweird.f32 %v4193
      %vm4201 = vmor %vm4199, %vm4200
      %v4202 = vsel %vm4201, %v4193, %v4198
      %v4203 = vrsqrt.pop %v4117
      %v4204 = vmul.f32 %v4203, %v4117
      %v4205 = vmul.f32 %v4204, %v4203
      %v4206 = vmul.f32 0.5, %v4205
      %v4207 = vsub.f32 1.5, %v4206
      %v4208 = vmul.f32 %v4203, %v4207
      %vm4209 = vweird.f32 %v4117
      %vm4210 = vweird.f32 %v4203
      %vm4211 = vmor %vm4209, %vm4210
      %v4212 = vsel %vm4211, %v4203, %v4208
      %v4213 = vrsqrt.pop %v4118
      %v4214 = vmul.f32 %v4213, %v4118
      %v4215 = vmul.f32 %v4214, %v4213
      %v4216 = vmul.f32 0.5, %v4215
      %v4217 = vsub.f32 1.5, %v4216
      %v4218 = vmul.f32 %v4213, %v4217
      %vm4219 = vweird.f32 %v4118
      %vm4220 = vweird.f32 %v4213
      %vm4221 = vmor %vm4219, %vm4220
      %v4222 = vsel %vm4221, %v4213, %v4218
      %v4223 = vrsqrt.pop %v4119
      %v4224 = vmul.f32 %v4223, %v4119
      %v4225 = vmul.f32 %v4224, %v4223
      %v4226 = vmul.f32 0.5, %v4225
      %v4227 = vsub.f32 1.5, %v4226
      %v4228 = vmul.f32 %v4223, %v4227
      %vm4229 = vweird.f32 %v4119
      %vm4230 = vweird.f32 %v4223
      %vm4231 = vmor %vm4229, %vm4230
      %v4232 = vsel %vm4231, %v4223, %v4228
      %v4233 = vrsqrt.pop %v4120
      %v4234 = vmul.f32 %v4233, %v4120
      %v4235 = vmul.f32 %v4234, %v4233
      %v4236 = vmul.f32 0.5, %v4235
      %v4237 = vsub.f32 1.5, %v4236
      %v4238 = vmul.f32 %v4233, %v4237
      %vm4239 = vweird.f32 %v4120
      %vm4240 = vweird.f32 %v4233
      %vm4241 = vmor %vm4239, %vm4240
      %v4242 = vsel %vm4241, %v4233, %v4238
      %v4243 = vrsqrt.pop %v4121
      %v4244 = vmul.f32 %v4243, %v4121
      %v4245 = vmul.f32 %v4244, %v4243
      %v4246 = vmul.f32 0.5, %v4245
      %v4247 = vsub.f32 1.5, %v4246
      %v4248 = vmul.f32 %v4243, %v4247
      %vm4249 = vweird.f32 %v4121
      %vm4250 = vweird.f32 %v4243
      %vm4251 = vmor %vm4249, %vm4250
      %v4252 = vsel %vm4251, %v4243, %v4248
      %v4253 = vrsqrt.pop %v4122
      %v4254 = vmul.f32 %v4253, %v4122
      %v4255 = vmul.f32 %v4254, %v4253
      %v4256 = vmul.f32 0.5, %v4255
      %v4257 = vsub.f32 1.5, %v4256
      %v4258 = vmul.f32 %v4253, %v4257
      %vm4259 = vweird.f32 %v4122
      %vm4260 = vweird.f32 %v4253
      %vm4261 = vmor %vm4259, %vm4260
      %v4262 = vsel %vm4261, %v4253, %v4258
      %v4263 = vrsqrt.pop %v4123
      %v4264 = vmul.f32 %v4263, %v4123
      %v4265 = vmul.f32 %v4264, %v4263
      %v4266 = vmul.f32 0.5, %v4265
      %v4267 = vsub.f32 1.5, %v4266
      %v4268 = vmul.f32 %v4263, %v4267
      %vm4269 = vweird.f32 %v4123
      %vm4270 = vweird.f32 %v4263
      %vm4271 = vmor %vm4269, %vm4270
      %v4272 = vsel %vm4271, %v4263, %v4268
      %v4273 = vrsqrt.pop %v4124
      %v4274 = vmul.f32 %v4273, %v4124
      %v4275 = vmul.f32 %v4274, %v4273
      %v4276 = vmul.f32 0.5, %v4275
      %v4277 = vsub.f32 1.5, %v4276
      %v4278 = vmul.f32 %v4273, %v4277
      %vm4279 = vweird.f32 %v4124
      %vm4280 = vweird.f32 %v4273
      %vm4281 = vmor %vm4279, %vm4280
      %v4282 = vsel %vm4281, %v4273, %v4278
      %v4283 = vrsqrt.pop %v4125
      %v4284 = vmul.f32 %v4283, %v4125
      %v4285 = vmul.f32 %v4284, %v4283
      %v4286 = vmul.f32 0.5, %v4285
      %v4287 = vsub.f32 1.5, %v4286
      %v4288 = vmul.f32 %v4283, %v4287
      %vm4289 = vweird.f32 %v4125
      %vm4290 = vweird.f32 %v4283
      %vm4291 = vmor %vm4289, %vm4290
      %v4292 = vsel %vm4291, %v4283, %v4288
      %v4293 = vrsqrt.pop %v4126
      %v4294 = vmul.f32 %v4293, %v4126
      %v4295 = vmul.f32 %v4294, %v4293
      %v4296 = vmul.f32 0.5, %v4295
      %v4297 = vsub.f32 1.5, %v4296
      %v4298 = vmul.f32 %v4293, %v4297
      %vm4299 = vweird.f32 %v4126
      %vm4300 = vweird.f32 %v4293
      %vm4301 = vmor %vm4299, %vm4300
      %v4302 = vsel %vm4301, %v4293, %v4298
      %v4303 = vrsqrt.pop %v4127
      %v4304 = vmul.f32 %v4303, %v4127
      %v4305 = vmul.f32 %v4304, %v4303
      %v4306 = vmul.f32 0.5, %v4305
      %v4307 = vsub.f32 1.5, %v4306
      %v4308 = vmul.f32 %v4303, %v4307
      %vm4309 = vweird.f32 %v4127
      %vm4310 = vweird.f32 %v4303
      %vm4311 = vmor %vm4309, %vm4310
      %v4312 = vsel %vm4311, %v4303, %v4308
      %v4313 = vrsqrt.pop %v4128
      %v4314 = vmul.f32 %v4313, %v4128
      %v4315 = vmul.f32 %v4314, %v4313
      %v4316 = vmul.f32 0.5, %v4315
      %v4317 = vsub.f32 1.5, %v4316
      %v4318 = vmul.f32 %v4313, %v4317
      %vm4319 = vweird.f32 %v4128
      %vm4320 = vweird.f32 %v4313
      %vm4321 = vmor %vm4319, %vm4320
      %v4322 = vsel %vm4321, %v4313, %v4318
      %v4323 = vrsqrt.pop %v4129
      %v4324 = vmul.f32 %v4323, %v4129
      %v4325 = vmul.f32 %v4324, %v4323
      %v4326 = vmul.f32 0.5, %v4325
      %v4327 = vsub.f32 1.5, %v4326
      %v4328 = vmul.f32 %v4323, %v4327
      %vm4329 = vweird.f32 %v4129
      %vm4330 = vweird.f32 %v4323
      %vm4331 = vmor %vm4329, %vm4330
      %v4332 = vsel %vm4331, %v4323, %v4328
      %v4333 = vrsqrt.pop %v4130
      %v4334 = vmul.f32 %v4333, %v4130
      %v4335 = vmul.f32 %v4334, %v4333
      %v4336 = vmul.f32 0.5, %v4335
      %v4337 = vsub.f32 1.5, %v4336
      %v4338 = vmul.f32 %v4333, %v4337
      %vm4339 = vweird.f32 %v4130
      %vm4340 = vweird.f32 %v4333
      %vm4341 = vmor %vm4339, %vm4340
      %v4342 = vsel %vm4341, %v4333, %v4338
      %v4343 = vrsqrt.pop %v4131
      %v4344 = vmul.f32 %v4343, %v4131
      %v4345 = vmul.f32 %v4344, %v4343
      %v4346 = vmul.f32 0.5, %v4345
      %v4347 = vsub.f32 1.5, %v4346
      %v4348 = vmul.f32 %v4343, %v4347
      %vm4349 = vweird.f32 %v4131
      %vm4350 = vweird.f32 %v4343
      %vm4351 = vmor %vm4349, %vm4350
      %v4352 = vsel %vm4351, %v4343, %v4348
      %v4353 = vrsqrt.pop %v4132
      %v4354 = vmul.f32 %v4353, %v4132
      %v4355 = vmul.f32 %v4354, %v4353
      %v4356 = vmul.f32 0.5, %v4355
      %v4357 = vsub.f32 1.5, %v4356
      %v4358 = vmul.f32 %v4353, %v4357
      %vm4359 = vweird.f32 %v4132
      %vm4360 = vweird.f32 %v4353
      %vm4361 = vmor %vm4359, %vm4360
      %v4362 = vsel %vm4361, %v4353, %v4358
      %v4363 = vrsqrt.pop %v4133
      %v4364 = vmul.f32 %v4363, %v4133
      %v4365 = vmul.f32 %v4364, %v4363
      %v4366 = vmul.f32 0.5, %v4365
      %v4367 = vsub.f32 1.5, %v4366
      %v4368 = vmul.f32 %v4363, %v4367
      %vm4369 = vweird.f32 %v4133
      %vm4370 = vweird.f32 %v4363
      %vm4371 = vmor %vm4369, %vm4370
      %v4372 = vsel %vm4371, %v4363, %v4368
      %v4373 = vrsqrt.pop %v4134
      %v4374 = vmul.f32 %v4373, %v4134
      %v4375 = vmul.f32 %v4374, %v4373
      %v4376 = vmul.f32 0.5, %v4375
      %v4377 = vsub.f32 1.5, %v4376
      %v4378 = vmul.f32 %v4373, %v4377
      %vm4379 = vweird.f32 %v4134
      %vm4380 = vweird.f32 %v4373
      %vm4381 = vmor %vm4379, %vm4380
      %v4382 = vsel %vm4381, %v4373, %v4378
      %v4383 = vrsqrt.pop %v4135
      %v4384 = vmul.f32 %v4383, %v4135
      %v4385 = vmul.f32 %v4384, %v4383
      %v4386 = vmul.f32 0.5, %v4385
      %v4387 = vsub.f32 1.5, %v4386
      %v4388 = vmul.f32 %v4383, %v4387
      %vm4389 = vweird.f32 %v4135
      %vm4390 = vweird.f32 %v4383
      %vm4391 = vmor %vm4389, %vm4390
      %v4392 = vsel %vm4391, %v4383, %v4388
      %v4393 = vrsqrt.pop %v4136
      %v4394 = vmul.f32 %v4393, %v4136
      %v4395 = vmul.f32 %v4394, %v4393
      %v4396 = vmul.f32 0.5, %v4395
      %v4397 = vsub.f32 1.5, %v4396
      %v4398 = vmul.f32 %v4393, %v4397
      %vm4399 = vweird.f32 %v4136
      %vm4400 = vweird.f32 %v4393
      %vm4401 = vmor %vm4399, %vm4400
      %v4402 = vsel %vm4401, %v4393, %v4398
      %v4403 = vrsqrt.pop %v4137
      %v4404 = vmul.f32 %v4403, %v4137
      %v4405 = vmul.f32 %v4404, %v4403
      %v4406 = vmul.f32 0.5, %v4405
      %v4407 = vsub.f32 1.5, %v4406
      %v4408 = vmul.f32 %v4403, %v4407
      %vm4409 = vweird.f32 %v4137
      %vm4410 = vweird.f32 %v4403
      %vm4411 = vmor %vm4409, %vm4410
      %v4412 = vsel %vm4411, %v4403, %v4408
      %v4413 = vrsqrt.pop %v4138
      %v4414 = vmul.f32 %v4413, %v4138
      %v4415 = vmul.f32 %v4414, %v4413
      %v4416 = vmul.f32 0.5, %v4415
      %v4417 = vsub.f32 1.5, %v4416
      %v4418 = vmul.f32 %v4413, %v4417
      %vm4419 = vweird.f32 %v4138
      %vm4420 = vweird.f32 %v4413
      %vm4421 = vmor %vm4419, %vm4420
      %v4422 = vsel %vm4421, %v4413, %v4418
      %v4423 = vrsqrt.pop %v4139
      %v4424 = vmul.f32 %v4423, %v4139
      %v4425 = vmul.f32 %v4424, %v4423
      %v4426 = vmul.f32 0.5, %v4425
      %v4427 = vsub.f32 1.5, %v4426
      %v4428 = vmul.f32 %v4423, %v4427
      %vm4429 = vweird.f32 %v4139
      %vm4430 = vweird.f32 %v4423
      %vm4431 = vmor %vm4429, %vm4430
      %v4432 = vsel %vm4431, %v4423, %v4428
      %v4433 = vrsqrt.pop %v4140
      %v4434 = vmul.f32 %v4433, %v4140
      %v4435 = vmul.f32 %v4434, %v4433
      %v4436 = vmul.f32 0.5, %v4435
      %v4437 = vsub.f32 1.5, %v4436
      %v4438 = vmul.f32 %v4433, %v4437
      %vm4439 = vweird.f32 %v4140
      %vm4440 = vweird.f32 %v4433
      %vm4441 = vmor %vm4439, %vm4440
      %v4442 = vsel %vm4441, %v4433, %v4438
      %v4443 = vrsqrt.pop %v4141
      %v4444 = vmul.f32 %v4443, %v4141
      %v4445 = vmul.f32 %v4444, %v4443
      %v4446 = vmul.f32 0.5, %v4445
      %v4447 = vsub.f32 1.5, %v4446
      %v4448 = vmul.f32 %v4443, %v4447
      %vm4449 = vweird.f32 %v4141
      %vm4450 = vweird.f32 %v4443
      %vm4451 = vmor %vm4449, %vm4450
      %v4452 = vsel %vm4451, %v4443, %v4448
      %v4453 = vrsqrt.pop %v4142
      %v4454 = vmul.f32 %v4453, %v4142
      %v4455 = vmul.f32 %v4454, %v4453
      %v4456 = vmul.f32 0.5, %v4455
      %v4457 = vsub.f32 1.5, %v4456
      %v4458 = vmul.f32 %v4453, %v4457
      %vm4459 = vweird.f32 %v4142
      %vm4460 = vweird.f32 %v4453
      %vm4461 = vmor %vm4459, %vm4460
      %v4462 = vsel %vm4461, %v4453, %v4458
      %v4463 = vmul.f32 %v3919, %v4152
      %v4464 = vmul.f32 %v3920, %v4162
      %v4465 = vmul.f32 %v3921, %v4172
      %v4466 = vmul.f32 %v3922, %v4182
      %v4467 = vmul.f32 %v3923, %v4192
      %v4468 = vmul.f32 %v3924, %v4202
      %v4469 = vmul.f32 %v3925, %v4212
      %v4470 = vmul.f32 %v3926, %v4222
      %v4471 = vmul.f32 %v3927, %v4232
      %v4472 = vmul.f32 %v3928, %v4242
      %v4473 = vmul.f32 %v3929, %v4252
      %v4474 = vmul.f32 %v3930, %v4262
      %v4475 = vmul.f32 %v3931, %v4272
      %v4476 = vmul.f32 %v3932, %v4282
      %v4477 = vmul.f32 %v3933, %v4292
      %v4478 = vmul.f32 %v3934, %v4302
      %v4479 = vmul.f32 %v3935, %v4312
      %v4480 = vmul.f32 %v3936, %v4322
      %v4481 = vmul.f32 %v3937, %v4332
      %v4482 = vmul.f32 %v3938, %v4342
      %v4483 = vmul.f32 %v3939, %v4352
      %v4484 = vmul.f32 %v3940, %v4362
      %v4485 = vmul.f32 %v3941, %v4372
      %v4486 = vmul.f32 %v3942, %v4382
      %v4487 = vmul.f32 %v3943, %v4392
      %v4488 = vmul.f32 %v3944, %v4402
      %v4489 = vmul.f32 %v3945, %v4412
      %v4490 = vmul.f32 %v3946, %v4422
      %v4491 = vmul.f32 %v3947, %v4432
      %v4492 = vmul.f32 %v3948, %v4442
      %v4493 = vmul.f32 %v3949, %v4452
      %v4494 = vmul.f32 %v3950, %v4462
      %v4495 = vperm.slane %v1157, 2
      %v4496 = vmul.f32 %v4463, %v4495
      %v4497 = vmul.f32 %v4464, %v4495
      %v4498 = vmul.f32 %v4465, %v4495
      %v4499 = vmul.f32 %v4466, %v4495
      %v4500 = vmul.f32 %v4467, %v4495
      %v4501 = vmul.f32 %v4468, %v4495
      %v4502 = vmul.f32 %v4469, %v4495
      %v4503 = vmul.f32 %v4470, %v4495
      %v4504 = vmul.f32 %v4471, %v4495
      %v4505 = vmul.f32 %v4472, %v4495
      %v4506 = vmul.f32 %v4473, %v4495
      %v4507 = vmul.f32 %v4474, %v4495
      %v4508 = vmul.f32 %v4475, %v4495
      %v4509 = vmul.f32 %v4476, %v4495
      %v4510 = vmul.f32 %v4477, %v4495
      %v4511 = vmul.f32 %v4478, %v4495
      %v4512 = vmul.f32 %v4479, %v4495
      %v4513 = vmul.f32 %v4480, %v4495
      %v4514 = vmul.f32 %v4481, %v4495
      %v4515 = vmul.f32 %v4482, %v4495
      %v4516 = vmul.f32 %v4483, %v4495
      %v4517 = vmul.f32 %v4484, %v4495
      %v4518 = vmul.f32 %v4485, %v4495
      %v4519 = vmul.f32 %v4486, %v4495
      %v4520 = vmul.f32 %v4487, %v4495
      %v4521 = vmul.f32 %v4488, %v4495
      %v4522 = vmul.f32 %v4489, %v4495
      %v4523 = vmul.f32 %v4490, %v4495
      %v4524 = vmul.f32 %v4491, %v4495
      %v4525 = vmul.f32 %v4492, %v4495
      %v4526 = vmul.f32 %v4493, %v4495
      %v4527 = vmul.f32 %v4494, %v4495
      %v4528 = vperm.slane %v1157, 3
      %v4529 = vadd.f32 %v4496, %v4528
      %v4530 = vadd.f32 %v4497, %v4528
      %v4531 = vadd.f32 %v4498, %v4528
      %v4532 = vadd.f32 %v4499, %v4528
      %v4533 = vadd.f32 %v4500, %v4528
      %v4534 = vadd.f32 %v4501, %v4528
      %v4535 = vadd.f32 %v4502, %v4528
      %v4536 = vadd.f32 %v4503, %v4528
      %v4537 = vadd.f32 %v4504, %v4528
      %v4538 = vadd.f32 %v4505, %v4528
      %v4539 = vadd.f32 %v4506, %v4528
      %v4540 = vadd.f32 %v4507, %v4528
      %v4541 = vadd.f32 %v4508, %v4528
      %v4542 = vadd.f32 %v4509, %v4528
      %v4543 = vadd.f32 %v4510, %v4528
      %v4544 = vadd.f32 %v4511, %v4528
      %v4545 = vadd.f32 %v4512, %v4528
      %v4546 = vadd.f32 %v4513, %v4528
      %v4547 = vadd.f32 %v4514, %v4528
      %v4548 = vadd.f32 %v4515, %v4528
      %v4549 = vadd.f32 %v4516, %v4528
      %v4550 = vadd.f32 %v4517, %v4528
      %v4551 = vadd.f32 %v4518, %v4528
      %v4552 = vadd.f32 %v4519, %v4528
      %v4553 = vadd.f32 %v4520, %v4528
      %v4554 = vadd.f32 %v4521, %v4528
      %v4555 = vadd.f32 %v4522, %v4528
      %v4556 = vadd.f32 %v4523, %v4528
      %v4557 = vadd.f32 %v4524, %v4528
      %v4558 = vadd.f32 %v4525, %v4528
      %v4559 = vadd.f32 %v4526, %v4528
      %v4560 = vadd.f32 %v4527, %v4528
      %s4561 = scalar_lea.vmem %s9, 4
      %v4562 = vld [vmem:[%s4561] sm:$0xf]
      %v4563 = vpack.c.bf16 %v4530, %v4529
      %v4564 = vpack.c.bf16 %v4532, %v4531
      %v4565 = vpack.c.bf16 %v4534, %v4533
      %v4566 = vpack.c.bf16 %v4536, %v4535
      %v4567 = vpack.c.bf16 %v4538, %v4537
      %v4568 = vpack.c.bf16 %v4540, %v4539
      %v4569 = vpack.c.bf16 %v4542, %v4541
      %v4570 = vpack.c.bf16 %v4544, %v4543
      %v4571 = vpack.c.bf16 %v4546, %v4545
      %v4572 = vpack.c.bf16 %v4548, %v4547
      %v4573 = vpack.c.bf16 %v4550, %v4549
      %v4574 = vpack.c.bf16 %v4552, %v4551
      %v4575 = vpack.c.bf16 %v4554, %v4553
      %v4576 = vpack.c.bf16 %v4556, %v4555
      %v4577 = vpack.c.bf16 %v4558, %v4557
      %v4578 = vpack.c.bf16 %v4560, %v4559
      %s4579 = scalar_lea.vmem %s5, 16
      %v4580 = vld [vmem:[%s4579] sm:$0xf]
      %v4581 = vld [vmem:[%s4579 + $0x4] sm:$0xf]
      %v4582 = vld [vmem:[%s4579 + $0x8] sm:$0xf]
      %v4583 = vld [vmem:[%s4579 + $0xc] sm:$0xf]
      %s4584 = scalar_lea.vmem %s6, 1
      %v4585 = vld [vmem:[%s4584] sm:$0x1]
      %v4587 = vperm.slane %v4585, 0
      %v4593 = vunpack.c.l.b16 %v4580
      %v4594 = vunpack.c.l.b16 %v4581
      %v4595 = vunpack.c.l.b16 %v4582
      %v4596 = vunpack.c.l.b16 %v4583
      %v4597 = vpack.c.b16 %v4594, %v4593
      %v4598 = vpack.c.b16 %v4596, %v4595
      %v4602 = vsel %vm1194, %v4563, 0
      %v4605 = vsel %vm1194, %v4564, 0
      %v4608 = vsel %vm1194, %v4565, 0
      %v4611 = vsel %vm1194, %v4566, 0
      %v4614 = vsel %vm1194, %v4567, 0
      %v4617 = vsel %vm1194, %v4568, 0
      %v4620 = vsel %vm1194, %v4569, 0
      %v4623 = vsel %vm1194, %v4570, 0
      %v4626 = vsel %vm1194, %v4571, 0
      %v4629 = vsel %vm1194, %v4572, 0
      %v4632 = vsel %vm1194, %v4573, 0
      %v4635 = vsel %vm1194, %v4574, 0
      %v4638 = vsel %vm1194, %v4575, 0
      %v4641 = vsel %vm1194, %v4576, 0
      %v4644 = vsel %vm1194, %v4577, 0
      %v4647 = vsel %vm1194, %v4578, 0
      %4649 = vmatpush.bf16.msra.mxu0 0
      %4650 = vmatpush.bf16.msra.mxu0 0
      %4651 = vmatpush.bf16.msra.mxu0 0
      %4652 = vmatpush.bf16.msra.mxu0 0
      %4653 = vmatpush.bf16.msra.mxu0 0
      %4654 = vmatpush.bf16.msra.mxu0 0
      %4655 = vmatpush.bf16.msra.mxu0 %v4598
      %4656 = vmatpush.bf16.msra.mxu0 %v4597
      %4657 = vmatmul.bf16.gmra.mxu0 %v4602
      %v4658 = vpop.f32.mrf.mxu0
      %v4659 = vadd.f32 %v4587, %v4658
      %v4660 = vpop.f32.mrf.mxu0
      %v4661 = vadd.f32 %v4587, %v4660
      %4662 = vmatmul.bf16.gmra.mxu0 %v4605
      %v4663 = vpop.f32.mrf.mxu0
      %v4664 = vadd.f32 %v4587, %v4663
      %v4665 = vpop.f32.mrf.mxu0
      %v4666 = vadd.f32 %v4587, %v4665
      %4667 = vmatmul.bf16.gmra.mxu0 %v4608
      %v4668 = vpop.f32.mrf.mxu0
      %v4669 = vadd.f32 %v4587, %v4668
      %v4670 = vpop.f32.mrf.mxu0
      %v4671 = vadd.f32 %v4587, %v4670
      %4672 = vmatmul.bf16.gmra.mxu0 %v4611
      %v4673 = vpop.f32.mrf.mxu0
      %v4674 = vadd.f32 %v4587, %v4673
      %v4675 = vpop.f32.mrf.mxu0
      %v4676 = vadd.f32 %v4587, %v4675
      %4677 = vmatmul.bf16.gmra.mxu0 %v4614
      %v4678 = vpop.f32.mrf.mxu0
      %v4679 = vadd.f32 %v4587, %v4678
      %v4680 = vpop.f32.mrf.mxu0
      %v4681 = vadd.f32 %v4587, %v4680
      %4682 = vmatmul.bf16.gmra.mxu0 %v4617
      %v4683 = vpop.f32.mrf.mxu0
      %v4684 = vadd.f32 %v4587, %v4683
      %v4685 = vpop.f32.mrf.mxu0
      %v4686 = vadd.f32 %v4587, %v4685
      %4687 = vmatmul.bf16.gmra.mxu0 %v4620
      %v4688 = vpop.f32.mrf.mxu0
      %v4689 = vadd.f32 %v4587, %v4688
      %v4690 = vpop.f32.mrf.mxu0
      %v4691 = vadd.f32 %v4587, %v4690
      %4692 = vmatmul.bf16.gmra.mxu0 %v4623
      %v4693 = vpop.f32.mrf.mxu0
      %v4694 = vadd.f32 %v4587, %v4693
      %v4695 = vpop.f32.mrf.mxu0
      %v4696 = vadd.f32 %v4587, %v4695
      %4697 = vmatmul.bf16.gmra.mxu0 %v4626
      %v4698 = vpop.f32.mrf.mxu0
      %v4699 = vadd.f32 %v4587, %v4698
      %v4700 = vpop.f32.mrf.mxu0
      %v4701 = vadd.f32 %v4587, %v4700
      %4702 = vmatmul.bf16.gmra.mxu0 %v4629
      %v4703 = vpop.f32.mrf.mxu0
      %v4704 = vadd.f32 %v4587, %v4703
      %v4705 = vpop.f32.mrf.mxu0
      %v4706 = vadd.f32 %v4587, %v4705
      %4707 = vmatmul.bf16.gmra.mxu0 %v4632
      %v4708 = vpop.f32.mrf.mxu0
      %v4709 = vadd.f32 %v4587, %v4708
      %v4710 = vpop.f32.mrf.mxu0
      %v4711 = vadd.f32 %v4587, %v4710
      %4712 = vmatmul.bf16.gmra.mxu0 %v4635
      %v4713 = vpop.f32.mrf.mxu0
      %v4714 = vadd.f32 %v4587, %v4713
      %v4715 = vpop.f32.mrf.mxu0
      %v4716 = vadd.f32 %v4587, %v4715
      %4717 = vmatmul.bf16.gmra.mxu0 %v4638
      %v4718 = vpop.f32.mrf.mxu0
      %v4719 = vadd.f32 %v4587, %v4718
      %v4720 = vpop.f32.mrf.mxu0
      %v4721 = vadd.f32 %v4587, %v4720
      %4722 = vmatmul.bf16.gmra.mxu0 %v4641
      %v4723 = vpop.f32.mrf.mxu0
      %v4724 = vadd.f32 %v4587, %v4723
      %v4725 = vpop.f32.mrf.mxu0
      %v4726 = vadd.f32 %v4587, %v4725
      %4727 = vmatmul.bf16.gmra.mxu0 %v4644
      %v4728 = vpop.f32.mrf.mxu0
      %v4729 = vadd.f32 %v4587, %v4728
      %v4730 = vpop.f32.mrf.mxu0
      %v4731 = vadd.f32 %v4587, %v4730
      %4732 = vmatmul.bf16.gmra.mxu0 %v4647
      %v4733 = vpop.f32.mrf.mxu0
      %v4734 = vadd.f32 %v4587, %v4733
      %v4735 = vpop.f32.mrf.mxu0
      %v4736 = vadd.f32 %v4587, %v4735
      %4737 = vdwg.mxu0
      %v4738 = vpack.c.bf16 %v4661, %v4659
      %v4739 = vpack.c.bf16 %v4666, %v4664
      %v4740 = vpack.c.bf16 %v4671, %v4669
      %v4741 = vpack.c.bf16 %v4676, %v4674
      %v4742 = vpack.c.bf16 %v4681, %v4679
      %v4743 = vpack.c.bf16 %v4686, %v4684
      %v4744 = vpack.c.bf16 %v4691, %v4689
      %v4745 = vpack.c.bf16 %v4696, %v4694
      %v4746 = vpack.c.bf16 %v4701, %v4699
      %v4747 = vpack.c.bf16 %v4706, %v4704
      %v4748 = vpack.c.bf16 %v4711, %v4709
      %v4749 = vpack.c.bf16 %v4716, %v4714
      %v4750 = vpack.c.bf16 %v4721, %v4719
      %v4751 = vpack.c.bf16 %v4726, %v4724
      %v4752 = vpack.c.bf16 %v4731, %v4729
      %v4753 = vpack.c.bf16 %v4736, %v4734
      %4770 = vrot.lane.b32.xlu0 %v4738, 96
      %v4771 = vpop.permute.xlu0 %4770
      %4772 = vrot.lane.b32.xlu0 %v4739, 96
      %v4773 = vpop.permute.xlu0 %4772
      %4774 = vrot.lane.b32.xlu0 %v4740, 96
      %v4775 = vpop.permute.xlu0 %4774
      %4776 = vrot.lane.b32.xlu0 %v4741, 96
      %v4777 = vpop.permute.xlu0 %4776
      %4778 = vrot.lane.b32.xlu0 %v4742, 96
      %v4779 = vpop.permute.xlu0 %4778
      %4780 = vrot.lane.b32.xlu0 %v4743, 96
      %v4781 = vpop.permute.xlu0 %4780
      %4782 = vrot.lane.b32.xlu0 %v4744, 96
      %v4783 = vpop.permute.xlu0 %4782
      %4784 = vrot.lane.b32.xlu0 %v4745, 96
      %v4785 = vpop.permute.xlu0 %4784
      %4786 = vrot.lane.b32.xlu0 %v4746, 96
      %v4787 = vpop.permute.xlu0 %4786
      %4788 = vrot.lane.b32.xlu0 %v4747, 96
      %v4789 = vpop.permute.xlu0 %4788
      %4790 = vrot.lane.b32.xlu0 %v4748, 96
      %v4791 = vpop.permute.xlu0 %4790
      %4792 = vrot.lane.b32.xlu0 %v4749, 96
      %v4793 = vpop.permute.xlu0 %4792
      %4794 = vrot.lane.b32.xlu0 %v4750, 96
      %v4795 = vpop.permute.xlu0 %4794
      %4796 = vrot.lane.b32.xlu0 %v4751, 96
      %v4797 = vpop.permute.xlu0 %4796
      %4798 = vrot.lane.b32.xlu0 %v4752, 96
      %v4799 = vpop.permute.xlu0 %4798
      %4800 = vrot.lane.b32.xlu0 %v4753, 96
      %v4801 = vpop.permute.xlu0 %4800
      %v4803 = vsel %vm1194, %v4771, 0
      %v4806 = vsel %vm1194, %v4773, 0
      %v4809 = vsel %vm1194, %v4775, 0
      %v4812 = vsel %vm1194, %v4777, 0
      %v4815 = vsel %vm1194, %v4779, 0
      %v4818 = vsel %vm1194, %v4781, 0
      %v4821 = vsel %vm1194, %v4783, 0
      %v4824 = vsel %vm1194, %v4785, 0
      %v4827 = vsel %vm1194, %v4787, 0
      %v4830 = vsel %vm1194, %v4789, 0
      %v4833 = vsel %vm1194, %v4791, 0
      %v4836 = vsel %vm1194, %v4793, 0
      %v4839 = vsel %vm1194, %v4795, 0
      %v4842 = vsel %vm1194, %v4797, 0
      %v4845 = vsel %vm1194, %v4799, 0
      %v4848 = vsel %vm1194, %v4801, 0
      %v4851 = vsel %vm1194, %v4738, 0
      %v4854 = vsel %vm1194, %v4739, 0
      %v4857 = vsel %vm1194, %v4740, 0
      %v4860 = vsel %vm1194, %v4741, 0
      %v4863 = vsel %vm1194, %v4742, 0
      %v4866 = vsel %vm1194, %v4743, 0
      %v4869 = vsel %vm1194, %v4744, 0
      %v4872 = vsel %vm1194, %v4745, 0
      %v4875 = vsel %vm1194, %v4746, 0
      %v4878 = vsel %vm1194, %v4747, 0
      %v4881 = vsel %vm1194, %v4748, 0
      %v4884 = vsel %vm1194, %v4749, 0
      %v4887 = vsel %vm1194, %v4750, 0
      %v4890 = vsel %vm1194, %v4751, 0
      %v4893 = vsel %vm1194, %v4752, 0
      %v4896 = vsel %vm1194, %v4753, 0
      %4898 = vmatpush.bf16.xpose.msra.mxu0 %v4872
      %4899 = vmatpush.bf16.xpose.msra.mxu0 %v4869
      %4900 = vmatpush.bf16.xpose.msra.mxu0 %v4866
      %4901 = vmatpush.bf16.xpose.msra.mxu0 %v4863
      %4902 = vmatpush.bf16.xpose.msra.mxu0 %v4860
      %4903 = vmatpush.bf16.xpose.msra.mxu0 %v4857
      %4904 = vmatpush.bf16.xpose.msra.mxu0 %v4854
      %4905 = vmatpush.bf16.xpose.msra.mxu0 %v4851
      %4906 = vmatmul.bf16.gmra.mxu0 %v4803
      %v4907 = vpop.f32.mrf.mxu0
      %v4908 = vadd.f32 %v860, %v4907
      %v4909 = vpop.f32.mrf.mxu0
      %v4910 = vadd.f32 %v862, %v4909
      %4911 = vmatmul.bf16.gmra.mxu0 %v4806
      %v4912 = vpop.f32.mrf.mxu0
      %v4913 = vadd.f32 %v864, %v4912
      %v4914 = vpop.f32.mrf.mxu0
      %v4915 = vadd.f32 %v866, %v4914
      %4916 = vmatmul.bf16.gmra.mxu0 %v4809
      %v4917 = vpop.f32.mrf.mxu0
      %v4918 = vadd.f32 %v868, %v4917
      %v4919 = vpop.f32.mrf.mxu0
      %v4920 = vadd.f32 %v870, %v4919
      %4921 = vmatmul.bf16.gmra.mxu0 %v4812
      %v4922 = vpop.f32.mrf.mxu0
      %v4923 = vadd.f32 %v872, %v4922
      %v4924 = vpop.f32.mrf.mxu0
      %v4925 = vadd.f32 %v874, %v4924
      %4926 = vmatmul.bf16.gmra.mxu0 %v4815
      %v4927 = vpop.f32.mrf.mxu0
      %v4928 = vadd.f32 %v876, %v4927
      %v4929 = vpop.f32.mrf.mxu0
      %v4930 = vadd.f32 %v878, %v4929
      %4931 = vmatmul.bf16.gmra.mxu0 %v4818
      %v4932 = vpop.f32.mrf.mxu0
      %v4933 = vadd.f32 %v880, %v4932
      %v4934 = vpop.f32.mrf.mxu0
      %v4935 = vadd.f32 %v882, %v4934
      %4936 = vmatmul.bf16.gmra.mxu0 %v4821
      %v4937 = vpop.f32.mrf.mxu0
      %v4938 = vadd.f32 %v884, %v4937
      %v4939 = vpop.f32.mrf.mxu0
      %v4940 = vadd.f32 %v886, %v4939
      %4941 = vmatmul.bf16.gmra.mxu0 %v4824
      %v4942 = vpop.f32.mrf.mxu0
      %v4943 = vadd.f32 %v888, %v4942
      %v4944 = vpop.f32.mrf.mxu0
      %v4945 = vadd.f32 %v890, %v4944
      %4946 = vmatmul.bf16.gmra.mxu0 %v4827
      %v4947 = vpop.f32.mrf.mxu0
      %v4948 = vadd.f32 %v892, %v4947
      %v4949 = vpop.f32.mrf.mxu0
      %v4950 = vadd.f32 %v894, %v4949
      %4951 = vmatmul.bf16.gmra.mxu0 %v4830
      %v4952 = vpop.f32.mrf.mxu0
      %v4953 = vadd.f32 %v896, %v4952
      %v4954 = vpop.f32.mrf.mxu0
      %v4955 = vadd.f32 %v898, %v4954
      %4956 = vmatmul.bf16.gmra.mxu0 %v4833
      %v4957 = vpop.f32.mrf.mxu0
      %v4958 = vadd.f32 %v900, %v4957
      %v4959 = vpop.f32.mrf.mxu0
      %v4960 = vadd.f32 %v902, %v4959
      %4961 = vmatmul.bf16.gmra.mxu0 %v4836
      %v4962 = vpop.f32.mrf.mxu0
      %v4963 = vadd.f32 %v904, %v4962
      %v4964 = vpop.f32.mrf.mxu0
      %v4965 = vadd.f32 %v906, %v4964
      %4966 = vmatmul.bf16.gmra.mxu0 %v4839
      %v4967 = vpop.f32.mrf.mxu0
      %v4968 = vadd.f32 %v908, %v4967
      %v4969 = vpop.f32.mrf.mxu0
      %v4970 = vadd.f32 %v910, %v4969
      %4971 = vmatmul.bf16.gmra.mxu0 %v4842
      %v4972 = vpop.f32.mrf.mxu0
      %v4973 = vadd.f32 %v912, %v4972
      %v4974 = vpop.f32.mrf.mxu0
      %v4975 = vadd.f32 %v914, %v4974
      %4976 = vmatmul.bf16.gmra.mxu0 %v4845
      %v4977 = vpop.f32.mrf.mxu0
      %v4978 = vadd.f32 %v916, %v4977
      %v4979 = vpop.f32.mrf.mxu0
      %v4980 = vadd.f32 %v918, %v4979
      %4981 = vmatmul.bf16.gmra.mxu0 %v4848
      %v4982 = vpop.f32.mrf.mxu0
      %v4983 = vadd.f32 %v920, %v4982
      %v4984 = vpop.f32.mrf.mxu0
      %v4985 = vadd.f32 %v922, %v4984
      %4986 = vdwg.mxu0
      %4987 = vmatpush.bf16.xpose.msra.mxu0 %v4896
      %4988 = vmatpush.bf16.xpose.msra.mxu0 %v4893
      %4989 = vmatpush.bf16.xpose.msra.mxu0 %v4890
      %4990 = vmatpush.bf16.xpose.msra.mxu0 %v4887
      %4991 = vmatpush.bf16.xpose.msra.mxu0 %v4884
      %4992 = vmatpush.bf16.xpose.msra.mxu0 %v4881
      %4993 = vmatpush.bf16.xpose.msra.mxu0 %v4878
      %4994 = vmatpush.bf16.xpose.msra.mxu0 %v4875
      %4995 = vmatmul.bf16.gmra.mxu0 %v4803
      %v4996 = vpop.f32.mrf.mxu0
      %v4997 = vadd.f32 %v861, %v4996
      %v4998 = vpop.f32.mrf.mxu0
      %v4999 = vadd.f32 %v863, %v4998
      %5000 = vmatmul.bf16.gmra.mxu0 %v4806
      %v5001 = vpop.f32.mrf.mxu0
      %v5002 = vadd.f32 %v865, %v5001
      %v5003 = vpop.f32.mrf.mxu0
      %v5004 = vadd.f32 %v867, %v5003
      %5005 = vmatmul.bf16.gmra.mxu0 %v4809
      %v5006 = vpop.f32.mrf.mxu0
      %v5007 = vadd.f32 %v869, %v5006
      %v5008 = vpop.f32.mrf.mxu0
      %v5009 = vadd.f32 %v871, %v5008
      %5010 = vmatmul.bf16.gmra.mxu0 %v4812
      %v5011 = vpop.f32.mrf.mxu0
      %v5012 = vadd.f32 %v873, %v5011
      %v5013 = vpop.f32.mrf.mxu0
      %v5014 = vadd.f32 %v875, %v5013
      %5015 = vmatmul.bf16.gmra.mxu0 %v4815
      %v5016 = vpop.f32.mrf.mxu0
      %v5017 = vadd.f32 %v877, %v5016
      %v5018 = vpop.f32.mrf.mxu0
      %v5019 = vadd.f32 %v879, %v5018
      %5020 = vmatmul.bf16.gmra.mxu0 %v4818
      %v5021 = vpop.f32.mrf.mxu0
      %v5022 = vadd.f32 %v881, %v5021
      %v5023 = vpop.f32.mrf.mxu0
      %v5024 = vadd.f32 %v883, %v5023
      %5025 = vmatmul.bf16.gmra.mxu0 %v4821
      %v5026 = vpop.f32.mrf.mxu0
      %v5027 = vadd.f32 %v885, %v5026
      %v5028 = vpop.f32.mrf.mxu0
      %v5029 = vadd.f32 %v887, %v5028
      %5030 = vmatmul.bf16.gmra.mxu0 %v4824
      %v5031 = vpop.f32.mrf.mxu0
      %v5032 = vadd.f32 %v889, %v5031
      %v5033 = vpop.f32.mrf.mxu0
      %v5034 = vadd.f32 %v891, %v5033
      %5035 = vmatmul.bf16.gmra.mxu0 %v4827
      %v5036 = vpop.f32.mrf.mxu0
      %v5037 = vadd.f32 %v893, %v5036
      %v5038 = vpop.f32.mrf.mxu0
      %v5039 = vadd.f32 %v895, %v5038
      %5040 = vmatmul.bf16.gmra.mxu0 %v4830
      %v5041 = vpop.f32.mrf.mxu0
      %v5042 = vadd.f32 %v897, %v5041
      %v5043 = vpop.f32.mrf.mxu0
      %v5044 = vadd.f32 %v899, %v5043
      %5045 = vmatmul.bf16.gmra.mxu0 %v4833
      %v5046 = vpop.f32.mrf.mxu0
      %v5047 = vadd.f32 %v901, %v5046
      %v5048 = vpop.f32.mrf.mxu0
      %v5049 = vadd.f32 %v903, %v5048
      %5050 = vmatmul.bf16.gmra.mxu0 %v4836
      %v5051 = vpop.f32.mrf.mxu0
      %v5052 = vadd.f32 %v905, %v5051
      %v5053 = vpop.f32.mrf.mxu0
      %v5054 = vadd.f32 %v907, %v5053
      %5055 = vmatmul.bf16.gmra.mxu0 %v4839
      %v5056 = vpop.f32.mrf.mxu0
      %v5057 = vadd.f32 %v909, %v5056
      %v5058 = vpop.f32.mrf.mxu0
      %v5059 = vadd.f32 %v911, %v5058
      %5060 = vmatmul.bf16.gmra.mxu0 %v4842
      %v5061 = vpop.f32.mrf.mxu0
      %v5062 = vadd.f32 %v913, %v5061
      %v5063 = vpop.f32.mrf.mxu0
      %v5064 = vadd.f32 %v915, %v5063
      %5065 = vmatmul.bf16.gmra.mxu0 %v4845
      %v5066 = vpop.f32.mrf.mxu0
      %v5067 = vadd.f32 %v917, %v5066
      %v5068 = vpop.f32.mrf.mxu0
      %v5069 = vadd.f32 %v919, %v5068
      %5070 = vmatmul.bf16.gmra.mxu0 %v4848
      %v5071 = vpop.f32.mrf.mxu0
      %v5072 = vadd.f32 %v921, %v5071
      %v5073 = vpop.f32.mrf.mxu0
      %v5074 = vadd.f32 %v923, %v5073
      %5075 = vdwg.mxu0
      %v5076 = vmax.f32 %v4908, %v4913
      %v5077 = vmax.f32 %v4910, %v4915
      %v5078 = vmax.f32 %v5076, %v4918
      %v5079 = vmax.f32 %v5077, %v4920
      %v5080 = vmax.f32 %v5078, %v4923
      %v5081 = vmax.f32 %v5079, %v4925
      %v5082 = vmax.f32 %v5080, %v4928
      %v5083 = vmax.f32 %v5081, %v4930
      %v5084 = vmax.f32 %v5082, %v4933
      %v5085 = vmax.f32 %v5083, %v4935
      %v5086 = vmax.f32 %v5084, %v4938
      %v5087 = vmax.f32 %v5085, %v4940
      %v5088 = vmax.f32 %v5086, %v4943
      %v5089 = vmax.f32 %v5087, %v4945
      %v5090 = vmax.f32 %v5088, %v4948
      %v5091 = vmax.f32 %v5089, %v4950
      %v5092 = vmax.f32 %v5090, %v4953
      %v5093 = vmax.f32 %v5091, %v4955
      %v5094 = vmax.f32 %v5092, %v4958
      %v5095 = vmax.f32 %v5093, %v4960
      %v5096 = vmax.f32 %v5094, %v4963
      %v5097 = vmax.f32 %v5095, %v4965
      %v5098 = vmax.f32 %v5096, %v4968
      %v5099 = vmax.f32 %v5097, %v4970
      %v5100 = vmax.f32 %v5098, %v4973
      %v5101 = vmax.f32 %v5099, %v4975
      %v5102 = vmax.f32 %v5100, %v4978
      %v5103 = vmax.f32 %v5101, %v4980
      %v5104 = vmax.f32 %v5102, %v4983
      %v5105 = vmax.f32 %v5103, %v4985
      %v5106 = vmax.f32 %v5104, %v5105
      %v5107 = vrot.slane %v5106, 4
      %v5108 = vmax.f32 %v5106, %v5107
      %v5109 = vrot.slane %v5108, 2
      %v5110 = vmax.f32 %v5108, %v5109
      %v5111 = vrot.slane %v5110, 1
      %v5112 = vmax.f32 %v5110, %v5111
      %v5113 = vmax.f32 %v4997, %v5002
      %v5114 = vmax.f32 %v4999, %v5004
      %v5115 = vmax.f32 %v5113, %v5007
      %v5116 = vmax.f32 %v5114, %v5009
      %v5117 = vmax.f32 %v5115, %v5012
      %v5118 = vmax.f32 %v5116, %v5014
      %v5119 = vmax.f32 %v5117, %v5017
      %v5120 = vmax.f32 %v5118, %v5019
      %v5121 = vmax.f32 %v5119, %v5022
      %v5122 = vmax.f32 %v5120, %v5024
      %v5123 = vmax.f32 %v5121, %v5027
      %v5124 = vmax.f32 %v5122, %v5029
      %v5125 = vmax.f32 %v5123, %v5032
      %v5126 = vmax.f32 %v5124, %v5034
      %v5127 = vmax.f32 %v5125, %v5037
      %v5128 = vmax.f32 %v5126, %v5039
      %v5129 = vmax.f32 %v5127, %v5042
      %v5130 = vmax.f32 %v5128, %v5044
      %v5131 = vmax.f32 %v5129, %v5047
      %v5132 = vmax.f32 %v5130, %v5049
      %v5133 = vmax.f32 %v5131, %v5052
      %v5134 = vmax.f32 %v5132, %v5054
      %v5135 = vmax.f32 %v5133, %v5057
      %v5136 = vmax.f32 %v5134, %v5059
      %v5137 = vmax.f32 %v5135, %v5062
      %v5138 = vmax.f32 %v5136, %v5064
      %v5139 = vmax.f32 %v5137, %v5067
      %v5140 = vmax.f32 %v5138, %v5069
      %v5141 = vmax.f32 %v5139, %v5072
      %v5142 = vmax.f32 %v5140, %v5074
      %v5143 = vmax.f32 %v5141, %v5142
      %v5144 = vrot.slane %v5143, 4
      %v5145 = vmax.f32 %v5143, %v5144
      %v5146 = vrot.slane %v5145, 2
      %v5147 = vmax.f32 %v5145, %v5146
      %v5148 = vrot.slane %v5147, 1
      %v5149 = vmax.f32 %v5147, %v5148
      %v5150 = vsub.f32 %v4908, %v5112
      %v5151 = vsub.f32 %v4997, %v5149
      %v5152 = vsub.f32 %v4910, %v5112
      %v5153 = vsub.f32 %v4999, %v5149
      %v5154 = vsub.f32 %v4913, %v5112
      %v5155 = vsub.f32 %v5002, %v5149
      %v5156 = vsub.f32 %v4915, %v5112
      %v5157 = vsub.f32 %v5004, %v5149
      %v5158 = vsub.f32 %v4918, %v5112
      %v5159 = vsub.f32 %v5007, %v5149
      %v5160 = vsub.f32 %v4920, %v5112
      %v5161 = vsub.f32 %v5009, %v5149
      %v5162 = vsub.f32 %v4923, %v5112
      %v5163 = vsub.f32 %v5012, %v5149
      %v5164 = vsub.f32 %v4925, %v5112
      %v5165 = vsub.f32 %v5014, %v5149
      %v5166 = vsub.f32 %v4928, %v5112
      %v5167 = vsub.f32 %v5017, %v5149
      %v5168 = vsub.f32 %v4930, %v5112
      %v5169 = vsub.f32 %v5019, %v5149
      %v5170 = vsub.f32 %v4933, %v5112
      %v5171 = vsub.f32 %v5022, %v5149
      %v5172 = vsub.f32 %v4935, %v5112
      %v5173 = vsub.f32 %v5024, %v5149
      %v5174 = vsub.f32 %v4938, %v5112
      %v5175 = vsub.f32 %v5027, %v5149
      %v5176 = vsub.f32 %v4940, %v5112
      %v5177 = vsub.f32 %v5029, %v5149
      %v5178 = vsub.f32 %v4943, %v5112
      %v5179 = vsub.f32 %v5032, %v5149
      %v5180 = vsub.f32 %v4945, %v5112
      %v5181 = vsub.f32 %v5034, %v5149
      %v5182 = vsub.f32 %v4948, %v5112
      %v5183 = vsub.f32 %v5037, %v5149
      %v5184 = vsub.f32 %v4950, %v5112
      %v5185 = vsub.f32 %v5039, %v5149
      %v5186 = vsub.f32 %v4953, %v5112
      %v5187 = vsub.f32 %v5042, %v5149
      %v5188 = vsub.f32 %v4955, %v5112
      %v5189 = vsub.f32 %v5044, %v5149
      %v5190 = vsub.f32 %v4958, %v5112
      %v5191 = vsub.f32 %v5047, %v5149
      %v5192 = vsub.f32 %v4960, %v5112
      %v5193 = vsub.f32 %v5049, %v5149
      %v5194 = vsub.f32 %v4963, %v5112
      %v5195 = vsub.f32 %v5052, %v5149
      %v5196 = vsub.f32 %v4965, %v5112
      %v5197 = vsub.f32 %v5054, %v5149
      %v5198 = vsub.f32 %v4968, %v5112
      %v5199 = vsub.f32 %v5057, %v5149
      %v5200 = vsub.f32 %v4970, %v5112
      %v5201 = vsub.f32 %v5059, %v5149
      %v5202 = vsub.f32 %v4973, %v5112
      %v5203 = vsub.f32 %v5062, %v5149
      %v5204 = vsub.f32 %v4975, %v5112
      %v5205 = vsub.f32 %v5064, %v5149
      %v5206 = vsub.f32 %v4978, %v5112
      %v5207 = vsub.f32 %v5067, %v5149
      %v5208 = vsub.f32 %v4980, %v5112
      %v5209 = vsub.f32 %v5069, %v5149
      %v5210 = vsub.f32 %v4983, %v5112
      %v5211 = vsub.f32 %v5072, %v5149
      %v5212 = vsub.f32 %v4985, %v5112
      %v5213 = vsub.f32 %v5074, %v5149
      %v5214 = vmul.f32 %v5150, 1.442695
      %v5215 = vpow.pop %v5214
      %v5216 = vmul.f32 %v5151, 1.442695
      %v5217 = vpow.pop %v5216
      %v5218 = vmul.f32 %v5152, 1.442695
      %v5219 = vpow.pop %v5218
      %v5220 = vmul.f32 %v5153, 1.442695
      %v5221 = vpow.pop %v5220
      %v5222 = vmul.f32 %v5154, 1.442695
      %v5223 = vpow.pop %v5222
      %v5224 = vmul.f32 %v5155, 1.442695
      %v5225 = vpow.pop %v5224
      %v5226 = vmul.f32 %v5156, 1.442695
      %v5227 = vpow.pop %v5226
      %v5228 = vmul.f32 %v5157, 1.442695
      %v5229 = vpow.pop %v5228
      %v5230 = vmul.f32 %v5158, 1.442695
      %v5231 = vpow.pop %v5230
      %v5232 = vmul.f32 %v5159, 1.442695
      %v5233 = vpow.pop %v5232
      %v5234 = vmul.f32 %v5160, 1.442695
      %v5235 = vpow.pop %v5234
      %v5236 = vmul.f32 %v5161, 1.442695
      %v5237 = vpow.pop %v5236
      %v5238 = vmul.f32 %v5162, 1.442695
      %v5239 = vpow.pop %v5238
      %v5240 = vmul.f32 %v5163, 1.442695
      %v5241 = vpow.pop %v5240
      %v5242 = vmul.f32 %v5164, 1.442695
      %v5243 = vpow.pop %v5242
      %v5244 = vmul.f32 %v5165, 1.442695
      %v5245 = vpow.pop %v5244
      %v5246 = vmul.f32 %v5166, 1.442695
      %v5247 = vpow.pop %v5246
      %v5248 = vmul.f32 %v5167, 1.442695
      %v5249 = vpow.pop %v5248
      %v5250 = vmul.f32 %v5168, 1.442695
      %v5251 = vpow.pop %v5250
      %v5252 = vmul.f32 %v5169, 1.442695
      %v5253 = vpow.pop %v5252
      %v5254 = vmul.f32 %v5170, 1.442695
      %v5255 = vpow.pop %v5254
      %v5256 = vmul.f32 %v5171, 1.442695
      %v5257 = vpow.pop %v5256
      %v5258 = vmul.f32 %v5172, 1.442695
      %v5259 = vpow.pop %v5258
      %v5260 = vmul.f32 %v5173, 1.442695
      %v5261 = vpow.pop %v5260
      %v5262 = vmul.f32 %v5174, 1.442695
      %v5263 = vpow.pop %v5262
      %v5264 = vmul.f32 %v5175, 1.442695
      %v5265 = vpow.pop %v5264
      %v5266 = vmul.f32 %v5176, 1.442695
      %v5267 = vpow.pop %v5266
      %v5268 = vmul.f32 %v5177, 1.442695
      %v5269 = vpow.pop %v5268
      %v5270 = vmul.f32 %v5178, 1.442695
      %v5271 = vpow.pop %v5270
      %v5272 = vmul.f32 %v5179, 1.442695
      %v5273 = vpow.pop %v5272
      %v5274 = vmul.f32 %v5180, 1.442695
      %v5275 = vpow.pop %v5274
      %v5276 = vmul.f32 %v5181, 1.442695
      %v5277 = vpow.pop %v5276
      %v5278 = vmul.f32 %v5182, 1.442695
      %v5279 = vpow.pop %v5278
      %v5280 = vmul.f32 %v5183, 1.442695
      %v5281 = vpow.pop %v5280
      %v5282 = vmul.f32 %v5184, 1.442695
      %v5283 = vpow.pop %v5282
      %v5284 = vmul.f32 %v5185, 1.442695
      %v5285 = vpow.pop %v5284
      %v5286 = vmul.f32 %v5186, 1.442695
      %v5287 = vpow.pop %v5286
      %v5288 = vmul.f32 %v5187, 1.442695
      %v5289 = vpow.pop %v5288
      %v5290 = vmul.f32 %v5188, 1.442695
      %v5291 = vpow.pop %v5290
      %v5292 = vmul.f32 %v5189, 1.442695
      %v5293 = vpow.pop %v5292
      %v5294 = vmul.f32 %v5190, 1.442695
      %v5295 = vpow.pop %v5294
      %v5296 = vmul.f32 %v5191, 1.442695
      %v5297 = vpow.pop %v5296
      %v5298 = vmul.f32 %v5192, 1.442695
      %v5299 = vpow.pop %v5298
      %v5300 = vmul.f32 %v5193, 1.442695
      %v5301 = vpow.pop %v5300
      %v5302 = vmul.f32 %v5194, 1.442695
      %v5303 = vpow.pop %v5302
      %v5304 = vmul.f32 %v5195, 1.442695
      %v5305 = vpow.pop %v5304
      %v5306 = vmul.f32 %v5196, 1.442695
      %v5307 = vpow.pop %v5306
      %v5308 = vmul.f32 %v5197, 1.442695
      %v5309 = vpow.pop %v5308
      %v5310 = vmul.f32 %v5198, 1.442695
      %v5311 = vpow.pop %v5310
      %v5312 = vmul.f32 %v5199, 1.442695
      %v5313 = vpow.pop %v5312
      %v5314 = vmul.f32 %v5200, 1.442695
      %v5315 = vpow.pop %v5314
      %v5316 = vmul.f32 %v5201, 1.442695
      %v5317 = vpow.pop %v5316
      %v5318 = vmul.f32 %v5202, 1.442695
      %v5319 = vpow.pop %v5318
      %v5320 = vmul.f32 %v5203, 1.442695
      %v5321 = vpow.pop %v5320
      %v5322 = vmul.f32 %v5204, 1.442695
      %v5323 = vpow.pop %v5322
      %v5324 = vmul.f32 %v5205, 1.442695
      %v5325 = vpow.pop %v5324
      %v5326 = vmul.f32 %v5206, 1.442695
      %v5327 = vpow.pop %v5326
      %v5328 = vmul.f32 %v5207, 1.442695
      %v5329 = vpow.pop %v5328
      %v5330 = vmul.f32 %v5208, 1.442695
      %v5331 = vpow.pop %v5330
      %v5332 = vmul.f32 %v5209, 1.442695
      %v5333 = vpow.pop %v5332
      %v5334 = vmul.f32 %v5210, 1.442695
      %v5335 = vpow.pop %v5334
      %v5336 = vmul.f32 %v5211, 1.442695
      %v5337 = vpow.pop %v5336
      %v5338 = vmul.f32 %v5212, 1.442695
      %v5339 = vpow.pop %v5338
      %v5340 = vmul.f32 %v5213, 1.442695
      %v5341 = vpow.pop %v5340
      %v5342 = vadd.f32 %v5215, %v5219
      %v5343 = vadd.f32 %v5342, %v5223
      %v5344 = vadd.f32 %v5343, %v5227
      %v5345 = vadd.f32 %v5344, %v5231
      %v5346 = vadd.f32 %v5345, %v5235
      %v5347 = vadd.f32 %v5346, %v5239
      %v5348 = vadd.f32 %v5347, %v5243
      %v5349 = vadd.f32 %v5348, %v5247
      %v5350 = vadd.f32 %v5349, %v5251
      %v5351 = vadd.f32 %v5350, %v5255
      %v5352 = vadd.f32 %v5351, %v5259
      %v5353 = vadd.f32 %v5352, %v5263
      %v5354 = vadd.f32 %v5353, %v5267
      %v5355 = vadd.f32 %v5354, %v5271
      %v5356 = vadd.f32 %v5355, %v5275
      %v5357 = vadd.f32 %v5356, %v5279
      %v5358 = vadd.f32 %v5357, %v5283
      %v5359 = vadd.f32 %v5358, %v5287
      %v5360 = vadd.f32 %v5359, %v5291
      %v5361 = vadd.f32 %v5360, %v5295
      %v5362 = vadd.f32 %v5361, %v5299
      %v5363 = vadd.f32 %v5362, %v5303
      %v5364 = vadd.f32 %v5363, %v5307
      %v5365 = vadd.f32 %v5364, %v5311
      %v5366 = vadd.f32 %v5365, %v5315
      %v5367 = vadd.f32 %v5366, %v5319
      %v5368 = vadd.f32 %v5367, %v5323
      %v5369 = vadd.f32 %v5368, %v5327
      %v5370 = vadd.f32 %v5369, %v5331
      %v5371 = vadd.f32 %v5370, %v5335
      %v5372 = vadd.f32 %v5371, %v5339
      %v5373 = vrot.slane %v5372, 4
      %v5374 = vadd.f32 %v5372, %v5373
      %v5375 = vrot.slane %v5374, 2
      %v5376 = vadd.f32 %v5374, %v5375
      %v5377 = vrot.slane %v5376, 1
      %v5378 = vadd.f32 %v5376, %v5377
      %v5379 = vadd.f32 %v5217, %v5221
      %v5380 = vadd.f32 %v5379, %v5225
      %v5381 = vadd.f32 %v5380, %v5229
      %v5382 = vadd.f32 %v5381, %v5233
      %v5383 = vadd.f32 %v5382, %v5237
      %v5384 = vadd.f32 %v5383, %v5241
      %v5385 = vadd.f32 %v5384, %v5245
      %v5386 = vadd.f32 %v5385, %v5249
      %v5387 = vadd.f32 %v5386, %v5253
      %v5388 = vadd.f32 %v5387, %v5257
      %v5389 = vadd.f32 %v5388, %v5261
      %v5390 = vadd.f32 %v5389, %v5265
      %v5391 = vadd.f32 %v5390, %v5269
      %v5392 = vadd.f32 %v5391, %v5273
      %v5393 = vadd.f32 %v5392, %v5277
      %v5394 = vadd.f32 %v5393, %v5281
      %v5395 = vadd.f32 %v5394, %v5285
      %v5396 = vadd.f32 %v5395, %v5289
      %v5397 = vadd.f32 %v5396, %v5293
      %v5398 = vadd.f32 %v5397, %v5297
      %v5399 = vadd.f32 %v5398, %v5301
      %v5400 = vadd.f32 %v5399, %v5305
      %v5401 = vadd.f32 %v5400, %v5309
      %v5402 = vadd.f32 %v5401, %v5313
      %v5403 = vadd.f32 %v5402, %v5317
      %v5404 = vadd.f32 %v5403, %v5321
      %v5405 = vadd.f32 %v5404, %v5325
      %v5406 = vadd.f32 %v5405, %v5329
      %v5407 = vadd.f32 %v5406, %v5333
      %v5408 = vadd.f32 %v5407, %v5337
      %v5409 = vadd.f32 %v5408, %v5341
      %v5410 = vrot.slane %v5409, 4
      %v5411 = vadd.f32 %v5409, %v5410
      %v5412 = vrot.slane %v5411, 2
      %v5413 = vadd.f32 %v5411, %v5412
      %v5414 = vrot.slane %v5413, 1
      %v5415 = vadd.f32 %v5413, %v5414
      %v5416 = vrcp.pop %v5378
      %v5417 = vrcp.pop %v5415
      %v5418 = vmul.f32 %v5215, %v5416
      %v5419 = vmul.f32 %v5217, %v5417
      %v5420 = vmul.f32 %v5219, %v5416
      %v5421 = vmul.f32 %v5221, %v5417
      %v5422 = vmul.f32 %v5223, %v5416
      %v5423 = vmul.f32 %v5225, %v5417
      %v5424 = vmul.f32 %v5227, %v5416
      %v5425 = vmul.f32 %v5229, %v5417
      %v5426 = vmul.f32 %v5231, %v5416
      %v5427 = vmul.f32 %v5233, %v5417
      %v5428 = vmul.f32 %v5235, %v5416
      %v5429 = vmul.f32 %v5237, %v5417
      %v5430 = vmul.f32 %v5239, %v5416
      %v5431 = vmul.f32 %v5241, %v5417
      %v5432 = vmul.f32 %v5243, %v5416
      %v5433 = vmul.f32 %v5245, %v5417
      %v5434 = vmul.f32 %v5247, %v5416
      %v5435 = vmul.f32 %v5249, %v5417
      %v5436 = vmul.f32 %v5251, %v5416
      %v5437 = vmul.f32 %v5253, %v5417
      %v5438 = vmul.f32 %v5255, %v5416
      %v5439 = vmul.f32 %v5257, %v5417
      %v5440 = vmul.f32 %v5259, %v5416
      %v5441 = vmul.f32 %v5261, %v5417
      %v5442 = vmul.f32 %v5263, %v5416
      %v5443 = vmul.f32 %v5265, %v5417
      %v5444 = vmul.f32 %v5267, %v5416
      %v5445 = vmul.f32 %v5269, %v5417
      %v5446 = vmul.f32 %v5271, %v5416
      %v5447 = vmul.f32 %v5273, %v5417
      %v5448 = vmul.f32 %v5275, %v5416
      %v5449 = vmul.f32 %v5277, %v5417
      %v5450 = vmul.f32 %v5279, %v5416
      %v5451 = vmul.f32 %v5281, %v5417
      %v5452 = vmul.f32 %v5283, %v5416
      %v5453 = vmul.f32 %v5285, %v5417
      %v5454 = vmul.f32 %v5287, %v5416
      %v5455 = vmul.f32 %v5289, %v5417
      %v5456 = vmul.f32 %v5291, %v5416
      %v5457 = vmul.f32 %v5293, %v5417
      %v5458 = vmul.f32 %v5295, %v5416
      %v5459 = vmul.f32 %v5297, %v5417
      %v5460 = vmul.f32 %v5299, %v5416
      %v5461 = vmul.f32 %v5301, %v5417
      %v5462 = vmul.f32 %v5303, %v5416
      %v5463 = vmul.f32 %v5305, %v5417
      %v5464 = vmul.f32 %v5307, %v5416
      %v5465 = vmul.f32 %v5309, %v5417
      %v5466 = vmul.f32 %v5311, %v5416
      %v5467 = vmul.f32 %v5313, %v5417
      %v5468 = vmul.f32 %v5315, %v5416
      %v5469 = vmul.f32 %v5317, %v5417
      %v5470 = vmul.f32 %v5319, %v5416
      %v5471 = vmul.f32 %v5321, %v5417
      %v5472 = vmul.f32 %v5323, %v5416
      %v5473 = vmul.f32 %v5325, %v5417
      %v5474 = vmul.f32 %v5327, %v5416
      %v5475 = vmul.f32 %v5329, %v5417
      %v5476 = vmul.f32 %v5331, %v5416
      %v5477 = vmul.f32 %v5333, %v5417
      %v5478 = vmul.f32 %v5335, %v5416
      %v5479 = vmul.f32 %v5337, %v5417
      %v5480 = vmul.f32 %v5339, %v5416
      %v5481 = vmul.f32 %v5341, %v5417
      %v5482 = vpack.c.bf16 %v5420, %v5418
      %v5483 = vpack.c.bf16 %v5421, %v5419
      %v5484 = vpack.c.bf16 %v5424, %v5422
      %v5485 = vpack.c.bf16 %v5425, %v5423
      %v5486 = vpack.c.bf16 %v5428, %v5426
      %v5487 = vpack.c.bf16 %v5429, %v5427
      %v5488 = vpack.c.bf16 %v5432, %v5430
      %v5489 = vpack.c.bf16 %v5433, %v5431
      %v5490 = vpack.c.bf16 %v5436, %v5434
      %v5491 = vpack.c.bf16 %v5437, %v5435
      %v5492 = vpack.c.bf16 %v5440, %v5438
      %v5493 = vpack.c.bf16 %v5441, %v5439
      %v5494 = vpack.c.bf16 %v5444, %v5442
      %v5495 = vpack.c.bf16 %v5445, %v5443
      %v5496 = vpack.c.bf16 %v5448, %v5446
      %v5497 = vpack.c.bf16 %v5449, %v5447
      %v5498 = vpack.c.bf16 %v5452, %v5450
      %v5499 = vpack.c.bf16 %v5453, %v5451
      %v5500 = vpack.c.bf16 %v5456, %v5454
      %v5501 = vpack.c.bf16 %v5457, %v5455
      %v5502 = vpack.c.bf16 %v5460, %v5458
      %v5503 = vpack.c.bf16 %v5461, %v5459
      %v5504 = vpack.c.bf16 %v5464, %v5462
      %v5505 = vpack.c.bf16 %v5465, %v5463
      %v5506 = vpack.c.bf16 %v5468, %v5466
      %v5507 = vpack.c.bf16 %v5469, %v5467
      %v5508 = vpack.c.bf16 %v5472, %v5470
      %v5509 = vpack.c.bf16 %v5473, %v5471
      %v5510 = vpack.c.bf16 %v5476, %v5474
      %v5511 = vpack.c.bf16 %v5477, %v5475
      %v5512 = vpack.c.bf16 %v5480, %v5478
      %v5513 = vpack.c.bf16 %v5481, %v5479
      %5514 = vxpose.binary.xlu0.c.b16.start [1/16] %v5483, %v5482, 128
      %5515 = vxpose.binary.xlu0.c.b16.cont [2/16] %v5485, %v5484, 128
      %5516 = vxpose.binary.xlu0.c.b16.cont [3/16] %v5487, %v5486, 128
      %5517 = vxpose.binary.xlu0.c.b16.cont [4/16] %v5489, %v5488, 128
      %5518 = vxpose.binary.xlu0.c.b16.cont [5/16] %v5491, %v5490, 128
      %5519 = vxpose.binary.xlu0.c.b16.cont [6/16] %v5493, %v5492, 128
      %5520 = vxpose.binary.xlu0.c.b16.cont [7/16] %v5495, %v5494, 128
      %5521 = vxpose.binary.xlu0.c.b16.end [8/16] %v5497, %v5496, 128
      %v5522 = vpop.trf.xlu0
      %v5523 = vpop.trf.xlu0
      %v5524 = vpop.trf.xlu0
      %v5525 = vpop.trf.xlu0
      %v5526 = vpop.trf.xlu0
      %v5527 = vpop.trf.xlu0
      %v5528 = vpop.trf.xlu0
      %v5529 = vpop.trf.xlu0
      %v5530 = vpop.trf.xlu0
      %v5531 = vpop.trf.xlu0
      %v5532 = vpop.trf.xlu0
      %v5533 = vpop.trf.xlu0
      %v5534 = vpop.trf.xlu0
      %v5535 = vpop.trf.xlu0
      %v5536 = vpop.trf.xlu0
      %v5537 = vpop.trf.xlu0
      %5538 = vxpose.binary.xlu0.c.b16.start [1/16] %v5499, %v5498, 128
      %5539 = vxpose.binary.xlu0.c.b16.cont [2/16] %v5501, %v5500, 128
      %5540 = vxpose.binary.xlu0.c.b16.cont [3/16] %v5503, %v5502, 128
      %5541 = vxpose.binary.xlu0.c.b16.cont [4/16] %v5505, %v5504, 128
      %5542 = vxpose.binary.xlu0.c.b16.cont [5/16] %v5507, %v5506, 128
      %5543 = vxpose.binary.xlu0.c.b16.cont [6/16] %v5509, %v5508, 128
      %5544 = vxpose.binary.xlu0.c.b16.cont [7/16] %v5511, %v5510, 128
      %5545 = vxpose.binary.xlu0.c.b16.end [8/16] %v5513, %v5512, 128
      %v5546 = vpop.trf.xlu0
      %v5547 = vpop.trf.xlu0
      %v5548 = vpop.trf.xlu0
      %v5549 = vpop.trf.xlu0
      %v5550 = vpop.trf.xlu0
      %v5551 = vpop.trf.xlu0
      %v5552 = vpop.trf.xlu0
      %v5553 = vpop.trf.xlu0
      %v5554 = vpop.trf.xlu0
      %v5555 = vpop.trf.xlu0
      %v5556 = vpop.trf.xlu0
      %v5557 = vpop.trf.xlu0
      %v5558 = vpop.trf.xlu0
      %v5559 = vpop.trf.xlu0
      %v5560 = vpop.trf.xlu0
      %v5561 = vpop.trf.xlu0
      %5562 = vrot.lane.b32.xlu0 %v4738, 64
      %v5563 = vpop.permute.xlu0 %5562
      %5564 = vrot.lane.b32.xlu0 %v4739, 64
      %v5565 = vpop.permute.xlu0 %5564
      %5566 = vrot.lane.b32.xlu0 %v4740, 64
      %v5567 = vpop.permute.xlu0 %5566
      %5568 = vrot.lane.b32.xlu0 %v4741, 64
      %v5569 = vpop.permute.xlu0 %5568
      %5570 = vrot.lane.b32.xlu0 %v4742, 64
      %v5571 = vpop.permute.xlu0 %5570
      %5572 = vrot.lane.b32.xlu0 %v4743, 64
      %v5573 = vpop.permute.xlu0 %5572
      %5574 = vrot.lane.b32.xlu0 %v4744, 64
      %v5575 = vpop.permute.xlu0 %5574
      %5576 = vrot.lane.b32.xlu0 %v4745, 64
      %v5577 = vpop.permute.xlu0 %5576
      %5578 = vrot.lane.b32.xlu0 %v4746, 64
      %v5579 = vpop.permute.xlu0 %5578
      %5580 = vrot.lane.b32.xlu0 %v4747, 64
      %v5581 = vpop.permute.xlu0 %5580
      %5582 = vrot.lane.b32.xlu0 %v4748, 64
      %v5583 = vpop.permute.xlu0 %5582
      %5584 = vrot.lane.b32.xlu0 %v4749, 64
      %v5585 = vpop.permute.xlu0 %5584
      %5586 = vrot.lane.b32.xlu0 %v4750, 64
      %v5587 = vpop.permute.xlu0 %5586
      %5588 = vrot.lane.b32.xlu0 %v4751, 64
      %v5589 = vpop.permute.xlu0 %5588
      %5590 = vrot.lane.b32.xlu0 %v4752, 64
      %v5591 = vpop.permute.xlu0 %5590
      %5592 = vrot.lane.b32.xlu0 %v4753, 64
      %v5593 = vpop.permute.xlu0 %5592
      %5610 = vmatpush.bf16.msra.mxu0 %v5577
      %5611 = vmatpush.bf16.msra.mxu0 %v5575
      %5612 = vmatpush.bf16.msra.mxu0 %v5573
      %5613 = vmatpush.bf16.msra.mxu0 %v5571
      %5614 = vmatpush.bf16.msra.mxu0 %v5569
      %5615 = vmatpush.bf16.msra.mxu0 %v5567
      %5616 = vmatpush.bf16.msra.mxu0 %v5565
      %5617 = vmatpush.bf16.msra.mxu0 %v5563
      %5618 = vmatmul.bf16.gmra.mxu0 %v5522
      %v5619 = vpop.f32.mrf.mxu0
      %v5620 = vadd.f32 0.0, %v5619
      %v5621 = vpop.f32.mrf.mxu0
      %v5622 = vadd.f32 0.0, %v5621
      %5623 = vmatmul.bf16.gmra.mxu0 %v5524
      %v5624 = vpop.f32.mrf.mxu0
      %v5625 = vadd.f32 0.0, %v5624
      %v5626 = vpop.f32.mrf.mxu0
      %v5627 = vadd.f32 0.0, %v5626
      %5628 = vmatmul.bf16.gmra.mxu0 %v5526
      %v5629 = vpop.f32.mrf.mxu0
      %v5630 = vadd.f32 0.0, %v5629
      %v5631 = vpop.f32.mrf.mxu0
      %v5632 = vadd.f32 0.0, %v5631
      %5633 = vmatmul.bf16.gmra.mxu0 %v5528
      %v5634 = vpop.f32.mrf.mxu0
      %v5635 = vadd.f32 0.0, %v5634
      %v5636 = vpop.f32.mrf.mxu0
      %v5637 = vadd.f32 0.0, %v5636
      %5638 = vmatmul.bf16.gmra.mxu0 %v5530
      %v5639 = vpop.f32.mrf.mxu0
      %v5640 = vadd.f32 0.0, %v5639
      %v5641 = vpop.f32.mrf.mxu0
      %v5642 = vadd.f32 0.0, %v5641
      %5643 = vmatmul.bf16.gmra.mxu0 %v5532
      %v5644 = vpop.f32.mrf.mxu0
      %v5645 = vadd.f32 0.0, %v5644
      %v5646 = vpop.f32.mrf.mxu0
      %v5647 = vadd.f32 0.0, %v5646
      %5648 = vmatmul.bf16.gmra.mxu0 %v5534
      %v5649 = vpop.f32.mrf.mxu0
      %v5650 = vadd.f32 0.0, %v5649
      %v5651 = vpop.f32.mrf.mxu0
      %v5652 = vadd.f32 0.0, %v5651
      %5653 = vmatmul.bf16.gmra.mxu0 %v5536
      %v5654 = vpop.f32.mrf.mxu0
      %v5655 = vadd.f32 0.0, %v5654
      %v5656 = vpop.f32.mrf.mxu0
      %v5657 = vadd.f32 0.0, %v5656
      %5658 = vmatmul.bf16.gmra.mxu0 %v5523
      %v5659 = vpop.f32.mrf.mxu0
      %v5660 = vadd.f32 0.0, %v5659
      %v5661 = vpop.f32.mrf.mxu0
      %v5662 = vadd.f32 0.0, %v5661
      %5663 = vmatmul.bf16.gmra.mxu0 %v5525
      %v5664 = vpop.f32.mrf.mxu0
      %v5665 = vadd.f32 0.0, %v5664
      %v5666 = vpop.f32.mrf.mxu0
      %v5667 = vadd.f32 0.0, %v5666
      %5668 = vmatmul.bf16.gmra.mxu0 %v5527
      %v5669 = vpop.f32.mrf.mxu0
      %v5670 = vadd.f32 0.0, %v5669
      %v5671 = vpop.f32.mrf.mxu0
      %v5672 = vadd.f32 0.0, %v5671
      %5673 = vmatmul.bf16.gmra.mxu0 %v5529
      %v5674 = vpop.f32.mrf.mxu0
      %v5675 = vadd.f32 0.0, %v5674
      %v5676 = vpop.f32.mrf.mxu0
      %v5677 = vadd.f32 0.0, %v5676
      %5678 = vmatmul.bf16.gmra.mxu0 %v5531
      %v5679 = vpop.f32.mrf.mxu0
      %v5680 = vadd.f32 0.0, %v5679
      %v5681 = vpop.f32.mrf.mxu0
      %v5682 = vadd.f32 0.0, %v5681
      %5683 = vmatmul.bf16.gmra.mxu0 %v5533
      %v5684 = vpop.f32.mrf.mxu0
      %v5685 = vadd.f32 0.0, %v5684
      %v5686 = vpop.f32.mrf.mxu0
      %v5687 = vadd.f32 0.0, %v5686
      %5688 = vmatmul.bf16.gmra.mxu0 %v5535
      %v5689 = vpop.f32.mrf.mxu0
      %v5690 = vadd.f32 0.0, %v5689
      %v5691 = vpop.f32.mrf.mxu0
      %v5692 = vadd.f32 0.0, %v5691
      %5693 = vmatmul.bf16.gmra.mxu0 %v5537
      %v5694 = vpop.f32.mrf.mxu0
      %v5695 = vadd.f32 0.0, %v5694
      %v5696 = vpop.f32.mrf.mxu0
      %v5697 = vadd.f32 0.0, %v5696
      %5698 = vdwg.mxu0
      %5699 = vmatpush.bf16.msra.mxu0 %v5593
      %5700 = vmatpush.bf16.msra.mxu0 %v5591
      %5701 = vmatpush.bf16.msra.mxu0 %v5589
      %5702 = vmatpush.bf16.msra.mxu0 %v5587
      %5703 = vmatpush.bf16.msra.mxu0 %v5585
      %5704 = vmatpush.bf16.msra.mxu0 %v5583
      %5705 = vmatpush.bf16.msra.mxu0 %v5581
      %5706 = vmatpush.bf16.msra.mxu0 %v5579
      %5707 = vmatmul.bf16.gmra.mxu0 %v5546
      %v5708 = vpop.f32.mrf.mxu0
      %v5709 = vadd.f32 %v5620, %v5708
      %v5710 = vpop.f32.mrf.mxu0
      %v5711 = vadd.f32 %v5622, %v5710
      %5712 = vmatmul.bf16.gmra.mxu0 %v5548
      %v5713 = vpop.f32.mrf.mxu0
      %v5714 = vadd.f32 %v5625, %v5713
      %v5715 = vpop.f32.mrf.mxu0
      %v5716 = vadd.f32 %v5627, %v5715
      %5717 = vmatmul.bf16.gmra.mxu0 %v5550
      %v5718 = vpop.f32.mrf.mxu0
      %v5719 = vadd.f32 %v5630, %v5718
      %v5720 = vpop.f32.mrf.mxu0
      %v5721 = vadd.f32 %v5632, %v5720
      %5722 = vmatmul.bf16.gmra.mxu0 %v5552
      %v5723 = vpop.f32.mrf.mxu0
      %v5724 = vadd.f32 %v5635, %v5723
      %v5725 = vpop.f32.mrf.mxu0
      %v5726 = vadd.f32 %v5637, %v5725
      %5727 = vmatmul.bf16.gmra.mxu0 %v5554
      %v5728 = vpop.f32.mrf.mxu0
      %v5729 = vadd.f32 %v5640, %v5728
      %v5730 = vpop.f32.mrf.mxu0
      %v5731 = vadd.f32 %v5642, %v5730
      %5732 = vmatmul.bf16.gmra.mxu0 %v5556
      %v5733 = vpop.f32.mrf.mxu0
      %v5734 = vadd.f32 %v5645, %v5733
      %v5735 = vpop.f32.mrf.mxu0
      %v5736 = vadd.f32 %v5647, %v5735
      %5737 = vmatmul.bf16.gmra.mxu0 %v5558
      %v5738 = vpop.f32.mrf.mxu0
      %v5739 = vadd.f32 %v5650, %v5738
      %v5740 = vpop.f32.mrf.mxu0
      %v5741 = vadd.f32 %v5652, %v5740
      %5742 = vmatmul.bf16.gmra.mxu0 %v5560
      %v5743 = vpop.f32.mrf.mxu0
      %v5744 = vadd.f32 %v5655, %v5743
      %v5745 = vpop.f32.mrf.mxu0
      %v5746 = vadd.f32 %v5657, %v5745
      %5747 = vmatmul.bf16.gmra.mxu0 %v5547
      %v5748 = vpop.f32.mrf.mxu0
      %v5749 = vadd.f32 %v5660, %v5748
      %v5750 = vpop.f32.mrf.mxu0
      %v5751 = vadd.f32 %v5662, %v5750
      %5752 = vmatmul.bf16.gmra.mxu0 %v5549
      %v5753 = vpop.f32.mrf.mxu0
      %v5754 = vadd.f32 %v5665, %v5753
      %v5755 = vpop.f32.mrf.mxu0
      %v5756 = vadd.f32 %v5667, %v5755
      %5757 = vmatmul.bf16.gmra.mxu0 %v5551
      %v5758 = vpop.f32.mrf.mxu0
      %v5759 = vadd.f32 %v5670, %v5758
      %v5760 = vpop.f32.mrf.mxu0
      %v5761 = vadd.f32 %v5672, %v5760
      %5762 = vmatmul.bf16.gmra.mxu0 %v5553
      %v5763 = vpop.f32.mrf.mxu0
      %v5764 = vadd.f32 %v5675, %v5763
      %v5765 = vpop.f32.mrf.mxu0
      %v5766 = vadd.f32 %v5677, %v5765
      %5767 = vmatmul.bf16.gmra.mxu0 %v5555
      %v5768 = vpop.f32.mrf.mxu0
      %v5769 = vadd.f32 %v5680, %v5768
      %v5770 = vpop.f32.mrf.mxu0
      %v5771 = vadd.f32 %v5682, %v5770
      %5772 = vmatmul.bf16.gmra.mxu0 %v5557
      %v5773 = vpop.f32.mrf.mxu0
      %v5774 = vadd.f32 %v5685, %v5773
      %v5775 = vpop.f32.mrf.mxu0
      %v5776 = vadd.f32 %v5687, %v5775
      %5777 = vmatmul.bf16.gmra.mxu0 %v5559
      %v5778 = vpop.f32.mrf.mxu0
      %v5779 = vadd.f32 %v5690, %v5778
      %v5780 = vpop.f32.mrf.mxu0
      %v5781 = vadd.f32 %v5692, %v5780
      %5782 = vmatmul.bf16.gmra.mxu0 %v5561
      %v5783 = vpop.f32.mrf.mxu0
      %v5784 = vadd.f32 %v5695, %v5783
      %v5785 = vpop.f32.mrf.mxu0
      %v5786 = vadd.f32 %v5697, %v5785
      %5787 = vdwg.mxu0
      %v5788 = vpack.c.bf16 %v5711, %v5709
      %v5789 = vpack.c.bf16 %v5716, %v5714
      %v5790 = vpack.c.bf16 %v5721, %v5719
      %v5791 = vpack.c.bf16 %v5726, %v5724
      %v5792 = vpack.c.bf16 %v5731, %v5729
      %v5793 = vpack.c.bf16 %v5736, %v5734
      %v5794 = vpack.c.bf16 %v5741, %v5739
      %v5795 = vpack.c.bf16 %v5746, %v5744
      %v5796 = vpack.c.bf16 %v5751, %v5749
      %v5797 = vpack.c.bf16 %v5756, %v5754
      %v5798 = vpack.c.bf16 %v5761, %v5759
      %v5799 = vpack.c.bf16 %v5766, %v5764
      %v5800 = vpack.c.bf16 %v5771, %v5769
      %v5801 = vpack.c.bf16 %v5776, %v5774
      %v5802 = vpack.c.bf16 %v5781, %v5779
      %v5803 = vpack.c.bf16 %v5786, %v5784
      %s5804 = scalar_lea.vmem %s7, 16
      %v5805 = vld [vmem:[%s5804] sm:$0xf]
      %v5806 = vld [vmem:[%s5804 + $0x4] sm:$0xf]
      %v5807 = vld [vmem:[%s5804 + $0x8] sm:$0xf]
      %v5808 = vld [vmem:[%s5804 + $0xc] sm:$0xf]
      %s5809 = scalar_lea.vmem %s8, 1
      %v5810 = vld [vmem:[%s5809] sm:$0x1]
      %v5812 = vperm.slane %v5810, 0
      %v5818 = vunpack.c.l.b16 %v5805
      %v5819 = vunpack.c.l.b16 %v5806
      %v5820 = vunpack.c.l.b16 %v5807
      %v5821 = vunpack.c.l.b16 %v5808
      %v5822 = vpack.c.b16 %v5819, %v5818
      %v5823 = vpack.c.b16 %v5821, %v5820
      %v5827 = vsel %vm1194, %v5788, 0
      %v5830 = vsel %vm1194, %v5789, 0
      %v5833 = vsel %vm1194, %v5790, 0
      %v5836 = vsel %vm1194, %v5791, 0
      %v5839 = vsel %vm1194, %v5792, 0
      %v5842 = vsel %vm1194, %v5793, 0
      %v5845 = vsel %vm1194, %v5794, 0
      %v5848 = vsel %vm1194, %v5795, 0
      %v5851 = vsel %vm1194, %v5796, 0
      %v5854 = vsel %vm1194, %v5797, 0
      %v5857 = vsel %vm1194, %v5798, 0
      %v5860 = vsel %vm1194, %v5799, 0
      %v5863 = vsel %vm1194, %v5800, 0
      %v5866 = vsel %vm1194, %v5801, 0
      %v5869 = vsel %vm1194, %v5802, 0
      %v5872 = vsel %vm1194, %v5803, 0
      %5874 = vmatpush.bf16.msra.mxu0 0
      %5875 = vmatpush.bf16.msra.mxu0 0
      %5876 = vmatpush.bf16.msra.mxu0 0
      %5877 = vmatpush.bf16.msra.mxu0 0
      %5878 = vmatpush.bf16.msra.mxu0 0
      %5879 = vmatpush.bf16.msra.mxu0 0
      %5880 = vmatpush.bf16.msra.mxu0 %v5823
      %5881 = vmatpush.bf16.msra.mxu0 %v5822
      %5882 = vmatmul.bf16.gmra.mxu0 %v5827
      %v5883 = vpop.f32.mrf.mxu0
      %v5884 = vadd.f32 %v5812, %v5883
      %v5885 = vpop.f32.mrf.mxu0
      %v5886 = vadd.f32 %v5812, %v5885
      %5887 = vmatmul.bf16.gmra.mxu0 %v5830
      %v5888 = vpop.f32.mrf.mxu0
      %v5889 = vadd.f32 %v5812, %v5888
      %v5890 = vpop.f32.mrf.mxu0
      %v5891 = vadd.f32 %v5812, %v5890
      %5892 = vmatmul.bf16.gmra.mxu0 %v5833
      %v5893 = vpop.f32.mrf.mxu0
      %v5894 = vadd.f32 %v5812, %v5893
      %v5895 = vpop.f32.mrf.mxu0
      %v5896 = vadd.f32 %v5812, %v5895
      %5897 = vmatmul.bf16.gmra.mxu0 %v5836
      %v5898 = vpop.f32.mrf.mxu0
      %v5899 = vadd.f32 %v5812, %v5898
      %v5900 = vpop.f32.mrf.mxu0
      %v5901 = vadd.f32 %v5812, %v5900
      %5902 = vmatmul.bf16.gmra.mxu0 %v5839
      %v5903 = vpop.f32.mrf.mxu0
      %v5904 = vadd.f32 %v5812, %v5903
      %v5905 = vpop.f32.mrf.mxu0
      %v5906 = vadd.f32 %v5812, %v5905
      %5907 = vmatmul.bf16.gmra.mxu0 %v5842
      %v5908 = vpop.f32.mrf.mxu0
      %v5909 = vadd.f32 %v5812, %v5908
      %v5910 = vpop.f32.mrf.mxu0
      %v5911 = vadd.f32 %v5812, %v5910
      %5912 = vmatmul.bf16.gmra.mxu0 %v5845
      %v5913 = vpop.f32.mrf.mxu0
      %v5914 = vadd.f32 %v5812, %v5913
      %v5915 = vpop.f32.mrf.mxu0
      %v5916 = vadd.f32 %v5812, %v5915
      %5917 = vmatmul.bf16.gmra.mxu0 %v5848
      %v5918 = vpop.f32.mrf.mxu0
      %v5919 = vadd.f32 %v5812, %v5918
      %v5920 = vpop.f32.mrf.mxu0
      %v5921 = vadd.f32 %v5812, %v5920
      %5922 = vmatmul.bf16.gmra.mxu0 %v5851
      %v5923 = vpop.f32.mrf.mxu0
      %v5924 = vadd.f32 %v5812, %v5923
      %v5925 = vpop.f32.mrf.mxu0
      %v5926 = vadd.f32 %v5812, %v5925
      %5927 = vmatmul.bf16.gmra.mxu0 %v5854
      %v5928 = vpop.f32.mrf.mxu0
      %v5929 = vadd.f32 %v5812, %v5928
      %v5930 = vpop.f32.mrf.mxu0
      %v5931 = vadd.f32 %v5812, %v5930
      %5932 = vmatmul.bf16.gmra.mxu0 %v5857
      %v5933 = vpop.f32.mrf.mxu0
      %v5934 = vadd.f32 %v5812, %v5933
      %v5935 = vpop.f32.mrf.mxu0
      %v5936 = vadd.f32 %v5812, %v5935
      %5937 = vmatmul.bf16.gmra.mxu0 %v5860
      %v5938 = vpop.f32.mrf.mxu0
      %v5939 = vadd.f32 %v5812, %v5938
      %v5940 = vpop.f32.mrf.mxu0
      %v5941 = vadd.f32 %v5812, %v5940
      %5942 = vmatmul.bf16.gmra.mxu0 %v5863
      %v5943 = vpop.f32.mrf.mxu0
      %v5944 = vadd.f32 %v5812, %v5943
      %v5945 = vpop.f32.mrf.mxu0
      %v5946 = vadd.f32 %v5812, %v5945
      %5947 = vmatmul.bf16.gmra.mxu0 %v5866
      %v5948 = vpop.f32.mrf.mxu0
      %v5949 = vadd.f32 %v5812, %v5948
      %v5950 = vpop.f32.mrf.mxu0
      %v5951 = vadd.f32 %v5812, %v5950
      %5952 = vmatmul.bf16.gmra.mxu0 %v5869
      %v5953 = vpop.f32.mrf.mxu0
      %v5954 = vadd.f32 %v5812, %v5953
      %v5955 = vpop.f32.mrf.mxu0
      %v5956 = vadd.f32 %v5812, %v5955
      %5957 = vmatmul.bf16.gmra.mxu0 %v5872
      %v5958 = vpop.f32.mrf.mxu0
      %v5959 = vadd.f32 %v5812, %v5958
      %v5960 = vpop.f32.mrf.mxu0
      %v5961 = vadd.f32 %v5812, %v5960
      %5962 = vdwg.mxu0
      %v5963 = vadd.f32 %v4529, %v5884
      %v5964 = vadd.f32 %v4530, %v5886
      %v5965 = vadd.f32 %v4531, %v5889
      %v5966 = vadd.f32 %v4532, %v5891
      %v5967 = vadd.f32 %v4533, %v5894
      %v5968 = vadd.f32 %v4534, %v5896
      %v5969 = vadd.f32 %v4535, %v5899
      %v5970 = vadd.f32 %v4536, %v5901
      %v5971 = vadd.f32 %v4537, %v5904
      %v5972 = vadd.f32 %v4538, %v5906
      %v5973 = vadd.f32 %v4539, %v5909
      %v5974 = vadd.f32 %v4540, %v5911
      %v5975 = vadd.f32 %v4541, %v5914
      %v5976 = vadd.f32 %v4542, %v5916
      %v5977 = vadd.f32 %v4543, %v5919
      %v5978 = vadd.f32 %v4544, %v5921
      %v5979 = vadd.f32 %v4545, %v5924
      %v5980 = vadd.f32 %v4546, %v5926
      %v5981 = vadd.f32 %v4547, %v5929
      %v5982 = vadd.f32 %v4548, %v5931
      %v5983 = vadd.f32 %v4549, %v5934
      %v5984 = vadd.f32 %v4550, %v5936
      %v5985 = vadd.f32 %v4551, %v5939
      %v5986 = vadd.f32 %v4552, %v5941
      %v5987 = vadd.f32 %v4553, %v5944
      %v5988 = vadd.f32 %v4554, %v5946
      %v5989 = vadd.f32 %v4555, %v5949
      %v5990 = vadd.f32 %v4556, %v5951
      %v5991 = vadd.f32 %v4557, %v5954
      %v5992 = vadd.f32 %v4558, %v5956
      %v5993 = vadd.f32 %v4559, %v5959
      %v5994 = vadd.f32 %v4560, %v5961
      %v5995 = vsel %vm1194, %v5963, 0.0
      %5996 = vadd.xlane.f32.xlu0 %v5995
      %v5997 = vpop.xlane.xlu0 %5996
      %v5998 = vsel %vm1194, %v5964, 0.0
      %5999 = vadd.xlane.f32.xlu0 %v5998
      %v6000 = vpop.xlane.xlu0 %5999
      %v6001 = vsel %vm1194, %v5965, 0.0
      %6002 = vadd.xlane.f32.xlu0 %v6001
      %v6003 = vpop.xlane.xlu0 %6002
      %v6004 = vsel %vm1194, %v5966, 0.0
      %6005 = vadd.xlane.f32.xlu0 %v6004
      %v6006 = vpop.xlane.xlu0 %6005
      %v6007 = vsel %vm1194, %v5967, 0.0
      %6008 = vadd.xlane.f32.xlu0 %v6007
      %v6009 = vpop.xlane.xlu0 %6008
      %v6010 = vsel %vm1194, %v5968, 0.0
      %6011 = vadd.xlane.f32.xlu0 %v6010
      %v6012 = vpop.xlane.xlu0 %6011
      %v6013 = vsel %vm1194, %v5969, 0.0
      %6014 = vadd.xlane.f32.xlu0 %v6013
      %v6015 = vpop.xlane.xlu0 %6014
      %v6016 = vsel %vm1194, %v5970, 0.0
      %6017 = vadd.xlane.f32.xlu0 %v6016
      %v6018 = vpop.xlane.xlu0 %6017
      %v6019 = vsel %vm1194, %v5971, 0.0
      %6020 = vadd.xlane.f32.xlu0 %v6019
      %v6021 = vpop.xlane.xlu0 %6020
      %v6022 = vsel %vm1194, %v5972, 0.0
      %6023 = vadd.xlane.f32.xlu0 %v6022
      %v6024 = vpop.xlane.xlu0 %6023
      %v6025 = vsel %vm1194, %v5973, 0.0
      %6026 = vadd.xlane.f32.xlu0 %v6025
      %v6027 = vpop.xlane.xlu0 %6026
      %v6028 = vsel %vm1194, %v5974, 0.0
      %6029 = vadd.xlane.f32.xlu0 %v6028
      %v6030 = vpop.xlane.xlu0 %6029
      %v6031 = vsel %vm1194, %v5975, 0.0
      %6032 = vadd.xlane.f32.xlu0 %v6031
      %v6033 = vpop.xlane.xlu0 %6032
      %v6034 = vsel %vm1194, %v5976, 0.0
      %6035 = vadd.xlane.f32.xlu0 %v6034
      %v6036 = vpop.xlane.xlu0 %6035
      %v6037 = vsel %vm1194, %v5977, 0.0
      %6038 = vadd.xlane.f32.xlu0 %v6037
      %v6039 = vpop.xlane.xlu0 %6038
      %v6040 = vsel %vm1194, %v5978, 0.0
      %6041 = vadd.xlane.f32.xlu0 %v6040
      %v6042 = vpop.xlane.xlu0 %6041
      %v6043 = vsel %vm1194, %v5979, 0.0
      %6044 = vadd.xlane.f32.xlu0 %v6043
      %v6045 = vpop.xlane.xlu0 %6044
      %v6046 = vsel %vm1194, %v5980, 0.0
      %6047 = vadd.xlane.f32.xlu0 %v6046
      %v6048 = vpop.xlane.xlu0 %6047
      %v6049 = vsel %vm1194, %v5981, 0.0
      %6050 = vadd.xlane.f32.xlu0 %v6049
      %v6051 = vpop.xlane.xlu0 %6050
      %v6052 = vsel %vm1194, %v5982, 0.0
      %6053 = vadd.xlane.f32.xlu0 %v6052
      %v6054 = vpop.xlane.xlu0 %6053
      %v6055 = vsel %vm1194, %v5983, 0.0
      %6056 = vadd.xlane.f32.xlu0 %v6055
      %v6057 = vpop.xlane.xlu0 %6056
      %v6058 = vsel %vm1194, %v5984, 0.0
      %6059 = vadd.xlane.f32.xlu0 %v6058
      %v6060 = vpop.xlane.xlu0 %6059
      %v6061 = vsel %vm1194, %v5985, 0.0
      %6062 = vadd.xlane.f32.xlu0 %v6061
      %v6063 = vpop.xlane.xlu0 %6062
      %v6064 = vsel %vm1194, %v5986, 0.0
      %6065 = vadd.xlane.f32.xlu0 %v6064
      %v6066 = vpop.xlane.xlu0 %6065
      %v6067 = vsel %vm1194, %v5987, 0.0
      %6068 = vadd.xlane.f32.xlu0 %v6067
      %v6069 = vpop.xlane.xlu0 %6068
      %v6070 = vsel %vm1194, %v5988, 0.0
      %6071 = vadd.xlane.f32.xlu0 %v6070
      %v6072 = vpop.xlane.xlu0 %6071
      %v6073 = vsel %vm1194, %v5989, 0.0
      %6074 = vadd.xlane.f32.xlu0 %v6073
      %v6075 = vpop.xlane.xlu0 %6074
      %v6076 = vsel %vm1194, %v5990, 0.0
      %6077 = vadd.xlane.f32.xlu0 %v6076
      %v6078 = vpop.xlane.xlu0 %6077
      %v6079 = vsel %vm1194, %v5991, 0.0
      %6080 = vadd.xlane.f32.xlu0 %v6079
      %v6081 = vpop.xlane.xlu0 %6080
      %v6082 = vsel %vm1194, %v5992, 0.0
      %6083 = vadd.xlane.f32.xlu0 %v6082
      %v6084 = vpop.xlane.xlu0 %6083
      %v6085 = vsel %vm1194, %v5993, 0.0
      %6086 = vadd.xlane.f32.xlu0 %v6085
      %v6087 = vpop.xlane.xlu0 %6086
      %v6088 = vsel %vm1194, %v5994, 0.0
      %6089 = vadd.xlane.f32.xlu0 %v6088
      %v6090 = vpop.xlane.xlu0 %6089
      %v6091 = vmul.f32 %v5997, %v2689
      %v6092 = vmul.f32 %v6000, %v2689
      %v6093 = vmul.f32 %v6003, %v2689
      %v6094 = vmul.f32 %v6006, %v2689
      %v6095 = vmul.f32 %v6009, %v2689
      %v6096 = vmul.f32 %v6012, %v2689
      %v6097 = vmul.f32 %v6015, %v2689
      %v6098 = vmul.f32 %v6018, %v2689
      %v6099 = vmul.f32 %v6021, %v2689
      %v6100 = vmul.f32 %v6024, %v2689
      %v6101 = vmul.f32 %v6027, %v2689
      %v6102 = vmul.f32 %v6030, %v2689
      %v6103 = vmul.f32 %v6033, %v2689
      %v6104 = vmul.f32 %v6036, %v2689
      %v6105 = vmul.f32 %v6039, %v2689
      %v6106 = vmul.f32 %v6042, %v2689
      %v6107 = vmul.f32 %v6045, %v2689
      %v6108 = vmul.f32 %v6048, %v2689
      %v6109 = vmul.f32 %v6051, %v2689
      %v6110 = vmul.f32 %v6054, %v2689
      %v6111 = vmul.f32 %v6057, %v2689
      %v6112 = vmul.f32 %v6060, %v2689
      %v6113 = vmul.f32 %v6063, %v2689
      %v6114 = vmul.f32 %v6066, %v2689
      %v6115 = vmul.f32 %v6069, %v2689
      %v6116 = vmul.f32 %v6072, %v2689
      %v6117 = vmul.f32 %v6075, %v2689
      %v6118 = vmul.f32 %v6078, %v2689
      %v6119 = vmul.f32 %v6081, %v2689
      %v6120 = vmul.f32 %v6084, %v2689
      %v6121 = vmul.f32 %v6087, %v2689
      %v6122 = vmul.f32 %v6090, %v2689
      %v6123 = vsub.f32 %v5963, %v6091
      %v6124 = vsub.f32 %v5964, %v6092
      %v6125 = vsub.f32 %v5965, %v6093
      %v6126 = vsub.f32 %v5966, %v6094
      %v6127 = vsub.f32 %v5967, %v6095
      %v6128 = vsub.f32 %v5968, %v6096
      %v6129 = vsub.f32 %v5969, %v6097
      %v6130 = vsub.f32 %v5970, %v6098
      %v6131 = vsub.f32 %v5971, %v6099
      %v6132 = vsub.f32 %v5972, %v6100
      %v6133 = vsub.f32 %v5973, %v6101
      %v6134 = vsub.f32 %v5974, %v6102
      %v6135 = vsub.f32 %v5975, %v6103
      %v6136 = vsub.f32 %v5976, %v6104
      %v6137 = vsub.f32 %v5977, %v6105
      %v6138 = vsub.f32 %v5978, %v6106
      %v6139 = vsub.f32 %v5979, %v6107
      %v6140 = vsub.f32 %v5980, %v6108
      %v6141 = vsub.f32 %v5981, %v6109
      %v6142 = vsub.f32 %v5982, %v6110
      %v6143 = vsub.f32 %v5983, %v6111
      %v6144 = vsub.f32 %v5984, %v6112
      %v6145 = vsub.f32 %v5985, %v6113
      %v6146 = vsub.f32 %v5986, %v6114
      %v6147 = vsub.f32 %v5987, %v6115
      %v6148 = vsub.f32 %v5988, %v6116
      %v6149 = vsub.f32 %v5989, %v6117
      %v6150 = vsub.f32 %v5990, %v6118
      %v6151 = vsub.f32 %v5991, %v6119
      %v6152 = vsub.f32 %v5992, %v6120
      %v6153 = vsub.f32 %v5993, %v6121
      %v6154 = vsub.f32 %v5994, %v6122
      %v6155 = vmul.f32 %v6123, %v6123
      %v6156 = vmul.f32 %v6124, %v6124
      %v6157 = vmul.f32 %v6125, %v6125
      %v6158 = vmul.f32 %v6126, %v6126
      %v6159 = vmul.f32 %v6127, %v6127
      %v6160 = vmul.f32 %v6128, %v6128
      %v6161 = vmul.f32 %v6129, %v6129
      %v6162 = vmul.f32 %v6130, %v6130
      %v6163 = vmul.f32 %v6131, %v6131
      %v6164 = vmul.f32 %v6132, %v6132
      %v6165 = vmul.f32 %v6133, %v6133
      %v6166 = vmul.f32 %v6134, %v6134
      %v6167 = vmul.f32 %v6135, %v6135
      %v6168 = vmul.f32 %v6136, %v6136
      %v6169 = vmul.f32 %v6137, %v6137
      %v6170 = vmul.f32 %v6138, %v6138
      %v6171 = vmul.f32 %v6139, %v6139
      %v6172 = vmul.f32 %v6140, %v6140
      %v6173 = vmul.f32 %v6141, %v6141
      %v6174 = vmul.f32 %v6142, %v6142
      %v6175 = vmul.f32 %v6143, %v6143
      %v6176 = vmul.f32 %v6144, %v6144
      %v6177 = vmul.f32 %v6145, %v6145
      %v6178 = vmul.f32 %v6146, %v6146
      %v6179 = vmul.f32 %v6147, %v6147
      %v6180 = vmul.f32 %v6148, %v6148
      %v6181 = vmul.f32 %v6149, %v6149
      %v6182 = vmul.f32 %v6150, %v6150
      %v6183 = vmul.f32 %v6151, %v6151
      %v6184 = vmul.f32 %v6152, %v6152
      %v6185 = vmul.f32 %v6153, %v6153
      %v6186 = vmul.f32 %v6154, %v6154
      %v6187 = vsel %vm1194, %v6155, 0.0
      %6188 = vadd.xlane.f32.xlu0 %v6187
      %v6189 = vpop.xlane.xlu0 %6188
      %v6190 = vsel %vm1194, %v6156, 0.0
      %6191 = vadd.xlane.f32.xlu0 %v6190
      %v6192 = vpop.xlane.xlu0 %6191
      %v6193 = vsel %vm1194, %v6157, 0.0
      %6194 = vadd.xlane.f32.xlu0 %v6193
      %v6195 = vpop.xlane.xlu0 %6194
      %v6196 = vsel %vm1194, %v6158, 0.0
      %6197 = vadd.xlane.f32.xlu0 %v6196
      %v6198 = vpop.xlane.xlu0 %6197
      %v6199 = vsel %vm1194, %v6159, 0.0
      %6200 = vadd.xlane.f32.xlu0 %v6199
      %v6201 = vpop.xlane.xlu0 %6200
      %v6202 = vsel %vm1194, %v6160, 0.0
      %6203 = vadd.xlane.f32.xlu0 %v6202
      %v6204 = vpop.xlane.xlu0 %6203
      %v6205 = vsel %vm1194, %v6161, 0.0
      %6206 = vadd.xlane.f32.xlu0 %v6205
      %v6207 = vpop.xlane.xlu0 %6206
      %v6208 = vsel %vm1194, %v6162, 0.0
      %6209 = vadd.xlane.f32.xlu0 %v6208
      %v6210 = vpop.xlane.xlu0 %6209
      %v6211 = vsel %vm1194, %v6163, 0.0
      %6212 = vadd.xlane.f32.xlu0 %v6211
      %v6213 = vpop.xlane.xlu0 %6212
      %v6214 = vsel %vm1194, %v6164, 0.0
      %6215 = vadd.xlane.f32.xlu0 %v6214
      %v6216 = vpop.xlane.xlu0 %6215
      %v6217 = vsel %vm1194, %v6165, 0.0
      %6218 = vadd.xlane.f32.xlu0 %v6217
      %v6219 = vpop.xlane.xlu0 %6218
      %v6220 = vsel %vm1194, %v6166, 0.0
      %6221 = vadd.xlane.f32.xlu0 %v6220
      %v6222 = vpop.xlane.xlu0 %6221
      %v6223 = vsel %vm1194, %v6167, 0.0
      %6224 = vadd.xlane.f32.xlu0 %v6223
      %v6225 = vpop.xlane.xlu0 %6224
      %v6226 = vsel %vm1194, %v6168, 0.0
      %6227 = vadd.xlane.f32.xlu0 %v6226
      %v6228 = vpop.xlane.xlu0 %6227
      %v6229 = vsel %vm1194, %v6169, 0.0
      %6230 = vadd.xlane.f32.xlu0 %v6229
      %v6231 = vpop.xlane.xlu0 %6230
      %v6232 = vsel %vm1194, %v6170, 0.0
      %6233 = vadd.xlane.f32.xlu0 %v6232
      %v6234 = vpop.xlane.xlu0 %6233
      %v6235 = vsel %vm1194, %v6171, 0.0
      %6236 = vadd.xlane.f32.xlu0 %v6235
      %v6237 = vpop.xlane.xlu0 %6236
      %v6238 = vsel %vm1194, %v6172, 0.0
      %6239 = vadd.xlane.f32.xlu0 %v6238
      %v6240 = vpop.xlane.xlu0 %6239
      %v6241 = vsel %vm1194, %v6173, 0.0
      %6242 = vadd.xlane.f32.xlu0 %v6241
      %v6243 = vpop.xlane.xlu0 %6242
      %v6244 = vsel %vm1194, %v6174, 0.0
      %6245 = vadd.xlane.f32.xlu0 %v6244
      %v6246 = vpop.xlane.xlu0 %6245
      %v6247 = vsel %vm1194, %v6175, 0.0
      %6248 = vadd.xlane.f32.xlu0 %v6247
      %v6249 = vpop.xlane.xlu0 %6248
      %v6250 = vsel %vm1194, %v6176, 0.0
      %6251 = vadd.xlane.f32.xlu0 %v6250
      %v6252 = vpop.xlane.xlu0 %6251
      %v6253 = vsel %vm1194, %v6177, 0.0
      %6254 = vadd.xlane.f32.xlu0 %v6253
      %v6255 = vpop.xlane.xlu0 %6254
      %v6256 = vsel %vm1194, %v6178, 0.0
      %6257 = vadd.xlane.f32.xlu0 %v6256
      %v6258 = vpop.xlane.xlu0 %6257
      %v6259 = vsel %vm1194, %v6179, 0.0
      %6260 = vadd.xlane.f32.xlu0 %v6259
      %v6261 = vpop.xlane.xlu0 %6260
      %v6262 = vsel %vm1194, %v6180, 0.0
      %6263 = vadd.xlane.f32.xlu0 %v6262
      %v6264 = vpop.xlane.xlu0 %6263
      %v6265 = vsel %vm1194, %v6181, 0.0
      %6266 = vadd.xlane.f32.xlu0 %v6265
      %v6267 = vpop.xlane.xlu0 %6266
      %v6268 = vsel %vm1194, %v6182, 0.0
      %6269 = vadd.xlane.f32.xlu0 %v6268
      %v6270 = vpop.xlane.xlu0 %6269
      %v6271 = vsel %vm1194, %v6183, 0.0
      %6272 = vadd.xlane.f32.xlu0 %v6271
      %v6273 = vpop.xlane.xlu0 %6272
      %v6274 = vsel %vm1194, %v6184, 0.0
      %6275 = vadd.xlane.f32.xlu0 %v6274
      %v6276 = vpop.xlane.xlu0 %6275
      %v6277 = vsel %vm1194, %v6185, 0.0
      %6278 = vadd.xlane.f32.xlu0 %v6277
      %v6279 = vpop.xlane.xlu0 %6278
      %v6280 = vsel %vm1194, %v6186, 0.0
      %6281 = vadd.xlane.f32.xlu0 %v6280
      %v6282 = vpop.xlane.xlu0 %6281
      %v6283 = vmul.f32 %v6189, %v2689
      %v6284 = vmul.f32 %v6192, %v2689
      %v6285 = vmul.f32 %v6195, %v2689
      %v6286 = vmul.f32 %v6198, %v2689
      %v6287 = vmul.f32 %v6201, %v2689
      %v6288 = vmul.f32 %v6204, %v2689
      %v6289 = vmul.f32 %v6207, %v2689
      %v6290 = vmul.f32 %v6210, %v2689
      %v6291 = vmul.f32 %v6213, %v2689
      %v6292 = vmul.f32 %v6216, %v2689
      %v6293 = vmul.f32 %v6219, %v2689
      %v6294 = vmul.f32 %v6222, %v2689
      %v6295 = vmul.f32 %v6225, %v2689
      %v6296 = vmul.f32 %v6228, %v2689
      %v6297 = vmul.f32 %v6231, %v2689
      %v6298 = vmul.f32 %v6234, %v2689
      %v6299 = vmul.f32 %v6237, %v2689
      %v6300 = vmul.f32 %v6240, %v2689
      %v6301 = vmul.f32 %v6243, %v2689
      %v6302 = vmul.f32 %v6246, %v2689
      %v6303 = vmul.f32 %v6249, %v2689
      %v6304 = vmul.f32 %v6252, %v2689
      %v6305 = vmul.f32 %v6255, %v2689
      %v6306 = vmul.f32 %v6258, %v2689
      %v6307 = vmul.f32 %v6261, %v2689
      %v6308 = vmul.f32 %v6264, %v2689
      %v6309 = vmul.f32 %v6267, %v2689
      %v6310 = vmul.f32 %v6270, %v2689
      %v6311 = vmul.f32 %v6273, %v2689
      %v6312 = vmul.f32 %v6276, %v2689
      %v6313 = vmul.f32 %v6279, %v2689
      %v6314 = vmul.f32 %v6282, %v2689
      %v6315 = vadd.f32 %v6283, 1e-05
      %v6316 = vadd.f32 %v6284, 1e-05
      %v6317 = vadd.f32 %v6285, 1e-05
      %v6318 = vadd.f32 %v6286, 1e-05
      %v6319 = vadd.f32 %v6287, 1e-05
      %v6320 = vadd.f32 %v6288, 1e-05
      %v6321 = vadd.f32 %v6289, 1e-05
      %v6322 = vadd.f32 %v6290, 1e-05
      %v6323 = vadd.f32 %v6291, 1e-05
      %v6324 = vadd.f32 %v6292, 1e-05
      %v6325 = vadd.f32 %v6293, 1e-05
      %v6326 = vadd.f32 %v6294, 1e-05
      %v6327 = vadd.f32 %v6295, 1e-05
      %v6328 = vadd.f32 %v6296, 1e-05
      %v6329 = vadd.f32 %v6297, 1e-05
      %v6330 = vadd.f32 %v6298, 1e-05
      %v6331 = vadd.f32 %v6299, 1e-05
      %v6332 = vadd.f32 %v6300, 1e-05
      %v6333 = vadd.f32 %v6301, 1e-05
      %v6334 = vadd.f32 %v6302, 1e-05
      %v6335 = vadd.f32 %v6303, 1e-05
      %v6336 = vadd.f32 %v6304, 1e-05
      %v6337 = vadd.f32 %v6305, 1e-05
      %v6338 = vadd.f32 %v6306, 1e-05
      %v6339 = vadd.f32 %v6307, 1e-05
      %v6340 = vadd.f32 %v6308, 1e-05
      %v6341 = vadd.f32 %v6309, 1e-05
      %v6342 = vadd.f32 %v6310, 1e-05
      %v6343 = vadd.f32 %v6311, 1e-05
      %v6344 = vadd.f32 %v6312, 1e-05
      %v6345 = vadd.f32 %v6313, 1e-05
      %v6346 = vadd.f32 %v6314, 1e-05
      %v6347 = vrsqrt.pop %v6315
      %v6348 = vmul.f32 %v6347, %v6315
      %v6349 = vmul.f32 %v6348, %v6347
      %v6350 = vmul.f32 0.5, %v6349
      %v6351 = vsub.f32 1.5, %v6350
      %v6352 = vmul.f32 %v6347, %v6351
      %vm6353 = vweird.f32 %v6315
      %vm6354 = vweird.f32 %v6347
      %vm6355 = vmor %vm6353, %vm6354
      %v6356 = vsel %vm6355, %v6347, %v6352
      %v6357 = vrsqrt.pop %v6316
      %v6358 = vmul.f32 %v6357, %v6316
      %v6359 = vmul.f32 %v6358, %v6357
      %v6360 = vmul.f32 0.5, %v6359
      %v6361 = vsub.f32 1.5, %v6360
      %v6362 = vmul.f32 %v6357, %v6361
      %vm6363 = vweird.f32 %v6316
      %vm6364 = vweird.f32 %v6357
      %vm6365 = vmor %vm6363, %vm6364
      %v6366 = vsel %vm6365, %v6357, %v6362
      %v6367 = vrsqrt.pop %v6317
      %v6368 = vmul.f32 %v6367, %v6317
      %v6369 = vmul.f32 %v6368, %v6367
      %v6370 = vmul.f32 0.5, %v6369
      %v6371 = vsub.f32 1.5, %v6370
      %v6372 = vmul.f32 %v6367, %v6371
      %vm6373 = vweird.f32 %v6317
      %vm6374 = vweird.f32 %v6367
      %vm6375 = vmor %vm6373, %vm6374
      %v6376 = vsel %vm6375, %v6367, %v6372
      %v6377 = vrsqrt.pop %v6318
      %v6378 = vmul.f32 %v6377, %v6318
      %v6379 = vmul.f32 %v6378, %v6377
      %v6380 = vmul.f32 0.5, %v6379
      %v6381 = vsub.f32 1.5, %v6380
      %v6382 = vmul.f32 %v6377, %v6381
      %vm6383 = vweird.f32 %v6318
      %vm6384 = vweird.f32 %v6377
      %vm6385 = vmor %vm6383, %vm6384
      %v6386 = vsel %vm6385, %v6377, %v6382
      %v6387 = vrsqrt.pop %v6319
      %v6388 = vmul.f32 %v6387, %v6319
      %v6389 = vmul.f32 %v6388, %v6387
      %v6390 = vmul.f32 0.5, %v6389
      %v6391 = vsub.f32 1.5, %v6390
      %v6392 = vmul.f32 %v6387, %v6391
      %vm6393 = vweird.f32 %v6319
      %vm6394 = vweird.f32 %v6387
      %vm6395 = vmor %vm6393, %vm6394
      %v6396 = vsel %vm6395, %v6387, %v6392
      %v6397 = vrsqrt.pop %v6320
      %v6398 = vmul.f32 %v6397, %v6320
      %v6399 = vmul.f32 %v6398, %v6397
      %v6400 = vmul.f32 0.5, %v6399
      %v6401 = vsub.f32 1.5, %v6400
      %v6402 = vmul.f32 %v6397, %v6401
      %vm6403 = vweird.f32 %v6320
      %vm6404 = vweird.f32 %v6397
      %vm6405 = vmor %vm6403, %vm6404
      %v6406 = vsel %vm6405, %v6397, %v6402
      %v6407 = vrsqrt.pop %v6321
      %v6408 = vmul.f32 %v6407, %v6321
      %v6409 = vmul.f32 %v6408, %v6407
      %v6410 = vmul.f32 0.5, %v6409
      %v6411 = vsub.f32 1.5, %v6410
      %v6412 = vmul.f32 %v6407, %v6411
      %vm6413 = vweird.f32 %v6321
      %vm6414 = vweird.f32 %v6407
      %vm6415 = vmor %vm6413, %vm6414
      %v6416 = vsel %vm6415, %v6407, %v6412
      %v6417 = vrsqrt.pop %v6322
      %v6418 = vmul.f32 %v6417, %v6322
      %v6419 = vmul.f32 %v6418, %v6417
      %v6420 = vmul.f32 0.5, %v6419
      %v6421 = vsub.f32 1.5, %v6420
      %v6422 = vmul.f32 %v6417, %v6421
      %vm6423 = vweird.f32 %v6322
      %vm6424 = vweird.f32 %v6417
      %vm6425 = vmor %vm6423, %vm6424
      %v6426 = vsel %vm6425, %v6417, %v6422
      %v6427 = vrsqrt.pop %v6323
      %v6428 = vmul.f32 %v6427, %v6323
      %v6429 = vmul.f32 %v6428, %v6427
      %v6430 = vmul.f32 0.5, %v6429
      %v6431 = vsub.f32 1.5, %v6430
      %v6432 = vmul.f32 %v6427, %v6431
      %vm6433 = vweird.f32 %v6323
      %vm6434 = vweird.f32 %v6427
      %vm6435 = vmor %vm6433, %vm6434
      %v6436 = vsel %vm6435, %v6427, %v6432
      %v6437 = vrsqrt.pop %v6324
      %v6438 = vmul.f32 %v6437, %v6324
      %v6439 = vmul.f32 %v6438, %v6437
      %v6440 = vmul.f32 0.5, %v6439
      %v6441 = vsub.f32 1.5, %v6440
      %v6442 = vmul.f32 %v6437, %v6441
      %vm6443 = vweird.f32 %v6324
      %vm6444 = vweird.f32 %v6437
      %vm6445 = vmor %vm6443, %vm6444
      %v6446 = vsel %vm6445, %v6437, %v6442
      %v6447 = vrsqrt.pop %v6325
      %v6448 = vmul.f32 %v6447, %v6325
      %v6449 = vmul.f32 %v6448, %v6447
      %v6450 = vmul.f32 0.5, %v6449
      %v6451 = vsub.f32 1.5, %v6450
      %v6452 = vmul.f32 %v6447, %v6451
      %vm6453 = vweird.f32 %v6325
      %vm6454 = vweird.f32 %v6447
      %vm6455 = vmor %vm6453, %vm6454
      %v6456 = vsel %vm6455, %v6447, %v6452
      %v6457 = vrsqrt.pop %v6326
      %v6458 = vmul.f32 %v6457, %v6326
      %v6459 = vmul.f32 %v6458, %v6457
      %v6460 = vmul.f32 0.5, %v6459
      %v6461 = vsub.f32 1.5, %v6460
      %v6462 = vmul.f32 %v6457, %v6461
      %vm6463 = vweird.f32 %v6326
      %vm6464 = vweird.f32 %v6457
      %vm6465 = vmor %vm6463, %vm6464
      %v6466 = vsel %vm6465, %v6457, %v6462
      %v6467 = vrsqrt.pop %v6327
      %v6468 = vmul.f32 %v6467, %v6327
      %v6469 = vmul.f32 %v6468, %v6467
      %v6470 = vmul.f32 0.5, %v6469
      %v6471 = vsub.f32 1.5, %v6470
      %v6472 = vmul.f32 %v6467, %v6471
      %vm6473 = vweird.f32 %v6327
      %vm6474 = vweird.f32 %v6467
      %vm6475 = vmor %vm6473, %vm6474
      %v6476 = vsel %vm6475, %v6467, %v6472
      %v6477 = vrsqrt.pop %v6328
      %v6478 = vmul.f32 %v6477, %v6328
      %v6479 = vmul.f32 %v6478, %v6477
      %v6480 = vmul.f32 0.5, %v6479
      %v6481 = vsub.f32 1.5, %v6480
      %v6482 = vmul.f32 %v6477, %v6481
      %vm6483 = vweird.f32 %v6328
      %vm6484 = vweird.f32 %v6477
      %vm6485 = vmor %vm6483, %vm6484
      %v6486 = vsel %vm6485, %v6477, %v6482
      %v6487 = vrsqrt.pop %v6329
      %v6488 = vmul.f32 %v6487, %v6329
      %v6489 = vmul.f32 %v6488, %v6487
      %v6490 = vmul.f32 0.5, %v6489
      %v6491 = vsub.f32 1.5, %v6490
      %v6492 = vmul.f32 %v6487, %v6491
      %vm6493 = vweird.f32 %v6329
      %vm6494 = vweird.f32 %v6487
      %vm6495 = vmor %vm6493, %vm6494
      %v6496 = vsel %vm6495, %v6487, %v6492
      %v6497 = vrsqrt.pop %v6330
      %v6498 = vmul.f32 %v6497, %v6330
      %v6499 = vmul.f32 %v6498, %v6497
      %v6500 = vmul.f32 0.5, %v6499
      %v6501 = vsub.f32 1.5, %v6500
      %v6502 = vmul.f32 %v6497, %v6501
      %vm6503 = vweird.f32 %v6330
      %vm6504 = vweird.f32 %v6497
      %vm6505 = vmor %vm6503, %vm6504
      %v6506 = vsel %vm6505, %v6497, %v6502
      %v6507 = vrsqrt.pop %v6331
      %v6508 = vmul.f32 %v6507, %v6331
      %v6509 = vmul.f32 %v6508, %v6507
      %v6510 = vmul.f32 0.5, %v6509
      %v6511 = vsub.f32 1.5, %v6510
      %v6512 = vmul.f32 %v6507, %v6511
      %vm6513 = vweird.f32 %v6331
      %vm6514 = vweird.f32 %v6507
      %vm6515 = vmor %vm6513, %vm6514
      %v6516 = vsel %vm6515, %v6507, %v6512
      %v6517 = vrsqrt.pop %v6332
      %v6518 = vmul.f32 %v6517, %v6332
      %v6519 = vmul.f32 %v6518, %v6517
      %v6520 = vmul.f32 0.5, %v6519
      %v6521 = vsub.f32 1.5, %v6520
      %v6522 = vmul.f32 %v6517, %v6521
      %vm6523 = vweird.f32 %v6332
      %vm6524 = vweird.f32 %v6517
      %vm6525 = vmor %vm6523, %vm6524
      %v6526 = vsel %vm6525, %v6517, %v6522
      %v6527 = vrsqrt.pop %v6333
      %v6528 = vmul.f32 %v6527, %v6333
      %v6529 = vmul.f32 %v6528, %v6527
      %v6530 = vmul.f32 0.5, %v6529
      %v6531 = vsub.f32 1.5, %v6530
      %v6532 = vmul.f32 %v6527, %v6531
      %vm6533 = vweird.f32 %v6333
      %vm6534 = vweird.f32 %v6527
      %vm6535 = vmor %vm6533, %vm6534
      %v6536 = vsel %vm6535, %v6527, %v6532
      %v6537 = vrsqrt.pop %v6334
      %v6538 = vmul.f32 %v6537, %v6334
      %v6539 = vmul.f32 %v6538, %v6537
      %v6540 = vmul.f32 0.5, %v6539
      %v6541 = vsub.f32 1.5, %v6540
      %v6542 = vmul.f32 %v6537, %v6541
      %vm6543 = vweird.f32 %v6334
      %vm6544 = vweird.f32 %v6537
      %vm6545 = vmor %vm6543, %vm6544
      %v6546 = vsel %vm6545, %v6537, %v6542
      %v6547 = vrsqrt.pop %v6335
      %v6548 = vmul.f32 %v6547, %v6335
      %v6549 = vmul.f32 %v6548, %v6547
      %v6550 = vmul.f32 0.5, %v6549
      %v6551 = vsub.f32 1.5, %v6550
      %v6552 = vmul.f32 %v6547, %v6551
      %vm6553 = vweird.f32 %v6335
      %vm6554 = vweird.f32 %v6547
      %vm6555 = vmor %vm6553, %vm6554
      %v6556 = vsel %vm6555, %v6547, %v6552
      %v6557 = vrsqrt.pop %v6336
      %v6558 = vmul.f32 %v6557, %v6336
      %v6559 = vmul.f32 %v6558, %v6557
      %v6560 = vmul.f32 0.5, %v6559
      %v6561 = vsub.f32 1.5, %v6560
      %v6562 = vmul.f32 %v6557, %v6561
      %vm6563 = vweird.f32 %v6336
      %vm6564 = vweird.f32 %v6557
      %vm6565 = vmor %vm6563, %vm6564
      %v6566 = vsel %vm6565, %v6557, %v6562
      %v6567 = vrsqrt.pop %v6337
      %v6568 = vmul.f32 %v6567, %v6337
      %v6569 = vmul.f32 %v6568, %v6567
      %v6570 = vmul.f32 0.5, %v6569
      %v6571 = vsub.f32 1.5, %v6570
      %v6572 = vmul.f32 %v6567, %v6571
      %vm6573 = vweird.f32 %v6337
      %vm6574 = vweird.f32 %v6567
      %vm6575 = vmor %vm6573, %vm6574
      %v6576 = vsel %vm6575, %v6567, %v6572
      %v6577 = vrsqrt.pop %v6338
      %v6578 = vmul.f32 %v6577, %v6338
      %v6579 = vmul.f32 %v6578, %v6577
      %v6580 = vmul.f32 0.5, %v6579
      %v6581 = vsub.f32 1.5, %v6580
      %v6582 = vmul.f32 %v6577, %v6581
      %vm6583 = vweird.f32 %v6338
      %vm6584 = vweird.f32 %v6577
      %vm6585 = vmor %vm6583, %vm6584
      %v6586 = vsel %vm6585, %v6577, %v6582
      %v6587 = vrsqrt.pop %v6339
      %v6588 = vmul.f32 %v6587, %v6339
      %v6589 = vmul.f32 %v6588, %v6587
      %v6590 = vmul.f32 0.5, %v6589
      %v6591 = vsub.f32 1.5, %v6590
      %v6592 = vmul.f32 %v6587, %v6591
      %vm6593 = vweird.f32 %v6339
      %vm6594 = vweird.f32 %v6587
      %vm6595 = vmor %vm6593, %vm6594
      %v6596 = vsel %vm6595, %v6587, %v6592
      %v6597 = vrsqrt.pop %v6340
      %v6598 = vmul.f32 %v6597, %v6340
      %v6599 = vmul.f32 %v6598, %v6597
      %v6600 = vmul.f32 0.5, %v6599
      %v6601 = vsub.f32 1.5, %v6600
      %v6602 = vmul.f32 %v6597, %v6601
      %vm6603 = vweird.f32 %v6340
      %vm6604 = vweird.f32 %v6597
      %vm6605 = vmor %vm6603, %vm6604
      %v6606 = vsel %vm6605, %v6597, %v6602
      %v6607 = vrsqrt.pop %v6341
      %v6608 = vmul.f32 %v6607, %v6341
      %v6609 = vmul.f32 %v6608, %v6607
      %v6610 = vmul.f32 0.5, %v6609
      %v6611 = vsub.f32 1.5, %v6610
      %v6612 = vmul.f32 %v6607, %v6611
      %vm6613 = vweird.f32 %v6341
      %vm6614 = vweird.f32 %v6607
      %vm6615 = vmor %vm6613, %vm6614
      %v6616 = vsel %vm6615, %v6607, %v6612
      %v6617 = vrsqrt.pop %v6342
      %v6618 = vmul.f32 %v6617, %v6342
      %v6619 = vmul.f32 %v6618, %v6617
      %v6620 = vmul.f32 0.5, %v6619
      %v6621 = vsub.f32 1.5, %v6620
      %v6622 = vmul.f32 %v6617, %v6621
      %vm6623 = vweird.f32 %v6342
      %vm6624 = vweird.f32 %v6617
      %vm6625 = vmor %vm6623, %vm6624
      %v6626 = vsel %vm6625, %v6617, %v6622
      %v6627 = vrsqrt.pop %v6343
      %v6628 = vmul.f32 %v6627, %v6343
      %v6629 = vmul.f32 %v6628, %v6627
      %v6630 = vmul.f32 0.5, %v6629
      %v6631 = vsub.f32 1.5, %v6630
      %v6632 = vmul.f32 %v6627, %v6631
      %vm6633 = vweird.f32 %v6343
      %vm6634 = vweird.f32 %v6627
      %vm6635 = vmor %vm6633, %vm6634
      %v6636 = vsel %vm6635, %v6627, %v6632
      %v6637 = vrsqrt.pop %v6344
      %v6638 = vmul.f32 %v6637, %v6344
      %v6639 = vmul.f32 %v6638, %v6637
      %v6640 = vmul.f32 0.5, %v6639
      %v6641 = vsub.f32 1.5, %v6640
      %v6642 = vmul.f32 %v6637, %v6641
      %vm6643 = vweird.f32 %v6344
      %vm6644 = vweird.f32 %v6637
      %vm6645 = vmor %vm6643, %vm6644
      %v6646 = vsel %vm6645, %v6637, %v6642
      %v6647 = vrsqrt.pop %v6345
      %v6648 = vmul.f32 %v6647, %v6345
      %v6649 = vmul.f32 %v6648, %v6647
      %v6650 = vmul.f32 0.5, %v6649
      %v6651 = vsub.f32 1.5, %v6650
      %v6652 = vmul.f32 %v6647, %v6651
      %vm6653 = vweird.f32 %v6345
      %vm6654 = vweird.f32 %v6647
      %vm6655 = vmor %vm6653, %vm6654
      %v6656 = vsel %vm6655, %v6647, %v6652
      %v6657 = vrsqrt.pop %v6346
      %v6658 = vmul.f32 %v6657, %v6346
      %v6659 = vmul.f32 %v6658, %v6657
      %v6660 = vmul.f32 0.5, %v6659
      %v6661 = vsub.f32 1.5, %v6660
      %v6662 = vmul.f32 %v6657, %v6661
      %vm6663 = vweird.f32 %v6346
      %vm6664 = vweird.f32 %v6657
      %vm6665 = vmor %vm6663, %vm6664
      %v6666 = vsel %vm6665, %v6657, %v6662
      %v6667 = vmul.f32 %v6123, %v6356
      %v6668 = vmul.f32 %v6124, %v6366
      %v6669 = vmul.f32 %v6125, %v6376
      %v6670 = vmul.f32 %v6126, %v6386
      %v6671 = vmul.f32 %v6127, %v6396
      %v6672 = vmul.f32 %v6128, %v6406
      %v6673 = vmul.f32 %v6129, %v6416
      %v6674 = vmul.f32 %v6130, %v6426
      %v6675 = vmul.f32 %v6131, %v6436
      %v6676 = vmul.f32 %v6132, %v6446
      %v6677 = vmul.f32 %v6133, %v6456
      %v6678 = vmul.f32 %v6134, %v6466
      %v6679 = vmul.f32 %v6135, %v6476
      %v6680 = vmul.f32 %v6136, %v6486
      %v6681 = vmul.f32 %v6137, %v6496
      %v6682 = vmul.f32 %v6138, %v6506
      %v6683 = vmul.f32 %v6139, %v6516
      %v6684 = vmul.f32 %v6140, %v6526
      %v6685 = vmul.f32 %v6141, %v6536
      %v6686 = vmul.f32 %v6142, %v6546
      %v6687 = vmul.f32 %v6143, %v6556
      %v6688 = vmul.f32 %v6144, %v6566
      %v6689 = vmul.f32 %v6145, %v6576
      %v6690 = vmul.f32 %v6146, %v6586
      %v6691 = vmul.f32 %v6147, %v6596
      %v6692 = vmul.f32 %v6148, %v6606
      %v6693 = vmul.f32 %v6149, %v6616
      %v6694 = vmul.f32 %v6150, %v6626
      %v6695 = vmul.f32 %v6151, %v6636
      %v6696 = vmul.f32 %v6152, %v6646
      %v6697 = vmul.f32 %v6153, %v6656
      %v6698 = vmul.f32 %v6154, %v6666
      %v6699 = vperm.slane %v4562, 0
      %v6700 = vmul.f32 %v6667, %v6699
      %v6701 = vmul.f32 %v6668, %v6699
      %v6702 = vmul.f32 %v6669, %v6699
      %v6703 = vmul.f32 %v6670, %v6699
      %v6704 = vmul.f32 %v6671, %v6699
      %v6705 = vmul.f32 %v6672, %v6699
      %v6706 = vmul.f32 %v6673, %v6699
      %v6707 = vmul.f32 %v6674, %v6699
      %v6708 = vmul.f32 %v6675, %v6699
      %v6709 = vmul.f32 %v6676, %v6699
      %v6710 = vmul.f32 %v6677, %v6699
      %v6711 = vmul.f32 %v6678, %v6699
      %v6712 = vmul.f32 %v6679, %v6699
      %v6713 = vmul.f32 %v6680, %v6699
      %v6714 = vmul.f32 %v6681, %v6699
      %v6715 = vmul.f32 %v6682, %v6699
      %v6716 = vmul.f32 %v6683, %v6699
      %v6717 = vmul.f32 %v6684, %v6699
      %v6718 = vmul.f32 %v6685, %v6699
      %v6719 = vmul.f32 %v6686, %v6699
      %v6720 = vmul.f32 %v6687, %v6699
      %v6721 = vmul.f32 %v6688, %v6699
      %v6722 = vmul.f32 %v6689, %v6699
      %v6723 = vmul.f32 %v6690, %v6699
      %v6724 = vmul.f32 %v6691, %v6699
      %v6725 = vmul.f32 %v6692, %v6699
      %v6726 = vmul.f32 %v6693, %v6699
      %v6727 = vmul.f32 %v6694, %v6699
      %v6728 = vmul.f32 %v6695, %v6699
      %v6729 = vmul.f32 %v6696, %v6699
      %v6730 = vmul.f32 %v6697, %v6699
      %v6731 = vmul.f32 %v6698, %v6699
      %v6732 = vperm.slane %v4562, 1
      %v6733 = vadd.f32 %v6700, %v6732
      %v6734 = vadd.f32 %v6701, %v6732
      %v6735 = vadd.f32 %v6702, %v6732
      %v6736 = vadd.f32 %v6703, %v6732
      %v6737 = vadd.f32 %v6704, %v6732
      %v6738 = vadd.f32 %v6705, %v6732
      %v6739 = vadd.f32 %v6706, %v6732
      %v6740 = vadd.f32 %v6707, %v6732
      %v6741 = vadd.f32 %v6708, %v6732
      %v6742 = vadd.f32 %v6709, %v6732
      %v6743 = vadd.f32 %v6710, %v6732
      %v6744 = vadd.f32 %v6711, %v6732
      %v6745 = vadd.f32 %v6712, %v6732
      %v6746 = vadd.f32 %v6713, %v6732
      %v6747 = vadd.f32 %v6714, %v6732
      %v6748 = vadd.f32 %v6715, %v6732
      %v6749 = vadd.f32 %v6716, %v6732
      %v6750 = vadd.f32 %v6717, %v6732
      %v6751 = vadd.f32 %v6718, %v6732
      %v6752 = vadd.f32 %v6719, %v6732
      %v6753 = vadd.f32 %v6720, %v6732
      %v6754 = vadd.f32 %v6721, %v6732
      %v6755 = vadd.f32 %v6722, %v6732
      %v6756 = vadd.f32 %v6723, %v6732
      %v6757 = vadd.f32 %v6724, %v6732
      %v6758 = vadd.f32 %v6725, %v6732
      %v6759 = vadd.f32 %v6726, %v6732
      %v6760 = vadd.f32 %v6727, %v6732
      %v6761 = vadd.f32 %v6728, %v6732
      %v6762 = vadd.f32 %v6729, %v6732
      %v6763 = vadd.f32 %v6730, %v6732
      %v6764 = vadd.f32 %v6731, %v6732
      %v6765 = vpack.c.bf16 %v6734, %v6733
      %v6766 = vpack.c.bf16 %v6736, %v6735
      %v6767 = vpack.c.bf16 %v6738, %v6737
      %v6768 = vpack.c.bf16 %v6740, %v6739
      %v6769 = vpack.c.bf16 %v6742, %v6741
      %v6770 = vpack.c.bf16 %v6744, %v6743
      %v6771 = vpack.c.bf16 %v6746, %v6745
      %v6772 = vpack.c.bf16 %v6748, %v6747
      %v6773 = vpack.c.bf16 %v6750, %v6749
      %v6774 = vpack.c.bf16 %v6752, %v6751
      %v6775 = vpack.c.bf16 %v6754, %v6753
      %v6776 = vpack.c.bf16 %v6756, %v6755
      %v6777 = vpack.c.bf16 %v6758, %v6757
      %v6778 = vpack.c.bf16 %v6760, %v6759
      %v6779 = vpack.c.bf16 %v6762, %v6761
      %v6780 = vpack.c.bf16 %v6764, %v6763
      %s6781 = scalar_lea.vmem %s10, 16
      %v6782 = vld [vmem:[%s6781] sm:$0xf]
      %v6783 = vld [vmem:[%s6781 + $0x4] sm:$0xf]
      %v6784 = vld [vmem:[%s6781 + $0x8] sm:$0xf]
      %v6785 = vld [vmem:[%s6781 + $0xc] sm:$0xf]
      %s6786 = scalar_lea.vmem %s11, 1
      %v6787 = vld [vmem:[%s6786] sm:$0x1]
      %v6789 = vperm.slane %v6787, 0
      %v6795 = vunpack.c.l.b16 %v6782
      %v6796 = vunpack.c.l.b16 %v6783
      %v6797 = vunpack.c.l.b16 %v6784
      %v6798 = vunpack.c.l.b16 %v6785
      %v6799 = vpack.c.b16 %v6796, %v6795
      %v6800 = vpack.c.b16 %v6798, %v6797
      %v6804 = vsel %vm1194, %v6765, 0
      %v6807 = vsel %vm1194, %v6766, 0
      %v6810 = vsel %vm1194, %v6767, 0
      %v6813 = vsel %vm1194, %v6768, 0
      %v6816 = vsel %vm1194, %v6769, 0
      %v6819 = vsel %vm1194, %v6770, 0
      %v6822 = vsel %vm1194, %v6771, 0
      %v6825 = vsel %vm1194, %v6772, 0
      %v6828 = vsel %vm1194, %v6773, 0
      %v6831 = vsel %vm1194, %v6774, 0
      %v6834 = vsel %vm1194, %v6775, 0
      %v6837 = vsel %vm1194, %v6776, 0
      %v6840 = vsel %vm1194, %v6777, 0
      %v6843 = vsel %vm1194, %v6778, 0
      %v6846 = vsel %vm1194, %v6779, 0
      %v6849 = vsel %vm1194, %v6780, 0
      %6851 = vmatpush.bf16.msra.mxu0 0
      %6852 = vmatpush.bf16.msra.mxu0 0
      %6853 = vmatpush.bf16.msra.mxu0 0
      %6854 = vmatpush.bf16.msra.mxu0 0
      %6855 = vmatpush.bf16.msra.mxu0 0
      %6856 = vmatpush.bf16.msra.mxu0 0
      %6857 = vmatpush.bf16.msra.mxu0 %v6800
      %6858 = vmatpush.bf16.msra.mxu0 %v6799
      %6859 = vmatmul.bf16.gmra.mxu0 %v6804
      %v6860 = vpop.f32.mrf.mxu0
      %v6861 = vadd.f32 %v6789, %v6860
      %v6862 = vpop.f32.mrf.mxu0
      %v6863 = vadd.f32 %v6789, %v6862
      %6864 = vmatmul.bf16.gmra.mxu0 %v6807
      %v6865 = vpop.f32.mrf.mxu0
      %v6866 = vadd.f32 %v6789, %v6865
      %v6867 = vpop.f32.mrf.mxu0
      %v6868 = vadd.f32 %v6789, %v6867
      %6869 = vmatmul.bf16.gmra.mxu0 %v6810
      %v6870 = vpop.f32.mrf.mxu0
      %v6871 = vadd.f32 %v6789, %v6870
      %v6872 = vpop.f32.mrf.mxu0
      %v6873 = vadd.f32 %v6789, %v6872
      %6874 = vmatmul.bf16.gmra.mxu0 %v6813
      %v6875 = vpop.f32.mrf.mxu0
      %v6876 = vadd.f32 %v6789, %v6875
      %v6877 = vpop.f32.mrf.mxu0
      %v6878 = vadd.f32 %v6789, %v6877
      %6879 = vmatmul.bf16.gmra.mxu0 %v6816
      %v6880 = vpop.f32.mrf.mxu0
      %v6881 = vadd.f32 %v6789, %v6880
      %v6882 = vpop.f32.mrf.mxu0
      %v6883 = vadd.f32 %v6789, %v6882
      %6884 = vmatmul.bf16.gmra.mxu0 %v6819
      %v6885 = vpop.f32.mrf.mxu0
      %v6886 = vadd.f32 %v6789, %v6885
      %v6887 = vpop.f32.mrf.mxu0
      %v6888 = vadd.f32 %v6789, %v6887
      %6889 = vmatmul.bf16.gmra.mxu0 %v6822
      %v6890 = vpop.f32.mrf.mxu0
      %v6891 = vadd.f32 %v6789, %v6890
      %v6892 = vpop.f32.mrf.mxu0
      %v6893 = vadd.f32 %v6789, %v6892
      %6894 = vmatmul.bf16.gmra.mxu0 %v6825
      %v6895 = vpop.f32.mrf.mxu0
      %v6896 = vadd.f32 %v6789, %v6895
      %v6897 = vpop.f32.mrf.mxu0
      %v6898 = vadd.f32 %v6789, %v6897
      %6899 = vmatmul.bf16.gmra.mxu0 %v6828
      %v6900 = vpop.f32.mrf.mxu0
      %v6901 = vadd.f32 %v6789, %v6900
      %v6902 = vpop.f32.mrf.mxu0
      %v6903 = vadd.f32 %v6789, %v6902
      %6904 = vmatmul.bf16.gmra.mxu0 %v6831
      %v6905 = vpop.f32.mrf.mxu0
      %v6906 = vadd.f32 %v6789, %v6905
      %v6907 = vpop.f32.mrf.mxu0
      %v6908 = vadd.f32 %v6789, %v6907
      %6909 = vmatmul.bf16.gmra.mxu0 %v6834
      %v6910 = vpop.f32.mrf.mxu0
      %v6911 = vadd.f32 %v6789, %v6910
      %v6912 = vpop.f32.mrf.mxu0
      %v6913 = vadd.f32 %v6789, %v6912
      %6914 = vmatmul.bf16.gmra.mxu0 %v6837
      %v6915 = vpop.f32.mrf.mxu0
      %v6916 = vadd.f32 %v6789, %v6915
      %v6917 = vpop.f32.mrf.mxu0
      %v6918 = vadd.f32 %v6789, %v6917
      %6919 = vmatmul.bf16.gmra.mxu0 %v6840
      %v6920 = vpop.f32.mrf.mxu0
      %v6921 = vadd.f32 %v6789, %v6920
      %v6922 = vpop.f32.mrf.mxu0
      %v6923 = vadd.f32 %v6789, %v6922
      %6924 = vmatmul.bf16.gmra.mxu0 %v6843
      %v6925 = vpop.f32.mrf.mxu0
      %v6926 = vadd.f32 %v6789, %v6925
      %v6927 = vpop.f32.mrf.mxu0
      %v6928 = vadd.f32 %v6789, %v6927
      %6929 = vmatmul.bf16.gmra.mxu0 %v6846
      %v6930 = vpop.f32.mrf.mxu0
      %v6931 = vadd.f32 %v6789, %v6930
      %v6932 = vpop.f32.mrf.mxu0
      %v6933 = vadd.f32 %v6789, %v6932
      %6934 = vmatmul.bf16.gmra.mxu0 %v6849
      %v6935 = vpop.f32.mrf.mxu0
      %v6936 = vadd.f32 %v6789, %v6935
      %v6937 = vpop.f32.mrf.mxu0
      %v6938 = vadd.f32 %v6789, %v6937
      %6939 = vdwg.mxu0
      %v6940 = vmax.f32 %v6861, 0.0
      %v6941 = vmax.f32 %v6863, 0.0
      %v6942 = vmax.f32 %v6866, 0.0
      %v6943 = vmax.f32 %v6868, 0.0
      %v6944 = vmax.f32 %v6871, 0.0
      %v6945 = vmax.f32 %v6873, 0.0
      %v6946 = vmax.f32 %v6876, 0.0
      %v6947 = vmax.f32 %v6878, 0.0
      %v6948 = vmax.f32 %v6881, 0.0
      %v6949 = vmax.f32 %v6883, 0.0
      %v6950 = vmax.f32 %v6886, 0.0
      %v6951 = vmax.f32 %v6888, 0.0
      %v6952 = vmax.f32 %v6891, 0.0
      %v6953 = vmax.f32 %v6893, 0.0
      %v6954 = vmax.f32 %v6896, 0.0
      %v6955 = vmax.f32 %v6898, 0.0
      %v6956 = vmax.f32 %v6901, 0.0
      %v6957 = vmax.f32 %v6903, 0.0
      %v6958 = vmax.f32 %v6906, 0.0
      %v6959 = vmax.f32 %v6908, 0.0
      %v6960 = vmax.f32 %v6911, 0.0
      %v6961 = vmax.f32 %v6913, 0.0
      %v6962 = vmax.f32 %v6916, 0.0
      %v6963 = vmax.f32 %v6918, 0.0
      %v6964 = vmax.f32 %v6921, 0.0
      %v6965 = vmax.f32 %v6923, 0.0
      %v6966 = vmax.f32 %v6926, 0.0
      %v6967 = vmax.f32 %v6928, 0.0
      %v6968 = vmax.f32 %v6931, 0.0
      %v6969 = vmax.f32 %v6933, 0.0
      %v6970 = vmax.f32 %v6936, 0.0
      %v6971 = vmax.f32 %v6938, 0.0
      %v6972 = vpack.c.bf16 %v6941, %v6940
      %v6973 = vpack.c.bf16 %v6943, %v6942
      %v6974 = vpack.c.bf16 %v6945, %v6944
      %v6975 = vpack.c.bf16 %v6947, %v6946
      %v6976 = vpack.c.bf16 %v6949, %v6948
      %v6977 = vpack.c.bf16 %v6951, %v6950
      %v6978 = vpack.c.bf16 %v6953, %v6952
      %v6979 = vpack.c.bf16 %v6955, %v6954
      %v6980 = vpack.c.bf16 %v6957, %v6956
      %v6981 = vpack.c.bf16 %v6959, %v6958
      %v6982 = vpack.c.bf16 %v6961, %v6960
      %v6983 = vpack.c.bf16 %v6963, %v6962
      %v6984 = vpack.c.bf16 %v6965, %v6964
      %v6985 = vpack.c.bf16 %v6967, %v6966
      %v6986 = vpack.c.bf16 %v6969, %v6968
      %v6987 = vpack.c.bf16 %v6971, %v6970
      %s6988 = scalar_lea.vmem %s12, 32
      %v6989 = vld [vmem:[%s6988] sm:$0xf]
      %v6990 = vld [vmem:[%s6988 + $0x4] sm:$0xf]
      %v6991 = vld [vmem:[%s6988 + $0x8] sm:$0xf]
      %v6992 = vld [vmem:[%s6988 + $0xc] sm:$0xf]
      %v6993 = vld [vmem:[%s6988 + $0x10] sm:$0xf]
      %v6994 = vld [vmem:[%s6988 + $0x14] sm:$0xf]
      %v6995 = vld [vmem:[%s6988 + $0x18] sm:$0xf]
      %v6996 = vld [vmem:[%s6988 + $0x1c] sm:$0xf]
      %s6997 = scalar_lea.vmem %s13, 1
      %v6998 = vld [vmem:[%s6997] sm:$0x1]
      %v7000 = vperm.slane %v6998, 0
      %v7010 = vunpack.c.l.b16 %v6989
      %v7011 = vunpack.c.l.b16 %v6990
      %v7012 = vunpack.c.l.b16 %v6991
      %v7013 = vunpack.c.l.b16 %v6992
      %v7014 = vunpack.c.l.b16 %v6993
      %v7015 = vunpack.c.l.b16 %v6994
      %v7016 = vunpack.c.l.b16 %v6995
      %v7017 = vunpack.c.l.b16 %v6996
      %v7018 = vpack.c.b16 %v7011, %v7010
      %v7019 = vpack.c.b16 %v7013, %v7012
      %v7020 = vpack.c.b16 %v7015, %v7014
      %v7021 = vpack.c.b16 %v7017, %v7016
      %v7027 = vsel %vm3621, %v6972, 0
      %v7030 = vsel %vm3621, %v6973, 0
      %v7033 = vsel %vm3621, %v6974, 0
      %v7036 = vsel %vm3621, %v6975, 0
      %v7039 = vsel %vm3621, %v6976, 0
      %v7042 = vsel %vm3621, %v6977, 0
      %v7045 = vsel %vm3621, %v6978, 0
      %v7048 = vsel %vm3621, %v6979, 0
      %v7051 = vsel %vm3621, %v6980, 0
      %v7054 = vsel %vm3621, %v6981, 0
      %v7057 = vsel %vm3621, %v6982, 0
      %v7060 = vsel %vm3621, %v6983, 0
      %v7063 = vsel %vm3621, %v6984, 0
      %v7066 = vsel %vm3621, %v6985, 0
      %v7069 = vsel %vm3621, %v6986, 0
      %v7072 = vsel %vm3621, %v6987, 0
      %7074 = vmatpush.bf16.msra.mxu0 0
      %7075 = vmatpush.bf16.msra.mxu0 0
      %7076 = vmatpush.bf16.msra.mxu0 0
      %7077 = vmatpush.bf16.msra.mxu0 0
      %7078 = vmatpush.bf16.msra.mxu0 %v7021
      %7079 = vmatpush.bf16.msra.mxu0 %v7020
      %7080 = vmatpush.bf16.msra.mxu0 %v7019
      %7081 = vmatpush.bf16.msra.mxu0 %v7018
      %7082 = vmatmul.bf16.gmra.mxu0 %v7027
      %v7083 = vpop.f32.mrf.mxu0
      %v7084 = vadd.f32 %v7000, %v7083
      %v7085 = vpop.f32.mrf.mxu0
      %v7086 = vadd.f32 %v7000, %v7085
      %7087 = vmatmul.bf16.gmra.mxu0 %v7030
      %v7088 = vpop.f32.mrf.mxu0
      %v7089 = vadd.f32 %v7000, %v7088
      %v7090 = vpop.f32.mrf.mxu0
      %v7091 = vadd.f32 %v7000, %v7090
      %7092 = vmatmul.bf16.gmra.mxu0 %v7033
      %v7093 = vpop.f32.mrf.mxu0
      %v7094 = vadd.f32 %v7000, %v7093
      %v7095 = vpop.f32.mrf.mxu0
      %v7096 = vadd.f32 %v7000, %v7095
      %7097 = vmatmul.bf16.gmra.mxu0 %v7036
      %v7098 = vpop.f32.mrf.mxu0
      %v7099 = vadd.f32 %v7000, %v7098
      %v7100 = vpop.f32.mrf.mxu0
      %v7101 = vadd.f32 %v7000, %v7100
      %7102 = vmatmul.bf16.gmra.mxu0 %v7039
      %v7103 = vpop.f32.mrf.mxu0
      %v7104 = vadd.f32 %v7000, %v7103
      %v7105 = vpop.f32.mrf.mxu0
      %v7106 = vadd.f32 %v7000, %v7105
      %7107 = vmatmul.bf16.gmra.mxu0 %v7042
      %v7108 = vpop.f32.mrf.mxu0
      %v7109 = vadd.f32 %v7000, %v7108
      %v7110 = vpop.f32.mrf.mxu0
      %v7111 = vadd.f32 %v7000, %v7110
      %7112 = vmatmul.bf16.gmra.mxu0 %v7045
      %v7113 = vpop.f32.mrf.mxu0
      %v7114 = vadd.f32 %v7000, %v7113
      %v7115 = vpop.f32.mrf.mxu0
      %v7116 = vadd.f32 %v7000, %v7115
      %7117 = vmatmul.bf16.gmra.mxu0 %v7048
      %v7118 = vpop.f32.mrf.mxu0
      %v7119 = vadd.f32 %v7000, %v7118
      %v7120 = vpop.f32.mrf.mxu0
      %v7121 = vadd.f32 %v7000, %v7120
      %7122 = vmatmul.bf16.gmra.mxu0 %v7051
      %v7123 = vpop.f32.mrf.mxu0
      %v7124 = vadd.f32 %v7000, %v7123
      %v7125 = vpop.f32.mrf.mxu0
      %v7126 = vadd.f32 %v7000, %v7125
      %7127 = vmatmul.bf16.gmra.mxu0 %v7054
      %v7128 = vpop.f32.mrf.mxu0
      %v7129 = vadd.f32 %v7000, %v7128
      %v7130 = vpop.f32.mrf.mxu0
      %v7131 = vadd.f32 %v7000, %v7130
      %7132 = vmatmul.bf16.gmra.mxu0 %v7057
      %v7133 = vpop.f32.mrf.mxu0
      %v7134 = vadd.f32 %v7000, %v7133
      %v7135 = vpop.f32.mrf.mxu0
      %v7136 = vadd.f32 %v7000, %v7135
      %7137 = vmatmul.bf16.gmra.mxu0 %v7060
      %v7138 = vpop.f32.mrf.mxu0
      %v7139 = vadd.f32 %v7000, %v7138
      %v7140 = vpop.f32.mrf.mxu0
      %v7141 = vadd.f32 %v7000, %v7140
      %7142 = vmatmul.bf16.gmra.mxu0 %v7063
      %v7143 = vpop.f32.mrf.mxu0
      %v7144 = vadd.f32 %v7000, %v7143
      %v7145 = vpop.f32.mrf.mxu0
      %v7146 = vadd.f32 %v7000, %v7145
      %7147 = vmatmul.bf16.gmra.mxu0 %v7066
      %v7148 = vpop.f32.mrf.mxu0
      %v7149 = vadd.f32 %v7000, %v7148
      %v7150 = vpop.f32.mrf.mxu0
      %v7151 = vadd.f32 %v7000, %v7150
      %7152 = vmatmul.bf16.gmra.mxu0 %v7069
      %v7153 = vpop.f32.mrf.mxu0
      %v7154 = vadd.f32 %v7000, %v7153
      %v7155 = vpop.f32.mrf.mxu0
      %v7156 = vadd.f32 %v7000, %v7155
      %7157 = vmatmul.bf16.gmra.mxu0 %v7072
      %v7158 = vpop.f32.mrf.mxu0
      %v7159 = vadd.f32 %v7000, %v7158
      %v7160 = vpop.f32.mrf.mxu0
      %v7161 = vadd.f32 %v7000, %v7160
      %7162 = vdwg.mxu0
      %v7163 = vadd.f32 %v6733, %v7084
      %v7164 = vadd.f32 %v6734, %v7086
      %v7165 = vadd.f32 %v6735, %v7089
      %v7166 = vadd.f32 %v6736, %v7091
      %v7167 = vadd.f32 %v6737, %v7094
      %v7168 = vadd.f32 %v6738, %v7096
      %v7169 = vadd.f32 %v6739, %v7099
      %v7170 = vadd.f32 %v6740, %v7101
      %v7171 = vadd.f32 %v6741, %v7104
      %v7172 = vadd.f32 %v6742, %v7106
      %v7173 = vadd.f32 %v6743, %v7109
      %v7174 = vadd.f32 %v6744, %v7111
      %v7175 = vadd.f32 %v6745, %v7114
      %v7176 = vadd.f32 %v6746, %v7116
      %v7177 = vadd.f32 %v6747, %v7119
      %v7178 = vadd.f32 %v6748, %v7121
      %v7179 = vadd.f32 %v6749, %v7124
      %v7180 = vadd.f32 %v6750, %v7126
      %v7181 = vadd.f32 %v6751, %v7129
      %v7182 = vadd.f32 %v6752, %v7131
      %v7183 = vadd.f32 %v6753, %v7134
      %v7184 = vadd.f32 %v6754, %v7136
      %v7185 = vadd.f32 %v6755, %v7139
      %v7186 = vadd.f32 %v6756, %v7141
      %v7187 = vadd.f32 %v6757, %v7144
      %v7188 = vadd.f32 %v6758, %v7146
      %v7189 = vadd.f32 %v6759, %v7149
      %v7190 = vadd.f32 %v6760, %v7151
      %v7191 = vadd.f32 %v6761, %v7154
      %v7192 = vadd.f32 %v6762, %v7156
      %v7193 = vadd.f32 %v6763, %v7159
      %v7194 = vadd.f32 %v6764, %v7161
      %v7195 = vsel %vm1194, %v7163, 0.0
      %7196 = vadd.xlane.f32.xlu0 %v7195
      %v7197 = vpop.xlane.xlu0 %7196
      %v7198 = vsel %vm1194, %v7164, 0.0
      %7199 = vadd.xlane.f32.xlu0 %v7198
      %v7200 = vpop.xlane.xlu0 %7199
      %v7201 = vsel %vm1194, %v7165, 0.0
      %7202 = vadd.xlane.f32.xlu0 %v7201
      %v7203 = vpop.xlane.xlu0 %7202
      %v7204 = vsel %vm1194, %v7166, 0.0
      %7205 = vadd.xlane.f32.xlu0 %v7204
      %v7206 = vpop.xlane.xlu0 %7205
      %v7207 = vsel %vm1194, %v7167, 0.0
      %7208 = vadd.xlane.f32.xlu0 %v7207
      %v7209 = vpop.xlane.xlu0 %7208
      %v7210 = vsel %vm1194, %v7168, 0.0
      %7211 = vadd.xlane.f32.xlu0 %v7210
      %v7212 = vpop.xlane.xlu0 %7211
      %v7213 = vsel %vm1194, %v7169, 0.0
      %7214 = vadd.xlane.f32.xlu0 %v7213
      %v7215 = vpop.xlane.xlu0 %7214
      %v7216 = vsel %vm1194, %v7170, 0.0
      %7217 = vadd.xlane.f32.xlu0 %v7216
      %v7218 = vpop.xlane.xlu0 %7217
      %v7219 = vsel %vm1194, %v7171, 0.0
      %7220 = vadd.xlane.f32.xlu0 %v7219
      %v7221 = vpop.xlane.xlu0 %7220
      %v7222 = vsel %vm1194, %v7172, 0.0
      %7223 = vadd.xlane.f32.xlu0 %v7222
      %v7224 = vpop.xlane.xlu0 %7223
      %v7225 = vsel %vm1194, %v7173, 0.0
      %7226 = vadd.xlane.f32.xlu0 %v7225
      %v7227 = vpop.xlane.xlu0 %7226
      %v7228 = vsel %vm1194, %v7174, 0.0
      %7229 = vadd.xlane.f32.xlu0 %v7228
      %v7230 = vpop.xlane.xlu0 %7229
      %v7231 = vsel %vm1194, %v7175, 0.0
      %7232 = vadd.xlane.f32.xlu0 %v7231
      %v7233 = vpop.xlane.xlu0 %7232
      %v7234 = vsel %vm1194, %v7176, 0.0
      %7235 = vadd.xlane.f32.xlu0 %v7234
      %v7236 = vpop.xlane.xlu0 %7235
      %v7237 = vsel %vm1194, %v7177, 0.0
      %7238 = vadd.xlane.f32.xlu0 %v7237
      %v7239 = vpop.xlane.xlu0 %7238
      %v7240 = vsel %vm1194, %v7178, 0.0
      %7241 = vadd.xlane.f32.xlu0 %v7240
      %v7242 = vpop.xlane.xlu0 %7241
      %v7243 = vsel %vm1194, %v7179, 0.0
      %7244 = vadd.xlane.f32.xlu0 %v7243
      %v7245 = vpop.xlane.xlu0 %7244
      %v7246 = vsel %vm1194, %v7180, 0.0
      %7247 = vadd.xlane.f32.xlu0 %v7246
      %v7248 = vpop.xlane.xlu0 %7247
      %v7249 = vsel %vm1194, %v7181, 0.0
      %7250 = vadd.xlane.f32.xlu0 %v7249
      %v7251 = vpop.xlane.xlu0 %7250
      %v7252 = vsel %vm1194, %v7182, 0.0
      %7253 = vadd.xlane.f32.xlu0 %v7252
      %v7254 = vpop.xlane.xlu0 %7253
      %v7255 = vsel %vm1194, %v7183, 0.0
      %7256 = vadd.xlane.f32.xlu0 %v7255
      %v7257 = vpop.xlane.xlu0 %7256
      %v7258 = vsel %vm1194, %v7184, 0.0
      %7259 = vadd.xlane.f32.xlu0 %v7258
      %v7260 = vpop.xlane.xlu0 %7259
      %v7261 = vsel %vm1194, %v7185, 0.0
      %7262 = vadd.xlane.f32.xlu0 %v7261
      %v7263 = vpop.xlane.xlu0 %7262
      %v7264 = vsel %vm1194, %v7186, 0.0
      %7265 = vadd.xlane.f32.xlu0 %v7264
      %v7266 = vpop.xlane.xlu0 %7265
      %v7267 = vsel %vm1194, %v7187, 0.0
      %7268 = vadd.xlane.f32.xlu0 %v7267
      %v7269 = vpop.xlane.xlu0 %7268
      %v7270 = vsel %vm1194, %v7188, 0.0
      %7271 = vadd.xlane.f32.xlu0 %v7270
      %v7272 = vpop.xlane.xlu0 %7271
      %v7273 = vsel %vm1194, %v7189, 0.0
      %7274 = vadd.xlane.f32.xlu0 %v7273
      %v7275 = vpop.xlane.xlu0 %7274
      %v7276 = vsel %vm1194, %v7190, 0.0
      %7277 = vadd.xlane.f32.xlu0 %v7276
      %v7278 = vpop.xlane.xlu0 %7277
      %v7279 = vsel %vm1194, %v7191, 0.0
      %7280 = vadd.xlane.f32.xlu0 %v7279
      %v7281 = vpop.xlane.xlu0 %7280
      %v7282 = vsel %vm1194, %v7192, 0.0
      %7283 = vadd.xlane.f32.xlu0 %v7282
      %v7284 = vpop.xlane.xlu0 %7283
      %v7285 = vsel %vm1194, %v7193, 0.0
      %7286 = vadd.xlane.f32.xlu0 %v7285
      %v7287 = vpop.xlane.xlu0 %7286
      %v7288 = vsel %vm1194, %v7194, 0.0
      %7289 = vadd.xlane.f32.xlu0 %v7288
      %v7290 = vpop.xlane.xlu0 %7289
      %v7291 = vmul.f32 %v7197, %v2689
      %v7292 = vmul.f32 %v7200, %v2689
      %v7293 = vmul.f32 %v7203, %v2689
      %v7294 = vmul.f32 %v7206, %v2689
      %v7295 = vmul.f32 %v7209, %v2689
      %v7296 = vmul.f32 %v7212, %v2689
      %v7297 = vmul.f32 %v7215, %v2689
      %v7298 = vmul.f32 %v7218, %v2689
      %v7299 = vmul.f32 %v7221, %v2689
      %v7300 = vmul.f32 %v7224, %v2689
      %v7301 = vmul.f32 %v7227, %v2689
      %v7302 = vmul.f32 %v7230, %v2689
      %v7303 = vmul.f32 %v7233, %v2689
      %v7304 = vmul.f32 %v7236, %v2689
      %v7305 = vmul.f32 %v7239, %v2689
      %v7306 = vmul.f32 %v7242, %v2689
      %v7307 = vmul.f32 %v7245, %v2689
      %v7308 = vmul.f32 %v7248, %v2689
      %v7309 = vmul.f32 %v7251, %v2689
      %v7310 = vmul.f32 %v7254, %v2689
      %v7311 = vmul.f32 %v7257, %v2689
      %v7312 = vmul.f32 %v7260, %v2689
      %v7313 = vmul.f32 %v7263, %v2689
      %v7314 = vmul.f32 %v7266, %v2689
      %v7315 = vmul.f32 %v7269, %v2689
      %v7316 = vmul.f32 %v7272, %v2689
      %v7317 = vmul.f32 %v7275, %v2689
      %v7318 = vmul.f32 %v7278, %v2689
      %v7319 = vmul.f32 %v7281, %v2689
      %v7320 = vmul.f32 %v7284, %v2689
      %v7321 = vmul.f32 %v7287, %v2689
      %v7322 = vmul.f32 %v7290, %v2689
      %v7323 = vsub.f32 %v7163, %v7291
      %v7324 = vsub.f32 %v7164, %v7292
      %v7325 = vsub.f32 %v7165, %v7293
      %v7326 = vsub.f32 %v7166, %v7294
      %v7327 = vsub.f32 %v7167, %v7295
      %v7328 = vsub.f32 %v7168, %v7296
      %v7329 = vsub.f32 %v7169, %v7297
      %v7330 = vsub.f32 %v7170, %v7298
      %v7331 = vsub.f32 %v7171, %v7299
      %v7332 = vsub.f32 %v7172, %v7300
      %v7333 = vsub.f32 %v7173, %v7301
      %v7334 = vsub.f32 %v7174, %v7302
      %v7335 = vsub.f32 %v7175, %v7303
      %v7336 = vsub.f32 %v7176, %v7304
      %v7337 = vsub.f32 %v7177, %v7305
      %v7338 = vsub.f32 %v7178, %v7306
      %v7339 = vsub.f32 %v7179, %v7307
      %v7340 = vsub.f32 %v7180, %v7308
      %v7341 = vsub.f32 %v7181, %v7309
      %v7342 = vsub.f32 %v7182, %v7310
      %v7343 = vsub.f32 %v7183, %v7311
      %v7344 = vsub.f32 %v7184, %v7312
      %v7345 = vsub.f32 %v7185, %v7313
      %v7346 = vsub.f32 %v7186, %v7314
      %v7347 = vsub.f32 %v7187, %v7315
      %v7348 = vsub.f32 %v7188, %v7316
      %v7349 = vsub.f32 %v7189, %v7317
      %v7350 = vsub.f32 %v7190, %v7318
      %v7351 = vsub.f32 %v7191, %v7319
      %v7352 = vsub.f32 %v7192, %v7320
      %v7353 = vsub.f32 %v7193, %v7321
      %v7354 = vsub.f32 %v7194, %v7322
      %v7355 = vmul.f32 %v7323, %v7323
      %v7356 = vmul.f32 %v7324, %v7324
      %v7357 = vmul.f32 %v7325, %v7325
      %v7358 = vmul.f32 %v7326, %v7326
      %v7359 = vmul.f32 %v7327, %v7327
      %v7360 = vmul.f32 %v7328, %v7328
      %v7361 = vmul.f32 %v7329, %v7329
      %v7362 = vmul.f32 %v7330, %v7330
      %v7363 = vmul.f32 %v7331, %v7331
      %v7364 = vmul.f32 %v7332, %v7332
      %v7365 = vmul.f32 %v7333, %v7333
      %v7366 = vmul.f32 %v7334, %v7334
      %v7367 = vmul.f32 %v7335, %v7335
      %v7368 = vmul.f32 %v7336, %v7336
      %v7369 = vmul.f32 %v7337, %v7337
      %v7370 = vmul.f32 %v7338, %v7338
      %v7371 = vmul.f32 %v7339, %v7339
      %v7372 = vmul.f32 %v7340, %v7340
      %v7373 = vmul.f32 %v7341, %v7341
      %v7374 = vmul.f32 %v7342, %v7342
      %v7375 = vmul.f32 %v7343, %v7343
      %v7376 = vmul.f32 %v7344, %v7344
      %v7377 = vmul.f32 %v7345, %v7345
      %v7378 = vmul.f32 %v7346, %v7346
      %v7379 = vmul.f32 %v7347, %v7347
      %v7380 = vmul.f32 %v7348, %v7348
      %v7381 = vmul.f32 %v7349, %v7349
      %v7382 = vmul.f32 %v7350, %v7350
      %v7383 = vmul.f32 %v7351, %v7351
      %v7384 = vmul.f32 %v7352, %v7352
      %v7385 = vmul.f32 %v7353, %v7353
      %v7386 = vmul.f32 %v7354, %v7354
      %v7387 = vsel %vm1194, %v7355, 0.0
      %7388 = vadd.xlane.f32.xlu0 %v7387
      %v7389 = vpop.xlane.xlu0 %7388
      %v7390 = vsel %vm1194, %v7356, 0.0
      %7391 = vadd.xlane.f32.xlu0 %v7390
      %v7392 = vpop.xlane.xlu0 %7391
      %v7393 = vsel %vm1194, %v7357, 0.0
      %7394 = vadd.xlane.f32.xlu0 %v7393
      %v7395 = vpop.xlane.xlu0 %7394
      %v7396 = vsel %vm1194, %v7358, 0.0
      %7397 = vadd.xlane.f32.xlu0 %v7396
      %v7398 = vpop.xlane.xlu0 %7397
      %v7399 = vsel %vm1194, %v7359, 0.0
      %7400 = vadd.xlane.f32.xlu0 %v7399
      %v7401 = vpop.xlane.xlu0 %7400
      %v7402 = vsel %vm1194, %v7360, 0.0
      %7403 = vadd.xlane.f32.xlu0 %v7402
      %v7404 = vpop.xlane.xlu0 %7403
      %v7405 = vsel %vm1194, %v7361, 0.0
      %7406 = vadd.xlane.f32.xlu0 %v7405
      %v7407 = vpop.xlane.xlu0 %7406
      %v7408 = vsel %vm1194, %v7362, 0.0
      %7409 = vadd.xlane.f32.xlu0 %v7408
      %v7410 = vpop.xlane.xlu0 %7409
      %v7411 = vsel %vm1194, %v7363, 0.0
      %7412 = vadd.xlane.f32.xlu0 %v7411
      %v7413 = vpop.xlane.xlu0 %7412
      %v7414 = vsel %vm1194, %v7364, 0.0
      %7415 = vadd.xlane.f32.xlu0 %v7414
      %v7416 = vpop.xlane.xlu0 %7415
      %v7417 = vsel %vm1194, %v7365, 0.0
      %7418 = vadd.xlane.f32.xlu0 %v7417
      %v7419 = vpop.xlane.xlu0 %7418
      %v7420 = vsel %vm1194, %v7366, 0.0
      %7421 = vadd.xlane.f32.xlu0 %v7420
      %v7422 = vpop.xlane.xlu0 %7421
      %v7423 = vsel %vm1194, %v7367, 0.0
      %7424 = vadd.xlane.f32.xlu0 %v7423
      %v7425 = vpop.xlane.xlu0 %7424
      %v7426 = vsel %vm1194, %v7368, 0.0
      %7427 = vadd.xlane.f32.xlu0 %v7426
      %v7428 = vpop.xlane.xlu0 %7427
      %v7429 = vsel %vm1194, %v7369, 0.0
      %7430 = vadd.xlane.f32.xlu0 %v7429
      %v7431 = vpop.xlane.xlu0 %7430
      %v7432 = vsel %vm1194, %v7370, 0.0
      %7433 = vadd.xlane.f32.xlu0 %v7432
      %v7434 = vpop.xlane.xlu0 %7433
      %v7435 = vsel %vm1194, %v7371, 0.0
      %7436 = vadd.xlane.f32.xlu0 %v7435
      %v7437 = vpop.xlane.xlu0 %7436
      %v7438 = vsel %vm1194, %v7372, 0.0
      %7439 = vadd.xlane.f32.xlu0 %v7438
      %v7440 = vpop.xlane.xlu0 %7439
      %v7441 = vsel %vm1194, %v7373, 0.0
      %7442 = vadd.xlane.f32.xlu0 %v7441
      %v7443 = vpop.xlane.xlu0 %7442
      %v7444 = vsel %vm1194, %v7374, 0.0
      %7445 = vadd.xlane.f32.xlu0 %v7444
      %v7446 = vpop.xlane.xlu0 %7445
      %v7447 = vsel %vm1194, %v7375, 0.0
      %7448 = vadd.xlane.f32.xlu0 %v7447
      %v7449 = vpop.xlane.xlu0 %7448
      %v7450 = vsel %vm1194, %v7376, 0.0
      %7451 = vadd.xlane.f32.xlu0 %v7450
      %v7452 = vpop.xlane.xlu0 %7451
      %v7453 = vsel %vm1194, %v7377, 0.0
      %7454 = vadd.xlane.f32.xlu0 %v7453
      %v7455 = vpop.xlane.xlu0 %7454
      %v7456 = vsel %vm1194, %v7378, 0.0
      %7457 = vadd.xlane.f32.xlu0 %v7456
      %v7458 = vpop.xlane.xlu0 %7457
      %v7459 = vsel %vm1194, %v7379, 0.0
      %7460 = vadd.xlane.f32.xlu0 %v7459
      %v7461 = vpop.xlane.xlu0 %7460
      %v7462 = vsel %vm1194, %v7380, 0.0
      %7463 = vadd.xlane.f32.xlu0 %v7462
      %v7464 = vpop.xlane.xlu0 %7463
      %v7465 = vsel %vm1194, %v7381, 0.0
      %7466 = vadd.xlane.f32.xlu0 %v7465
      %v7467 = vpop.xlane.xlu0 %7466
      %v7468 = vsel %vm1194, %v7382, 0.0
      %7469 = vadd.xlane.f32.xlu0 %v7468
      %v7470 = vpop.xlane.xlu0 %7469
      %v7471 = vsel %vm1194, %v7383, 0.0
      %7472 = vadd.xlane.f32.xlu0 %v7471
      %v7473 = vpop.xlane.xlu0 %7472
      %v7474 = vsel %vm1194, %v7384, 0.0
      %7475 = vadd.xlane.f32.xlu0 %v7474
      %v7476 = vpop.xlane.xlu0 %7475
      %v7477 = vsel %vm1194, %v7385, 0.0
      %7478 = vadd.xlane.f32.xlu0 %v7477
      %v7479 = vpop.xlane.xlu0 %7478
      %v7480 = vsel %vm1194, %v7386, 0.0
      %7481 = vadd.xlane.f32.xlu0 %v7480
      %v7482 = vpop.xlane.xlu0 %7481
      %v7483 = vmul.f32 %v7389, %v2689
      %v7484 = vmul.f32 %v7392, %v2689
      %v7485 = vmul.f32 %v7395, %v2689
      %v7486 = vmul.f32 %v7398, %v2689
      %v7487 = vmul.f32 %v7401, %v2689
      %v7488 = vmul.f32 %v7404, %v2689
      %v7489 = vmul.f32 %v7407, %v2689
      %v7490 = vmul.f32 %v7410, %v2689
      %v7491 = vmul.f32 %v7413, %v2689
      %v7492 = vmul.f32 %v7416, %v2689
      %v7493 = vmul.f32 %v7419, %v2689
      %v7494 = vmul.f32 %v7422, %v2689
      %v7495 = vmul.f32 %v7425, %v2689
      %v7496 = vmul.f32 %v7428, %v2689
      %v7497 = vmul.f32 %v7431, %v2689
      %v7498 = vmul.f32 %v7434, %v2689
      %v7499 = vmul.f32 %v7437, %v2689
      %v7500 = vmul.f32 %v7440, %v2689
      %v7501 = vmul.f32 %v7443, %v2689
      %v7502 = vmul.f32 %v7446, %v2689
      %v7503 = vmul.f32 %v7449, %v2689
      %v7504 = vmul.f32 %v7452, %v2689
      %v7505 = vmul.f32 %v7455, %v2689
      %v7506 = vmul.f32 %v7458, %v2689
      %v7507 = vmul.f32 %v7461, %v2689
      %v7508 = vmul.f32 %v7464, %v2689
      %v7509 = vmul.f32 %v7467, %v2689
      %v7510 = vmul.f32 %v7470, %v2689
      %v7511 = vmul.f32 %v7473, %v2689
      %v7512 = vmul.f32 %v7476, %v2689
      %v7513 = vmul.f32 %v7479, %v2689
      %v7514 = vmul.f32 %v7482, %v2689
      %v7515 = vadd.f32 %v7483, 1e-05
      %v7516 = vadd.f32 %v7484, 1e-05
      %v7517 = vadd.f32 %v7485, 1e-05
      %v7518 = vadd.f32 %v7486, 1e-05
      %v7519 = vadd.f32 %v7487, 1e-05
      %v7520 = vadd.f32 %v7488, 1e-05
      %v7521 = vadd.f32 %v7489, 1e-05
      %v7522 = vadd.f32 %v7490, 1e-05
      %v7523 = vadd.f32 %v7491, 1e-05
      %v7524 = vadd.f32 %v7492, 1e-05
      %v7525 = vadd.f32 %v7493, 1e-05
      %v7526 = vadd.f32 %v7494, 1e-05
      %v7527 = vadd.f32 %v7495, 1e-05
      %v7528 = vadd.f32 %v7496, 1e-05
      %v7529 = vadd.f32 %v7497, 1e-05
      %v7530 = vadd.f32 %v7498, 1e-05
      %v7531 = vadd.f32 %v7499, 1e-05
      %v7532 = vadd.f32 %v7500, 1e-05
      %v7533 = vadd.f32 %v7501, 1e-05
      %v7534 = vadd.f32 %v7502, 1e-05
      %v7535 = vadd.f32 %v7503, 1e-05
      %v7536 = vadd.f32 %v7504, 1e-05
      %v7537 = vadd.f32 %v7505, 1e-05
      %v7538 = vadd.f32 %v7506, 1e-05
      %v7539 = vadd.f32 %v7507, 1e-05
      %v7540 = vadd.f32 %v7508, 1e-05
      %v7541 = vadd.f32 %v7509, 1e-05
      %v7542 = vadd.f32 %v7510, 1e-05
      %v7543 = vadd.f32 %v7511, 1e-05
      %v7544 = vadd.f32 %v7512, 1e-05
      %v7545 = vadd.f32 %v7513, 1e-05
      %v7546 = vadd.f32 %v7514, 1e-05
      %v7547 = vrsqrt.pop %v7515
      %v7548 = vmul.f32 %v7547, %v7515
      %v7549 = vmul.f32 %v7548, %v7547
      %v7550 = vmul.f32 0.5, %v7549
      %v7551 = vsub.f32 1.5, %v7550
      %v7552 = vmul.f32 %v7547, %v7551
      %vm7553 = vweird.f32 %v7515
      %vm7554 = vweird.f32 %v7547
      %vm7555 = vmor %vm7553, %vm7554
      %v7556 = vsel %vm7555, %v7547, %v7552
      %v7557 = vrsqrt.pop %v7516
      %v7558 = vmul.f32 %v7557, %v7516
      %v7559 = vmul.f32 %v7558, %v7557
      %v7560 = vmul.f32 0.5, %v7559
      %v7561 = vsub.f32 1.5, %v7560
      %v7562 = vmul.f32 %v7557, %v7561
      %vm7563 = vweird.f32 %v7516
      %vm7564 = vweird.f32 %v7557
      %vm7565 = vmor %vm7563, %vm7564
      %v7566 = vsel %vm7565, %v7557, %v7562
      %v7567 = vrsqrt.pop %v7517
      %v7568 = vmul.f32 %v7567, %v7517
      %v7569 = vmul.f32 %v7568, %v7567
      %v7570 = vmul.f32 0.5, %v7569
      %v7571 = vsub.f32 1.5, %v7570
      %v7572 = vmul.f32 %v7567, %v7571
      %vm7573 = vweird.f32 %v7517
      %vm7574 = vweird.f32 %v7567
      %vm7575 = vmor %vm7573, %vm7574
      %v7576 = vsel %vm7575, %v7567, %v7572
      %v7577 = vrsqrt.pop %v7518
      %v7578 = vmul.f32 %v7577, %v7518
      %v7579 = vmul.f32 %v7578, %v7577
      %v7580 = vmul.f32 0.5, %v7579
      %v7581 = vsub.f32 1.5, %v7580
      %v7582 = vmul.f32 %v7577, %v7581
      %vm7583 = vweird.f32 %v7518
      %vm7584 = vweird.f32 %v7577
      %vm7585 = vmor %vm7583, %vm7584
      %v7586 = vsel %vm7585, %v7577, %v7582
      %v7587 = vrsqrt.pop %v7519
      %v7588 = vmul.f32 %v7587, %v7519
      %v7589 = vmul.f32 %v7588, %v7587
      %v7590 = vmul.f32 0.5, %v7589
      %v7591 = vsub.f32 1.5, %v7590
      %v7592 = vmul.f32 %v7587, %v7591
      %vm7593 = vweird.f32 %v7519
      %vm7594 = vweird.f32 %v7587
      %vm7595 = vmor %vm7593, %vm7594
      %v7596 = vsel %vm7595, %v7587, %v7592
      %v7597 = vrsqrt.pop %v7520
      %v7598 = vmul.f32 %v7597, %v7520
      %v7599 = vmul.f32 %v7598, %v7597
      %v7600 = vmul.f32 0.5, %v7599
      %v7601 = vsub.f32 1.5, %v7600
      %v7602 = vmul.f32 %v7597, %v7601
      %vm7603 = vweird.f32 %v7520
      %vm7604 = vweird.f32 %v7597
      %vm7605 = vmor %vm7603, %vm7604
      %v7606 = vsel %vm7605, %v7597, %v7602
      %v7607 = vrsqrt.pop %v7521
      %v7608 = vmul.f32 %v7607, %v7521
      %v7609 = vmul.f32 %v7608, %v7607
      %v7610 = vmul.f32 0.5, %v7609
      %v7611 = vsub.f32 1.5, %v7610
      %v7612 = vmul.f32 %v7607, %v7611
      %vm7613 = vweird.f32 %v7521
      %vm7614 = vweird.f32 %v7607
      %vm7615 = vmor %vm7613, %vm7614
      %v7616 = vsel %vm7615, %v7607, %v7612
      %v7617 = vrsqrt.pop %v7522
      %v7618 = vmul.f32 %v7617, %v7522
      %v7619 = vmul.f32 %v7618, %v7617
      %v7620 = vmul.f32 0.5, %v7619
      %v7621 = vsub.f32 1.5, %v7620
      %v7622 = vmul.f32 %v7617, %v7621
      %vm7623 = vweird.f32 %v7522
      %vm7624 = vweird.f32 %v7617
      %vm7625 = vmor %vm7623, %vm7624
      %v7626 = vsel %vm7625, %v7617, %v7622
      %v7627 = vrsqrt.pop %v7523
      %v7628 = vmul.f32 %v7627, %v7523
      %v7629 = vmul.f32 %v7628, %v7627
      %v7630 = vmul.f32 0.5, %v7629
      %v7631 = vsub.f32 1.5, %v7630
      %v7632 = vmul.f32 %v7627, %v7631
      %vm7633 = vweird.f32 %v7523
      %vm7634 = vweird.f32 %v7627
      %vm7635 = vmor %vm7633, %vm7634
      %v7636 = vsel %vm7635, %v7627, %v7632
      %v7637 = vrsqrt.pop %v7524
      %v7638 = vmul.f32 %v7637, %v7524
      %v7639 = vmul.f32 %v7638, %v7637
      %v7640 = vmul.f32 0.5, %v7639
      %v7641 = vsub.f32 1.5, %v7640
      %v7642 = vmul.f32 %v7637, %v7641
      %vm7643 = vweird.f32 %v7524
      %vm7644 = vweird.f32 %v7637
      %vm7645 = vmor %vm7643, %vm7644
      %v7646 = vsel %vm7645, %v7637, %v7642
      %v7647 = vrsqrt.pop %v7525
      %v7648 = vmul.f32 %v7647, %v7525
      %v7649 = vmul.f32 %v7648, %v7647
      %v7650 = vmul.f32 0.5, %v7649
      %v7651 = vsub.f32 1.5, %v7650
      %v7652 = vmul.f32 %v7647, %v7651
      %vm7653 = vweird.f32 %v7525
      %vm7654 = vweird.f32 %v7647
      %vm7655 = vmor %vm7653, %vm7654
      %v7656 = vsel %vm7655, %v7647, %v7652
      %v7657 = vrsqrt.pop %v7526
      %v7658 = vmul.f32 %v7657, %v7526
      %v7659 = vmul.f32 %v7658, %v7657
      %v7660 = vmul.f32 0.5, %v7659
      %v7661 = vsub.f32 1.5, %v7660
      %v7662 = vmul.f32 %v7657, %v7661
      %vm7663 = vweird.f32 %v7526
      %vm7664 = vweird.f32 %v7657
      %vm7665 = vmor %vm7663, %vm7664
      %v7666 = vsel %vm7665, %v7657, %v7662
      %v7667 = vrsqrt.pop %v7527
      %v7668 = vmul.f32 %v7667, %v7527
      %v7669 = vmul.f32 %v7668, %v7667
      %v7670 = vmul.f32 0.5, %v7669
      %v7671 = vsub.f32 1.5, %v7670
      %v7672 = vmul.f32 %v7667, %v7671
      %vm7673 = vweird.f32 %v7527
      %vm7674 = vweird.f32 %v7667
      %vm7675 = vmor %vm7673, %vm7674
      %v7676 = vsel %vm7675, %v7667, %v7672
      %v7677 = vrsqrt.pop %v7528
      %v7678 = vmul.f32 %v7677, %v7528
      %v7679 = vmul.f32 %v7678, %v7677
      %v7680 = vmul.f32 0.5, %v7679
      %v7681 = vsub.f32 1.5, %v7680
      %v7682 = vmul.f32 %v7677, %v7681
      %vm7683 = vweird.f32 %v7528
      %vm7684 = vweird.f32 %v7677
      %vm7685 = vmor %vm7683, %vm7684
      %v7686 = vsel %vm7685, %v7677, %v7682
      %v7687 = vrsqrt.pop %v7529
      %v7688 = vmul.f32 %v7687, %v7529
      %v7689 = vmul.f32 %v7688, %v7687
      %v7690 = vmul.f32 0.5, %v7689
      %v7691 = vsub.f32 1.5, %v7690
      %v7692 = vmul.f32 %v7687, %v7691
      %vm7693 = vweird.f32 %v7529
      %vm7694 = vweird.f32 %v7687
      %vm7695 = vmor %vm7693, %vm7694
      %v7696 = vsel %vm7695, %v7687, %v7692
      %v7697 = vrsqrt.pop %v7530
      %v7698 = vmul.f32 %v7697, %v7530
      %v7699 = vmul.f32 %v7698, %v7697
      %v7700 = vmul.f32 0.5, %v7699
      %v7701 = vsub.f32 1.5, %v7700
      %v7702 = vmul.f32 %v7697, %v7701
      %vm7703 = vweird.f32 %v7530
      %vm7704 = vweird.f32 %v7697
      %vm7705 = vmor %vm7703, %vm7704
      %v7706 = vsel %vm7705, %v7697, %v7702
      %v7707 = vrsqrt.pop %v7531
      %v7708 = vmul.f32 %v7707, %v7531
      %v7709 = vmul.f32 %v7708, %v7707
      %v7710 = vmul.f32 0.5, %v7709
      %v7711 = vsub.f32 1.5, %v7710
      %v7712 = vmul.f32 %v7707, %v7711
      %vm7713 = vweird.f32 %v7531
      %vm7714 = vweird.f32 %v7707
      %vm7715 = vmor %vm7713, %vm7714
      %v7716 = vsel %vm7715, %v7707, %v7712
      %v7717 = vrsqrt.pop %v7532
      %v7718 = vmul.f32 %v7717, %v7532
      %v7719 = vmul.f32 %v7718, %v7717
      %v7720 = vmul.f32 0.5, %v7719
      %v7721 = vsub.f32 1.5, %v7720
      %v7722 = vmul.f32 %v7717, %v7721
      %vm7723 = vweird.f32 %v7532
      %vm7724 = vweird.f32 %v7717
      %vm7725 = vmor %vm7723, %vm7724
      %v7726 = vsel %vm7725, %v7717, %v7722
      %v7727 = vrsqrt.pop %v7533
      %v7728 = vmul.f32 %v7727, %v7533
      %v7729 = vmul.f32 %v7728, %v7727
      %v7730 = vmul.f32 0.5, %v7729
      %v7731 = vsub.f32 1.5, %v7730
      %v7732 = vmul.f32 %v7727, %v7731
      %vm7733 = vweird.f32 %v7533
      %vm7734 = vweird.f32 %v7727
      %vm7735 = vmor %vm7733, %vm7734
      %v7736 = vsel %vm7735, %v7727, %v7732
      %v7737 = vrsqrt.pop %v7534
      %v7738 = vmul.f32 %v7737, %v7534
      %v7739 = vmul.f32 %v7738, %v7737
      %v7740 = vmul.f32 0.5, %v7739
      %v7741 = vsub.f32 1.5, %v7740
      %v7742 = vmul.f32 %v7737, %v7741
      %vm7743 = vweird.f32 %v7534
      %vm7744 = vweird.f32 %v7737
      %vm7745 = vmor %vm7743, %vm7744
      %v7746 = vsel %vm7745, %v7737, %v7742
      %v7747 = vrsqrt.pop %v7535
      %v7748 = vmul.f32 %v7747, %v7535
      %v7749 = vmul.f32 %v7748, %v7747
      %v7750 = vmul.f32 0.5, %v7749
      %v7751 = vsub.f32 1.5, %v7750
      %v7752 = vmul.f32 %v7747, %v7751
      %vm7753 = vweird.f32 %v7535
      %vm7754 = vweird.f32 %v7747
      %vm7755 = vmor %vm7753, %vm7754
      %v7756 = vsel %vm7755, %v7747, %v7752
      %v7757 = vrsqrt.pop %v7536
      %v7758 = vmul.f32 %v7757, %v7536
      %v7759 = vmul.f32 %v7758, %v7757
      %v7760 = vmul.f32 0.5, %v7759
      %v7761 = vsub.f32 1.5, %v7760
      %v7762 = vmul.f32 %v7757, %v7761
      %vm7763 = vweird.f32 %v7536
      %vm7764 = vweird.f32 %v7757
      %vm7765 = vmor %vm7763, %vm7764
      %v7766 = vsel %vm7765, %v7757, %v7762
      %v7767 = vrsqrt.pop %v7537
      %v7768 = vmul.f32 %v7767, %v7537
      %v7769 = vmul.f32 %v7768, %v7767
      %v7770 = vmul.f32 0.5, %v7769
      %v7771 = vsub.f32 1.5, %v7770
      %v7772 = vmul.f32 %v7767, %v7771
      %vm7773 = vweird.f32 %v7537
      %vm7774 = vweird.f32 %v7767
      %vm7775 = vmor %vm7773, %vm7774
      %v7776 = vsel %vm7775, %v7767, %v7772
      %v7777 = vrsqrt.pop %v7538
      %v7778 = vmul.f32 %v7777, %v7538
      %v7779 = vmul.f32 %v7778, %v7777
      %v7780 = vmul.f32 0.5, %v7779
      %v7781 = vsub.f32 1.5, %v7780
      %v7782 = vmul.f32 %v7777, %v7781
      %vm7783 = vweird.f32 %v7538
      %vm7784 = vweird.f32 %v7777
      %vm7785 = vmor %vm7783, %vm7784
      %v7786 = vsel %vm7785, %v7777, %v7782
      %v7787 = vrsqrt.pop %v7539
      %v7788 = vmul.f32 %v7787, %v7539
      %v7789 = vmul.f32 %v7788, %v7787
      %v7790 = vmul.f32 0.5, %v7789
      %v7791 = vsub.f32 1.5, %v7790
      %v7792 = vmul.f32 %v7787, %v7791
      %vm7793 = vweird.f32 %v7539
      %vm7794 = vweird.f32 %v7787
      %vm7795 = vmor %vm7793, %vm7794
      %v7796 = vsel %vm7795, %v7787, %v7792
      %v7797 = vrsqrt.pop %v7540
      %v7798 = vmul.f32 %v7797, %v7540
      %v7799 = vmul.f32 %v7798, %v7797
      %v7800 = vmul.f32 0.5, %v7799
      %v7801 = vsub.f32 1.5, %v7800
      %v7802 = vmul.f32 %v7797, %v7801
      %vm7803 = vweird.f32 %v7540
      %vm7804 = vweird.f32 %v7797
      %vm7805 = vmor %vm7803, %vm7804
      %v7806 = vsel %vm7805, %v7797, %v7802
      %v7807 = vrsqrt.pop %v7541
      %v7808 = vmul.f32 %v7807, %v7541
      %v7809 = vmul.f32 %v7808, %v7807
      %v7810 = vmul.f32 0.5, %v7809
      %v7811 = vsub.f32 1.5, %v7810
      %v7812 = vmul.f32 %v7807, %v7811
      %vm7813 = vweird.f32 %v7541
      %vm7814 = vweird.f32 %v7807
      %vm7815 = vmor %vm7813, %vm7814
      %v7816 = vsel %vm7815, %v7807, %v7812
      %v7817 = vrsqrt.pop %v7542
      %v7818 = vmul.f32 %v7817, %v7542
      %v7819 = vmul.f32 %v7818, %v7817
      %v7820 = vmul.f32 0.5, %v7819
      %v7821 = vsub.f32 1.5, %v7820
      %v7822 = vmul.f32 %v7817, %v7821
      %vm7823 = vweird.f32 %v7542
      %vm7824 = vweird.f32 %v7817
      %vm7825 = vmor %vm7823, %vm7824
      %v7826 = vsel %vm7825, %v7817, %v7822
      %v7827 = vrsqrt.pop %v7543
      %v7828 = vmul.f32 %v7827, %v7543
      %v7829 = vmul.f32 %v7828, %v7827
      %v7830 = vmul.f32 0.5, %v7829
      %v7831 = vsub.f32 1.5, %v7830
      %v7832 = vmul.f32 %v7827, %v7831
      %vm7833 = vweird.f32 %v7543
      %vm7834 = vweird.f32 %v7827
      %vm7835 = vmor %vm7833, %vm7834
      %v7836 = vsel %vm7835, %v7827, %v7832
      %v7837 = vrsqrt.pop %v7544
      %v7838 = vmul.f32 %v7837, %v7544
      %v7839 = vmul.f32 %v7838, %v7837
      %v7840 = vmul.f32 0.5, %v7839
      %v7841 = vsub.f32 1.5, %v7840
      %v7842 = vmul.f32 %v7837, %v7841
      %vm7843 = vweird.f32 %v7544
      %vm7844 = vweird.f32 %v7837
      %vm7845 = vmor %vm7843, %vm7844
      %v7846 = vsel %vm7845, %v7837, %v7842
      %v7847 = vrsqrt.pop %v7545
      %v7848 = vmul.f32 %v7847, %v7545
      %v7849 = vmul.f32 %v7848, %v7847
      %v7850 = vmul.f32 0.5, %v7849
      %v7851 = vsub.f32 1.5, %v7850
      %v7852 = vmul.f32 %v7847, %v7851
      %vm7853 = vweird.f32 %v7545
      %vm7854 = vweird.f32 %v7847
      %vm7855 = vmor %vm7853, %vm7854
      %v7856 = vsel %vm7855, %v7847, %v7852
      %v7857 = vrsqrt.pop %v7546
      %v7858 = vmul.f32 %v7857, %v7546
      %v7859 = vmul.f32 %v7858, %v7857
      %v7860 = vmul.f32 0.5, %v7859
      %v7861 = vsub.f32 1.5, %v7860
      %v7862 = vmul.f32 %v7857, %v7861
      %vm7863 = vweird.f32 %v7546
      %vm7864 = vweird.f32 %v7857
      %vm7865 = vmor %vm7863, %vm7864
      %v7866 = vsel %vm7865, %v7857, %v7862
      %v7867 = vmul.f32 %v7323, %v7556
      %v7868 = vmul.f32 %v7324, %v7566
      %v7869 = vmul.f32 %v7325, %v7576
      %v7870 = vmul.f32 %v7326, %v7586
      %v7871 = vmul.f32 %v7327, %v7596
      %v7872 = vmul.f32 %v7328, %v7606
      %v7873 = vmul.f32 %v7329, %v7616
      %v7874 = vmul.f32 %v7330, %v7626
      %v7875 = vmul.f32 %v7331, %v7636
      %v7876 = vmul.f32 %v7332, %v7646
      %v7877 = vmul.f32 %v7333, %v7656
      %v7878 = vmul.f32 %v7334, %v7666
      %v7879 = vmul.f32 %v7335, %v7676
      %v7880 = vmul.f32 %v7336, %v7686
      %v7881 = vmul.f32 %v7337, %v7696
      %v7882 = vmul.f32 %v7338, %v7706
      %v7883 = vmul.f32 %v7339, %v7716
      %v7884 = vmul.f32 %v7340, %v7726
      %v7885 = vmul.f32 %v7341, %v7736
      %v7886 = vmul.f32 %v7342, %v7746
      %v7887 = vmul.f32 %v7343, %v7756
      %v7888 = vmul.f32 %v7344, %v7766
      %v7889 = vmul.f32 %v7345, %v7776
      %v7890 = vmul.f32 %v7346, %v7786
      %v7891 = vmul.f32 %v7347, %v7796
      %v7892 = vmul.f32 %v7348, %v7806
      %v7893 = vmul.f32 %v7349, %v7816
      %v7894 = vmul.f32 %v7350, %v7826
      %v7895 = vmul.f32 %v7351, %v7836
      %v7896 = vmul.f32 %v7352, %v7846
      %v7897 = vmul.f32 %v7353, %v7856
      %v7898 = vmul.f32 %v7354, %v7866
      %v7899 = vperm.slane %v4562, 2
      %v7900 = vmul.f32 %v7867, %v7899
      %v7901 = vmul.f32 %v7868, %v7899
      %v7902 = vmul.f32 %v7869, %v7899
      %v7903 = vmul.f32 %v7870, %v7899
      %v7904 = vmul.f32 %v7871, %v7899
      %v7905 = vmul.f32 %v7872, %v7899
      %v7906 = vmul.f32 %v7873, %v7899
      %v7907 = vmul.f32 %v7874, %v7899
      %v7908 = vmul.f32 %v7875, %v7899
      %v7909 = vmul.f32 %v7876, %v7899
      %v7910 = vmul.f32 %v7877, %v7899
      %v7911 = vmul.f32 %v7878, %v7899
      %v7912 = vmul.f32 %v7879, %v7899
      %v7913 = vmul.f32 %v7880, %v7899
      %v7914 = vmul.f32 %v7881, %v7899
      %v7915 = vmul.f32 %v7882, %v7899
      %v7916 = vmul.f32 %v7883, %v7899
      %v7917 = vmul.f32 %v7884, %v7899
      %v7918 = vmul.f32 %v7885, %v7899
      %v7919 = vmul.f32 %v7886, %v7899
      %v7920 = vmul.f32 %v7887, %v7899
      %v7921 = vmul.f32 %v7888, %v7899
      %v7922 = vmul.f32 %v7889, %v7899
      %v7923 = vmul.f32 %v7890, %v7899
      %v7924 = vmul.f32 %v7891, %v7899
      %v7925 = vmul.f32 %v7892, %v7899
      %v7926 = vmul.f32 %v7893, %v7899
      %v7927 = vmul.f32 %v7894, %v7899
      %v7928 = vmul.f32 %v7895, %v7899
      %v7929 = vmul.f32 %v7896, %v7899
      %v7930 = vmul.f32 %v7897, %v7899
      %v7931 = vmul.f32 %v7898, %v7899
      %v7932 = vperm.slane %v4562, 3
      %v7933 = vadd.f32 %v7900, %v7932
      %v7934 = vadd.f32 %v7901, %v7932
      %v7935 = vadd.f32 %v7902, %v7932
      %v7936 = vadd.f32 %v7903, %v7932
      %v7937 = vadd.f32 %v7904, %v7932
      %v7938 = vadd.f32 %v7905, %v7932
      %v7939 = vadd.f32 %v7906, %v7932
      %v7940 = vadd.f32 %v7907, %v7932
      %v7941 = vadd.f32 %v7908, %v7932
      %v7942 = vadd.f32 %v7909, %v7932
      %v7943 = vadd.f32 %v7910, %v7932
      %v7944 = vadd.f32 %v7911, %v7932
      %v7945 = vadd.f32 %v7912, %v7932
      %v7946 = vadd.f32 %v7913, %v7932
      %v7947 = vadd.f32 %v7914, %v7932
      %v7948 = vadd.f32 %v7915, %v7932
      %v7949 = vadd.f32 %v7916, %v7932
      %v7950 = vadd.f32 %v7917, %v7932
      %v7951 = vadd.f32 %v7918, %v7932
      %v7952 = vadd.f32 %v7919, %v7932
      %v7953 = vadd.f32 %v7920, %v7932
      %v7954 = vadd.f32 %v7921, %v7932
      %v7955 = vadd.f32 %v7922, %v7932
      %v7956 = vadd.f32 %v7923, %v7932
      %v7957 = vadd.f32 %v7924, %v7932
      %v7958 = vadd.f32 %v7925, %v7932
      %v7959 = vadd.f32 %v7926, %v7932
      %v7960 = vadd.f32 %v7927, %v7932
      %v7961 = vadd.f32 %v7928, %v7932
      %v7962 = vadd.f32 %v7929, %v7932
      %v7963 = vadd.f32 %v7930, %v7932
      %v7964 = vadd.f32 %v7931, %v7932
      %v7965 = vsel %vm1194, %v7933, -inf
      %v7966 = vrot.slane %v7965, 4
      %v7967 = vmax.f32 %v7965, %v7966
      %v7968 = vrot.slane %v7967, 2
      %v7969 = vmax.f32 %v7967, %v7968
      %v7970 = vrot.slane %v7969, 1
      %v7971 = vmax.f32 %v7969, %v7970
      %v7972 = vsel %vm1194, %v7934, -inf
      %v7973 = vrot.slane %v7972, 4
      %v7974 = vmax.f32 %v7972, %v7973
      %v7975 = vrot.slane %v7974, 2
      %v7976 = vmax.f32 %v7974, %v7975
      %v7977 = vrot.slane %v7976, 1
      %v7978 = vmax.f32 %v7976, %v7977
      %v7979 = vsel %vm1194, %v7935, -inf
      %v7980 = vrot.slane %v7979, 4
      %v7981 = vmax.f32 %v7979, %v7980
      %v7982 = vrot.slane %v7981, 2
      %v7983 = vmax.f32 %v7981, %v7982
      %v7984 = vrot.slane %v7983, 1
      %v7985 = vmax.f32 %v7983, %v7984
      %v7986 = vsel %vm1194, %v7936, -inf
      %v7987 = vrot.slane %v7986, 4
      %v7988 = vmax.f32 %v7986, %v7987
      %v7989 = vrot.slane %v7988, 2
      %v7990 = vmax.f32 %v7988, %v7989
      %v7991 = vrot.slane %v7990, 1
      %v7992 = vmax.f32 %v7990, %v7991
      %v7993 = vsel %vm1194, %v7937, -inf
      %v7994 = vrot.slane %v7993, 4
      %v7995 = vmax.f32 %v7993, %v7994
      %v7996 = vrot.slane %v7995, 2
      %v7997 = vmax.f32 %v7995, %v7996
      %v7998 = vrot.slane %v7997, 1
      %v7999 = vmax.f32 %v7997, %v7998
      %v8000 = vsel %vm1194, %v7938, -inf
      %v8001 = vrot.slane %v8000, 4
      %v8002 = vmax.f32 %v8000, %v8001
      %v8003 = vrot.slane %v8002, 2
      %v8004 = vmax.f32 %v8002, %v8003
      %v8005 = vrot.slane %v8004, 1
      %v8006 = vmax.f32 %v8004, %v8005
      %v8007 = vsel %vm1194, %v7939, -inf
      %v8008 = vrot.slane %v8007, 4
      %v8009 = vmax.f32 %v8007, %v8008
      %v8010 = vrot.slane %v8009, 2
      %v8011 = vmax.f32 %v8009, %v8010
      %v8012 = vrot.slane %v8011, 1
      %v8013 = vmax.f32 %v8011, %v8012
      %v8014 = vsel %vm1194, %v7940, -inf
      %v8015 = vrot.slane %v8014, 4
      %v8016 = vmax.f32 %v8014, %v8015
      %v8017 = vrot.slane %v8016, 2
      %v8018 = vmax.f32 %v8016, %v8017
      %v8019 = vrot.slane %v8018, 1
      %v8020 = vmax.f32 %v8018, %v8019
      %v8021 = vsel %vm1194, %v7941, -inf
      %v8022 = vrot.slane %v8021, 4
      %v8023 = vmax.f32 %v8021, %v8022
      %v8024 = vrot.slane %v8023, 2
      %v8025 = vmax.f32 %v8023, %v8024
      %v8026 = vrot.slane %v8025, 1
      %v8027 = vmax.f32 %v8025, %v8026
      %v8028 = vsel %vm1194, %v7942, -inf
      %v8029 = vrot.slane %v8028, 4
      %v8030 = vmax.f32 %v8028, %v8029
      %v8031 = vrot.slane %v8030, 2
      %v8032 = vmax.f32 %v8030, %v8031
      %v8033 = vrot.slane %v8032, 1
      %v8034 = vmax.f32 %v8032, %v8033
      %v8035 = vsel %vm1194, %v7943, -inf
      %v8036 = vrot.slane %v8035, 4
      %v8037 = vmax.f32 %v8035, %v8036
      %v8038 = vrot.slane %v8037, 2
      %v8039 = vmax.f32 %v8037, %v8038
      %v8040 = vrot.slane %v8039, 1
      %v8041 = vmax.f32 %v8039, %v8040
      %v8042 = vsel %vm1194, %v7944, -inf
      %v8043 = vrot.slane %v8042, 4
      %v8044 = vmax.f32 %v8042, %v8043
      %v8045 = vrot.slane %v8044, 2
      %v8046 = vmax.f32 %v8044, %v8045
      %v8047 = vrot.slane %v8046, 1
      %v8048 = vmax.f32 %v8046, %v8047
      %v8049 = vsel %vm1194, %v7945, -inf
      %v8050 = vrot.slane %v8049, 4
      %v8051 = vmax.f32 %v8049, %v8050
      %v8052 = vrot.slane %v8051, 2
      %v8053 = vmax.f32 %v8051, %v8052
      %v8054 = vrot.slane %v8053, 1
      %v8055 = vmax.f32 %v8053, %v8054
      %v8056 = vsel %vm1194, %v7946, -inf
      %v8057 = vrot.slane %v8056, 4
      %v8058 = vmax.f32 %v8056, %v8057
      %v8059 = vrot.slane %v8058, 2
      %v8060 = vmax.f32 %v8058, %v8059
      %v8061 = vrot.slane %v8060, 1
      %v8062 = vmax.f32 %v8060, %v8061
      %v8063 = vsel %vm1194, %v7947, -inf
      %v8064 = vrot.slane %v8063, 4
      %v8065 = vmax.f32 %v8063, %v8064
      %v8066 = vrot.slane %v8065, 2
      %v8067 = vmax.f32 %v8065, %v8066
      %v8068 = vrot.slane %v8067, 1
      %v8069 = vmax.f32 %v8067, %v8068
      %v8070 = vsel %vm1194, %v7948, -inf
      %v8071 = vrot.slane %v8070, 4
      %v8072 = vmax.f32 %v8070, %v8071
      %v8073 = vrot.slane %v8072, 2
      %v8074 = vmax.f32 %v8072, %v8073
      %v8075 = vrot.slane %v8074, 1
      %v8076 = vmax.f32 %v8074, %v8075
      %v8077 = vsel %vm1194, %v7949, -inf
      %v8078 = vrot.slane %v8077, 4
      %v8079 = vmax.f32 %v8077, %v8078
      %v8080 = vrot.slane %v8079, 2
      %v8081 = vmax.f32 %v8079, %v8080
      %v8082 = vrot.slane %v8081, 1
      %v8083 = vmax.f32 %v8081, %v8082
      %v8084 = vsel %vm1194, %v7950, -inf
      %v8085 = vrot.slane %v8084, 4
      %v8086 = vmax.f32 %v8084, %v8085
      %v8087 = vrot.slane %v8086, 2
      %v8088 = vmax.f32 %v8086, %v8087
      %v8089 = vrot.slane %v8088, 1
      %v8090 = vmax.f32 %v8088, %v8089
      %v8091 = vsel %vm1194, %v7951, -inf
      %v8092 = vrot.slane %v8091, 4
      %v8093 = vmax.f32 %v8091, %v8092
      %v8094 = vrot.slane %v8093, 2
      %v8095 = vmax.f32 %v8093, %v8094
      %v8096 = vrot.slane %v8095, 1
      %v8097 = vmax.f32 %v8095, %v8096
      %v8098 = vsel %vm1194, %v7952, -inf
      %v8099 = vrot.slane %v8098, 4
      %v8100 = vmax.f32 %v8098, %v8099
      %v8101 = vrot.slane %v8100, 2
      %v8102 = vmax.f32 %v8100, %v8101
      %v8103 = vrot.slane %v8102, 1
      %v8104 = vmax.f32 %v8102, %v8103
      %v8105 = vsel %vm1194, %v7953, -inf
      %v8106 = vrot.slane %v8105, 4
      %v8107 = vmax.f32 %v8105, %v8106
      %v8108 = vrot.slane %v8107, 2
      %v8109 = vmax.f32 %v8107, %v8108
      %v8110 = vrot.slane %v8109, 1
      %v8111 = vmax.f32 %v8109, %v8110
      %v8112 = vsel %vm1194, %v7954, -inf
      %v8113 = vrot.slane %v8112, 4
      %v8114 = vmax.f32 %v8112, %v8113
      %v8115 = vrot.slane %v8114, 2
      %v8116 = vmax.f32 %v8114, %v8115
      %v8117 = vrot.slane %v8116, 1
      %v8118 = vmax.f32 %v8116, %v8117
      %v8119 = vsel %vm1194, %v7955, -inf
      %v8120 = vrot.slane %v8119, 4
      %v8121 = vmax.f32 %v8119, %v8120
      %v8122 = vrot.slane %v8121, 2
      %v8123 = vmax.f32 %v8121, %v8122
      %v8124 = vrot.slane %v8123, 1
      %v8125 = vmax.f32 %v8123, %v8124
      %v8126 = vsel %vm1194, %v7956, -inf
      %v8127 = vrot.slane %v8126, 4
      %v8128 = vmax.f32 %v8126, %v8127
      %v8129 = vrot.slane %v8128, 2
      %v8130 = vmax.f32 %v8128, %v8129
      %v8131 = vrot.slane %v8130, 1
      %v8132 = vmax.f32 %v8130, %v8131
      %v8133 = vsel %vm1194, %v7957, -inf
      %v8134 = vrot.slane %v8133, 4
      %v8135 = vmax.f32 %v8133, %v8134
      %v8136 = vrot.slane %v8135, 2
      %v8137 = vmax.f32 %v8135, %v8136
      %v8138 = vrot.slane %v8137, 1
      %v8139 = vmax.f32 %v8137, %v8138
      %v8140 = vsel %vm1194, %v7958, -inf
      %v8141 = vrot.slane %v8140, 4
      %v8142 = vmax.f32 %v8140, %v8141
      %v8143 = vrot.slane %v8142, 2
      %v8144 = vmax.f32 %v8142, %v8143
      %v8145 = vrot.slane %v8144, 1
      %v8146 = vmax.f32 %v8144, %v8145
      %v8147 = vsel %vm1194, %v7959, -inf
      %v8148 = vrot.slane %v8147, 4
      %v8149 = vmax.f32 %v8147, %v8148
      %v8150 = vrot.slane %v8149, 2
      %v8151 = vmax.f32 %v8149, %v8150
      %v8152 = vrot.slane %v8151, 1
      %v8153 = vmax.f32 %v8151, %v8152
      %v8154 = vsel %vm1194, %v7960, -inf
      %v8155 = vrot.slane %v8154, 4
      %v8156 = vmax.f32 %v8154, %v8155
      %v8157 = vrot.slane %v8156, 2
      %v8158 = vmax.f32 %v8156, %v8157
      %v8159 = vrot.slane %v8158, 1
      %v8160 = vmax.f32 %v8158, %v8159
      %v8161 = vsel %vm1194, %v7961, -inf
      %v8162 = vrot.slane %v8161, 4
      %v8163 = vmax.f32 %v8161, %v8162
      %v8164 = vrot.slane %v8163, 2
      %v8165 = vmax.f32 %v8163, %v8164
      %v8166 = vrot.slane %v8165, 1
      %v8167 = vmax.f32 %v8165, %v8166
      %v8168 = vsel %vm1194, %v7962, -inf
      %v8169 = vrot.slane %v8168, 4
      %v8170 = vmax.f32 %v8168, %v8169
      %v8171 = vrot.slane %v8170, 2
      %v8172 = vmax.f32 %v8170, %v8171
      %v8173 = vrot.slane %v8172, 1
      %v8174 = vmax.f32 %v8172, %v8173
      %v8175 = vsel %vm1194, %v7963, -inf
      %v8176 = vrot.slane %v8175, 4
      %v8177 = vmax.f32 %v8175, %v8176
      %v8178 = vrot.slane %v8177, 2
      %v8179 = vmax.f32 %v8177, %v8178
      %v8180 = vrot.slane %v8179, 1
      %v8181 = vmax.f32 %v8179, %v8180
      %v8182 = vsel %vm1194, %v7964, -inf
      %v8183 = vrot.slane %v8182, 4
      %v8184 = vmax.f32 %v8182, %v8183
      %v8185 = vrot.slane %v8184, 2
      %v8186 = vmax.f32 %v8184, %v8185
      %v8187 = vrot.slane %v8186, 1
      %v8188 = vmax.f32 %v8186, %v8187
      %vm8221 = vcmask 1041409
      %v8222 = vsel %vm8221, %v7978, %v7971
      %vm8223 = vcmask 1042434
      %v8224 = vsel %vm8223, %v7985, %v8222
      %vm8225 = vcmask 1043459
      %v8226 = vsel %vm8225, %v7992, %v8224
      %vm8227 = vcmask 1044484
      %v8228 = vsel %vm8227, %v7999, %v8226
      %vm8229 = vcmask 1045509
      %v8230 = vsel %vm8229, %v8006, %v8228
      %vm8231 = vcmask 1046534
      %v8232 = vsel %vm8231, %v8013, %v8230
      %vm8233 = vcmask 1047559
      %v8234 = vsel %vm8233, %v8020, %v8232
      %v8235 = vsel %vm8221, %v8034, %v8027
      %v8236 = vsel %vm8223, %v8041, %v8235
      %v8237 = vsel %vm8225, %v8048, %v8236
      %v8238 = vsel %vm8227, %v8055, %v8237
      %v8239 = vsel %vm8229, %v8062, %v8238
      %v8240 = vsel %vm8231, %v8069, %v8239
      %v8241 = vsel %vm8233, %v8076, %v8240
      %v8242 = vsel %vm8221, %v8090, %v8083
      %v8243 = vsel %vm8223, %v8097, %v8242
      %v8244 = vsel %vm8225, %v8104, %v8243
      %v8245 = vsel %vm8227, %v8111, %v8244
      %v8246 = vsel %vm8229, %v8118, %v8245
      %v8247 = vsel %vm8231, %v8125, %v8246
      %v8248 = vsel %vm8233, %v8132, %v8247
      %v8249 = vsel %vm8221, %v8146, %v8139
      %v8250 = vsel %vm8223, %v8153, %v8249
      %v8251 = vsel %vm8225, %v8160, %v8250
      %v8252 = vsel %vm8227, %v8167, %v8251
      %v8253 = vsel %vm8229, %v8174, %v8252
      %v8254 = vsel %vm8231, %v8181, %v8253
      %v8255 = vsel %vm8233, %v8188, %v8254
      %8260 = vst.msk [vmem:[%s469] sm:$0xff] %vm1194, %v8234
      %8261 = vst.msk [vmem:[%s469 + $0x8] sm:$0xff] %vm1194, %v8241
      %8262 = vst.msk [vmem:[%s469 + $0x10] sm:$0xff] %vm1194, %v8248
      %8263 = vst.msk [vmem:[%s469 + $0x18] sm:$0xff] %vm1194, %v8255
      %s8264 = smul.u32 4, %s25
      %p8265 = scmp.lt.s32.totalorder %s8264, 7
      %s8266 = scalar_select %p8265, %s8264, 7
      %s8267 = smul.addr %s8266, 8
      %s8268 = scalar_lea.vmem %s14, %s8267
      // Predicated region
      $region77: #{tpu_custom_call.1} parent=75 // pred_check
        %p8269 = pneg %p342
      $region78: #{tpu_custom_call.1} parent=75 // pred_check_branch
        %8271 = sbr.rel (%p8269) target = $region80
      $region79: #{tpu_custom_call.1} parent=75 // pred_region
        %s8272 = smul.u32 4, %s25
      $region80: #{tpu_custom_call.1} parent=75 // pred_fallthru
        _
    $region76: #{tpu_custom_call.1} parent=5 // pred_fallthru
      _
    %p8273 = scmp.le.s32.totalorder 2, %s20
    // Predicated region
    $region81: #{tpu_custom_call.1} parent=5 // pred_check
      %p8274 = pneg %p8273
    $region82: #{tpu_custom_call.1} parent=5 // pred_check_branch
      %8276 = sbr.rel (%p8274) target = $region84
    $region83: #{tpu_custom_call.1} parent=5 // pred_region
      %s8277 = ssub.s32 %s20, 2
      // Predicated region
      $region85: #{tpu_custom_call.1} parent=83 // pred_check
        %p8278 = pneg %p348
      $region86: #{tpu_custom_call.1} parent=83 // pred_check_branch
        %8280 = sbr.rel (%p8278) target = $region88
      $region87: #{tpu_custom_call.1} parent=83 // pred_region
        %s8281 = smul.u32 4, %s26
        %p8282 = scmp.lt.s32.totalorder %s8281, 7
        %s8283 = scalar_select %p8282, %s8281, 7
        %s8284 = smul.addr %s8283, 8
        %s8285 = scalar_lea.vmem %s14, %s8284
      $region88: #{tpu_custom_call.1} parent=83 // pred_fallthru
        _
    $region84: #{tpu_custom_call.1} parent=5 // pred_fallthru
      _
  $region6: #{tpu_custom_call.1} parent=0 // loop_footer
    %s24 = sadd.s32 1, %s20
  $region7: #{tpu_custom_call.1} parent=0 // loop_footer_branch
    %19 = sbr.rel target = $region3
  $region8: #{tpu_custom_call.1} parent=0 // loop_exit
    _

</llo_original>
